<compile_context>
chip_gen: v6e
topology: v6e:2x2x1
jax: 0.10.0
libtpu: 0.0.40
codegen_flags: <defaults>
</compile_context>

<pallas_src>
import functools
import numpy as np
import jax
import jax.numpy as jnp
from jax import lax
from jax.experimental import pallas as pl
from jax.experimental.pallas import tpu as pltpu

EPS = 1e-5          # torch.nn.LayerNorm default
NEG = -1e9          # finite stand-in for -inf in the shift masks (same softmax result)


# ----------------------------- math helpers -----------------------------

def _layernorm(x, g, b):
    mu = jnp.mean(x, axis=-1, keepdims=True)
    xc = x - mu
    var = jnp.mean(xc * xc, axis=-1, keepdims=True)
    return xc * lax.rsqrt(var + EPS) * g + b


def _gelu_tanh(x):
    # TODO(synk): torch nn.GELU default is the exact-erf form; the tanh form used
    # here maps to the EUP and deviates by <~1e-3, inside the accuracy budget.
    c = 0.7978845608028654  # sqrt(2/pi)
    return 0.5 * x * (1.0 + jnp.tanh(c * (x + 0.044715 * x * x * x)))


def _gelu_erf(x):  # exact form, used only in the pure-JAX reference
    return 0.5 * x * (1.0 + lax.erf(x * 0.7071067811865476))


# ------------------------------- fused kernel --------------------------------

def swin_block_kernel(x_ref, bias_ref, g1_ref, b1_ref, wq_ref, wk_ref, wv_ref,
                      wo_ref, bo_ref, g2_ref, b2_ref, w1_ref, bm1_ref,
                      w2_ref, bm2_ref, o_ref, *, heads, head_dim, win_src):
    """Whole SwinBlock3D for one batch element, tokens in shifted window layout.

    x_ref   : (W*N, dim)   window-partitioned (already cyclically shifted) tokens
    bias_ref: (W, N, N)    pos_bias + shift mask, per OUTPUT window
    wq/wk/wv: (heads, dim, hd)   (scale folded into wq)
    wo      : (inner, dim) ; bo (1, dim)
    w1/w2   : MLP weights ; bm1/bm2 their biases
    o_ref   : (W*N, dim)   block output (still in shifted window layout)
    """
    n_win, N, _ = bias_ref.shape

    x = x_ref[...].astype(jnp.float32)                        # (W*N, dim)
    xn = _layernorm(x, g1_ref[...], b1_ref[...])
    xn_bf = xn.astype(jnp.bfloat16)

    # q/k read from the SOURCE window of each output window (shifted-window quirk).
    if tuple(win_src) == tuple(range(n_win)):
        xn_src = xn_bf
    else:
        xn_src = jnp.concatenate(
            [xn_bf[s * N:(s + 1) * N, :] for s in win_src], axis=0)

    bias = bias_ref[...]                                       # (W, N, N) f32

    head_outs = []
    for h in range(heads):
        q = jnp.dot(xn_src, wq_ref[h].astype(jnp.bfloat16),    # scale pre-folded
                    preferred_element_type=jnp.float32)
        k = jnp.dot(xn_src, wk_ref[h].astype(jnp.bfloat16),
                    preferred_element_type=jnp.float32)
        v = jnp.dot(xn_bf, wv_ref[h].astype(jnp.bfloat16),
                    preferred_element_type=jnp.float32)
        q = q.reshape(n_win, N, head_dim).astype(jnp.bfloat16)
        k = k.reshape(n_win, N, head_dim).astype(jnp.bfloat16)
        v = v.reshape(n_win, N, head_dim).astype(jnp.bfloat16)

        # batched over all windows at once
        dots = lax.dot_general(q, k, (((2,), (2,)), ((0,), (0,))),
                               preferred_element_type=jnp.float32) + bias   # (W,N,N)
        m = jnp.max(dots, axis=-1, keepdims=True)
        p = jnp.exp(dots - m)
        l = jnp.sum(p, axis=-1, keepdims=True)
        attn = (p * pl.reciprocal(l, approx=True)).astype(jnp.bfloat16)
        oh = lax.dot_general(attn, v, (((2,), (1,)), ((0,), (0,))),
                             preferred_element_type=jnp.float32)            # (W,N,hd)
        head_outs.append(oh.reshape(n_win * N, head_dim))

    inner = jnp.concatenate(head_outs, axis=-1)                 # (W*N, heads*hd)
    att = jnp.dot(inner.astype(jnp.bfloat16), wo_ref[...].astype(jnp.bfloat16),
                  preferred_element_type=jnp.float32) + bo_ref[...]

    # ---- fused MLP block (per-token ops commute with host-side unshift) ----
    x1 = att + x
    xn2 = _layernorm(x1, g2_ref[...], b2_ref[...])
    hid = jnp.dot(xn2.astype(jnp.bfloat16), w1_ref[...].astype(jnp.bfloat16),
                  preferred_element_type=jnp.float32) + bm1_ref[...]
    hid = _gelu_tanh(hid)
    y = jnp.dot(hid.astype(jnp.bfloat16), w2_ref[...].astype(jnp.bfloat16),
                preferred_element_type=jnp.float32) + bm2_ref[...]
    o_ref[...] = (x1 + y).astype(o_ref.dtype)


# --------------------------- pallas_call wrapper -----------------------------

_PARAM_ORDER = ("bias", "ln1_g", "ln1_b", "wq", "wk", "wv", "wo", "b_out",
                "ln2_g", "ln2_b", "w1", "b1", "w2", "b2")


def _const_spec(a):
    """Small constant operand: full array resident every grid step."""
    nd = a.ndim
    return pl.BlockSpec(a.shape, lambda i, _nd=nd: (0,) * _nd)


def _swin_fused_call(xflat, params, cfg, win_src):
    B, L, dim = xflat.shape
    heads, hd = cfg["heads"], cfg["head_dim"]
    n_win, N, _ = params["bias"].shape
    mlp_dim = params["w1"].shape[1]
    inner = heads * hd

    flops = B * (heads * (3 * 2 * L * dim * hd + 2 * 2 * n_win * N * N * hd)
                 + 2 * L * inner * dim
                 + 2 * L * dim * mlp_dim + 2 * L * mlp_dim * dim)
    transcendentals = B * (heads * n_win * N * N + L * mlp_dim)
    weight_bytes = sum(int(np.prod(params[k].shape)) * 4 for k in _PARAM_ORDER)
    bytes_accessed = B * (2 * L * dim * 4) + weight_bytes

    kern = functools.partial(swin_block_kernel, heads=heads, head_dim=hd,
                             win_src=tuple(win_src))
    return pl.pallas_call(
        kern,
        out_shape=jax.ShapeDtypeStruct((B, L, dim), xflat.dtype),
        grid=(B,),
        in_specs=[pl.BlockSpec((None, L, dim), lambda i: (i, 0, 0))] +
                 [_const_spec(params[k]) for k in _PARAM_ORDER],
        out_specs=pl.BlockSpec((None, L, dim), lambda i: (i, 0, 0)),
        compiler_params=pltpu.CompilerParams(dimension_semantics=("parallel",)),
        cost_estimate=pl.CostEstimate(flops=flops, transcendentals=transcendentals,
                                      bytes_accessed=bytes_accessed),
    )(xflat, *[params[k] for k in _PARAM_ORDER])


# ------------------------------ forward (glue) --------------------------------

def window_partition(t, nw, ws):
    b, c = t.shape[0], t.shape[-1]
    nwx, nwy, nwz = nw
    wx, wy, wz = ws
    t = t.reshape(b, nwx, wx, nwy, wy, nwz, wz, c)
    t = jnp.transpose(t, (0, 1, 3, 5, 2, 4, 6, 7))
    return t.reshape(b, nwx * nwy * nwz * wx * wy * wz, c)


def window_unpartition(t, nw, ws):
    b, c = t.shape[0], t.shape[-1]
    nwx, nwy, nwz = nw
    wx, wy, wz = ws
    t = t.reshape(b, nwx, nwy, nwz, wx, wy, wz, c)
    t = jnp.transpose(t, (0, 1, 4, 2, 5, 3, 6, 7))
    return t.reshape(b, nwx * wx, nwy * wy, nwz * wz, c)


def source_window_perm(nw, shifted):
    """source window (flat) of every output window (the reference's einops quirk)."""
    nwx, nwy, nwz = nw
    if not shifted:
        return tuple(range(nwx * nwy * nwz))
    assert nwx == nwy == nwz, "shifted SwinBlock3D relabeling requires nwx == nwy == nwz"
    perm = []
    for ix in range(nwx):
        for iy in range(nwy):
            for iz in range(nwz):
                perm.append(iy * (nwy * nwz) + iz * nwz + ix)
    return tuple(perm)


def swin_block_forward(x, params, cfg):
    b, nx, ny, nz, dim = x.shape
    wx, wy, wz = cfg["window"]
    shifted = cfg["shifted"]
    dx, dy, dz = cfg["disp"]
    nwx, nwy, nwz = nx // wx, ny // wy, nz // wz
    win_src = source_window_perm((nwx, nwy, nwz), shifted)

    xs = jnp.roll(x, (-dx, -dy, -dz), axis=(1, 2, 3)) if shifted else x
    xflat = window_partition(xs, (nwx, nwy, nwz), (wx, wy, wz))     # (b, W*N, dim)

    oflat = _swin_fused_call(xflat, params, cfg, win_src)           # shifted window layout

    o = window_unpartition(oflat, (nwx, nwy, nwz), (wx, wy, wz))
    if shifted:
        o = jnp.roll(o, (dx, dy, dz), axis=(1, 2, 3))
    return o


# ----------------------------- constant builders -------------------------------

def create_mask3d(ws, disp, x_shift, y_shift, z_shift):
    wx, wy, wz = ws
    mask = np.zeros((wx, wy, wz, wx, wy, wz), np.float32)
    dx, dy, dz = disp
    if x_shift:
        mask[-dx:, :, :, :-dx, :, :] = NEG
        mask[:-dx, :, :, -dx:, :, :] = NEG
    if y_shift:
        mask[:, -dy:, :, :, :-dy, :] = NEG
        mask[:, :-dy, :, :, -dy:, :] = NEG
    if z_shift:
        mask[:, :, -dz:, :, :, :-dz] = NEG
        mask[:, :, :-dz, :, :, -dz:] = NEG
    N = wx * wy * wz
    return mask.reshape(N, N)


# ------------------------------ pure-JAX reference ------------------------------

def reference_forward(x, rp, cfg, pos_bias, mask_all, win_src):
    """Mirror of the torch module (incl. its shifted-window einops quirk), pure jnp."""
    b, nx, ny, nz, dim = x.shape
    wx, wy, wz = cfg["window"]
    heads, hd = cfg["heads"], cfg["head_dim"]
    shifted = cfg["shifted"]
    dx, dy, dz = cfg["disp"]
    nwx, nwy, nwz = nx // wx, ny // wy, nz // wz
    W, N, M = nwx * nwy * nwz, wx * wy * wz, b * nx * ny * nz
    inner = heads * hd
    scale = hd ** -0.5

    x0 = x
    xs = jnp.roll(x0, (-dx, -dy, -dz), (1, 2, 3)) if shifted else x0
    xn = _layernorm(xs.reshape(M, dim), rp["ln1_g"], rp["ln1_b"])
    qkv = jnp.dot(xn, rp["w_qkv"]).reshape(b, nx, ny, nz, 3 * inner)
    q, k, v = jnp.split(qkv, 3, axis=-1)

    def to_win(t):
        t = t.reshape(b, nwx, wx, nwy, wy, nwz, wz, heads, hd)
        t = jnp.transpose(t, (0, 7, 1, 3, 5, 2, 4, 6, 8))
        return t.reshape(b * heads, W, N, hd)

    q, k, v = map(to_win, (q, k, v))
    win_src = np.asarray(win_src)
    if shifted:
        q, k = q[:, win_src], k[:, win_src]
        mask = jnp.asarray(mask_all)[win_src]
    else:
        mask = jnp.zeros((W, N, N), jnp.float32)
    dots = jnp.einsum('bwid,bwjd->bwij', q, k) * scale + pos_bias + mask
    attn = jax.nn.softmax(dots, axis=-1)
    o = jnp.einsum('bwij,bwjd->bwid', attn, v)
    o = o.reshape(b, heads, nwx, nwy, nwz, wx, wy, wz, hd)
    o = jnp.transpose(o, (0, 2, 5, 3, 6, 4, 7, 1, 8)).reshape(M, inner)
    o = jnp.dot(o, rp["w_out"]) + rp["b_out"]
    o = o.reshape(b, nx, ny, nz, dim)
    if shifted:
        o = jnp.roll(o, (dx, dy, dz), (1, 2, 3))
    x1 = (o + x0).reshape(M, dim)
    h = _gelu_erf(jnp.dot(_layernorm(x1, rp["ln2_g"], rp["ln2_b"]), rp["w1"]) + rp["b1"])
    y = jnp.dot(h, rp["w2"]) + rp["b2"]
    return (x1 + y).reshape(b, nx, ny, nz, dim)


# ----------------------------------- main --------------------------------------

if __name__ == "__main__":
    # SwinBlock3D(dim=32, heads=2, head_dim=16, mlp_dim=64, window_size=4,
    #             relative_pos_embedding=True, dropout=0.0), input (2, 8, 8, 8, 32).
    B, S, DIM = 2, 8, 32
    HEADS, HEAD_DIM, MLP_DIM = 2, 16, 64
    WINDOW = 4

    wx = wy = wz = WINDOW
    nwx = nwy = nwz = S // WINDOW
    W, N = nwx * nwy * nwz, wx * wy * wz
    disp = (wx // 2, wy // 2, wz // 2)
    inner = HEADS * HEAD_DIM
    scale = HEAD_DIM ** -0.5

    key = jax.random.PRNGKey(0)
    ks = jax.random.split(key, 10)

    # -------- relative position bias table + gather (host-side constants) --------
    coords = np.array([[a, c, d] for a in range(wx) for c in range(wy) for d in range(wz)])
    rel = coords[None, :, :] - coords[:, None, :]
    rel[..., 0] += wx - 1
    rel[..., 1] += wy - 1
    rel[..., 2] += wz - 1
    pos_emb = jax.random.normal(ks[8], (2 * wx - 1, 2 * wy - 1, 2 * wz - 1), jnp.float32)
    pos_bias = pos_emb[rel[..., 0], rel[..., 1], rel[..., 2]]        # (N, N)

    # -------- module weights --------
    w_qkv = 0.05 * jax.random.normal(ks[0], (DIM, 3 * inner), jnp.float32)   # to_qkv (no bias)
    w_out = 0.05 * jax.random.normal(ks[1], (inner, DIM), jnp.float32)
    b_out = 0.01 * jax.random.normal(ks[2], (1, DIM), jnp.float32)
    w1 = 0.05 * jax.random.normal(ks[3], (DIM, MLP_DIM), jnp.float32)
    b1 = 0.01 * jax.random.normal(ks[4], (1, MLP_DIM), jnp.float32)
    w2 = 0.05 * jax.random.normal(ks[5], (MLP_DIM, DIM), jnp.float32)
    b2 = 0.01 * jax.random.normal(ks[6], (1, DIM), jnp.float32)
    x = jax.random.normal(ks[7], (B, S, S, S, DIM), jnp.float32)

    # per-head projection slices; attention scale folded into wq at prep time
    wq = (w_qkv[:, 0 * inner:1 * inner] * scale).reshape(DIM, HEADS, HEAD_DIM).transpose(1, 0, 2)
    wk = w_qkv[:, 1 * inner:2 * inner].reshape(DIM, HEADS, HEAD_DIM).transpose(1, 0, 2)
    wv = w_qkv[:, 2 * inner:3 * inner].reshape(DIM, HEADS, HEAD_DIM).transpose(1, 0, 2)

    base_params = dict(
        ln1_g=jnp.ones((1, DIM), jnp.float32), ln1_b=jnp.zeros((1, DIM), jnp.float32),
        wq=wq, wk=wk, wv=wv, wo=w_out, b_out=b_out,
        ln2_g=jnp.ones((1, DIM), jnp.float32), ln2_b=jnp.zeros((1, DIM), jnp.float32),
        w1=w1, b1=b1, w2=w2, b2=b2)
    rp = dict(ln1_g=base_params["ln1_g"], ln1_b=base_params["ln1_b"], w_qkv=w_qkv,
              w_out=w_out, b_out=b_out, ln2_g=base_params["ln2_g"],
              ln2_b=base_params["ln2_b"], w1=w1, b1=b1, w2=w2, b2=b2)

    for shifted in (True, False):
        win_src = source_window_perm((nwx, nwy, nwz), shifted)

        mask_all = np.zeros((W, N, N), np.float32)          # per SOURCE window
        if shifted:
            xm = create_mask3d((wx, wy, wz), disp, True, False, False)
            ym = create_mask3d((wx, wy, wz), disp, False, True, False)
            zm = create_mask3d((wx, wy, wz), disp, False, False, True)
            for wi in range(W):
                xw_, r = divmod(wi, nwy * nwz)
                yw_, zw_ = divmod(r, nwz)
                if xw_ == nwx - 1: mask_all[wi] += xm
                if yw_ == nwy - 1: mask_all[wi] += ym
                if zw_ == nwz - 1: mask_all[wi] += zm

        # pre-summed per-OUTPUT-window bias = pos_bias + mask(source window)
        bias_all = jnp.asarray(mask_all[np.asarray(win_src)]) + pos_bias[None]   # (W,N,N)
        params = dict(base_params, bias=bias_all)

        cfg = dict(window=(wx, wy, wz), heads=HEADS, head_dim=HEAD_DIM,
                   shifted=shifted, disp=disp)

        fwd = jax.jit(lambda xx, pp, _cfg=cfg: swin_block_forward(xx, pp, _cfg))
        out = jax.block_until_ready(fwd(x, params))

        assert out.shape == x.shape, out.shape
        assert bool(jnp.all(jnp.isfinite(out)))

        # correctness check against a pure-JAX mirror of the torch module
        with jax.default_matmul_precision("highest"):
            ref = reference_forward(x, rp, cfg, pos_bias, mask_all, win_src)
        err = float(jnp.max(jnp.abs(out - ref)))
        assert err < 2e-2, f"shifted={shifted}: max abs error vs reference {err}"

    print("KERNEL_OK")
</pallas_src>

<mosaic_0001>
module attributes {stable_mosaic.version = 11 : i64} {
  func.func @swin_block_kernel(%arg0: i32, %arg1: memref<1x512x32xf32, #tpu.memory_space<vmem>>, %arg2: memref<8x64x64xf32, #tpu.memory_space<vmem>>, %arg3: memref<1x32xf32, #tpu.memory_space<vmem>>, %arg4: memref<1x32xf32, #tpu.memory_space<vmem>>, %arg5: memref<2x32x16xf32, #tpu.memory_space<vmem>>, %arg6: memref<2x32x16xf32, #tpu.memory_space<vmem>>, %arg7: memref<2x32x16xf32, #tpu.memory_space<vmem>>, %arg8: memref<32x32xf32, #tpu.memory_space<vmem>>, %arg9: memref<1x32xf32, #tpu.memory_space<vmem>>, %arg10: memref<1x32xf32, #tpu.memory_space<vmem>>, %arg11: memref<1x32xf32, #tpu.memory_space<vmem>>, %arg12: memref<32x64xf32, #tpu.memory_space<vmem>>, %arg13: memref<1x64xf32, #tpu.memory_space<vmem>>, %arg14: memref<64x32xf32, #tpu.memory_space<vmem>>, %arg15: memref<1x32xf32, #tpu.memory_space<vmem>>, %arg16: memref<1x512x32xf32, #tpu.memory_space<vmem>>) attributes {dimension_semantics = [#tpu.dimension_semantics<parallel>], iteration_bounds = array<i64: 2>, scalar_prefetch = 0 : i64, scratch_operands = 0 : i64, tpu.core_type = #tpu.core_type<tc>, window_params = [{transform_indices = @transform_0, window_bounds = array<i64: 1, 512, 32>}, {pipeline_mode = #tpu.pipeline_mode<synchronous>, transform_indices = @transform_1, window_bounds = array<i64: 8, 64, 64>}, {pipeline_mode = #tpu.pipeline_mode<synchronous>, transform_indices = @transform_2, window_bounds = array<i64: 1, 32>}, {pipeline_mode = #tpu.pipeline_mode<synchronous>, transform_indices = @transform_3, window_bounds = array<i64: 1, 32>}, {pipeline_mode = #tpu.pipeline_mode<synchronous>, transform_indices = @transform_4, window_bounds = array<i64: 2, 32, 16>}, {pipeline_mode = #tpu.pipeline_mode<synchronous>, transform_indices = @transform_5, window_bounds = array<i64: 2, 32, 16>}, {pipeline_mode = #tpu.pipeline_mode<synchronous>, transform_indices = @transform_6, window_bounds = array<i64: 2, 32, 16>}, {pipeline_mode = #tpu.pipeline_mode<synchronous>, transform_indices = @transform_7, window_bounds = array<i64: 32, 32>}, {pipeline_mode = #tpu.pipeline_mode<synchronous>, transform_indices = @transform_8, window_bounds = array<i64: 1, 32>}, {pipeline_mode = #tpu.pipeline_mode<synchronous>, transform_indices = @transform_9, window_bounds = array<i64: 1, 32>}, {pipeline_mode = #tpu.pipeline_mode<synchronous>, transform_indices = @transform_10, window_bounds = array<i64: 1, 32>}, {pipeline_mode = #tpu.pipeline_mode<synchronous>, transform_indices = @transform_11, window_bounds = array<i64: 32, 64>}, {pipeline_mode = #tpu.pipeline_mode<synchronous>, transform_indices = @transform_12, window_bounds = array<i64: 1, 64>}, {pipeline_mode = #tpu.pipeline_mode<synchronous>, transform_indices = @transform_13, window_bounds = array<i64: 64, 32>}, {pipeline_mode = #tpu.pipeline_mode<synchronous>, transform_indices = @transform_14, window_bounds = array<i64: 1, 32>}, {transform_indices = @transform_15, window_bounds = array<i64: 1, 512, 32>}]} {
    %c0 = arith.constant 0 : index
    %c0_0 = arith.constant 0 : index
    %c0_1 = arith.constant 0 : index
    %0 = vector.load %arg1[%c0, %c0_0, %c0_1] : memref<1x512x32xf32, #tpu.memory_space<vmem>>, vector<1x512x32xf32>
    %1 = vector.shape_cast %0 : vector<1x512x32xf32> to vector<512x32xf32>
    %c0_2 = arith.constant 0 : index
    %c0_3 = arith.constant 0 : index
    %2 = vector.load %arg3[%c0_2, %c0_3] : memref<1x32xf32, #tpu.memory_space<vmem>>, vector<1x32xf32>
    %c0_4 = arith.constant 0 : index
    %c0_5 = arith.constant 0 : index
    %3 = vector.load %arg4[%c0_4, %c0_5] : memref<1x32xf32, #tpu.memory_space<vmem>>, vector<1x32xf32>
    %cst = arith.constant dense<0.000000e+00> : vector<512xf32>
    %4 = vector.multi_reduction <add>, %1, %cst [1] : vector<512x32xf32> to vector<512xf32>
    %5 = vector.shape_cast %4 : vector<512xf32> to vector<512x1xf32>
    %cst_6 = arith.constant 3.200000e+01 : f32
    %6 = vector.broadcast %cst_6 : f32 to vector<512x1xf32>
    %7 = arith.divf %5, %6 : vector<512x1xf32>
    %8 = vector.broadcast %7 : vector<512x1xf32> to vector<512x32xf32>
    %9 = arith.subf %1, %8 : vector<512x32xf32>
    %10 = arith.mulf %9, %9 : vector<512x32xf32>
    %cst_7 = arith.constant dense<0.000000e+00> : vector<512xf32>
    %11 = vector.multi_reduction <add>, %10, %cst_7 [1] : vector<512x32xf32> to vector<512xf32>
    %12 = vector.shape_cast %11 : vector<512xf32> to vector<512x1xf32>
    %cst_8 = arith.constant 3.200000e+01 : f32
    %13 = vector.broadcast %cst_8 : f32 to vector<512x1xf32>
    %14 = arith.divf %12, %13 : vector<512x1xf32>
    %cst_9 = arith.constant 9.99999974E-6 : f32
    %15 = vector.broadcast %cst_9 : f32 to vector<512x1xf32>
    %16 = arith.addf %14, %15 : vector<512x1xf32>
    %17 = math.rsqrt %16 : vector<512x1xf32>
    %18 = vector.broadcast %17 : vector<512x1xf32> to vector<512x32xf32>
    %19 = arith.mulf %9, %18 : vector<512x32xf32>
    %20 = vector.broadcast %2 : vector<1x32xf32> to vector<512x32xf32>
    %21 = arith.mulf %19, %20 : vector<512x32xf32>
    %22 = vector.broadcast %3 : vector<1x32xf32> to vector<512x32xf32>
    %23 = arith.addf %21, %22 : vector<512x32xf32>
    %24 = arith.truncf %23 : vector<512x32xf32> to vector<512x32xbf16>
    %25 = vector.extract_strided_slice %24 {offsets = [0, 0], sizes = [64, 32], strides = [1, 1]} : vector<512x32xbf16> to vector<64x32xbf16>
    %26 = vector.extract_strided_slice %24 {offsets = [128, 0], sizes = [64, 32], strides = [1, 1]} : vector<512x32xbf16> to vector<64x32xbf16>
    %27 = vector.extract_strided_slice %24 {offsets = [256, 0], sizes = [64, 32], strides = [1, 1]} : vector<512x32xbf16> to vector<64x32xbf16>
    %28 = vector.extract_strided_slice %24 {offsets = [384, 0], sizes = [64, 32], strides = [1, 1]} : vector<512x32xbf16> to vector<64x32xbf16>
    %29 = vector.extract_strided_slice %24 {offsets = [64, 0], sizes = [64, 32], strides = [1, 1]} : vector<512x32xbf16> to vector<64x32xbf16>
    %30 = vector.extract_strided_slice %24 {offsets = [192, 0], sizes = [64, 32], strides = [1, 1]} : vector<512x32xbf16> to vector<64x32xbf16>
    %31 = vector.extract_strided_slice %24 {offsets = [320, 0], sizes = [64, 32], strides = [1, 1]} : vector<512x32xbf16> to vector<64x32xbf16>
    %32 = vector.extract_strided_slice %24 {offsets = [448, 0], sizes = [64, 32], strides = [1, 1]} : vector<512x32xbf16> to vector<64x32xbf16>
    %33 = tpu.concatenate %25, %26, %27, %28, %29, %30, %31, %32 in 0 : vector<64x32xbf16>, vector<64x32xbf16>, vector<64x32xbf16>, vector<64x32xbf16>, vector<64x32xbf16>, vector<64x32xbf16>, vector<64x32xbf16>, vector<64x32xbf16> -> vector<512x32xbf16>
    %c0_10 = arith.constant 0 : index
    %c0_11 = arith.constant 0 : index
    %c0_12 = arith.constant 0 : index
    %34 = vector.load %arg2[%c0_10, %c0_11, %c0_12] : memref<8x64x64xf32, #tpu.memory_space<vmem>>, vector<8x64x64xf32>
    %c0_13 = arith.constant 0 : index
    %c0_14 = arith.constant 0 : index
    %c0_15 = arith.constant 0 : index
    %35 = vector.load %arg5[%c0_13, %c0_14, %c0_15] : memref<2x32x16xf32, #tpu.memory_space<vmem>>, vector<1x32x16xf32>
    %36 = vector.shape_cast %35 : vector<1x32x16xf32> to vector<32x16xf32>
    %37 = arith.truncf %36 : vector<32x16xf32> to vector<32x16xbf16>
    %cst_16 = arith.constant dense<0.000000e+00> : vector<512x16xf32>
    %38 = tpu.matmul %33, %37, %cst_16 {dimension_numbers = #tpu.dot_dimension_numbers<[1], [0], [0], [1], [0, 0, 1, 1], [], []>} : vector<512x32xbf16>, vector<32x16xbf16>, vector<512x16xf32> -> vector<512x16xf32>
    %c0_17 = arith.constant 0 : index
    %c0_18 = arith.constant 0 : index
    %c0_19 = arith.constant 0 : index
    %39 = vector.load %arg6[%c0_17, %c0_18, %c0_19] : memref<2x32x16xf32, #tpu.memory_space<vmem>>, vector<1x32x16xf32>
    %40 = vector.shape_cast %39 : vector<1x32x16xf32> to vector<32x16xf32>
    %41 = arith.truncf %40 : vector<32x16xf32> to vector<32x16xbf16>
    %cst_20 = arith.constant dense<0.000000e+00> : vector<512x16xf32>
    %42 = tpu.matmul %33, %41, %cst_20 {dimension_numbers = #tpu.dot_dimension_numbers<[1], [0], [0], [1], [0, 0, 1, 1], [], []>} : vector<512x32xbf16>, vector<32x16xbf16>, vector<512x16xf32> -> vector<512x16xf32>
    %c0_21 = arith.constant 0 : index
    %c0_22 = arith.constant 0 : index
    %c0_23 = arith.constant 0 : index
    %43 = vector.load %arg7[%c0_21, %c0_22, %c0_23] : memref<2x32x16xf32, #tpu.memory_space<vmem>>, vector<1x32x16xf32>
    %44 = vector.shape_cast %43 : vector<1x32x16xf32> to vector<32x16xf32>
    %45 = arith.truncf %44 : vector<32x16xf32> to vector<32x16xbf16>
    %cst_24 = arith.constant dense<0.000000e+00> : vector<512x16xf32>
    %46 = tpu.matmul %24, %45, %cst_24 {dimension_numbers = #tpu.dot_dimension_numbers<[1], [0], [0], [1], [0, 0, 1, 1], [], []>} : vector<512x32xbf16>, vector<32x16xbf16>, vector<512x16xf32> -> vector<512x16xf32>
    %47 = vector.shape_cast %38 : vector<512x16xf32> to vector<8x64x16xf32>
    %48 = arith.truncf %47 : vector<8x64x16xf32> to vector<8x64x16xbf16>
    %49 = vector.shape_cast %42 : vector<512x16xf32> to vector<8x64x16xf32>
    %50 = arith.truncf %49 : vector<8x64x16xf32> to vector<8x64x16xbf16>
    %51 = vector.shape_cast %46 : vector<512x16xf32> to vector<8x64x16xf32>
    %52 = arith.truncf %51 : vector<8x64x16xf32> to vector<8x64x16xbf16>
    %cst_25 = arith.constant dense<0.000000e+00> : vector<8x64x64xf32>
    %53 = tpu.matmul %48, %50, %cst_25 {dimension_numbers = #tpu.dot_dimension_numbers<[2], [2], [1], [1], [0, 0, 0, 1, 1, 1], [0], [0]>} : vector<8x64x16xbf16>, vector<8x64x16xbf16>, vector<8x64x64xf32> -> vector<8x64x64xf32>
    %54 = arith.addf %53, %34 : vector<8x64x64xf32>
    %cst_26 = arith.constant dense<0xFF800000> : vector<8x64xf32>
    %55 = vector.multi_reduction <maximumf>, %54, %cst_26 [2] : vector<8x64x64xf32> to vector<8x64xf32>
    %56 = vector.shape_cast %55 : vector<8x64xf32> to vector<8x64x1xf32>
    %57 = vector.broadcast %56 : vector<8x64x1xf32> to vector<8x64x64xf32>
    %58 = arith.subf %54, %57 : vector<8x64x64xf32>
    %59 = math.exp %58 : vector<8x64x64xf32>
    %cst_27 = arith.constant dense<0.000000e+00> : vector<8x64xf32>
    %60 = vector.multi_reduction <add>, %59, %cst_27 [2] : vector<8x64x64xf32> to vector<8x64xf32>
    %61 = vector.shape_cast %60 : vector<8x64xf32> to vector<8x64x1xf32>
    %62 = tpu.reciprocal %61 {approx = true} : vector<8x64x1xf32> -> vector<8x64x1xf32>
    %63 = vector.broadcast %62 : vector<8x64x1xf32> to vector<8x64x64xf32>
    %64 = arith.mulf %59, %63 : vector<8x64x64xf32>
    %65 = arith.truncf %64 : vector<8x64x64xf32> to vector<8x64x64xbf16>
    %cst_28 = arith.constant dense<0.000000e+00> : vector<8x64x16xf32>
    %66 = tpu.matmul %65, %52, %cst_28 {dimension_numbers = #tpu.dot_dimension_numbers<[2], [1], [1], [2], [0, 0, 0, 1, 1, 2], [0], [0]>} : vector<8x64x64xbf16>, vector<8x64x16xbf16>, vector<8x64x16xf32> -> vector<8x64x16xf32>
    %67 = vector.shape_cast %66 : vector<8x64x16xf32> to vector<512x16xf32>
    %c1 = arith.constant 1 : index
    %c0_29 = arith.constant 0 : index
    %c0_30 = arith.constant 0 : index
    %68 = vector.load %arg5[%c1, %c0_29, %c0_30] : memref<2x32x16xf32, #tpu.memory_space<vmem>>, vector<1x32x16xf32>
    %69 = vector.shape_cast %68 : vector<1x32x16xf32> to vector<32x16xf32>
    %70 = arith.truncf %69 : vector<32x16xf32> to vector<32x16xbf16>
    %cst_31 = arith.constant dense<0.000000e+00> : vector<512x16xf32>
    %71 = tpu.matmul %33, %70, %cst_31 {dimension_numbers = #tpu.dot_dimension_numbers<[1], [0], [0], [1], [0, 0, 1, 1], [], []>} : vector<512x32xbf16>, vector<32x16xbf16>, vector<512x16xf32> -> vector<512x16xf32>
    %c1_32 = arith.constant 1 : index
    %c0_33 = arith.constant 0 : index
    %c0_34 = arith.constant 0 : index
    %72 = vector.load %arg6[%c1_32, %c0_33, %c0_34] : memref<2x32x16xf32, #tpu.memory_space<vmem>>, vector<1x32x16xf32>
    %73 = vector.shape_cast %72 : vector<1x32x16xf32> to vector<32x16xf32>
    %74 = arith.truncf %73 : vector<32x16xf32> to vector<32x16xbf16>
    %cst_35 = arith.constant dense<0.000000e+00> : vector<512x16xf32>
    %75 = tpu.matmul %33, %74, %cst_35 {dimension_numbers = #tpu.dot_dimension_numbers<[1], [0], [0], [1], [0, 0, 1, 1], [], []>} : vector<512x32xbf16>, vector<32x16xbf16>, vector<512x16xf32> -> vector<512x16xf32>
    %c1_36 = arith.constant 1 : index
    %c0_37 = arith.constant 0 : index
    %c0_38 = arith.constant 0 : index
    %76 = vector.load %arg7[%c1_36, %c0_37, %c0_38] : memref<2x32x16xf32, #tpu.memory_space<vmem>>, vector<1x32x16xf32>
    %77 = vector.shape_cast %76 : vector<1x32x16xf32> to vector<32x16xf32>
    %78 = arith.truncf %77 : vector<32x16xf32> to vector<32x16xbf16>
    %cst_39 = arith.constant dense<0.000000e+00> : vector<512x16xf32>
    %79 = tpu.matmul %24, %78, %cst_39 {dimension_numbers = #tpu.dot_dimension_numbers<[1], [0], [0], [1], [0, 0, 1, 1], [], []>} : vector<512x32xbf16>, vector<32x16xbf16>, vector<512x16xf32> -> vector<512x16xf32>
    %80 = vector.shape_cast %71 : vector<512x16xf32> to vector<8x64x16xf32>
    %81 = arith.truncf %80 : vector<8x64x16xf32> to vector<8x64x16xbf16>
    %82 = vector.shape_cast %75 : vector<512x16xf32> to vector<8x64x16xf32>
    %83 = arith.truncf %82 : vector<8x64x16xf32> to vector<8x64x16xbf16>
    %84 = vector.shape_cast %79 : vector<512x16xf32> to vector<8x64x16xf32>
    %85 = arith.truncf %84 : vector<8x64x16xf32> to vector<8x64x16xbf16>
    %cst_40 = arith.constant dense<0.000000e+00> : vector<8x64x64xf32>
    %86 = tpu.matmul %81, %83, %cst_40 {dimension_numbers = #tpu.dot_dimension_numbers<[2], [2], [1], [1], [0, 0, 0, 1, 1, 1], [0], [0]>} : vector<8x64x16xbf16>, vector<8x64x16xbf16>, vector<8x64x64xf32> -> vector<8x64x64xf32>
    %87 = arith.addf %86, %34 : vector<8x64x64xf32>
    %cst_41 = arith.constant dense<0xFF800000> : vector<8x64xf32>
    %88 = vector.multi_reduction <maximumf>, %87, %cst_41 [2] : vector<8x64x64xf32> to vector<8x64xf32>
    %89 = vector.shape_cast %88 : vector<8x64xf32> to vector<8x64x1xf32>
    %90 = vector.broadcast %89 : vector<8x64x1xf32> to vector<8x64x64xf32>
    %91 = arith.subf %87, %90 : vector<8x64x64xf32>
    %92 = math.exp %91 : vector<8x64x64xf32>
    %cst_42 = arith.constant dense<0.000000e+00> : vector<8x64xf32>
    %93 = vector.multi_reduction <add>, %92, %cst_42 [2] : vector<8x64x64xf32> to vector<8x64xf32>
    %94 = vector.shape_cast %93 : vector<8x64xf32> to vector<8x64x1xf32>
    %95 = tpu.reciprocal %94 {approx = true} : vector<8x64x1xf32> -> vector<8x64x1xf32>
    %96 = vector.broadcast %95 : vector<8x64x1xf32> to vector<8x64x64xf32>
    %97 = arith.mulf %92, %96 : vector<8x64x64xf32>
    %98 = arith.truncf %97 : vector<8x64x64xf32> to vector<8x64x64xbf16>
    %cst_43 = arith.constant dense<0.000000e+00> : vector<8x64x16xf32>
    %99 = tpu.matmul %98, %85, %cst_43 {dimension_numbers = #tpu.dot_dimension_numbers<[2], [1], [1], [2], [0, 0, 0, 1, 1, 2], [0], [0]>} : vector<8x64x64xbf16>, vector<8x64x16xbf16>, vector<8x64x16xf32> -> vector<8x64x16xf32>
    %100 = vector.shape_cast %99 : vector<8x64x16xf32> to vector<512x16xf32>
    %101 = tpu.concatenate %67, %100 in 1 : vector<512x16xf32>, vector<512x16xf32> -> vector<512x32xf32>
    %102 = arith.truncf %101 : vector<512x32xf32> to vector<512x32xbf16>
    %c0_44 = arith.constant 0 : index
    %c0_45 = arith.constant 0 : index
    %103 = vector.load %arg8[%c0_44, %c0_45] : memref<32x32xf32, #tpu.memory_space<vmem>>, vector<32x32xf32>
    %104 = arith.truncf %103 : vector<32x32xf32> to vector<32x32xbf16>
    %cst_46 = arith.constant dense<0.000000e+00> : vector<512x32xf32>
    %105 = tpu.matmul %102, %104, %cst_46 {dimension_numbers = #tpu.dot_dimension_numbers<[1], [0], [0], [1], [0, 0, 1, 1], [], []>} : vector<512x32xbf16>, vector<32x32xbf16>, vector<512x32xf32> -> vector<512x32xf32>
    %c0_47 = arith.constant 0 : index
    %c0_48 = arith.constant 0 : index
    %106 = vector.load %arg9[%c0_47, %c0_48] : memref<1x32xf32, #tpu.memory_space<vmem>>, vector<1x32xf32>
    %107 = vector.broadcast %106 : vector<1x32xf32> to vector<512x32xf32>
    %108 = arith.addf %105, %107 : vector<512x32xf32>
    %109 = arith.addf %108, %1 : vector<512x32xf32>
    %c0_49 = arith.constant 0 : index
    %c0_50 = arith.constant 0 : index
    %110 = vector.load %arg10[%c0_49, %c0_50] : memref<1x32xf32, #tpu.memory_space<vmem>>, vector<1x32xf32>
    %c0_51 = arith.constant 0 : index
    %c0_52 = arith.constant 0 : index
    %111 = vector.load %arg11[%c0_51, %c0_52] : memref<1x32xf32, #tpu.memory_space<vmem>>, vector<1x32xf32>
    %cst_53 = arith.constant dense<0.000000e+00> : vector<512xf32>
    %112 = vector.multi_reduction <add>, %109, %cst_53 [1] : vector<512x32xf32> to vector<512xf32>
    %113 = vector.shape_cast %112 : vector<512xf32> to vector<512x1xf32>
    %cst_54 = arith.constant 3.200000e+01 : f32
    %114 = vector.broadcast %cst_54 : f32 to vector<512x1xf32>
    %115 = arith.divf %113, %114 : vector<512x1xf32>
    %116 = vector.broadcast %115 : vector<512x1xf32> to vector<512x32xf32>
    %117 = arith.subf %109, %116 : vector<512x32xf32>
    %118 = arith.mulf %117, %117 : vector<512x32xf32>
    %cst_55 = arith.constant dense<0.000000e+00> : vector<512xf32>
    %119 = vector.multi_reduction <add>, %118, %cst_55 [1] : vector<512x32xf32> to vector<512xf32>
    %120 = vector.shape_cast %119 : vector<512xf32> to vector<512x1xf32>
    %cst_56 = arith.constant 3.200000e+01 : f32
    %121 = vector.broadcast %cst_56 : f32 to vector<512x1xf32>
    %122 = arith.divf %120, %121 : vector<512x1xf32>
    %cst_57 = arith.constant 9.99999974E-6 : f32
    %123 = vector.broadcast %cst_57 : f32 to vector<512x1xf32>
    %124 = arith.addf %122, %123 : vector<512x1xf32>
    %125 = math.rsqrt %124 : vector<512x1xf32>
    %126 = vector.broadcast %125 : vector<512x1xf32> to vector<512x32xf32>
    %127 = arith.mulf %117, %126 : vector<512x32xf32>
    %128 = vector.broadcast %110 : vector<1x32xf32> to vector<512x32xf32>
    %129 = arith.mulf %127, %128 : vector<512x32xf32>
    %130 = vector.broadcast %111 : vector<1x32xf32> to vector<512x32xf32>
    %131 = arith.addf %129, %130 : vector<512x32xf32>
    %132 = arith.truncf %131 : vector<512x32xf32> to vector<512x32xbf16>
    %c0_58 = arith.constant 0 : index
    %c0_59 = arith.constant 0 : index
    %133 = vector.load %arg12[%c0_58, %c0_59] : memref<32x64xf32, #tpu.memory_space<vmem>>, vector<32x64xf32>
    %134 = arith.truncf %133 : vector<32x64xf32> to vector<32x64xbf16>
    %cst_60 = arith.constant dense<0.000000e+00> : vector<512x64xf32>
    %135 = tpu.matmul %132, %134, %cst_60 {dimension_numbers = #tpu.dot_dimension_numbers<[1], [0], [0], [1], [0, 0, 1, 1], [], []>} : vector<512x32xbf16>, vector<32x64xbf16>, vector<512x64xf32> -> vector<512x64xf32>
    %c0_61 = arith.constant 0 : index
    %c0_62 = arith.constant 0 : index
    %136 = vector.load %arg13[%c0_61, %c0_62] : memref<1x64xf32, #tpu.memory_space<vmem>>, vector<1x64xf32>
    %137 = vector.broadcast %136 : vector<1x64xf32> to vector<512x64xf32>
    %138 = arith.addf %135, %137 : vector<512x64xf32>
    %cst_63 = arith.constant 5.000000e-01 : f32
    %139 = vector.broadcast %cst_63 : f32 to vector<512x64xf32>
    %140 = arith.mulf %139, %138 : vector<512x64xf32>
    %cst_64 = arith.constant 4.471500e-02 : f32
    %141 = vector.broadcast %cst_64 : f32 to vector<512x64xf32>
    %142 = arith.mulf %141, %138 : vector<512x64xf32>
    %143 = arith.mulf %142, %138 : vector<512x64xf32>
    %144 = arith.mulf %143, %138 : vector<512x64xf32>
    %145 = arith.addf %138, %144 : vector<512x64xf32>
    %cst_65 = arith.constant 0.797884583 : f32
    %146 = vector.broadcast %cst_65 : f32 to vector<512x64xf32>
    %147 = arith.mulf %146, %145 : vector<512x64xf32>
    %148 = math.tanh %147 : vector<512x64xf32>
    %cst_66 = arith.constant 1.000000e+00 : f32
    %149 = vector.broadcast %cst_66 : f32 to vector<512x64xf32>
    %150 = arith.addf %149, %148 : vector<512x64xf32>
    %151 = arith.mulf %140, %150 : vector<512x64xf32>
    %152 = arith.truncf %151 : vector<512x64xf32> to vector<512x64xbf16>
    %c0_67 = arith.constant 0 : index
    %c0_68 = arith.constant 0 : index
    %153 = vector.load %arg14[%c0_67, %c0_68] : memref<64x32xf32, #tpu.memory_space<vmem>>, vector<64x32xf32>
    %154 = arith.truncf %153 : vector<64x32xf32> to vector<64x32xbf16>
    %cst_69 = arith.constant dense<0.000000e+00> : vector<512x32xf32>
    %155 = tpu.matmul %152, %154, %cst_69 {dimension_numbers = #tpu.dot_dimension_numbers<[1], [0], [0], [1], [0, 0, 1, 1], [], []>} : vector<512x64xbf16>, vector<64x32xbf16>, vector<512x32xf32> -> vector<512x32xf32>
    %c0_70 = arith.constant 0 : index
    %c0_71 = arith.constant 0 : index
    %156 = vector.load %arg15[%c0_70, %c0_71] : memref<1x32xf32, #tpu.memory_space<vmem>>, vector<1x32xf32>
    %157 = vector.broadcast %156 : vector<1x32xf32> to vector<512x32xf32>
    %158 = arith.addf %155, %157 : vector<512x32xf32>
    %159 = arith.addf %109, %158 : vector<512x32xf32>
    %c0_72 = arith.constant 0 : index
    %c0_73 = arith.constant 0 : index
    %c0_74 = arith.constant 0 : index
    %160 = vector.load %arg16[%c0_72, %c0_73, %c0_74] : memref<1x512x32xf32, #tpu.memory_space<vmem>>, vector<1x512x32xf32>
    %161 = vector.shape_cast %160 : vector<1x512x32xf32> to vector<512x32xf32>
    %162 = vector.shape_cast %159 : vector<512x32xf32> to vector<1x512x32xf32>
    tpu.vector_store %arg16[%c0_72, %c0_73, %c0_74], %162 {strides = array<i32>} : memref<1x512x32xf32, #tpu.memory_space<vmem>>, vector<1x512x32xf32>,
    return
  }
  func.func @transform_0(%arg0: i32) -> (i32, i32, i32) {
    %c0_i32 = arith.constant 0 : i32
    %c0_i32_0 = arith.constant 0 : i32
    %c0_i32_1 = arith.constant 0 : i32
    return %arg0, %c0_i32, %c0_i32_0 : i32, i32, i32
  }
  func.func @transform_1(%arg0: i32) -> (i32, i32, i32) {
    %c0_i32 = arith.constant 0 : i32
    %c0_i32_0 = arith.constant 0 : i32
    %c0_i32_1 = arith.constant 0 : i32
    %c0_i32_2 = arith.constant 0 : i32
    return %c0_i32, %c0_i32_0, %c0_i32_1 : i32, i32, i32
  }
  func.func @transform_2(%arg0: i32) -> (i32, i32) {
    %c0_i32 = arith.constant 0 : i32
    %c0_i32_0 = arith.constant 0 : i32
    %c0_i32_1 = arith.constant 0 : i32
    return %c0_i32, %c0_i32_0 : i32, i32
  }
  func.func @transform_3(%arg0: i32) -> (i32, i32) {
    %c0_i32 = arith.constant 0 : i32
    %c0_i32_0 = arith.constant 0 : i32
    %c0_i32_1 = arith.constant 0 : i32
    return %c0_i32, %c0_i32_0 : i32, i32
  }
  func.func @transform_4(%arg0: i32) -> (i32, i32, i32) {
    %c0_i32 = arith.constant 0 : i32
    %c0_i32_0 = arith.constant 0 : i32
    %c0_i32_1 = arith.constant 0 : i32
    %c0_i32_2 = arith.constant 0 : i32
    return %c0_i32, %c0_i32_0, %c0_i32_1 : i32, i32, i32
  }
  func.func @transform_5(%arg0: i32) -> (i32, i32, i32) {
    %c0_i32 = arith.constant 0 : i32
    %c0_i32_0 = arith.constant 0 : i32
    %c0_i32_1 = arith.constant 0 : i32
    %c0_i32_2 = arith.constant 0 : i32
    return %c0_i32, %c0_i32_0, %c0_i32_1 : i32, i32, i32
  }
  func.func @transform_6(%arg0: i32) -> (i32, i32, i32) {
    %c0_i32 = arith.constant 0 : i32
    %c0_i32_0 = arith.constant 0 : i32
    %c0_i32_1 = arith.constant 0 : i32
    %c0_i32_2 = arith.constant 0 : i32
    return %c0_i32, %c0_i32_0, %c0_i32_1 : i32, i32, i32
  }
  func.func @transform_7(%arg0: i32) -> (i32, i32) {
    %c0_i32 = arith.constant 0 : i32
    %c0_i32_0 = arith.constant 0 : i32
    %c0_i32_1 = arith.constant 0 : i32
    return %c0_i32, %c0_i32_0 : i32, i32
  }
  func.func @transform_8(%arg0: i32) -> (i32, i32) {
    %c0_i32 = arith.constant 0 : i32
    %c0_i32_0 = arith.constant 0 : i32
    %c0_i32_1 = arith.constant 0 : i32
    return %c0_i32, %c0_i32_0 : i32, i32
  }
  func.func @transform_9(%arg0: i32) -> (i32, i32) {
    %c0_i32 = arith.constant 0 : i32
    %c0_i32_0 = arith.constant 0 : i32
    %c0_i32_1 = arith.constant 0 : i32
    return %c0_i32, %c0_i32_0 : i32, i32
  }
  func.func @transform_10(%arg0: i32) -> (i32, i32) {
    %c0_i32 = arith.constant 0 : i32
    %c0_i32_0 = arith.constant 0 : i32
    %c0_i32_1 = arith.constant 0 : i32
    return %c0_i32, %c0_i32_0 : i32, i32
  }
  func.func @transform_11(%arg0: i32) -> (i32, i32) {
    %c0_i32 = arith.constant 0 : i32
    %c0_i32_0 = arith.constant 0 : i32
    %c0_i32_1 = arith.constant 0 : i32
    return %c0_i32, %c0_i32_0 : i32, i32
  }
  func.func @transform_12(%arg0: i32) -> (i32, i32) {
    %c0_i32 = arith.constant 0 : i32
    %c0_i32_0 = arith.constant 0 : i32
    %c0_i32_1 = arith.constant 0 : i32
    return %c0_i32, %c0_i32_0 : i32, i32
  }
  func.func @transform_13(%arg0: i32) -> (i32, i32) {
    %c0_i32 = arith.constant 0 : i32
    %c0_i32_0 = arith.constant 0 : i32
    %c0_i32_1 = arith.constant 0 : i32
    return %c0_i32, %c0_i32_0 : i32, i32
  }
  func.func @transform_14(%arg0: i32) -> (i32, i32) {
    %c0_i32 = arith.constant 0 : i32
    %c0_i32_0 = arith.constant 0 : i32
    %c0_i32_1 = arith.constant 0 : i32
    return %c0_i32, %c0_i32_0 : i32, i32
  }
  func.func @transform_15(%arg0: i32) -> (i32, i32, i32) {
    %c0_i32 = arith.constant 0 : i32
    %c0_i32_0 = arith.constant 0 : i32
    %c0_i32_1 = arith.constant 0 : i32
    return %arg0, %c0_i32, %c0_i32_0 : i32, i32, i32
  }
}

</mosaic_0001>

<llo_original>
// kernel: _lambda_.1
$region0: #{_lambda_.1}
  #allocation0 [shape = 'u32[]', space=smem, size = 0x4, offset = 0x4, fixed_abs, tag = 'smem constant byte address 0x4 - core index']
  #allocation1 [shape = 'u32[144,128]{1,0:T(1,128)}', space=vmem, size = 0x12000, scoped, tag = 'internal scratch']
  %s0 = inlined_call_operand.vmem [shape: f32[2,512,32], index: 0, kind: input, shape index: {}]
  %s1 = inlined_call_operand.vmem [shape: f32[8,64,64], index: 1, kind: input, shape index: {}]
  %s2 = inlined_call_operand.vmem [shape: f32[1,32], index: 2, kind: input, shape index: {}]
  %s3 = inlined_call_operand.vmem [shape: f32[1,32], index: 3, kind: input, shape index: {}]
  %s4 = inlined_call_operand.vmem [shape: f32[2,32,16], index: 4, kind: input, shape index: {}]
  %s5 = inlined_call_operand.vmem [shape: f32[2,32,16], index: 5, kind: input, shape index: {}]
  %s6 = inlined_call_operand.vmem [shape: f32[2,32,16], index: 6, kind: input, shape index: {}]
  %s7 = inlined_call_operand.vmem [shape: f32[32,32], index: 7, kind: input, shape index: {}]
  %s8 = inlined_call_operand.vmem [shape: f32[1,32], index: 8, kind: input, shape index: {}]
  %s9 = inlined_call_operand.vmem [shape: f32[1,32], index: 9, kind: input, shape index: {}]
  %s10 = inlined_call_operand.vmem [shape: f32[1,32], index: 10, kind: input, shape index: {}]
  %s11 = inlined_call_operand.vmem [shape: f32[32,64], index: 11, kind: input, shape index: {}]
  %s12 = inlined_call_operand.vmem [shape: f32[1,64], index: 12, kind: input, shape index: {}]
  %s13 = inlined_call_operand.vmem [shape: f32[64,32], index: 13, kind: input, shape index: {}]
  %s14 = inlined_call_operand.vmem [shape: f32[1,32], index: 14, kind: input, shape index: {}]
  %s15 = inlined_call_operand.vmem [shape: f32[2,512,32], index: 15, kind: output, shape index: {}]
  %s16 = sld [smem:[#allocation0]]
  $region93: #{_lambda_.1} parent=0
    _
  %s18 = ssub.s32 1, %s16
  %s19 = scalar_select 0, %s18, %s16
  loop: start=0, step=1, limit=4
  $region2: #{_lambda_.1} parent=0 // loop_pre_header
    _
  $region3: #{_lambda_.1} parent=0 // loop_header
    %s21 = sphi 0, %s25
    %p22 = scmp.ge.s32.totalorder %s21, 4
    %s31 = sphi 0, %s33
    %s34 = sphi 0, %s31
    %s35 = sphi 0, %s34
    %s51 = sphi 0, %s35
    %s55 = sphi 0, %s55
    %s57 = sphi 0, %s55
    %s58 = sphi 0, %s57
    %s72 = sphi 0, %s58
    %s76 = sphi 0, %s76
    %s78 = sphi 0, %s76
    %s79 = sphi 0, %s78
    %s93 = sphi 0, %s79
    %s97 = sphi 0, %s97
    %s99 = sphi 0, %s97
    %s100 = sphi 0, %s99
    %s114 = sphi 0, %s100
    %s118 = sphi 0, %s118
    %s120 = sphi 0, %s118
    %s121 = sphi 0, %s120
    %s135 = sphi 0, %s121
    %s139 = sphi 0, %s139
    %s141 = sphi 0, %s139
    %s142 = sphi 0, %s141
    %s156 = sphi 0, %s142
    %s160 = sphi 0, %s160
    %s162 = sphi 0, %s160
    %s163 = sphi 0, %s162
    %s177 = sphi 0, %s163
    %s181 = sphi 0, %s181
    %s183 = sphi 0, %s181
    %s184 = sphi 0, %s183
    %s198 = sphi 0, %s184
    %s202 = sphi 0, %s202
    %s204 = sphi 0, %s202
    %s205 = sphi 0, %s204
    %s219 = sphi 0, %s205
    %s223 = sphi 0, %s223
    %s225 = sphi 0, %s223
    %s226 = sphi 0, %s225
    %s240 = sphi 0, %s226
    %s244 = sphi 0, %s244
    %s246 = sphi 0, %s244
    %s247 = sphi 0, %s246
    %s261 = sphi 0, %s247
    %s265 = sphi 0, %s265
    %s267 = sphi 0, %s265
    %s268 = sphi 0, %s267
    %s282 = sphi 0, %s268
    %s286 = sphi 0, %s286
    %s288 = sphi 0, %s286
    %s289 = sphi 0, %s288
    %s303 = sphi 0, %s289
    %s307 = sphi 0, %s307
    %s309 = sphi 0, %s307
    %s310 = sphi 0, %s309
    %s324 = sphi 0, %s310
    %s328 = sphi 0, %s328
    %s330 = sphi 0, %s328
    %s331 = sphi 0, %s330
    %s345 = sphi 0, %s331
    %s351 = sphi 0, %s353
    %s354 = sphi 0, %s351
    %s355 = sphi 0, %s354
    %s371 = sphi 0, %s355
  $region4: #{_lambda_.1} parent=0 // loop_header_branch
    %24 = sbr.rel (%p22) target = $region8
  $region5: #{_lambda_.1} parent=0 // loop_body
    %s26 = ssub.s32 %s21, 1
    %s27 = ssub.s32 %s21, 2
    %s28 = sadd.s32 %s21, 1
    %s29 = ssub.s32 %s21, %s28
    %p30 = scmp.eq.s32.totalorder %s29, 0
    %s32 = sadd.s32 %s31, 1
    %s33 = scalar_select %p30, %s31, %s32
    %p36 = pneg %p30
    %p37 = scmp.eq.s32.totalorder %s21, 1
    %p38 = por %p36, %p37
    %p39 = scmp.ne.s32.totalorder %s31, %s34
    %p40 = scmp.eq.s32.totalorder %s21, 0
    %p41 = por %p39, %p40
    %p42 = scmp.ne.s32.totalorder %s31, %s34
    %p43 = scmp.eq.s32.totalorder %s26, 1
    %p44 = por %p42, %p43
    %p45 = scmp.ne.s32.totalorder %s34, %s35
    %p46 = scmp.eq.s32.totalorder %s26, 0
    %p47 = por %p45, %p46
    %p48 = scmp.ne.s32.totalorder %s34, %s35
    %p49 = scmp.eq.s32.totalorder %s27, 1
    %p50 = por %p48, %p49
    %p52 = scmp.ne.s32.totalorder %s35, %s51
    %p53 = scmp.eq.s32.totalorder %s27, 0
    %p54 = por %p52, %p53
    %s56 = sadd.s32 %s55, 1
    %p59 = scmp.eq.s32.totalorder %s21, 1
    %p60 = scmp.ne.s32.totalorder %s55, %s57
    %p61 = scmp.eq.s32.totalorder %s21, 0
    %p62 = por %p60, %p61
    %p63 = scmp.ne.s32.totalorder %s55, %s57
    %p64 = scmp.eq.s32.totalorder %s26, 1
    %p65 = por %p63, %p64
    %p66 = scmp.ne.s32.totalorder %s57, %s58
    %p67 = scmp.eq.s32.totalorder %s26, 0
    %p68 = por %p66, %p67
    %p69 = scmp.ne.s32.totalorder %s57, %s58
    %p70 = scmp.eq.s32.totalorder %s27, 1
    %p71 = por %p69, %p70
    %p73 = scmp.ne.s32.totalorder %s58, %s72
    %p74 = scmp.eq.s32.totalorder %s27, 0
    %p75 = por %p73, %p74
    %s77 = sadd.s32 %s76, 1
    %p80 = scmp.eq.s32.totalorder %s21, 1
    %p81 = scmp.ne.s32.totalorder %s76, %s78
    %p82 = scmp.eq.s32.totalorder %s21, 0
    %p83 = por %p81, %p82
    %p84 = scmp.ne.s32.totalorder %s76, %s78
    %p85 = scmp.eq.s32.totalorder %s26, 1
    %p86 = por %p84, %p85
    %p87 = scmp.ne.s32.totalorder %s78, %s79
    %p88 = scmp.eq.s32.totalorder %s26, 0
    %p89 = por %p87, %p88
    %p90 = scmp.ne.s32.totalorder %s78, %s79
    %p91 = scmp.eq.s32.totalorder %s27, 1
    %p92 = por %p90, %p91
    %p94 = scmp.ne.s32.totalorder %s79, %s93
    %p95 = scmp.eq.s32.totalorder %s27, 0
    %p96 = por %p94, %p95
    %s98 = sadd.s32 %s97, 1
    %p101 = scmp.eq.s32.totalorder %s21, 1
    %p102 = scmp.ne.s32.totalorder %s97, %s99
    %p103 = scmp.eq.s32.totalorder %s21, 0
    %p104 = por %p102, %p103
    %p105 = scmp.ne.s32.totalorder %s97, %s99
    %p106 = scmp.eq.s32.totalorder %s26, 1
    %p107 = por %p105, %p106
    %p108 = scmp.ne.s32.totalorder %s99, %s100
    %p109 = scmp.eq.s32.totalorder %s26, 0
    %p110 = por %p108, %p109
    %p111 = scmp.ne.s32.totalorder %s99, %s100
    %p112 = scmp.eq.s32.totalorder %s27, 1
    %p113 = por %p111, %p112
    %p115 = scmp.ne.s32.totalorder %s100, %s114
    %p116 = scmp.eq.s32.totalorder %s27, 0
    %p117 = por %p115, %p116
    %s119 = sadd.s32 %s118, 1
    %p122 = scmp.eq.s32.totalorder %s21, 1
    %p123 = scmp.ne.s32.totalorder %s118, %s120
    %p124 = scmp.eq.s32.totalorder %s21, 0
    %p125 = por %p123, %p124
    %p126 = scmp.ne.s32.totalorder %s118, %s120
    %p127 = scmp.eq.s32.totalorder %s26, 1
    %p128 = por %p126, %p127
    %p129 = scmp.ne.s32.totalorder %s120, %s121
    %p130 = scmp.eq.s32.totalorder %s26, 0
    %p131 = por %p129, %p130
    %p132 = scmp.ne.s32.totalorder %s120, %s121
    %p133 = scmp.eq.s32.totalorder %s27, 1
    %p134 = por %p132, %p133
    %p136 = scmp.ne.s32.totalorder %s121, %s135
    %p137 = scmp.eq.s32.totalorder %s27, 0
    %p138 = por %p136, %p137
    %s140 = sadd.s32 %s139, 1
    %p143 = scmp.eq.s32.totalorder %s21, 1
    %p144 = scmp.ne.s32.totalorder %s139, %s141
    %p145 = scmp.eq.s32.totalorder %s21, 0
    %p146 = por %p144, %p145
    %p147 = scmp.ne.s32.totalorder %s139, %s141
    %p148 = scmp.eq.s32.totalorder %s26, 1
    %p149 = por %p147, %p148
    %p150 = scmp.ne.s32.totalorder %s141, %s142
    %p151 = scmp.eq.s32.totalorder %s26, 0
    %p152 = por %p150, %p151
    %p153 = scmp.ne.s32.totalorder %s141, %s142
    %p154 = scmp.eq.s32.totalorder %s27, 1
    %p155 = por %p153, %p154
    %p157 = scmp.ne.s32.totalorder %s142, %s156
    %p158 = scmp.eq.s32.totalorder %s27, 0
    %p159 = por %p157, %p158
    %s161 = sadd.s32 %s160, 1
    %p164 = scmp.eq.s32.totalorder %s21, 1
    %p165 = scmp.ne.s32.totalorder %s160, %s162
    %p166 = scmp.eq.s32.totalorder %s21, 0
    %p167 = por %p165, %p166
    %p168 = scmp.ne.s32.totalorder %s160, %s162
    %p169 = scmp.eq.s32.totalorder %s26, 1
    %p170 = por %p168, %p169
    %p171 = scmp.ne.s32.totalorder %s162, %s163
    %p172 = scmp.eq.s32.totalorder %s26, 0
    %p173 = por %p171, %p172
    %p174 = scmp.ne.s32.totalorder %s162, %s163
    %p175 = scmp.eq.s32.totalorder %s27, 1
    %p176 = por %p174, %p175
    %p178 = scmp.ne.s32.totalorder %s163, %s177
    %p179 = scmp.eq.s32.totalorder %s27, 0
    %p180 = por %p178, %p179
    %s182 = sadd.s32 %s181, 1
    %p185 = scmp.eq.s32.totalorder %s21, 1
    %p186 = scmp.ne.s32.totalorder %s181, %s183
    %p187 = scmp.eq.s32.totalorder %s21, 0
    %p188 = por %p186, %p187
    %p189 = scmp.ne.s32.totalorder %s181, %s183
    %p190 = scmp.eq.s32.totalorder %s26, 1
    %p191 = por %p189, %p190
    %p192 = scmp.ne.s32.totalorder %s183, %s184
    %p193 = scmp.eq.s32.totalorder %s26, 0
    %p194 = por %p192, %p193
    %p195 = scmp.ne.s32.totalorder %s183, %s184
    %p196 = scmp.eq.s32.totalorder %s27, 1
    %p197 = por %p195, %p196
    %p199 = scmp.ne.s32.totalorder %s184, %s198
    %p200 = scmp.eq.s32.totalorder %s27, 0
    %p201 = por %p199, %p200
    %s203 = sadd.s32 %s202, 1
    %p206 = scmp.eq.s32.totalorder %s21, 1
    %p207 = scmp.ne.s32.totalorder %s202, %s204
    %p208 = scmp.eq.s32.totalorder %s21, 0
    %p209 = por %p207, %p208
    %p210 = scmp.ne.s32.totalorder %s202, %s204
    %p211 = scmp.eq.s32.totalorder %s26, 1
    %p212 = por %p210, %p211
    %p213 = scmp.ne.s32.totalorder %s204, %s205
    %p214 = scmp.eq.s32.totalorder %s26, 0
    %p215 = por %p213, %p214
    %p216 = scmp.ne.s32.totalorder %s204, %s205
    %p217 = scmp.eq.s32.totalorder %s27, 1
    %p218 = por %p216, %p217
    %p220 = scmp.ne.s32.totalorder %s205, %s219
    %p221 = scmp.eq.s32.totalorder %s27, 0
    %p222 = por %p220, %p221
    %s224 = sadd.s32 %s223, 1
    %p227 = scmp.eq.s32.totalorder %s21, 1
    %p228 = scmp.ne.s32.totalorder %s223, %s225
    %p229 = scmp.eq.s32.totalorder %s21, 0
    %p230 = por %p228, %p229
    %p231 = scmp.ne.s32.totalorder %s223, %s225
    %p232 = scmp.eq.s32.totalorder %s26, 1
    %p233 = por %p231, %p232
    %p234 = scmp.ne.s32.totalorder %s225, %s226
    %p235 = scmp.eq.s32.totalorder %s26, 0
    %p236 = por %p234, %p235
    %p237 = scmp.ne.s32.totalorder %s225, %s226
    %p238 = scmp.eq.s32.totalorder %s27, 1
    %p239 = por %p237, %p238
    %p241 = scmp.ne.s32.totalorder %s226, %s240
    %p242 = scmp.eq.s32.totalorder %s27, 0
    %p243 = por %p241, %p242
    %s245 = sadd.s32 %s244, 1
    %p248 = scmp.eq.s32.totalorder %s21, 1
    %p249 = scmp.ne.s32.totalorder %s244, %s246
    %p250 = scmp.eq.s32.totalorder %s21, 0
    %p251 = por %p249, %p250
    %p252 = scmp.ne.s32.totalorder %s244, %s246
    %p253 = scmp.eq.s32.totalorder %s26, 1
    %p254 = por %p252, %p253
    %p255 = scmp.ne.s32.totalorder %s246, %s247
    %p256 = scmp.eq.s32.totalorder %s26, 0
    %p257 = por %p255, %p256
    %p258 = scmp.ne.s32.totalorder %s246, %s247
    %p259 = scmp.eq.s32.totalorder %s27, 1
    %p260 = por %p258, %p259
    %p262 = scmp.ne.s32.totalorder %s247, %s261
    %p263 = scmp.eq.s32.totalorder %s27, 0
    %p264 = por %p262, %p263
    %s266 = sadd.s32 %s265, 1
    %p269 = scmp.eq.s32.totalorder %s21, 1
    %p270 = scmp.ne.s32.totalorder %s265, %s267
    %p271 = scmp.eq.s32.totalorder %s21, 0
    %p272 = por %p270, %p271
    %p273 = scmp.ne.s32.totalorder %s265, %s267
    %p274 = scmp.eq.s32.totalorder %s26, 1
    %p275 = por %p273, %p274
    %p276 = scmp.ne.s32.totalorder %s267, %s268
    %p277 = scmp.eq.s32.totalorder %s26, 0
    %p278 = por %p276, %p277
    %p279 = scmp.ne.s32.totalorder %s267, %s268
    %p280 = scmp.eq.s32.totalorder %s27, 1
    %p281 = por %p279, %p280
    %p283 = scmp.ne.s32.totalorder %s268, %s282
    %p284 = scmp.eq.s32.totalorder %s27, 0
    %p285 = por %p283, %p284
    %s287 = sadd.s32 %s286, 1
    %p290 = scmp.eq.s32.totalorder %s21, 1
    %p291 = scmp.ne.s32.totalorder %s286, %s288
    %p292 = scmp.eq.s32.totalorder %s21, 0
    %p293 = por %p291, %p292
    %p294 = scmp.ne.s32.totalorder %s286, %s288
    %p295 = scmp.eq.s32.totalorder %s26, 1
    %p296 = por %p294, %p295
    %p297 = scmp.ne.s32.totalorder %s288, %s289
    %p298 = scmp.eq.s32.totalorder %s26, 0
    %p299 = por %p297, %p298
    %p300 = scmp.ne.s32.totalorder %s288, %s289
    %p301 = scmp.eq.s32.totalorder %s27, 1
    %p302 = por %p300, %p301
    %p304 = scmp.ne.s32.totalorder %s289, %s303
    %p305 = scmp.eq.s32.totalorder %s27, 0
    %p306 = por %p304, %p305
    %s308 = sadd.s32 %s307, 1
    %p311 = scmp.eq.s32.totalorder %s21, 1
    %p312 = scmp.ne.s32.totalorder %s307, %s309
    %p313 = scmp.eq.s32.totalorder %s21, 0
    %p314 = por %p312, %p313
    %p315 = scmp.ne.s32.totalorder %s307, %s309
    %p316 = scmp.eq.s32.totalorder %s26, 1
    %p317 = por %p315, %p316
    %p318 = scmp.ne.s32.totalorder %s309, %s310
    %p319 = scmp.eq.s32.totalorder %s26, 0
    %p320 = por %p318, %p319
    %p321 = scmp.ne.s32.totalorder %s309, %s310
    %p322 = scmp.eq.s32.totalorder %s27, 1
    %p323 = por %p321, %p322
    %p325 = scmp.ne.s32.totalorder %s310, %s324
    %p326 = scmp.eq.s32.totalorder %s27, 0
    %p327 = por %p325, %p326
    %s329 = sadd.s32 %s328, 1
    %p332 = scmp.eq.s32.totalorder %s21, 1
    %p333 = scmp.ne.s32.totalorder %s328, %s330
    %p334 = scmp.eq.s32.totalorder %s21, 0
    %p335 = por %p333, %p334
    %p336 = scmp.ne.s32.totalorder %s328, %s330
    %p337 = scmp.eq.s32.totalorder %s26, 1
    %p338 = por %p336, %p337
    %p339 = scmp.ne.s32.totalorder %s330, %s331
    %p340 = scmp.eq.s32.totalorder %s26, 0
    %p341 = por %p339, %p340
    %p342 = scmp.ne.s32.totalorder %s330, %s331
    %p343 = scmp.eq.s32.totalorder %s27, 1
    %p344 = por %p342, %p343
    %p346 = scmp.ne.s32.totalorder %s331, %s345
    %p347 = scmp.eq.s32.totalorder %s27, 0
    %p348 = por %p346, %p347
    %s349 = ssub.s32 %s21, %s28
    %p350 = scmp.eq.s32.totalorder %s349, 0
    %s352 = sadd.s32 %s351, 1
    %s353 = scalar_select %p350, %s351, %s352
    %p356 = pneg %p350
    %p357 = scmp.eq.s32.totalorder %s21, 1
    %p358 = por %p356, %p357
    %p359 = scmp.ne.s32.totalorder %s351, %s354
    %p360 = scmp.eq.s32.totalorder %s21, 0
    %p361 = por %p359, %p360
    %p362 = scmp.ne.s32.totalorder %s351, %s354
    %p363 = scmp.eq.s32.totalorder %s26, 1
    %p364 = por %p362, %p363
    %p365 = scmp.ne.s32.totalorder %s354, %s355
    %p366 = scmp.eq.s32.totalorder %s26, 0
    %p367 = por %p365, %p366
    %p368 = scmp.ne.s32.totalorder %s354, %s355
    %p369 = scmp.eq.s32.totalorder %s27, 1
    %p370 = por %p368, %p369
    %p372 = scmp.ne.s32.totalorder %s355, %s371
    %p373 = scmp.eq.s32.totalorder %s27, 0
    %p374 = por %p372, %p373
    %p375 = scmp.le.s32.totalorder 1, %s21
    %p376 = scmp.lt.s32.totalorder %s21, 3
    %p377 = pnand %p375, %p376
    %p378 = pneg %p377
    // Predicated region
    $region9: #{_lambda_.1} parent=5 // pred_check
      _
    $region10: #{_lambda_.1} parent=5 // pred_check_branch
      %380 = sbr.rel (%p377) target = $region12
    $region11: #{_lambda_.1} parent=5 // pred_region
      %s381 = ssub.s32 %s21, 1
      // Predicated region
      $region13: #{_lambda_.1} parent=11 // pred_check
        %p382 = pneg %p68
      $region14: #{_lambda_.1} parent=11 // pred_check_branch
        %384 = sbr.rel (%p382) target = $region16
      $region15: #{_lambda_.1} parent=11 // pred_region
        _
      $region16: #{_lambda_.1} parent=11 // pred_fallthru
        _
      // Predicated region
      $region17: #{_lambda_.1} parent=11 // pred_check
        %p385 = pneg %p89
      $region18: #{_lambda_.1} parent=11 // pred_check_branch
        %387 = sbr.rel (%p385) target = $region20
      $region19: #{_lambda_.1} parent=11 // pred_region
        _
      $region20: #{_lambda_.1} parent=11 // pred_fallthru
        _
      // Predicated region
      $region21: #{_lambda_.1} parent=11 // pred_check
        %p388 = pneg %p110
      $region22: #{_lambda_.1} parent=11 // pred_check_branch
        %390 = sbr.rel (%p388) target = $region24
      $region23: #{_lambda_.1} parent=11 // pred_region
        _
      $region24: #{_lambda_.1} parent=11 // pred_fallthru
        _
      // Predicated region
      $region25: #{_lambda_.1} parent=11 // pred_check
        %p391 = pneg %p131
      $region26: #{_lambda_.1} parent=11 // pred_check_branch
        %393 = sbr.rel (%p391) target = $region28
      $region27: #{_lambda_.1} parent=11 // pred_region
        _
      $region28: #{_lambda_.1} parent=11 // pred_fallthru
        _
      // Predicated region
      $region29: #{_lambda_.1} parent=11 // pred_check
        %p394 = pneg %p152
      $region30: #{_lambda_.1} parent=11 // pred_check_branch
        %396 = sbr.rel (%p394) target = $region32
      $region31: #{_lambda_.1} parent=11 // pred_region
        _
      $region32: #{_lambda_.1} parent=11 // pred_fallthru
        _
      // Predicated region
      $region33: #{_lambda_.1} parent=11 // pred_check
        %p397 = pneg %p173
      $region34: #{_lambda_.1} parent=11 // pred_check_branch
        %399 = sbr.rel (%p397) target = $region36
      $region35: #{_lambda_.1} parent=11 // pred_region
        _
      $region36: #{_lambda_.1} parent=11 // pred_fallthru
        _
      // Predicated region
      $region37: #{_lambda_.1} parent=11 // pred_check
        %p400 = pneg %p194
      $region38: #{_lambda_.1} parent=11 // pred_check_branch
        %402 = sbr.rel (%p400) target = $region40
      $region39: #{_lambda_.1} parent=11 // pred_region
        _
      $region40: #{_lambda_.1} parent=11 // pred_fallthru
        _
      // Predicated region
      $region41: #{_lambda_.1} parent=11 // pred_check
        %p403 = pneg %p215
      $region42: #{_lambda_.1} parent=11 // pred_check_branch
        %405 = sbr.rel (%p403) target = $region44
      $region43: #{_lambda_.1} parent=11 // pred_region
        _
      $region44: #{_lambda_.1} parent=11 // pred_fallthru
        _
      // Predicated region
      $region45: #{_lambda_.1} parent=11 // pred_check
        %p406 = pneg %p236
      $region46: #{_lambda_.1} parent=11 // pred_check_branch
        %408 = sbr.rel (%p406) target = $region48
      $region47: #{_lambda_.1} parent=11 // pred_region
        _
      $region48: #{_lambda_.1} parent=11 // pred_fallthru
        _
      // Predicated region
      $region49: #{_lambda_.1} parent=11 // pred_check
        %p409 = pneg %p257
      $region50: #{_lambda_.1} parent=11 // pred_check_branch
        %411 = sbr.rel (%p409) target = $region52
      $region51: #{_lambda_.1} parent=11 // pred_region
        _
      $region52: #{_lambda_.1} parent=11 // pred_fallthru
        _
      // Predicated region
      $region53: #{_lambda_.1} parent=11 // pred_check
        %p412 = pneg %p278
      $region54: #{_lambda_.1} parent=11 // pred_check_branch
        %414 = sbr.rel (%p412) target = $region56
      $region55: #{_lambda_.1} parent=11 // pred_region
        _
      $region56: #{_lambda_.1} parent=11 // pred_fallthru
        _
      // Predicated region
      $region57: #{_lambda_.1} parent=11 // pred_check
        %p415 = pneg %p299
      $region58: #{_lambda_.1} parent=11 // pred_check_branch
        %417 = sbr.rel (%p415) target = $region60
      $region59: #{_lambda_.1} parent=11 // pred_region
        _
      $region60: #{_lambda_.1} parent=11 // pred_fallthru
        _
      // Predicated region
      $region61: #{_lambda_.1} parent=11 // pred_check
        %p418 = pneg %p320
      $region62: #{_lambda_.1} parent=11 // pred_check_branch
        %420 = sbr.rel (%p418) target = $region64
      $region63: #{_lambda_.1} parent=11 // pred_region
        _
      $region64: #{_lambda_.1} parent=11 // pred_fallthru
        _
      // Predicated region
      $region65: #{_lambda_.1} parent=11 // pred_check
        %p421 = pneg %p341
      $region66: #{_lambda_.1} parent=11 // pred_check_branch
        %423 = sbr.rel (%p421) target = $region68
      $region67: #{_lambda_.1} parent=11 // pred_region
        _
      $region68: #{_lambda_.1} parent=11 // pred_fallthru
        _
    $region12: #{_lambda_.1} parent=5 // pred_fallthru
      _
    %p424 = scmp.lt.s32.totalorder %s21, 2
    // Predicated region
    $region69: #{_lambda_.1} parent=5 // pred_check
      %p425 = pneg %p424
    $region70: #{_lambda_.1} parent=5 // pred_check_branch
      %427 = sbr.rel (%p425) target = $region72
    $region71: #{_lambda_.1} parent=5 // pred_region
      // Predicated region
      $region73: #{_lambda_.1} parent=71 // pred_check
        %p428 = pneg %p41
      $region74: #{_lambda_.1} parent=71 // pred_check_branch
        %430 = sbr.rel (%p428) target = $region76
      $region75: #{_lambda_.1} parent=71 // pred_region
        %p431 = scmp.lt.s32.totalorder %s21, 1
        %s432 = scalar_select %p431, %s21, 1
        %s433 = smul.addr %s432, 64
        %s434 = smul.addr %s433, 8
        %s435 = scalar_lea.vmem %s0, %s434
      $region76: #{_lambda_.1} parent=71 // pred_fallthru
        _
    $region72: #{_lambda_.1} parent=5 // pred_fallthru
      _
    %p436 = scmp.le.s32.totalorder 1, %s21
    %p437 = scmp.lt.s32.totalorder %s21, 3
    %p438 = pnand %p436, %p437
    %p439 = pneg %p438
    // Predicated region
    $region77: #{_lambda_.1} parent=5 // pred_check
      _
    $region78: #{_lambda_.1} parent=5 // pred_check_branch
      %441 = sbr.rel (%p438) target = $region80
    $region79: #{_lambda_.1} parent=5 // pred_region
      %s442 = ssub.s32 %s21, 1
      %p443 = scmp.lt.s32.totalorder %s26, 1
      %s444 = scalar_select %p443, %s26, 1
      %s445 = smul.addr %s444, 64
      %s446 = smul.addr %s445, 8
      %s447 = scalar_lea.vmem %s0, %s446
      %p448 = pneg %p47
      %p449 = pneg %p44
      %p450 = pneg %p68
      %p451 = pneg %p65
      %p452 = pneg %p89
      %p453 = pneg %p86
      %p454 = pneg %p110
      %p455 = pneg %p107
      %p456 = pneg %p131
      %p457 = pneg %p128
      %p458 = pneg %p152
      %p459 = pneg %p149
      %p460 = pneg %p173
      %p461 = pneg %p170
      %p462 = pneg %p194
      %p463 = pneg %p191
      %p464 = pneg %p215
      %p465 = pneg %p212
      %p466 = pneg %p236
      %p467 = pneg %p233
      %p468 = pneg %p257
      %p469 = pneg %p254
      %p470 = pneg %p278
      %p471 = pneg %p275
      %p472 = pneg %p299
      %p473 = pneg %p296
      %p474 = pneg %p320
      %p475 = pneg %p317
      %p476 = pneg %p341
      %p477 = pneg %p338
      %p478 = pneg %p367
      %p479 = pneg %p364
      %p480 = scmp.lt.s32.totalorder %s26, 1
      %s481 = scalar_select %p480, %s26, 1
      %s482 = smul.addr %s481, 64
      %s483 = smul.addr %s482, 8
      %s484 = scalar_lea.vmem %s15, %s483
      %p485 = scmp.lt.s32.totalorder %s26, 1
      %s486 = scalar_select %p485, %s26, 1
      %s487 = smul.addr %s486, 64
      %s488 = smul.addr %s487, 8
      %s489 = scalar_lea.vmem %s0, %s488
      %p490 = scmp.lt.s32.totalorder %s26, 1
      %s491 = scalar_select %p490, %s26, 1
      %s492 = smul.addr %s491, 64
      %s493 = smul.addr %s492, 8
      %s494 = scalar_lea.vmem %s15, %s493
      %v496 = vld [vmem:[%s489] sm:$0xff]
      %v497 = vld [vmem:[%s489 + $0x8] sm:$0xff]
      %v498 = vld [vmem:[%s489 + $0x10] sm:$0xff]
      %v499 = vld [vmem:[%s489 + $0x18] sm:$0xff]
      %v500 = vld [vmem:[%s489 + $0x20] sm:$0xff]
      %v501 = vld [vmem:[%s489 + $0x28] sm:$0xff]
      %v502 = vld [vmem:[%s489 + $0x30] sm:$0xff]
      %v503 = vld [vmem:[%s489 + $0x38] sm:$0xff]
      %v504 = vld [vmem:[%s489 + $0x40] sm:$0xff]
      %v505 = vld [vmem:[%s489 + $0x48] sm:$0xff]
      %v506 = vld [vmem:[%s489 + $0x50] sm:$0xff]
      %v507 = vld [vmem:[%s489 + $0x58] sm:$0xff]
      %v508 = vld [vmem:[%s489 + $0x60] sm:$0xff]
      %v509 = vld [vmem:[%s489 + $0x68] sm:$0xff]
      %v510 = vld [vmem:[%s489 + $0x70] sm:$0xff]
      %v511 = vld [vmem:[%s489 + $0x78] sm:$0xff]
      %v512 = vld [vmem:[%s489 + $0x80] sm:$0xff]
      %v513 = vld [vmem:[%s489 + $0x88] sm:$0xff]
      %v514 = vld [vmem:[%s489 + $0x90] sm:$0xff]
      %v515 = vld [vmem:[%s489 + $0x98] sm:$0xff]
      %v516 = vld [vmem:[%s489 + $0xa0] sm:$0xff]
      %v517 = vld [vmem:[%s489 + $0xa8] sm:$0xff]
      %v518 = vld [vmem:[%s489 + $0xb0] sm:$0xff]
      %v519 = vld [vmem:[%s489 + $0xb8] sm:$0xff]
      %v520 = vld [vmem:[%s489 + $0xc0] sm:$0xff]
      %v521 = vld [vmem:[%s489 + $0xc8] sm:$0xff]
      %v522 = vld [vmem:[%s489 + $0xd0] sm:$0xff]
      %v523 = vld [vmem:[%s489 + $0xd8] sm:$0xff]
      %v524 = vld [vmem:[%s489 + $0xe0] sm:$0xff]
      %v525 = vld [vmem:[%s489 + $0xe8] sm:$0xff]
      %v526 = vld [vmem:[%s489 + $0xf0] sm:$0xff]
      %v527 = vld [vmem:[%s489 + $0xf8] sm:$0xff]
      %v528 = vld [vmem:[%s489 + $0x100] sm:$0xff]
      %v529 = vld [vmem:[%s489 + $0x108] sm:$0xff]
      %v530 = vld [vmem:[%s489 + $0x110] sm:$0xff]
      %v531 = vld [vmem:[%s489 + $0x118] sm:$0xff]
      %v532 = vld [vmem:[%s489 + $0x120] sm:$0xff]
      %v533 = vld [vmem:[%s489 + $0x128] sm:$0xff]
      %v534 = vld [vmem:[%s489 + $0x130] sm:$0xff]
      %v535 = vld [vmem:[%s489 + $0x138] sm:$0xff]
      %v536 = vld [vmem:[%s489 + $0x140] sm:$0xff]
      %v537 = vld [vmem:[%s489 + $0x148] sm:$0xff]
      %v538 = vld [vmem:[%s489 + $0x150] sm:$0xff]
      %v539 = vld [vmem:[%s489 + $0x158] sm:$0xff]
      %v540 = vld [vmem:[%s489 + $0x160] sm:$0xff]
      %v541 = vld [vmem:[%s489 + $0x168] sm:$0xff]
      %v542 = vld [vmem:[%s489 + $0x170] sm:$0xff]
      %v543 = vld [vmem:[%s489 + $0x178] sm:$0xff]
      %v544 = vld [vmem:[%s489 + $0x180] sm:$0xff]
      %v545 = vld [vmem:[%s489 + $0x188] sm:$0xff]
      %v546 = vld [vmem:[%s489 + $0x190] sm:$0xff]
      %v547 = vld [vmem:[%s489 + $0x198] sm:$0xff]
      %v548 = vld [vmem:[%s489 + $0x1a0] sm:$0xff]
      %v549 = vld [vmem:[%s489 + $0x1a8] sm:$0xff]
      %v550 = vld [vmem:[%s489 + $0x1b0] sm:$0xff]
      %v551 = vld [vmem:[%s489 + $0x1b8] sm:$0xff]
      %v552 = vld [vmem:[%s489 + $0x1c0] sm:$0xff]
      %v553 = vld [vmem:[%s489 + $0x1c8] sm:$0xff]
      %v554 = vld [vmem:[%s489 + $0x1d0] sm:$0xff]
      %v555 = vld [vmem:[%s489 + $0x1d8] sm:$0xff]
      %v556 = vld [vmem:[%s489 + $0x1e0] sm:$0xff]
      %v557 = vld [vmem:[%s489 + $0x1e8] sm:$0xff]
      %v558 = vld [vmem:[%s489 + $0x1f0] sm:$0xff]
      %v559 = vld [vmem:[%s489 + $0x1f8] sm:$0xff]
      %v560 = vld [vmem:[%s2] sm:$0x1]
      %v561 = vld [vmem:[%s3] sm:$0x1]
      %vm562 = vcmask 261120
      %v563 = vsel %vm562, %v496, 0.0
      %564 = vadd.xlane.f32.xlu0 %v563
      %v565 = vpop.xlane.xlu0 %564
      %v566 = vsel %vm562, %v497, 0.0
      %567 = vadd.xlane.f32.xlu0 %v566
      %v568 = vpop.xlane.xlu0 %567
      %v569 = vsel %vm562, %v498, 0.0
      %570 = vadd.xlane.f32.xlu0 %v569
      %v571 = vpop.xlane.xlu0 %570
      %v572 = vsel %vm562, %v499, 0.0
      %573 = vadd.xlane.f32.xlu0 %v572
      %v574 = vpop.xlane.xlu0 %573
      %v575 = vsel %vm562, %v500, 0.0
      %576 = vadd.xlane.f32.xlu0 %v575
      %v577 = vpop.xlane.xlu0 %576
      %v578 = vsel %vm562, %v501, 0.0
      %579 = vadd.xlane.f32.xlu0 %v578
      %v580 = vpop.xlane.xlu0 %579
      %v581 = vsel %vm562, %v502, 0.0
      %582 = vadd.xlane.f32.xlu0 %v581
      %v583 = vpop.xlane.xlu0 %582
      %v584 = vsel %vm562, %v503, 0.0
      %585 = vadd.xlane.f32.xlu0 %v584
      %v586 = vpop.xlane.xlu0 %585
      %v587 = vsel %vm562, %v504, 0.0
      %588 = vadd.xlane.f32.xlu0 %v587
      %v589 = vpop.xlane.xlu0 %588
      %v590 = vsel %vm562, %v505, 0.0
      %591 = vadd.xlane.f32.xlu0 %v590
      %v592 = vpop.xlane.xlu0 %591
      %v593 = vsel %vm562, %v506, 0.0
      %594 = vadd.xlane.f32.xlu0 %v593
      %v595 = vpop.xlane.xlu0 %594
      %v596 = vsel %vm562, %v507, 0.0
      %597 = vadd.xlane.f32.xlu0 %v596
      %v598 = vpop.xlane.xlu0 %597
      %v599 = vsel %vm562, %v508, 0.0
      %600 = vadd.xlane.f32.xlu0 %v599
      %v601 = vpop.xlane.xlu0 %600
      %v602 = vsel %vm562, %v509, 0.0
      %603 = vadd.xlane.f32.xlu0 %v602
      %v604 = vpop.xlane.xlu0 %603
      %v605 = vsel %vm562, %v510, 0.0
      %606 = vadd.xlane.f32.xlu0 %v605
      %v607 = vpop.xlane.xlu0 %606
      %v608 = vsel %vm562, %v511, 0.0
      %609 = vadd.xlane.f32.xlu0 %v608
      %v610 = vpop.xlane.xlu0 %609
      %v611 = vsel %vm562, %v512, 0.0
      %612 = vadd.xlane.f32.xlu0 %v611
      %v613 = vpop.xlane.xlu0 %612
      %v614 = vsel %vm562, %v513, 0.0
      %615 = vadd.xlane.f32.xlu0 %v614
      %v616 = vpop.xlane.xlu0 %615
      %v617 = vsel %vm562, %v514, 0.0
      %618 = vadd.xlane.f32.xlu0 %v617
      %v619 = vpop.xlane.xlu0 %618
      %v620 = vsel %vm562, %v515, 0.0
      %621 = vadd.xlane.f32.xlu0 %v620
      %v622 = vpop.xlane.xlu0 %621
      %v623 = vsel %vm562, %v516, 0.0
      %624 = vadd.xlane.f32.xlu0 %v623
      %v625 = vpop.xlane.xlu0 %624
      %v626 = vsel %vm562, %v517, 0.0
      %627 = vadd.xlane.f32.xlu0 %v626
      %v628 = vpop.xlane.xlu0 %627
      %v629 = vsel %vm562, %v518, 0.0
      %630 = vadd.xlane.f32.xlu0 %v629
      %v631 = vpop.xlane.xlu0 %630
      %v632 = vsel %vm562, %v519, 0.0
      %633 = vadd.xlane.f32.xlu0 %v632
      %v634 = vpop.xlane.xlu0 %633
      %v635 = vsel %vm562, %v520, 0.0
      %636 = vadd.xlane.f32.xlu0 %v635
      %v637 = vpop.xlane.xlu0 %636
      %v638 = vsel %vm562, %v521, 0.0
      %639 = vadd.xlane.f32.xlu0 %v638
      %v640 = vpop.xlane.xlu0 %639
      %v641 = vsel %vm562, %v522, 0.0
      %642 = vadd.xlane.f32.xlu0 %v641
      %v643 = vpop.xlane.xlu0 %642
      %v644 = vsel %vm562, %v523, 0.0
      %645 = vadd.xlane.f32.xlu0 %v644
      %v646 = vpop.xlane.xlu0 %645
      %v647 = vsel %vm562, %v524, 0.0
      %648 = vadd.xlane.f32.xlu0 %v647
      %v649 = vpop.xlane.xlu0 %648
      %v650 = vsel %vm562, %v525, 0.0
      %651 = vadd.xlane.f32.xlu0 %v650
      %v652 = vpop.xlane.xlu0 %651
      %v653 = vsel %vm562, %v526, 0.0
      %654 = vadd.xlane.f32.xlu0 %v653
      %v655 = vpop.xlane.xlu0 %654
      %v656 = vsel %vm562, %v527, 0.0
      %657 = vadd.xlane.f32.xlu0 %v656
      %v658 = vpop.xlane.xlu0 %657
      %v659 = vsel %vm562, %v528, 0.0
      %660 = vadd.xlane.f32.xlu0 %v659
      %v661 = vpop.xlane.xlu0 %660
      %v662 = vsel %vm562, %v529, 0.0
      %663 = vadd.xlane.f32.xlu0 %v662
      %v664 = vpop.xlane.xlu0 %663
      %v665 = vsel %vm562, %v530, 0.0
      %666 = vadd.xlane.f32.xlu0 %v665
      %v667 = vpop.xlane.xlu0 %666
      %v668 = vsel %vm562, %v531, 0.0
      %669 = vadd.xlane.f32.xlu0 %v668
      %v670 = vpop.xlane.xlu0 %669
      %v671 = vsel %vm562, %v532, 0.0
      %672 = vadd.xlane.f32.xlu0 %v671
      %v673 = vpop.xlane.xlu0 %672
      %v674 = vsel %vm562, %v533, 0.0
      %675 = vadd.xlane.f32.xlu0 %v674
      %v676 = vpop.xlane.xlu0 %675
      %v677 = vsel %vm562, %v534, 0.0
      %678 = vadd.xlane.f32.xlu0 %v677
      %v679 = vpop.xlane.xlu0 %678
      %v680 = vsel %vm562, %v535, 0.0
      %681 = vadd.xlane.f32.xlu0 %v680
      %v682 = vpop.xlane.xlu0 %681
      %v683 = vsel %vm562, %v536, 0.0
      %684 = vadd.xlane.f32.xlu0 %v683
      %v685 = vpop.xlane.xlu0 %684
      %v686 = vsel %vm562, %v537, 0.0
      %687 = vadd.xlane.f32.xlu0 %v686
      %v688 = vpop.xlane.xlu0 %687
      %v689 = vsel %vm562, %v538, 0.0
      %690 = vadd.xlane.f32.xlu0 %v689
      %v691 = vpop.xlane.xlu0 %690
      %v692 = vsel %vm562, %v539, 0.0
      %693 = vadd.xlane.f32.xlu0 %v692
      %v694 = vpop.xlane.xlu0 %693
      %v695 = vsel %vm562, %v540, 0.0
      %696 = vadd.xlane.f32.xlu0 %v695
      %v697 = vpop.xlane.xlu0 %696
      %v698 = vsel %vm562, %v541, 0.0
      %699 = vadd.xlane.f32.xlu0 %v698
      %v700 = vpop.xlane.xlu0 %699
      %v701 = vsel %vm562, %v542, 0.0
      %702 = vadd.xlane.f32.xlu0 %v701
      %v703 = vpop.xlane.xlu0 %702
      %v704 = vsel %vm562, %v543, 0.0
      %705 = vadd.xlane.f32.xlu0 %v704
      %v706 = vpop.xlane.xlu0 %705
      %v707 = vsel %vm562, %v544, 0.0
      %708 = vadd.xlane.f32.xlu0 %v707
      %v709 = vpop.xlane.xlu0 %708
      %v710 = vsel %vm562, %v545, 0.0
      %711 = vadd.xlane.f32.xlu0 %v710
      %v712 = vpop.xlane.xlu0 %711
      %v713 = vsel %vm562, %v546, 0.0
      %714 = vadd.xlane.f32.xlu0 %v713
      %v715 = vpop.xlane.xlu0 %714
      %v716 = vsel %vm562, %v547, 0.0
      %717 = vadd.xlane.f32.xlu0 %v716
      %v718 = vpop.xlane.xlu0 %717
      %v719 = vsel %vm562, %v548, 0.0
      %720 = vadd.xlane.f32.xlu0 %v719
      %v721 = vpop.xlane.xlu0 %720
      %v722 = vsel %vm562, %v549, 0.0
      %723 = vadd.xlane.f32.xlu0 %v722
      %v724 = vpop.xlane.xlu0 %723
      %v725 = vsel %vm562, %v550, 0.0
      %726 = vadd.xlane.f32.xlu0 %v725
      %v727 = vpop.xlane.xlu0 %726
      %v728 = vsel %vm562, %v551, 0.0
      %729 = vadd.xlane.f32.xlu0 %v728
      %v730 = vpop.xlane.xlu0 %729
      %v731 = vsel %vm562, %v552, 0.0
      %732 = vadd.xlane.f32.xlu0 %v731
      %v733 = vpop.xlane.xlu0 %732
      %v734 = vsel %vm562, %v553, 0.0
      %735 = vadd.xlane.f32.xlu0 %v734
      %v736 = vpop.xlane.xlu0 %735
      %v737 = vsel %vm562, %v554, 0.0
      %738 = vadd.xlane.f32.xlu0 %v737
      %v739 = vpop.xlane.xlu0 %738
      %v740 = vsel %vm562, %v555, 0.0
      %741 = vadd.xlane.f32.xlu0 %v740
      %v742 = vpop.xlane.xlu0 %741
      %v743 = vsel %vm562, %v556, 0.0
      %744 = vadd.xlane.f32.xlu0 %v743
      %v745 = vpop.xlane.xlu0 %744
      %v746 = vsel %vm562, %v557, 0.0
      %747 = vadd.xlane.f32.xlu0 %v746
      %v748 = vpop.xlane.xlu0 %747
      %v749 = vsel %vm562, %v558, 0.0
      %750 = vadd.xlane.f32.xlu0 %v749
      %v751 = vpop.xlane.xlu0 %750
      %v752 = vsel %vm562, %v559, 0.0
      %753 = vadd.xlane.f32.xlu0 %v752
      %v754 = vpop.xlane.xlu0 %753
      %v755 = vrcp.pop 32.0
      %v756 = vmul.f32 %v565, %v755
      %v757 = vmul.f32 %v568, %v755
      %v758 = vmul.f32 %v571, %v755
      %v759 = vmul.f32 %v574, %v755
      %v760 = vmul.f32 %v577, %v755
      %v761 = vmul.f32 %v580, %v755
      %v762 = vmul.f32 %v583, %v755
      %v763 = vmul.f32 %v586, %v755
      %v764 = vmul.f32 %v589, %v755
      %v765 = vmul.f32 %v592, %v755
      %v766 = vmul.f32 %v595, %v755
      %v767 = vmul.f32 %v598, %v755
      %v768 = vmul.f32 %v601, %v755
      %v769 = vmul.f32 %v604, %v755
      %v770 = vmul.f32 %v607, %v755
      %v771 = vmul.f32 %v610, %v755
      %v772 = vmul.f32 %v613, %v755
      %v773 = vmul.f32 %v616, %v755
      %v774 = vmul.f32 %v619, %v755
      %v775 = vmul.f32 %v622, %v755
      %v776 = vmul.f32 %v625, %v755
      %v777 = vmul.f32 %v628, %v755
      %v778 = vmul.f32 %v631, %v755
      %v779 = vmul.f32 %v634, %v755
      %v780 = vmul.f32 %v637, %v755
      %v781 = vmul.f32 %v640, %v755
      %v782 = vmul.f32 %v643, %v755
      %v783 = vmul.f32 %v646, %v755
      %v784 = vmul.f32 %v649, %v755
      %v785 = vmul.f32 %v652, %v755
      %v786 = vmul.f32 %v655, %v755
      %v787 = vmul.f32 %v658, %v755
      %v788 = vmul.f32 %v661, %v755
      %v789 = vmul.f32 %v664, %v755
      %v790 = vmul.f32 %v667, %v755
      %v791 = vmul.f32 %v670, %v755
      %v792 = vmul.f32 %v673, %v755
      %v793 = vmul.f32 %v676, %v755
      %v794 = vmul.f32 %v679, %v755
      %v795 = vmul.f32 %v682, %v755
      %v796 = vmul.f32 %v685, %v755
      %v797 = vmul.f32 %v688, %v755
      %v798 = vmul.f32 %v691, %v755
      %v799 = vmul.f32 %v694, %v755
      %v800 = vmul.f32 %v697, %v755
      %v801 = vmul.f32 %v700, %v755
      %v802 = vmul.f32 %v703, %v755
      %v803 = vmul.f32 %v706, %v755
      %v804 = vmul.f32 %v709, %v755
      %v805 = vmul.f32 %v712, %v755
      %v806 = vmul.f32 %v715, %v755
      %v807 = vmul.f32 %v718, %v755
      %v808 = vmul.f32 %v721, %v755
      %v809 = vmul.f32 %v724, %v755
      %v810 = vmul.f32 %v727, %v755
      %v811 = vmul.f32 %v730, %v755
      %v812 = vmul.f32 %v733, %v755
      %v813 = vmul.f32 %v736, %v755
      %v814 = vmul.f32 %v739, %v755
      %v815 = vmul.f32 %v742, %v755
      %v816 = vmul.f32 %v745, %v755
      %v817 = vmul.f32 %v748, %v755
      %v818 = vmul.f32 %v751, %v755
      %v819 = vmul.f32 %v754, %v755
      %v820 = vsub.f32 %v496, %v756
      %v821 = vsub.f32 %v497, %v757
      %v822 = vsub.f32 %v498, %v758
      %v823 = vsub.f32 %v499, %v759
      %v824 = vsub.f32 %v500, %v760
      %v825 = vsub.f32 %v501, %v761
      %v826 = vsub.f32 %v502, %v762
      %v827 = vsub.f32 %v503, %v763
      %v828 = vsub.f32 %v504, %v764
      %v829 = vsub.f32 %v505, %v765
      %v830 = vsub.f32 %v506, %v766
      %v831 = vsub.f32 %v507, %v767
      %v832 = vsub.f32 %v508, %v768
      %v833 = vsub.f32 %v509, %v769
      %v834 = vsub.f32 %v510, %v770
      %v835 = vsub.f32 %v511, %v771
      %v836 = vsub.f32 %v512, %v772
      %v837 = vsub.f32 %v513, %v773
      %v838 = vsub.f32 %v514, %v774
      %v839 = vsub.f32 %v515, %v775
      %v840 = vsub.f32 %v516, %v776
      %v841 = vsub.f32 %v517, %v777
      %v842 = vsub.f32 %v518, %v778
      %v843 = vsub.f32 %v519, %v779
      %v844 = vsub.f32 %v520, %v780
      %v845 = vsub.f32 %v521, %v781
      %v846 = vsub.f32 %v522, %v782
      %v847 = vsub.f32 %v523, %v783
      %v848 = vsub.f32 %v524, %v784
      %v849 = vsub.f32 %v525, %v785
      %v850 = vsub.f32 %v526, %v786
      %v851 = vsub.f32 %v527, %v787
      %v852 = vsub.f32 %v528, %v788
      %v853 = vsub.f32 %v529, %v789
      %v854 = vsub.f32 %v530, %v790
      %v855 = vsub.f32 %v531, %v791
      %v856 = vsub.f32 %v532, %v792
      %v857 = vsub.f32 %v533, %v793
      %v858 = vsub.f32 %v534, %v794
      %v859 = vsub.f32 %v535, %v795
      %v860 = vsub.f32 %v536, %v796
      %v861 = vsub.f32 %v537, %v797
      %v862 = vsub.f32 %v538, %v798
      %v863 = vsub.f32 %v539, %v799
      %v864 = vsub.f32 %v540, %v800
      %v865 = vsub.f32 %v541, %v801
      %v866 = vsub.f32 %v542, %v802
      %v867 = vsub.f32 %v543, %v803
      %v868 = vsub.f32 %v544, %v804
      %v869 = vsub.f32 %v545, %v805
      %v870 = vsub.f32 %v546, %v806
      %v871 = vsub.f32 %v547, %v807
      %v872 = vsub.f32 %v548, %v808
      %v873 = vsub.f32 %v549, %v809
      %v874 = vsub.f32 %v550, %v810
      %v875 = vsub.f32 %v551, %v811
      %v876 = vsub.f32 %v552, %v812
      %v877 = vsub.f32 %v553, %v813
      %v878 = vsub.f32 %v554, %v814
      %v879 = vsub.f32 %v555, %v815
      %v880 = vsub.f32 %v556, %v816
      %v881 = vsub.f32 %v557, %v817
      %v882 = vsub.f32 %v558, %v818
      %v883 = vsub.f32 %v559, %v819
      %v884 = vmul.f32 %v820, %v820
      %v885 = vmul.f32 %v821, %v821
      %v886 = vmul.f32 %v822, %v822
      %v887 = vmul.f32 %v823, %v823
      %v888 = vmul.f32 %v824, %v824
      %v889 = vmul.f32 %v825, %v825
      %v890 = vmul.f32 %v826, %v826
      %v891 = vmul.f32 %v827, %v827
      %v892 = vmul.f32 %v828, %v828
      %v893 = vmul.f32 %v829, %v829
      %v894 = vmul.f32 %v830, %v830
      %v895 = vmul.f32 %v831, %v831
      %v896 = vmul.f32 %v832, %v832
      %v897 = vmul.f32 %v833, %v833
      %v898 = vmul.f32 %v834, %v834
      %v899 = vmul.f32 %v835, %v835
      %v900 = vmul.f32 %v836, %v836
      %v901 = vmul.f32 %v837, %v837
      %v902 = vmul.f32 %v838, %v838
      %v903 = vmul.f32 %v839, %v839
      %v904 = vmul.f32 %v840, %v840
      %v905 = vmul.f32 %v841, %v841
      %v906 = vmul.f32 %v842, %v842
      %v907 = vmul.f32 %v843, %v843
      %v908 = vmul.f32 %v844, %v844
      %v909 = vmul.f32 %v845, %v845
      %v910 = vmul.f32 %v846, %v846
      %v911 = vmul.f32 %v847, %v847
      %v912 = vmul.f32 %v848, %v848
      %v913 = vmul.f32 %v849, %v849
      %v914 = vmul.f32 %v850, %v850
      %v915 = vmul.f32 %v851, %v851
      %v916 = vmul.f32 %v852, %v852
      %v917 = vmul.f32 %v853, %v853
      %v918 = vmul.f32 %v854, %v854
      %v919 = vmul.f32 %v855, %v855
      %v920 = vmul.f32 %v856, %v856
      %v921 = vmul.f32 %v857, %v857
      %v922 = vmul.f32 %v858, %v858
      %v923 = vmul.f32 %v859, %v859
      %v924 = vmul.f32 %v860, %v860
      %v925 = vmul.f32 %v861, %v861
      %v926 = vmul.f32 %v862, %v862
      %v927 = vmul.f32 %v863, %v863
      %v928 = vmul.f32 %v864, %v864
      %v929 = vmul.f32 %v865, %v865
      %v930 = vmul.f32 %v866, %v866
      %v931 = vmul.f32 %v867, %v867
      %v932 = vmul.f32 %v868, %v868
      %v933 = vmul.f32 %v869, %v869
      %v934 = vmul.f32 %v870, %v870
      %v935 = vmul.f32 %v871, %v871
      %v936 = vmul.f32 %v872, %v872
      %v937 = vmul.f32 %v873, %v873
      %v938 = vmul.f32 %v874, %v874
      %v939 = vmul.f32 %v875, %v875
      %v940 = vmul.f32 %v876, %v876
      %v941 = vmul.f32 %v877, %v877
      %v942 = vmul.f32 %v878, %v878
      %v943 = vmul.f32 %v879, %v879
      %v944 = vmul.f32 %v880, %v880
      %v945 = vmul.f32 %v881, %v881
      %v946 = vmul.f32 %v882, %v882
      %v947 = vmul.f32 %v883, %v883
      %v948 = vsel %vm562, %v884, 0.0
      %949 = vadd.xlane.f32.xlu0 %v948
      %v950 = vpop.xlane.xlu0 %949
      %v951 = vsel %vm562, %v885, 0.0
      %952 = vadd.xlane.f32.xlu0 %v951
      %v953 = vpop.xlane.xlu0 %952
      %v954 = vsel %vm562, %v886, 0.0
      %955 = vadd.xlane.f32.xlu0 %v954
      %v956 = vpop.xlane.xlu0 %955
      %v957 = vsel %vm562, %v887, 0.0
      %958 = vadd.xlane.f32.xlu0 %v957
      %v959 = vpop.xlane.xlu0 %958
      %v960 = vsel %vm562, %v888, 0.0
      %961 = vadd.xlane.f32.xlu0 %v960
      %v962 = vpop.xlane.xlu0 %961
      %v963 = vsel %vm562, %v889, 0.0
      %964 = vadd.xlane.f32.xlu0 %v963
      %v965 = vpop.xlane.xlu0 %964
      %v966 = vsel %vm562, %v890, 0.0
      %967 = vadd.xlane.f32.xlu0 %v966
      %v968 = vpop.xlane.xlu0 %967
      %v969 = vsel %vm562, %v891, 0.0
      %970 = vadd.xlane.f32.xlu0 %v969
      %v971 = vpop.xlane.xlu0 %970
      %v972 = vsel %vm562, %v892, 0.0
      %973 = vadd.xlane.f32.xlu0 %v972
      %v974 = vpop.xlane.xlu0 %973
      %v975 = vsel %vm562, %v893, 0.0
      %976 = vadd.xlane.f32.xlu0 %v975
      %v977 = vpop.xlane.xlu0 %976
      %v978 = vsel %vm562, %v894, 0.0
      %979 = vadd.xlane.f32.xlu0 %v978
      %v980 = vpop.xlane.xlu0 %979
      %v981 = vsel %vm562, %v895, 0.0
      %982 = vadd.xlane.f32.xlu0 %v981
      %v983 = vpop.xlane.xlu0 %982
      %v984 = vsel %vm562, %v896, 0.0
      %985 = vadd.xlane.f32.xlu0 %v984
      %v986 = vpop.xlane.xlu0 %985
      %v987 = vsel %vm562, %v897, 0.0
      %988 = vadd.xlane.f32.xlu0 %v987
      %v989 = vpop.xlane.xlu0 %988
      %v990 = vsel %vm562, %v898, 0.0
      %991 = vadd.xlane.f32.xlu0 %v990
      %v992 = vpop.xlane.xlu0 %991
      %v993 = vsel %vm562, %v899, 0.0
      %994 = vadd.xlane.f32.xlu0 %v993
      %v995 = vpop.xlane.xlu0 %994
      %v996 = vsel %vm562, %v900, 0.0
      %997 = vadd.xlane.f32.xlu0 %v996
      %v998 = vpop.xlane.xlu0 %997
      %v999 = vsel %vm562, %v901, 0.0
      %1000 = vadd.xlane.f32.xlu0 %v999
      %v1001 = vpop.xlane.xlu0 %1000
      %v1002 = vsel %vm562, %v902, 0.0
      %1003 = vadd.xlane.f32.xlu0 %v1002
      %v1004 = vpop.xlane.xlu0 %1003
      %v1005 = vsel %vm562, %v903, 0.0
      %1006 = vadd.xlane.f32.xlu0 %v1005
      %v1007 = vpop.xlane.xlu0 %1006
      %v1008 = vsel %vm562, %v904, 0.0
      %1009 = vadd.xlane.f32.xlu0 %v1008
      %v1010 = vpop.xlane.xlu0 %1009
      %v1011 = vsel %vm562, %v905, 0.0
      %1012 = vadd.xlane.f32.xlu0 %v1011
      %v1013 = vpop.xlane.xlu0 %1012
      %v1014 = vsel %vm562, %v906, 0.0
      %1015 = vadd.xlane.f32.xlu0 %v1014
      %v1016 = vpop.xlane.xlu0 %1015
      %v1017 = vsel %vm562, %v907, 0.0
      %1018 = vadd.xlane.f32.xlu0 %v1017
      %v1019 = vpop.xlane.xlu0 %1018
      %v1020 = vsel %vm562, %v908, 0.0
      %1021 = vadd.xlane.f32.xlu0 %v1020
      %v1022 = vpop.xlane.xlu0 %1021
      %v1023 = vsel %vm562, %v909, 0.0
      %1024 = vadd.xlane.f32.xlu0 %v1023
      %v1025 = vpop.xlane.xlu0 %1024
      %v1026 = vsel %vm562, %v910, 0.0
      %1027 = vadd.xlane.f32.xlu0 %v1026
      %v1028 = vpop.xlane.xlu0 %1027
      %v1029 = vsel %vm562, %v911, 0.0
      %1030 = vadd.xlane.f32.xlu0 %v1029
      %v1031 = vpop.xlane.xlu0 %1030
      %v1032 = vsel %vm562, %v912, 0.0
      %1033 = vadd.xlane.f32.xlu0 %v1032
      %v1034 = vpop.xlane.xlu0 %1033
      %v1035 = vsel %vm562, %v913, 0.0
      %1036 = vadd.xlane.f32.xlu0 %v1035
      %v1037 = vpop.xlane.xlu0 %1036
      %v1038 = vsel %vm562, %v914, 0.0
      %1039 = vadd.xlane.f32.xlu0 %v1038
      %v1040 = vpop.xlane.xlu0 %1039
      %v1041 = vsel %vm562, %v915, 0.0
      %1042 = vadd.xlane.f32.xlu0 %v1041
      %v1043 = vpop.xlane.xlu0 %1042
      %v1044 = vsel %vm562, %v916, 0.0
      %1045 = vadd.xlane.f32.xlu0 %v1044
      %v1046 = vpop.xlane.xlu0 %1045
      %v1047 = vsel %vm562, %v917, 0.0
      %1048 = vadd.xlane.f32.xlu0 %v1047
      %v1049 = vpop.xlane.xlu0 %1048
      %v1050 = vsel %vm562, %v918, 0.0
      %1051 = vadd.xlane.f32.xlu0 %v1050
      %v1052 = vpop.xlane.xlu0 %1051
      %v1053 = vsel %vm562, %v919, 0.0
      %1054 = vadd.xlane.f32.xlu0 %v1053
      %v1055 = vpop.xlane.xlu0 %1054
      %v1056 = vsel %vm562, %v920, 0.0
      %1057 = vadd.xlane.f32.xlu0 %v1056
      %v1058 = vpop.xlane.xlu0 %1057
      %v1059 = vsel %vm562, %v921, 0.0
      %1060 = vadd.xlane.f32.xlu0 %v1059
      %v1061 = vpop.xlane.xlu0 %1060
      %v1062 = vsel %vm562, %v922, 0.0
      %1063 = vadd.xlane.f32.xlu0 %v1062
      %v1064 = vpop.xlane.xlu0 %1063
      %v1065 = vsel %vm562, %v923, 0.0
      %1066 = vadd.xlane.f32.xlu0 %v1065
      %v1067 = vpop.xlane.xlu0 %1066
      %v1068 = vsel %vm562, %v924, 0.0
      %1069 = vadd.xlane.f32.xlu0 %v1068
      %v1070 = vpop.xlane.xlu0 %1069
      %v1071 = vsel %vm562, %v925, 0.0
      %1072 = vadd.xlane.f32.xlu0 %v1071
      %v1073 = vpop.xlane.xlu0 %1072
      %v1074 = vsel %vm562, %v926, 0.0
      %1075 = vadd.xlane.f32.xlu0 %v1074
      %v1076 = vpop.xlane.xlu0 %1075
      %v1077 = vsel %vm562, %v927, 0.0
      %1078 = vadd.xlane.f32.xlu0 %v1077
      %v1079 = vpop.xlane.xlu0 %1078
      %v1080 = vsel %vm562, %v928, 0.0
      %1081 = vadd.xlane.f32.xlu0 %v1080
      %v1082 = vpop.xlane.xlu0 %1081
      %v1083 = vsel %vm562, %v929, 0.0
      %1084 = vadd.xlane.f32.xlu0 %v1083
      %v1085 = vpop.xlane.xlu0 %1084
      %v1086 = vsel %vm562, %v930, 0.0
      %1087 = vadd.xlane.f32.xlu0 %v1086
      %v1088 = vpop.xlane.xlu0 %1087
      %v1089 = vsel %vm562, %v931, 0.0
      %1090 = vadd.xlane.f32.xlu0 %v1089
      %v1091 = vpop.xlane.xlu0 %1090
      %v1092 = vsel %vm562, %v932, 0.0
      %1093 = vadd.xlane.f32.xlu0 %v1092
      %v1094 = vpop.xlane.xlu0 %1093
      %v1095 = vsel %vm562, %v933, 0.0
      %1096 = vadd.xlane.f32.xlu0 %v1095
      %v1097 = vpop.xlane.xlu0 %1096
      %v1098 = vsel %vm562, %v934, 0.0
      %1099 = vadd.xlane.f32.xlu0 %v1098
      %v1100 = vpop.xlane.xlu0 %1099
      %v1101 = vsel %vm562, %v935, 0.0
      %1102 = vadd.xlane.f32.xlu0 %v1101
      %v1103 = vpop.xlane.xlu0 %1102
      %v1104 = vsel %vm562, %v936, 0.0
      %1105 = vadd.xlane.f32.xlu0 %v1104
      %v1106 = vpop.xlane.xlu0 %1105
      %v1107 = vsel %vm562, %v937, 0.0
      %1108 = vadd.xlane.f32.xlu0 %v1107
      %v1109 = vpop.xlane.xlu0 %1108
      %v1110 = vsel %vm562, %v938, 0.0
      %1111 = vadd.xlane.f32.xlu0 %v1110
      %v1112 = vpop.xlane.xlu0 %1111
      %v1113 = vsel %vm562, %v939, 0.0
      %1114 = vadd.xlane.f32.xlu0 %v1113
      %v1115 = vpop.xlane.xlu0 %1114
      %v1116 = vsel %vm562, %v940, 0.0
      %1117 = vadd.xlane.f32.xlu0 %v1116
      %v1118 = vpop.xlane.xlu0 %1117
      %v1119 = vsel %vm562, %v941, 0.0
      %1120 = vadd.xlane.f32.xlu0 %v1119
      %v1121 = vpop.xlane.xlu0 %1120
      %v1122 = vsel %vm562, %v942, 0.0
      %1123 = vadd.xlane.f32.xlu0 %v1122
      %v1124 = vpop.xlane.xlu0 %1123
      %v1125 = vsel %vm562, %v943, 0.0
      %1126 = vadd.xlane.f32.xlu0 %v1125
      %v1127 = vpop.xlane.xlu0 %1126
      %v1128 = vsel %vm562, %v944, 0.0
      %1129 = vadd.xlane.f32.xlu0 %v1128
      %v1130 = vpop.xlane.xlu0 %1129
      %v1131 = vsel %vm562, %v945, 0.0
      %1132 = vadd.xlane.f32.xlu0 %v1131
      %v1133 = vpop.xlane.xlu0 %1132
      %v1134 = vsel %vm562, %v946, 0.0
      %1135 = vadd.xlane.f32.xlu0 %v1134
      %v1136 = vpop.xlane.xlu0 %1135
      %v1137 = vsel %vm562, %v947, 0.0
      %1138 = vadd.xlane.f32.xlu0 %v1137
      %v1139 = vpop.xlane.xlu0 %1138
      %v1140 = vmul.f32 %v950, %v755
      %v1141 = vmul.f32 %v953, %v755
      %v1142 = vmul.f32 %v956, %v755
      %v1143 = vmul.f32 %v959, %v755
      %v1144 = vmul.f32 %v962, %v755
      %v1145 = vmul.f32 %v965, %v755
      %v1146 = vmul.f32 %v968, %v755
      %v1147 = vmul.f32 %v971, %v755
      %v1148 = vmul.f32 %v974, %v755
      %v1149 = vmul.f32 %v977, %v755
      %v1150 = vmul.f32 %v980, %v755
      %v1151 = vmul.f32 %v983, %v755
      %v1152 = vmul.f32 %v986, %v755
      %v1153 = vmul.f32 %v989, %v755
      %v1154 = vmul.f32 %v992, %v755
      %v1155 = vmul.f32 %v995, %v755
      %v1156 = vmul.f32 %v998, %v755
      %v1157 = vmul.f32 %v1001, %v755
      %v1158 = vmul.f32 %v1004, %v755
      %v1159 = vmul.f32 %v1007, %v755
      %v1160 = vmul.f32 %v1010, %v755
      %v1161 = vmul.f32 %v1013, %v755
      %v1162 = vmul.f32 %v1016, %v755
      %v1163 = vmul.f32 %v1019, %v755
      %v1164 = vmul.f32 %v1022, %v755
      %v1165 = vmul.f32 %v1025, %v755
      %v1166 = vmul.f32 %v1028, %v755
      %v1167 = vmul.f32 %v1031, %v755
      %v1168 = vmul.f32 %v1034, %v755
      %v1169 = vmul.f32 %v1037, %v755
      %v1170 = vmul.f32 %v1040, %v755
      %v1171 = vmul.f32 %v1043, %v755
      %v1172 = vmul.f32 %v1046, %v755
      %v1173 = vmul.f32 %v1049, %v755
      %v1174 = vmul.f32 %v1052, %v755
      %v1175 = vmul.f32 %v1055, %v755
      %v1176 = vmul.f32 %v1058, %v755
      %v1177 = vmul.f32 %v1061, %v755
      %v1178 = vmul.f32 %v1064, %v755
      %v1179 = vmul.f32 %v1067, %v755
      %v1180 = vmul.f32 %v1070, %v755
      %v1181 = vmul.f32 %v1073, %v755
      %v1182 = vmul.f32 %v1076, %v755
      %v1183 = vmul.f32 %v1079, %v755
      %v1184 = vmul.f32 %v1082, %v755
      %v1185 = vmul.f32 %v1085, %v755
      %v1186 = vmul.f32 %v1088, %v755
      %v1187 = vmul.f32 %v1091, %v755
      %v1188 = vmul.f32 %v1094, %v755
      %v1189 = vmul.f32 %v1097, %v755
      %v1190 = vmul.f32 %v1100, %v755
      %v1191 = vmul.f32 %v1103, %v755
      %v1192 = vmul.f32 %v1106, %v755
      %v1193 = vmul.f32 %v1109, %v755
      %v1194 = vmul.f32 %v1112, %v755
      %v1195 = vmul.f32 %v1115, %v755
      %v1196 = vmul.f32 %v1118, %v755
      %v1197 = vmul.f32 %v1121, %v755
      %v1198 = vmul.f32 %v1124, %v755
      %v1199 = vmul.f32 %v1127, %v755
      %v1200 = vmul.f32 %v1130, %v755
      %v1201 = vmul.f32 %v1133, %v755
      %v1202 = vmul.f32 %v1136, %v755
      %v1203 = vmul.f32 %v1139, %v755
      %v1204 = vadd.f32 %v1140, 1e-05
      %v1205 = vadd.f32 %v1141, 1e-05
      %v1206 = vadd.f32 %v1142, 1e-05
      %v1207 = vadd.f32 %v1143, 1e-05
      %v1208 = vadd.f32 %v1144, 1e-05
      %v1209 = vadd.f32 %v1145, 1e-05
      %v1210 = vadd.f32 %v1146, 1e-05
      %v1211 = vadd.f32 %v1147, 1e-05
      %v1212 = vadd.f32 %v1148, 1e-05
      %v1213 = vadd.f32 %v1149, 1e-05
      %v1214 = vadd.f32 %v1150, 1e-05
      %v1215 = vadd.f32 %v1151, 1e-05
      %v1216 = vadd.f32 %v1152, 1e-05
      %v1217 = vadd.f32 %v1153, 1e-05
      %v1218 = vadd.f32 %v1154, 1e-05
      %v1219 = vadd.f32 %v1155, 1e-05
      %v1220 = vadd.f32 %v1156, 1e-05
      %v1221 = vadd.f32 %v1157, 1e-05
      %v1222 = vadd.f32 %v1158, 1e-05
      %v1223 = vadd.f32 %v1159, 1e-05
      %v1224 = vadd.f32 %v1160, 1e-05
      %v1225 = vadd.f32 %v1161, 1e-05
      %v1226 = vadd.f32 %v1162, 1e-05
      %v1227 = vadd.f32 %v1163, 1e-05
      %v1228 = vadd.f32 %v1164, 1e-05
      %v1229 = vadd.f32 %v1165, 1e-05
      %v1230 = vadd.f32 %v1166, 1e-05
      %v1231 = vadd.f32 %v1167, 1e-05
      %v1232 = vadd.f32 %v1168, 1e-05
      %v1233 = vadd.f32 %v1169, 1e-05
      %v1234 = vadd.f32 %v1170, 1e-05
      %v1235 = vadd.f32 %v1171, 1e-05
      %v1236 = vadd.f32 %v1172, 1e-05
      %v1237 = vadd.f32 %v1173, 1e-05
      %v1238 = vadd.f32 %v1174, 1e-05
      %v1239 = vadd.f32 %v1175, 1e-05
      %v1240 = vadd.f32 %v1176, 1e-05
      %v1241 = vadd.f32 %v1177, 1e-05
      %v1242 = vadd.f32 %v1178, 1e-05
      %v1243 = vadd.f32 %v1179, 1e-05
      %v1244 = vadd.f32 %v1180, 1e-05
      %v1245 = vadd.f32 %v1181, 1e-05
      %v1246 = vadd.f32 %v1182, 1e-05
      %v1247 = vadd.f32 %v1183, 1e-05
      %v1248 = vadd.f32 %v1184, 1e-05
      %v1249 = vadd.f32 %v1185, 1e-05
      %v1250 = vadd.f32 %v1186, 1e-05
      %v1251 = vadd.f32 %v1187, 1e-05
      %v1252 = vadd.f32 %v1188, 1e-05
      %v1253 = vadd.f32 %v1189, 1e-05
      %v1254 = vadd.f32 %v1190, 1e-05
      %v1255 = vadd.f32 %v1191, 1e-05
      %v1256 = vadd.f32 %v1192, 1e-05
      %v1257 = vadd.f32 %v1193, 1e-05
      %v1258 = vadd.f32 %v1194, 1e-05
      %v1259 = vadd.f32 %v1195, 1e-05
      %v1260 = vadd.f32 %v1196, 1e-05
      %v1261 = vadd.f32 %v1197, 1e-05
      %v1262 = vadd.f32 %v1198, 1e-05
      %v1263 = vadd.f32 %v1199, 1e-05
      %v1264 = vadd.f32 %v1200, 1e-05
      %v1265 = vadd.f32 %v1201, 1e-05
      %v1266 = vadd.f32 %v1202, 1e-05
      %v1267 = vadd.f32 %v1203, 1e-05
      %v1268 = vrsqrt.pop %v1204
      %v1269 = vrsqrt.pop %v1205
      %v1270 = vrsqrt.pop %v1206
      %v1271 = vrsqrt.pop %v1207
      %v1272 = vrsqrt.pop %v1208
      %v1273 = vrsqrt.pop %v1209
      %v1274 = vrsqrt.pop %v1210
      %v1275 = vrsqrt.pop %v1211
      %v1276 = vrsqrt.pop %v1212
      %v1277 = vrsqrt.pop %v1213
      %v1278 = vrsqrt.pop %v1214
      %v1279 = vrsqrt.pop %v1215
      %v1280 = vrsqrt.pop %v1216
      %v1281 = vrsqrt.pop %v1217
      %v1282 = vrsqrt.pop %v1218
      %v1283 = vrsqrt.pop %v1219
      %v1284 = vrsqrt.pop %v1220
      %v1285 = vrsqrt.pop %v1221
      %v1286 = vrsqrt.pop %v1222
      %v1287 = vrsqrt.pop %v1223
      %v1288 = vrsqrt.pop %v1224
      %v1289 = vrsqrt.pop %v1225
      %v1290 = vrsqrt.pop %v1226
      %v1291 = vrsqrt.pop %v1227
      %v1292 = vrsqrt.pop %v1228
      %v1293 = vrsqrt.pop %v1229
      %v1294 = vrsqrt.pop %v1230
      %v1295 = vrsqrt.pop %v1231
      %v1296 = vrsqrt.pop %v1232
      %v1297 = vrsqrt.pop %v1233
      %v1298 = vrsqrt.pop %v1234
      %v1299 = vrsqrt.pop %v1235
      %v1300 = vrsqrt.pop %v1236
      %v1301 = vrsqrt.pop %v1237
      %v1302 = vrsqrt.pop %v1238
      %v1303 = vrsqrt.pop %v1239
      %v1304 = vrsqrt.pop %v1240
      %v1305 = vrsqrt.pop %v1241
      %v1306 = vrsqrt.pop %v1242
      %v1307 = vrsqrt.pop %v1243
      %v1308 = vrsqrt.pop %v1244
      %v1309 = vrsqrt.pop %v1245
      %v1310 = vrsqrt.pop %v1246
      %v1311 = vrsqrt.pop %v1247
      %v1312 = vrsqrt.pop %v1248
      %v1313 = vrsqrt.pop %v1249
      %v1314 = vrsqrt.pop %v1250
      %v1315 = vrsqrt.pop %v1251
      %v1316 = vrsqrt.pop %v1252
      %v1317 = vrsqrt.pop %v1253
      %v1318 = vrsqrt.pop %v1254
      %v1319 = vrsqrt.pop %v1255
      %v1320 = vrsqrt.pop %v1256
      %v1321 = vrsqrt.pop %v1257
      %v1322 = vrsqrt.pop %v1258
      %v1323 = vrsqrt.pop %v1259
      %v1324 = vrsqrt.pop %v1260
      %v1325 = vrsqrt.pop %v1261
      %v1326 = vrsqrt.pop %v1262
      %v1327 = vrsqrt.pop %v1263
      %v1328 = vrsqrt.pop %v1264
      %v1329 = vrsqrt.pop %v1265
      %v1330 = vrsqrt.pop %v1266
      %v1331 = vrsqrt.pop %v1267
      %v1332 = vmul.f32 %v820, %v1268
      %v1333 = vmul.f32 %v821, %v1269
      %v1334 = vmul.f32 %v822, %v1270
      %v1335 = vmul.f32 %v823, %v1271
      %v1336 = vmul.f32 %v824, %v1272
      %v1337 = vmul.f32 %v825, %v1273
      %v1338 = vmul.f32 %v826, %v1274
      %v1339 = vmul.f32 %v827, %v1275
      %v1340 = vmul.f32 %v828, %v1276
      %v1341 = vmul.f32 %v829, %v1277
      %v1342 = vmul.f32 %v830, %v1278
      %v1343 = vmul.f32 %v831, %v1279
      %v1344 = vmul.f32 %v832, %v1280
      %v1345 = vmul.f32 %v833, %v1281
      %v1346 = vmul.f32 %v834, %v1282
      %v1347 = vmul.f32 %v835, %v1283
      %v1348 = vmul.f32 %v836, %v1284
      %v1349 = vmul.f32 %v837, %v1285
      %v1350 = vmul.f32 %v838, %v1286
      %v1351 = vmul.f32 %v839, %v1287
      %v1352 = vmul.f32 %v840, %v1288
      %v1353 = vmul.f32 %v841, %v1289
      %v1354 = vmul.f32 %v842, %v1290
      %v1355 = vmul.f32 %v843, %v1291
      %v1356 = vmul.f32 %v844, %v1292
      %v1357 = vmul.f32 %v845, %v1293
      %v1358 = vmul.f32 %v846, %v1294
      %v1359 = vmul.f32 %v847, %v1295
      %v1360 = vmul.f32 %v848, %v1296
      %v1361 = vmul.f32 %v849, %v1297
      %v1362 = vmul.f32 %v850, %v1298
      %v1363 = vmul.f32 %v851, %v1299
      %v1364 = vmul.f32 %v852, %v1300
      %v1365 = vmul.f32 %v853, %v1301
      %v1366 = vmul.f32 %v854, %v1302
      %v1367 = vmul.f32 %v855, %v1303
      %v1368 = vmul.f32 %v856, %v1304
      %v1369 = vmul.f32 %v857, %v1305
      %v1370 = vmul.f32 %v858, %v1306
      %v1371 = vmul.f32 %v859, %v1307
      %v1372 = vmul.f32 %v860, %v1308
      %v1373 = vmul.f32 %v861, %v1309
      %v1374 = vmul.f32 %v862, %v1310
      %v1375 = vmul.f32 %v863, %v1311
      %v1376 = vmul.f32 %v864, %v1312
      %v1377 = vmul.f32 %v865, %v1313
      %v1378 = vmul.f32 %v866, %v1314
      %v1379 = vmul.f32 %v867, %v1315
      %v1380 = vmul.f32 %v868, %v1316
      %v1381 = vmul.f32 %v869, %v1317
      %v1382 = vmul.f32 %v870, %v1318
      %v1383 = vmul.f32 %v871, %v1319
      %v1384 = vmul.f32 %v872, %v1320
      %v1385 = vmul.f32 %v873, %v1321
      %v1386 = vmul.f32 %v874, %v1322
      %v1387 = vmul.f32 %v875, %v1323
      %v1388 = vmul.f32 %v876, %v1324
      %v1389 = vmul.f32 %v877, %v1325
      %v1390 = vmul.f32 %v878, %v1326
      %v1391 = vmul.f32 %v879, %v1327
      %v1392 = vmul.f32 %v880, %v1328
      %v1393 = vmul.f32 %v881, %v1329
      %v1394 = vmul.f32 %v882, %v1330
      %v1395 = vmul.f32 %v883, %v1331
      %v1397 = vlaneseq
      %v1398 = vshrl.u32 %v1397, 7
      %v1399 = vsub.s32 0, %v1398
      %v1400 = vrot.slane %v560, %v1399
      %v1402 = vmul.f32 %v1332, %v1400
      %v1403 = vmul.f32 %v1333, %v1400
      %v1404 = vmul.f32 %v1334, %v1400
      %v1405 = vmul.f32 %v1335, %v1400
      %v1406 = vmul.f32 %v1336, %v1400
      %v1407 = vmul.f32 %v1337, %v1400
      %v1408 = vmul.f32 %v1338, %v1400
      %v1409 = vmul.f32 %v1339, %v1400
      %v1410 = vmul.f32 %v1340, %v1400
      %v1411 = vmul.f32 %v1341, %v1400
      %v1412 = vmul.f32 %v1342, %v1400
      %v1413 = vmul.f32 %v1343, %v1400
      %v1414 = vmul.f32 %v1344, %v1400
      %v1415 = vmul.f32 %v1345, %v1400
      %v1416 = vmul.f32 %v1346, %v1400
      %v1417 = vmul.f32 %v1347, %v1400
      %v1418 = vmul.f32 %v1348, %v1400
      %v1419 = vmul.f32 %v1349, %v1400
      %v1420 = vmul.f32 %v1350, %v1400
      %v1421 = vmul.f32 %v1351, %v1400
      %v1422 = vmul.f32 %v1352, %v1400
      %v1423 = vmul.f32 %v1353, %v1400
      %v1424 = vmul.f32 %v1354, %v1400
      %v1425 = vmul.f32 %v1355, %v1400
      %v1426 = vmul.f32 %v1356, %v1400
      %v1427 = vmul.f32 %v1357, %v1400
      %v1428 = vmul.f32 %v1358, %v1400
      %v1429 = vmul.f32 %v1359, %v1400
      %v1430 = vmul.f32 %v1360, %v1400
      %v1431 = vmul.f32 %v1361, %v1400
      %v1432 = vmul.f32 %v1362, %v1400
      %v1433 = vmul.f32 %v1363, %v1400
      %v1434 = vmul.f32 %v1364, %v1400
      %v1435 = vmul.f32 %v1365, %v1400
      %v1436 = vmul.f32 %v1366, %v1400
      %v1437 = vmul.f32 %v1367, %v1400
      %v1438 = vmul.f32 %v1368, %v1400
      %v1439 = vmul.f32 %v1369, %v1400
      %v1440 = vmul.f32 %v1370, %v1400
      %v1441 = vmul.f32 %v1371, %v1400
      %v1442 = vmul.f32 %v1372, %v1400
      %v1443 = vmul.f32 %v1373, %v1400
      %v1444 = vmul.f32 %v1374, %v1400
      %v1445 = vmul.f32 %v1375, %v1400
      %v1446 = vmul.f32 %v1376, %v1400
      %v1447 = vmul.f32 %v1377, %v1400
      %v1448 = vmul.f32 %v1378, %v1400
      %v1449 = vmul.f32 %v1379, %v1400
      %v1450 = vmul.f32 %v1380, %v1400
      %v1451 = vmul.f32 %v1381, %v1400
      %v1452 = vmul.f32 %v1382, %v1400
      %v1453 = vmul.f32 %v1383, %v1400
      %v1454 = vmul.f32 %v1384, %v1400
      %v1455 = vmul.f32 %v1385, %v1400
      %v1456 = vmul.f32 %v1386, %v1400
      %v1457 = vmul.f32 %v1387, %v1400
      %v1458 = vmul.f32 %v1388, %v1400
      %v1459 = vmul.f32 %v1389, %v1400
      %v1460 = vmul.f32 %v1390, %v1400
      %v1461 = vmul.f32 %v1391, %v1400
      %v1462 = vmul.f32 %v1392, %v1400
      %v1463 = vmul.f32 %v1393, %v1400
      %v1464 = vmul.f32 %v1394, %v1400
      %v1465 = vmul.f32 %v1395, %v1400
      %v1467 = vlaneseq
      %v1468 = vshrl.u32 %v1467, 7
      %v1469 = vsub.s32 0, %v1468
      %v1470 = vrot.slane %v561, %v1469
      %v1472 = vadd.f32 %v1402, %v1470
      %v1473 = vadd.f32 %v1403, %v1470
      %v1474 = vadd.f32 %v1404, %v1470
      %v1475 = vadd.f32 %v1405, %v1470
      %v1476 = vadd.f32 %v1406, %v1470
      %v1477 = vadd.f32 %v1407, %v1470
      %v1478 = vadd.f32 %v1408, %v1470
      %v1479 = vadd.f32 %v1409, %v1470
      %v1480 = vadd.f32 %v1410, %v1470
      %v1481 = vadd.f32 %v1411, %v1470
      %v1482 = vadd.f32 %v1412, %v1470
      %v1483 = vadd.f32 %v1413, %v1470
      %v1484 = vadd.f32 %v1414, %v1470
      %v1485 = vadd.f32 %v1415, %v1470
      %v1486 = vadd.f32 %v1416, %v1470
      %v1487 = vadd.f32 %v1417, %v1470
      %v1488 = vadd.f32 %v1418, %v1470
      %v1489 = vadd.f32 %v1419, %v1470
      %v1490 = vadd.f32 %v1420, %v1470
      %v1491 = vadd.f32 %v1421, %v1470
      %v1492 = vadd.f32 %v1422, %v1470
      %v1493 = vadd.f32 %v1423, %v1470
      %v1494 = vadd.f32 %v1424, %v1470
      %v1495 = vadd.f32 %v1425, %v1470
      %v1496 = vadd.f32 %v1426, %v1470
      %v1497 = vadd.f32 %v1427, %v1470
      %v1498 = vadd.f32 %v1428, %v1470
      %v1499 = vadd.f32 %v1429, %v1470
      %v1500 = vadd.f32 %v1430, %v1470
      %v1501 = vadd.f32 %v1431, %v1470
      %v1502 = vadd.f32 %v1432, %v1470
      %v1503 = vadd.f32 %v1433, %v1470
      %v1504 = vadd.f32 %v1434, %v1470
      %v1505 = vadd.f32 %v1435, %v1470
      %v1506 = vadd.f32 %v1436, %v1470
      %v1507 = vadd.f32 %v1437, %v1470
      %v1508 = vadd.f32 %v1438, %v1470
      %v1509 = vadd.f32 %v1439, %v1470
      %v1510 = vadd.f32 %v1440, %v1470
      %v1511 = vadd.f32 %v1441, %v1470
      %v1512 = vadd.f32 %v1442, %v1470
      %v1513 = vadd.f32 %v1443, %v1470
      %v1514 = vadd.f32 %v1444, %v1470
      %v1515 = vadd.f32 %v1445, %v1470
      %v1516 = vadd.f32 %v1446, %v1470
      %v1517 = vadd.f32 %v1447, %v1470
      %v1518 = vadd.f32 %v1448, %v1470
      %v1519 = vadd.f32 %v1449, %v1470
      %v1520 = vadd.f32 %v1450, %v1470
      %v1521 = vadd.f32 %v1451, %v1470
      %v1522 = vadd.f32 %v1452, %v1470
      %v1523 = vadd.f32 %v1453, %v1470
      %v1524 = vadd.f32 %v1454, %v1470
      %v1525 = vadd.f32 %v1455, %v1470
      %v1526 = vadd.f32 %v1456, %v1470
      %v1527 = vadd.f32 %v1457, %v1470
      %v1528 = vadd.f32 %v1458, %v1470
      %v1529 = vadd.f32 %v1459, %v1470
      %v1530 = vadd.f32 %v1460, %v1470
      %v1531 = vadd.f32 %v1461, %v1470
      %v1532 = vadd.f32 %v1462, %v1470
      %v1533 = vadd.f32 %v1463, %v1470
      %v1534 = vadd.f32 %v1464, %v1470
      %v1535 = vadd.f32 %v1465, %v1470
      %v1536 = vpack.c.bf16 %v1473, %v1472
      %v1537 = vpack.c.bf16 %v1475, %v1474
      %v1538 = vpack.c.bf16 %v1477, %v1476
      %v1539 = vpack.c.bf16 %v1479, %v1478
      %v1540 = vpack.c.bf16 %v1481, %v1480
      %v1541 = vpack.c.bf16 %v1483, %v1482
      %v1542 = vpack.c.bf16 %v1485, %v1484
      %v1543 = vpack.c.bf16 %v1487, %v1486
      %v1544 = vpack.c.bf16 %v1489, %v1488
      %v1545 = vpack.c.bf16 %v1491, %v1490
      %v1546 = vpack.c.bf16 %v1493, %v1492
      %v1547 = vpack.c.bf16 %v1495, %v1494
      %v1548 = vpack.c.bf16 %v1497, %v1496
      %v1549 = vpack.c.bf16 %v1499, %v1498
      %v1550 = vpack.c.bf16 %v1501, %v1500
      %v1551 = vpack.c.bf16 %v1503, %v1502
      %v1552 = vpack.c.bf16 %v1505, %v1504
      %v1553 = vpack.c.bf16 %v1507, %v1506
      %v1554 = vpack.c.bf16 %v1509, %v1508
      %v1555 = vpack.c.bf16 %v1511, %v1510
      %v1556 = vpack.c.bf16 %v1513, %v1512
      %v1557 = vpack.c.bf16 %v1515, %v1514
      %v1558 = vpack.c.bf16 %v1517, %v1516
      %v1559 = vpack.c.bf16 %v1519, %v1518
      %v1560 = vpack.c.bf16 %v1521, %v1520
      %v1561 = vpack.c.bf16 %v1523, %v1522
      %v1562 = vpack.c.bf16 %v1525, %v1524
      %v1563 = vpack.c.bf16 %v1527, %v1526
      %v1564 = vpack.c.bf16 %v1529, %v1528
      %v1565 = vpack.c.bf16 %v1531, %v1530
      %v1566 = vpack.c.bf16 %v1533, %v1532
      %v1567 = vpack.c.bf16 %v1535, %v1534
      %v1568 = vld [vmem:[%s1] sm:$0xff]
      %v1569 = vld [vmem:[%s1 + $0x8] sm:$0xff]
      %v1570 = vld [vmem:[%s1 + $0x10] sm:$0xff]
      %v1571 = vld [vmem:[%s1 + $0x18] sm:$0xff]
      %v1572 = vld [vmem:[%s1 + $0x20] sm:$0xff]
      %v1573 = vld [vmem:[%s1 + $0x28] sm:$0xff]
      %v1574 = vld [vmem:[%s1 + $0x30] sm:$0xff]
      %v1575 = vld [vmem:[%s1 + $0x38] sm:$0xff]
      %v1576 = vld [vmem:[%s1 + $0x40] sm:$0xff]
      %v1577 = vld [vmem:[%s1 + $0x48] sm:$0xff]
      %v1578 = vld [vmem:[%s1 + $0x50] sm:$0xff]
      %v1579 = vld [vmem:[%s1 + $0x58] sm:$0xff]
      %v1580 = vld [vmem:[%s1 + $0x60] sm:$0xff]
      %v1581 = vld [vmem:[%s1 + $0x68] sm:$0xff]
      %v1582 = vld [vmem:[%s1 + $0x70] sm:$0xff]
      %v1583 = vld [vmem:[%s1 + $0x78] sm:$0xff]
      %v1584 = vld [vmem:[%s1 + $0x80] sm:$0xff]
      %v1585 = vld [vmem:[%s1 + $0x88] sm:$0xff]
      %v1586 = vld [vmem:[%s1 + $0x90] sm:$0xff]
      %v1587 = vld [vmem:[%s1 + $0x98] sm:$0xff]
      %v1588 = vld [vmem:[%s1 + $0xa0] sm:$0xff]
      %v1589 = vld [vmem:[%s1 + $0xa8] sm:$0xff]
      %v1590 = vld [vmem:[%s1 + $0xb0] sm:$0xff]
      %v1591 = vld [vmem:[%s1 + $0xb8] sm:$0xff]
      %v1592 = vld [vmem:[%s1 + $0xc0] sm:$0xff]
      %v1593 = vld [vmem:[%s1 + $0xc8] sm:$0xff]
      %v1594 = vld [vmem:[%s1 + $0xd0] sm:$0xff]
      %v1595 = vld [vmem:[%s1 + $0xd8] sm:$0xff]
      %v1596 = vld [vmem:[%s1 + $0xe0] sm:$0xff]
      %v1597 = vld [vmem:[%s1 + $0xe8] sm:$0xff]
      %v1598 = vld [vmem:[%s1 + $0xf0] sm:$0xff]
      %v1599 = vld [vmem:[%s1 + $0xf8] sm:$0xff]
      %v1600 = vld [vmem:[%s1 + $0x100] sm:$0xff]
      %v1601 = vld [vmem:[%s1 + $0x108] sm:$0xff]
      %v1602 = vld [vmem:[%s1 + $0x110] sm:$0xff]
      %v1603 = vld [vmem:[%s1 + $0x118] sm:$0xff]
      %v1604 = vld [vmem:[%s1 + $0x120] sm:$0xff]
      %v1605 = vld [vmem:[%s1 + $0x128] sm:$0xff]
      %v1606 = vld [vmem:[%s1 + $0x130] sm:$0xff]
      %v1607 = vld [vmem:[%s1 + $0x138] sm:$0xff]
      %v1608 = vld [vmem:[%s1 + $0x140] sm:$0xff]
      %v1609 = vld [vmem:[%s1 + $0x148] sm:$0xff]
      %v1610 = vld [vmem:[%s1 + $0x150] sm:$0xff]
      %v1611 = vld [vmem:[%s1 + $0x158] sm:$0xff]
      %v1612 = vld [vmem:[%s1 + $0x160] sm:$0xff]
      %v1613 = vld [vmem:[%s1 + $0x168] sm:$0xff]
      %v1614 = vld [vmem:[%s1 + $0x170] sm:$0xff]
      %v1615 = vld [vmem:[%s1 + $0x178] sm:$0xff]
      %v1616 = vld [vmem:[%s1 + $0x180] sm:$0xff]
      %v1617 = vld [vmem:[%s1 + $0x188] sm:$0xff]
      %v1618 = vld [vmem:[%s1 + $0x190] sm:$0xff]
      %v1619 = vld [vmem:[%s1 + $0x198] sm:$0xff]
      %v1620 = vld [vmem:[%s1 + $0x1a0] sm:$0xff]
      %v1621 = vld [vmem:[%s1 + $0x1a8] sm:$0xff]
      %v1622 = vld [vmem:[%s1 + $0x1b0] sm:$0xff]
      %v1623 = vld [vmem:[%s1 + $0x1b8] sm:$0xff]
      %v1624 = vld [vmem:[%s1 + $0x1c0] sm:$0xff]
      %v1625 = vld [vmem:[%s1 + $0x1c8] sm:$0xff]
      %v1626 = vld [vmem:[%s1 + $0x1d0] sm:$0xff]
      %v1627 = vld [vmem:[%s1 + $0x1d8] sm:$0xff]
      %v1628 = vld [vmem:[%s1 + $0x1e0] sm:$0xff]
      %v1629 = vld [vmem:[%s1 + $0x1e8] sm:$0xff]
      %v1630 = vld [vmem:[%s1 + $0x1f0] sm:$0xff]
      %v1631 = vld [vmem:[%s1 + $0x1f8] sm:$0xff]
      %v1632 = vld [vmem:[%s4] sm:$0xff]
      %v1633 = vld [vmem:[%s4 + $0x8] sm:$0xff]
      %v1634 = vld [vmem:[%s4 + $0x10] sm:$0xff]
      %v1635 = vld [vmem:[%s4 + $0x18] sm:$0xff]
      %v1636 = vpack.c.bf16 %v1633, %v1632
      %v1637 = vpack.c.bf16 %v1635, %v1634
      %v1639 = vsel %vm562, %v1536, 0
      %v1642 = vsel %vm562, %v1537, 0
      %v1645 = vsel %vm562, %v1538, 0
      %v1648 = vsel %vm562, %v1539, 0
      %v1651 = vsel %vm562, %v1544, 0
      %v1654 = vsel %vm562, %v1545, 0
      %v1657 = vsel %vm562, %v1546, 0
      %v1660 = vsel %vm562, %v1547, 0
      %v1663 = vsel %vm562, %v1552, 0
      %v1666 = vsel %vm562, %v1553, 0
      %v1669 = vsel %vm562, %v1554, 0
      %v1672 = vsel %vm562, %v1555, 0
      %v1675 = vsel %vm562, %v1560, 0
      %v1678 = vsel %vm562, %v1561, 0
      %v1681 = vsel %vm562, %v1562, 0
      %v1684 = vsel %vm562, %v1563, 0
      %v1687 = vsel %vm562, %v1540, 0
      %v1690 = vsel %vm562, %v1541, 0
      %v1693 = vsel %vm562, %v1542, 0
      %v1696 = vsel %vm562, %v1543, 0
      %v1699 = vsel %vm562, %v1548, 0
      %v1702 = vsel %vm562, %v1549, 0
      %v1705 = vsel %vm562, %v1550, 0
      %v1708 = vsel %vm562, %v1551, 0
      %v1711 = vsel %vm562, %v1556, 0
      %v1714 = vsel %vm562, %v1557, 0
      %v1717 = vsel %vm562, %v1558, 0
      %v1720 = vsel %vm562, %v1559, 0
      %v1723 = vsel %vm562, %v1564, 0
      %v1726 = vsel %vm562, %v1565, 0
      %v1729 = vsel %vm562, %v1566, 0
      %v1732 = vsel %vm562, %v1567, 0
      %1734 = vmatprep.subr.bf16.mxu0 0
      %1735 = vmatpush1.bf16.msra.mxu0 0
      %1736 = vmatprep.subr.bf16.mxu0 0
      %1737 = vmatpush1.bf16.msra.mxu0 0
      %1738 = vmatprep.subr.bf16.mxu0 0
      %1739 = vmatpush1.bf16.msra.mxu0 0
      %1740 = vmatprep.subr.bf16.mxu0 0
      %1741 = vmatpush1.bf16.msra.mxu0 0
      %1742 = vmatprep.subr.bf16.mxu0 0
      %1743 = vmatpush1.bf16.msra.mxu0 0
      %1744 = vmatprep.subr.bf16.mxu0 0
      %1745 = vmatpush1.bf16.msra.mxu0 0
      %1746 = vmatprep.subr.bf16.mxu0 0
      %1747 = vmatpush1.bf16.msra.mxu0 %v1637
      %1748 = vmatprep.subr.bf16.mxu0 0
      %1749 = vmatpush1.bf16.msra.mxu0 %v1636
      %1750 = vmatprep.subr.bf16.mxu0 0
      %1751 = vmatpush2.bf16.msra.mxu0 0
      %1752 = vmatprep.subr.bf16.mxu0 0
      %1753 = vmatpush2.bf16.msra.mxu0 0
      %1754 = vmatprep.subr.bf16.mxu0 0
      %1755 = vmatpush2.bf16.msra.mxu0 0
      %1756 = vmatprep.subr.bf16.mxu0 0
      %1757 = vmatpush2.bf16.msra.mxu0 0
      %1758 = vmatprep.subr.bf16.mxu0 0
      %1759 = vmatpush2.bf16.msra.mxu0 0
      %1760 = vmatprep.subr.bf16.mxu0 0
      %1761 = vmatpush2.bf16.msra.mxu0 0
      %1762 = vmatprep.subr.bf16.mxu0 0
      %1763 = vmatpush2.bf16.msra.mxu0 0
      %1764 = vmatprep.subr.bf16.mxu0 0
      %1765 = vmatpush2.bf16.msra.mxu0 0
      %1766 = vmatprep.mubr.bf16.mxu0 0
      %1767 = vmatmul.mubr.bf16.gmra.mxu0 %v1639
      %v1768 = vpop.f32.mrf.mxu0
      %v1769 = vadd.f32 0.0, %v1768
      %v1770 = vpop.f32.mrf.mxu0
      %v1771 = vpop.f32.mrf.mxu0
      %v1772 = vadd.f32 0.0, %v1771
      %v1773 = vpop.f32.mrf.mxu0
      %1774 = vmatprep.mubr.bf16.mxu0 0
      %1775 = vmatmul.mubr.bf16.gmra.mxu0 %v1642
      %v1776 = vpop.f32.mrf.mxu0
      %v1777 = vadd.f32 0.0, %v1776
      %v1778 = vpop.f32.mrf.mxu0
      %v1779 = vpop.f32.mrf.mxu0
      %v1780 = vadd.f32 0.0, %v1779
      %v1781 = vpop.f32.mrf.mxu0
      %1782 = vmatprep.mubr.bf16.mxu0 0
      %1783 = vmatmul.mubr.bf16.gmra.mxu0 %v1645
      %v1784 = vpop.f32.mrf.mxu0
      %v1785 = vadd.f32 0.0, %v1784
      %v1786 = vpop.f32.mrf.mxu0
      %v1787 = vpop.f32.mrf.mxu0
      %v1788 = vadd.f32 0.0, %v1787
      %v1789 = vpop.f32.mrf.mxu0
      %1790 = vmatprep.mubr.bf16.mxu0 0
      %1791 = vmatmul.mubr.bf16.gmra.mxu0 %v1648
      %v1792 = vpop.f32.mrf.mxu0
      %v1793 = vadd.f32 0.0, %v1792
      %v1794 = vpop.f32.mrf.mxu0
      %v1795 = vpop.f32.mrf.mxu0
      %v1796 = vadd.f32 0.0, %v1795
      %v1797 = vpop.f32.mrf.mxu0
      %1798 = vmatprep.mubr.bf16.mxu0 0
      %1799 = vmatmul.mubr.bf16.gmra.mxu0 %v1651
      %v1800 = vpop.f32.mrf.mxu0
      %v1801 = vadd.f32 0.0, %v1800
      %v1802 = vpop.f32.mrf.mxu0
      %v1803 = vpop.f32.mrf.mxu0
      %v1804 = vadd.f32 0.0, %v1803
      %v1805 = vpop.f32.mrf.mxu0
      %1806 = vmatprep.mubr.bf16.mxu0 0
      %1807 = vmatmul.mubr.bf16.gmra.mxu0 %v1654
      %v1808 = vpop.f32.mrf.mxu0
      %v1809 = vadd.f32 0.0, %v1808
      %v1810 = vpop.f32.mrf.mxu0
      %v1811 = vpop.f32.mrf.mxu0
      %v1812 = vadd.f32 0.0, %v1811
      %v1813 = vpop.f32.mrf.mxu0
      %1814 = vmatprep.mubr.bf16.mxu0 0
      %1815 = vmatmul.mubr.bf16.gmra.mxu0 %v1657
      %v1816 = vpop.f32.mrf.mxu0
      %v1817 = vadd.f32 0.0, %v1816
      %v1818 = vpop.f32.mrf.mxu0
      %v1819 = vpop.f32.mrf.mxu0
      %v1820 = vadd.f32 0.0, %v1819
      %v1821 = vpop.f32.mrf.mxu0
      %1822 = vmatprep.mubr.bf16.mxu0 0
      %1823 = vmatmul.mubr.bf16.gmra.mxu0 %v1660
      %v1824 = vpop.f32.mrf.mxu0
      %v1825 = vadd.f32 0.0, %v1824
      %v1826 = vpop.f32.mrf.mxu0
      %v1827 = vpop.f32.mrf.mxu0
      %v1828 = vadd.f32 0.0, %v1827
      %v1829 = vpop.f32.mrf.mxu0
      %1830 = vmatprep.mubr.bf16.mxu0 0
      %1831 = vmatmul.mubr.bf16.gmra.mxu0 %v1663
      %v1832 = vpop.f32.mrf.mxu0
      %v1833 = vadd.f32 0.0, %v1832
      %v1834 = vpop.f32.mrf.mxu0
      %v1835 = vpop.f32.mrf.mxu0
      %v1836 = vadd.f32 0.0, %v1835
      %v1837 = vpop.f32.mrf.mxu0
      %1838 = vmatprep.mubr.bf16.mxu0 0
      %1839 = vmatmul.mubr.bf16.gmra.mxu0 %v1666
      %v1840 = vpop.f32.mrf.mxu0
      %v1841 = vadd.f32 0.0, %v1840
      %v1842 = vpop.f32.mrf.mxu0
      %v1843 = vpop.f32.mrf.mxu0
      %v1844 = vadd.f32 0.0, %v1843
      %v1845 = vpop.f32.mrf.mxu0
      %1846 = vmatprep.mubr.bf16.mxu0 0
      %1847 = vmatmul.mubr.bf16.gmra.mxu0 %v1669
      %v1848 = vpop.f32.mrf.mxu0
      %v1849 = vadd.f32 0.0, %v1848
      %v1850 = vpop.f32.mrf.mxu0
      %v1851 = vpop.f32.mrf.mxu0
      %v1852 = vadd.f32 0.0, %v1851
      %v1853 = vpop.f32.mrf.mxu0
      %1854 = vmatprep.mubr.bf16.mxu0 0
      %1855 = vmatmul.mubr.bf16.gmra.mxu0 %v1672
      %v1856 = vpop.f32.mrf.mxu0
      %v1857 = vadd.f32 0.0, %v1856
      %v1858 = vpop.f32.mrf.mxu0
      %v1859 = vpop.f32.mrf.mxu0
      %v1860 = vadd.f32 0.0, %v1859
      %v1861 = vpop.f32.mrf.mxu0
      %1862 = vmatprep.mubr.bf16.mxu0 0
      %1863 = vmatmul.mubr.bf16.gmra.mxu0 %v1675
      %v1864 = vpop.f32.mrf.mxu0
      %v1865 = vadd.f32 0.0, %v1864
      %v1866 = vpop.f32.mrf.mxu0
      %v1867 = vpop.f32.mrf.mxu0
      %v1868 = vadd.f32 0.0, %v1867
      %v1869 = vpop.f32.mrf.mxu0
      %1870 = vmatprep.mubr.bf16.mxu0 0
      %1871 = vmatmul.mubr.bf16.gmra.mxu0 %v1678
      %v1872 = vpop.f32.mrf.mxu0
      %v1873 = vadd.f32 0.0, %v1872
      %v1874 = vpop.f32.mrf.mxu0
      %v1875 = vpop.f32.mrf.mxu0
      %v1876 = vadd.f32 0.0, %v1875
      %v1877 = vpop.f32.mrf.mxu0
      %1878 = vmatprep.mubr.bf16.mxu0 0
      %1879 = vmatmul.mubr.bf16.gmra.mxu0 %v1681
      %v1880 = vpop.f32.mrf.mxu0
      %v1881 = vadd.f32 0.0, %v1880
      %v1882 = vpop.f32.mrf.mxu0
      %v1883 = vpop.f32.mrf.mxu0
      %v1884 = vadd.f32 0.0, %v1883
      %v1885 = vpop.f32.mrf.mxu0
      %1886 = vmatprep.mubr.bf16.mxu0 0
      %1887 = vmatmul.mubr.bf16.gmra.mxu0 %v1684
      %v1888 = vpop.f32.mrf.mxu0
      %v1889 = vadd.f32 0.0, %v1888
      %v1890 = vpop.f32.mrf.mxu0
      %v1891 = vpop.f32.mrf.mxu0
      %v1892 = vadd.f32 0.0, %v1891
      %v1893 = vpop.f32.mrf.mxu0
      %1894 = vmatprep.mubr.bf16.mxu0 0
      %1895 = vmatmul.mubr.bf16.gmra.mxu0 %v1687
      %v1896 = vpop.f32.mrf.mxu0
      %v1897 = vadd.f32 0.0, %v1896
      %v1898 = vpop.f32.mrf.mxu0
      %v1899 = vpop.f32.mrf.mxu0
      %v1900 = vadd.f32 0.0, %v1899
      %v1901 = vpop.f32.mrf.mxu0
      %1902 = vmatprep.mubr.bf16.mxu0 0
      %1903 = vmatmul.mubr.bf16.gmra.mxu0 %v1690
      %v1904 = vpop.f32.mrf.mxu0
      %v1905 = vadd.f32 0.0, %v1904
      %v1906 = vpop.f32.mrf.mxu0
      %v1907 = vpop.f32.mrf.mxu0
      %v1908 = vadd.f32 0.0, %v1907
      %v1909 = vpop.f32.mrf.mxu0
      %1910 = vmatprep.mubr.bf16.mxu0 0
      %1911 = vmatmul.mubr.bf16.gmra.mxu0 %v1693
      %v1912 = vpop.f32.mrf.mxu0
      %v1913 = vadd.f32 0.0, %v1912
      %v1914 = vpop.f32.mrf.mxu0
      %v1915 = vpop.f32.mrf.mxu0
      %v1916 = vadd.f32 0.0, %v1915
      %v1917 = vpop.f32.mrf.mxu0
      %1918 = vmatprep.mubr.bf16.mxu0 0
      %1919 = vmatmul.mubr.bf16.gmra.mxu0 %v1696
      %v1920 = vpop.f32.mrf.mxu0
      %v1921 = vadd.f32 0.0, %v1920
      %v1922 = vpop.f32.mrf.mxu0
      %v1923 = vpop.f32.mrf.mxu0
      %v1924 = vadd.f32 0.0, %v1923
      %v1925 = vpop.f32.mrf.mxu0
      %1926 = vmatprep.mubr.bf16.mxu0 0
      %1927 = vmatmul.mubr.bf16.gmra.mxu0 %v1699
      %v1928 = vpop.f32.mrf.mxu0
      %v1929 = vadd.f32 0.0, %v1928
      %v1930 = vpop.f32.mrf.mxu0
      %v1931 = vpop.f32.mrf.mxu0
      %v1932 = vadd.f32 0.0, %v1931
      %v1933 = vpop.f32.mrf.mxu0
      %1934 = vmatprep.mubr.bf16.mxu0 0
      %1935 = vmatmul.mubr.bf16.gmra.mxu0 %v1702
      %v1936 = vpop.f32.mrf.mxu0
      %v1937 = vadd.f32 0.0, %v1936
      %v1938 = vpop.f32.mrf.mxu0
      %v1939 = vpop.f32.mrf.mxu0
      %v1940 = vadd.f32 0.0, %v1939
      %v1941 = vpop.f32.mrf.mxu0
      %1942 = vmatprep.mubr.bf16.mxu0 0
      %1943 = vmatmul.mubr.bf16.gmra.mxu0 %v1705
      %v1944 = vpop.f32.mrf.mxu0
      %v1945 = vadd.f32 0.0, %v1944
      %v1946 = vpop.f32.mrf.mxu0
      %v1947 = vpop.f32.mrf.mxu0
      %v1948 = vadd.f32 0.0, %v1947
      %v1949 = vpop.f32.mrf.mxu0
      %1950 = vmatprep.mubr.bf16.mxu0 0
      %1951 = vmatmul.mubr.bf16.gmra.mxu0 %v1708
      %v1952 = vpop.f32.mrf.mxu0
      %v1953 = vadd.f32 0.0, %v1952
      %v1954 = vpop.f32.mrf.mxu0
      %v1955 = vpop.f32.mrf.mxu0
      %v1956 = vadd.f32 0.0, %v1955
      %v1957 = vpop.f32.mrf.mxu0
      %1958 = vmatprep.mubr.bf16.mxu0 0
      %1959 = vmatmul.mubr.bf16.gmra.mxu0 %v1711
      %v1960 = vpop.f32.mrf.mxu0
      %v1961 = vadd.f32 0.0, %v1960
      %v1962 = vpop.f32.mrf.mxu0
      %v1963 = vpop.f32.mrf.mxu0
      %v1964 = vadd.f32 0.0, %v1963
      %v1965 = vpop.f32.mrf.mxu0
      %1966 = vmatprep.mubr.bf16.mxu0 0
      %1967 = vmatmul.mubr.bf16.gmra.mxu0 %v1714
      %v1968 = vpop.f32.mrf.mxu0
      %v1969 = vadd.f32 0.0, %v1968
      %v1970 = vpop.f32.mrf.mxu0
      %v1971 = vpop.f32.mrf.mxu0
      %v1972 = vadd.f32 0.0, %v1971
      %v1973 = vpop.f32.mrf.mxu0
      %1974 = vmatprep.mubr.bf16.mxu0 0
      %1975 = vmatmul.mubr.bf16.gmra.mxu0 %v1717
      %v1976 = vpop.f32.mrf.mxu0
      %v1977 = vadd.f32 0.0, %v1976
      %v1978 = vpop.f32.mrf.mxu0
      %v1979 = vpop.f32.mrf.mxu0
      %v1980 = vadd.f32 0.0, %v1979
      %v1981 = vpop.f32.mrf.mxu0
      %1982 = vmatprep.mubr.bf16.mxu0 0
      %1983 = vmatmul.mubr.bf16.gmra.mxu0 %v1720
      %v1984 = vpop.f32.mrf.mxu0
      %v1985 = vadd.f32 0.0, %v1984
      %v1986 = vpop.f32.mrf.mxu0
      %v1987 = vpop.f32.mrf.mxu0
      %v1988 = vadd.f32 0.0, %v1987
      %v1989 = vpop.f32.mrf.mxu0
      %1990 = vmatprep.mubr.bf16.mxu0 0
      %1991 = vmatmul.mubr.bf16.gmra.mxu0 %v1723
      %v1992 = vpop.f32.mrf.mxu0
      %v1993 = vadd.f32 0.0, %v1992
      %v1994 = vpop.f32.mrf.mxu0
      %v1995 = vpop.f32.mrf.mxu0
      %v1996 = vadd.f32 0.0, %v1995
      %v1997 = vpop.f32.mrf.mxu0
      %1998 = vmatprep.mubr.bf16.mxu0 0
      %1999 = vmatmul.mubr.bf16.gmra.mxu0 %v1726
      %v2000 = vpop.f32.mrf.mxu0
      %v2001 = vadd.f32 0.0, %v2000
      %v2002 = vpop.f32.mrf.mxu0
      %v2003 = vpop.f32.mrf.mxu0
      %v2004 = vadd.f32 0.0, %v2003
      %v2005 = vpop.f32.mrf.mxu0
      %2006 = vmatprep.mubr.bf16.mxu0 0
      %2007 = vmatmul.mubr.bf16.gmra.mxu0 %v1729
      %v2008 = vpop.f32.mrf.mxu0
      %v2009 = vadd.f32 0.0, %v2008
      %v2010 = vpop.f32.mrf.mxu0
      %v2011 = vpop.f32.mrf.mxu0
      %v2012 = vadd.f32 0.0, %v2011
      %v2013 = vpop.f32.mrf.mxu0
      %2014 = vmatprep.mubr.bf16.mxu0 0
      %2015 = vmatmul.mubr.bf16.gmra.mxu0 %v1732
      %v2016 = vpop.f32.mrf.mxu0
      %v2017 = vadd.f32 0.0, %v2016
      %v2018 = vpop.f32.mrf.mxu0
      %v2019 = vpop.f32.mrf.mxu0
      %v2020 = vadd.f32 0.0, %v2019
      %v2021 = vpop.f32.mrf.mxu0
      %2022 = vdwg.mxu0
      %v2023 = vld [vmem:[%s5] sm:$0xff]
      %v2024 = vld [vmem:[%s5 + $0x8] sm:$0xff]
      %v2025 = vld [vmem:[%s5 + $0x10] sm:$0xff]
      %v2026 = vld [vmem:[%s5 + $0x18] sm:$0xff]
      %v2027 = vpack.c.bf16 %v2024, %v2023
      %v2028 = vpack.c.bf16 %v2026, %v2025
      %2029 = vmatprep.subr.bf16.mxu0 0
      %2030 = vmatpush1.bf16.msra.mxu0 0
      %2031 = vmatprep.subr.bf16.mxu0 0
      %2032 = vmatpush1.bf16.msra.mxu0 0
      %2033 = vmatprep.subr.bf16.mxu0 0
      %2034 = vmatpush1.bf16.msra.mxu0 0
      %2035 = vmatprep.subr.bf16.mxu0 0
      %2036 = vmatpush1.bf16.msra.mxu0 0
      %2037 = vmatprep.subr.bf16.mxu0 0
      %2038 = vmatpush1.bf16.msra.mxu0 0
      %2039 = vmatprep.subr.bf16.mxu0 0
      %2040 = vmatpush1.bf16.msra.mxu0 0
      %2041 = vmatprep.subr.bf16.mxu0 0
      %2042 = vmatpush1.bf16.msra.mxu0 %v2028
      %2043 = vmatprep.subr.bf16.mxu0 0
      %2044 = vmatpush1.bf16.msra.mxu0 %v2027
      %2045 = vmatprep.subr.bf16.mxu0 0
      %2046 = vmatpush2.bf16.msra.mxu0 0
      %2047 = vmatprep.subr.bf16.mxu0 0
      %2048 = vmatpush2.bf16.msra.mxu0 0
      %2049 = vmatprep.subr.bf16.mxu0 0
      %2050 = vmatpush2.bf16.msra.mxu0 0
      %2051 = vmatprep.subr.bf16.mxu0 0
      %2052 = vmatpush2.bf16.msra.mxu0 0
      %2053 = vmatprep.subr.bf16.mxu0 0
      %2054 = vmatpush2.bf16.msra.mxu0 0
      %2055 = vmatprep.subr.bf16.mxu0 0
      %2056 = vmatpush2.bf16.msra.mxu0 0
      %2057 = vmatprep.subr.bf16.mxu0 0
      %2058 = vmatpush2.bf16.msra.mxu0 0
      %2059 = vmatprep.subr.bf16.mxu0 0
      %2060 = vmatpush2.bf16.msra.mxu0 0
      %2061 = vmatprep.mubr.bf16.mxu0 0
      %2062 = vmatmul.mubr.bf16.gmra.mxu0 %v1639
      %v2063 = vpop.f32.mrf.mxu0
      %v2064 = vadd.f32 0.0, %v2063
      %v2065 = vpop.f32.mrf.mxu0
      %v2066 = vpop.f32.mrf.mxu0
      %v2067 = vadd.f32 0.0, %v2066
      %v2068 = vpop.f32.mrf.mxu0
      %2069 = vmatprep.mubr.bf16.mxu0 0
      %2070 = vmatmul.mubr.bf16.gmra.mxu0 %v1642
      %v2071 = vpop.f32.mrf.mxu0
      %v2072 = vadd.f32 0.0, %v2071
      %v2073 = vpop.f32.mrf.mxu0
      %v2074 = vpop.f32.mrf.mxu0
      %v2075 = vadd.f32 0.0, %v2074
      %v2076 = vpop.f32.mrf.mxu0
      %2077 = vmatprep.mubr.bf16.mxu0 0
      %2078 = vmatmul.mubr.bf16.gmra.mxu0 %v1645
      %v2079 = vpop.f32.mrf.mxu0
      %v2080 = vadd.f32 0.0, %v2079
      %v2081 = vpop.f32.mrf.mxu0
      %v2082 = vpop.f32.mrf.mxu0
      %v2083 = vadd.f32 0.0, %v2082
      %v2084 = vpop.f32.mrf.mxu0
      %2085 = vmatprep.mubr.bf16.mxu0 0
      %2086 = vmatmul.mubr.bf16.gmra.mxu0 %v1648
      %v2087 = vpop.f32.mrf.mxu0
      %v2088 = vadd.f32 0.0, %v2087
      %v2089 = vpop.f32.mrf.mxu0
      %v2090 = vpop.f32.mrf.mxu0
      %v2091 = vadd.f32 0.0, %v2090
      %v2092 = vpop.f32.mrf.mxu0
      %2093 = vmatprep.mubr.bf16.mxu0 0
      %2094 = vmatmul.mubr.bf16.gmra.mxu0 %v1651
      %v2095 = vpop.f32.mrf.mxu0
      %v2096 = vadd.f32 0.0, %v2095
      %v2097 = vpop.f32.mrf.mxu0
      %v2098 = vpop.f32.mrf.mxu0
      %v2099 = vadd.f32 0.0, %v2098
      %v2100 = vpop.f32.mrf.mxu0
      %2101 = vmatprep.mubr.bf16.mxu0 0
      %2102 = vmatmul.mubr.bf16.gmra.mxu0 %v1654
      %v2103 = vpop.f32.mrf.mxu0
      %v2104 = vadd.f32 0.0, %v2103
      %v2105 = vpop.f32.mrf.mxu0
      %v2106 = vpop.f32.mrf.mxu0
      %v2107 = vadd.f32 0.0, %v2106
      %v2108 = vpop.f32.mrf.mxu0
      %2109 = vmatprep.mubr.bf16.mxu0 0
      %2110 = vmatmul.mubr.bf16.gmra.mxu0 %v1657
      %v2111 = vpop.f32.mrf.mxu0
      %v2112 = vadd.f32 0.0, %v2111
      %v2113 = vpop.f32.mrf.mxu0
      %v2114 = vpop.f32.mrf.mxu0
      %v2115 = vadd.f32 0.0, %v2114
      %v2116 = vpop.f32.mrf.mxu0
      %2117 = vmatprep.mubr.bf16.mxu0 0
      %2118 = vmatmul.mubr.bf16.gmra.mxu0 %v1660
      %v2119 = vpop.f32.mrf.mxu0
      %v2120 = vadd.f32 0.0, %v2119
      %v2121 = vpop.f32.mrf.mxu0
      %v2122 = vpop.f32.mrf.mxu0
      %v2123 = vadd.f32 0.0, %v2122
      %v2124 = vpop.f32.mrf.mxu0
      %2125 = vmatprep.mubr.bf16.mxu0 0
      %2126 = vmatmul.mubr.bf16.gmra.mxu0 %v1663
      %v2127 = vpop.f32.mrf.mxu0
      %v2128 = vadd.f32 0.0, %v2127
      %v2129 = vpop.f32.mrf.mxu0
      %v2130 = vpop.f32.mrf.mxu0
      %v2131 = vadd.f32 0.0, %v2130
      %v2132 = vpop.f32.mrf.mxu0
      %2133 = vmatprep.mubr.bf16.mxu0 0
      %2134 = vmatmul.mubr.bf16.gmra.mxu0 %v1666
      %v2135 = vpop.f32.mrf.mxu0
      %v2136 = vadd.f32 0.0, %v2135
      %v2137 = vpop.f32.mrf.mxu0
      %v2138 = vpop.f32.mrf.mxu0
      %v2139 = vadd.f32 0.0, %v2138
      %v2140 = vpop.f32.mrf.mxu0
      %2141 = vmatprep.mubr.bf16.mxu0 0
      %2142 = vmatmul.mubr.bf16.gmra.mxu0 %v1669
      %v2143 = vpop.f32.mrf.mxu0
      %v2144 = vadd.f32 0.0, %v2143
      %v2145 = vpop.f32.mrf.mxu0
      %v2146 = vpop.f32.mrf.mxu0
      %v2147 = vadd.f32 0.0, %v2146
      %v2148 = vpop.f32.mrf.mxu0
      %2149 = vmatprep.mubr.bf16.mxu0 0
      %2150 = vmatmul.mubr.bf16.gmra.mxu0 %v1672
      %v2151 = vpop.f32.mrf.mxu0
      %v2152 = vadd.f32 0.0, %v2151
      %v2153 = vpop.f32.mrf.mxu0
      %v2154 = vpop.f32.mrf.mxu0
      %v2155 = vadd.f32 0.0, %v2154
      %v2156 = vpop.f32.mrf.mxu0
      %2157 = vmatprep.mubr.bf16.mxu0 0
      %2158 = vmatmul.mubr.bf16.gmra.mxu0 %v1675
      %v2159 = vpop.f32.mrf.mxu0
      %v2160 = vadd.f32 0.0, %v2159
      %v2161 = vpop.f32.mrf.mxu0
      %v2162 = vpop.f32.mrf.mxu0
      %v2163 = vadd.f32 0.0, %v2162
      %v2164 = vpop.f32.mrf.mxu0
      %2165 = vmatprep.mubr.bf16.mxu0 0
      %2166 = vmatmul.mubr.bf16.gmra.mxu0 %v1678
      %v2167 = vpop.f32.mrf.mxu0
      %v2168 = vadd.f32 0.0, %v2167
      %v2169 = vpop.f32.mrf.mxu0
      %v2170 = vpop.f32.mrf.mxu0
      %v2171 = vadd.f32 0.0, %v2170
      %v2172 = vpop.f32.mrf.mxu0
      %2173 = vmatprep.mubr.bf16.mxu0 0
      %2174 = vmatmul.mubr.bf16.gmra.mxu0 %v1681
      %v2175 = vpop.f32.mrf.mxu0
      %v2176 = vadd.f32 0.0, %v2175
      %v2177 = vpop.f32.mrf.mxu0
      %v2178 = vpop.f32.mrf.mxu0
      %v2179 = vadd.f32 0.0, %v2178
      %v2180 = vpop.f32.mrf.mxu0
      %2181 = vmatprep.mubr.bf16.mxu0 0
      %2182 = vmatmul.mubr.bf16.gmra.mxu0 %v1684
      %v2183 = vpop.f32.mrf.mxu0
      %v2184 = vadd.f32 0.0, %v2183
      %v2185 = vpop.f32.mrf.mxu0
      %v2186 = vpop.f32.mrf.mxu0
      %v2187 = vadd.f32 0.0, %v2186
      %v2188 = vpop.f32.mrf.mxu0
      %2189 = vmatprep.mubr.bf16.mxu0 0
      %2190 = vmatmul.mubr.bf16.gmra.mxu0 %v1687
      %v2191 = vpop.f32.mrf.mxu0
      %v2192 = vadd.f32 0.0, %v2191
      %v2193 = vpop.f32.mrf.mxu0
      %v2194 = vpop.f32.mrf.mxu0
      %v2195 = vadd.f32 0.0, %v2194
      %v2196 = vpop.f32.mrf.mxu0
      %2197 = vmatprep.mubr.bf16.mxu0 0
      %2198 = vmatmul.mubr.bf16.gmra.mxu0 %v1690
      %v2199 = vpop.f32.mrf.mxu0
      %v2200 = vadd.f32 0.0, %v2199
      %v2201 = vpop.f32.mrf.mxu0
      %v2202 = vpop.f32.mrf.mxu0
      %v2203 = vadd.f32 0.0, %v2202
      %v2204 = vpop.f32.mrf.mxu0
      %2205 = vmatprep.mubr.bf16.mxu0 0
      %2206 = vmatmul.mubr.bf16.gmra.mxu0 %v1693
      %v2207 = vpop.f32.mrf.mxu0
      %v2208 = vadd.f32 0.0, %v2207
      %v2209 = vpop.f32.mrf.mxu0
      %v2210 = vpop.f32.mrf.mxu0
      %v2211 = vadd.f32 0.0, %v2210
      %v2212 = vpop.f32.mrf.mxu0
      %2213 = vmatprep.mubr.bf16.mxu0 0
      %2214 = vmatmul.mubr.bf16.gmra.mxu0 %v1696
      %v2215 = vpop.f32.mrf.mxu0
      %v2216 = vadd.f32 0.0, %v2215
      %v2217 = vpop.f32.mrf.mxu0
      %v2218 = vpop.f32.mrf.mxu0
      %v2219 = vadd.f32 0.0, %v2218
      %v2220 = vpop.f32.mrf.mxu0
      %2221 = vmatprep.mubr.bf16.mxu0 0
      %2222 = vmatmul.mubr.bf16.gmra.mxu0 %v1699
      %v2223 = vpop.f32.mrf.mxu0
      %v2224 = vadd.f32 0.0, %v2223
      %v2225 = vpop.f32.mrf.mxu0
      %v2226 = vpop.f32.mrf.mxu0
      %v2227 = vadd.f32 0.0, %v2226
      %v2228 = vpop.f32.mrf.mxu0
      %2229 = vmatprep.mubr.bf16.mxu0 0
      %2230 = vmatmul.mubr.bf16.gmra.mxu0 %v1702
      %v2231 = vpop.f32.mrf.mxu0
      %v2232 = vadd.f32 0.0, %v2231
      %v2233 = vpop.f32.mrf.mxu0
      %v2234 = vpop.f32.mrf.mxu0
      %v2235 = vadd.f32 0.0, %v2234
      %v2236 = vpop.f32.mrf.mxu0
      %2237 = vmatprep.mubr.bf16.mxu0 0
      %2238 = vmatmul.mubr.bf16.gmra.mxu0 %v1705
      %v2239 = vpop.f32.mrf.mxu0
      %v2240 = vadd.f32 0.0, %v2239
      %v2241 = vpop.f32.mrf.mxu0
      %v2242 = vpop.f32.mrf.mxu0
      %v2243 = vadd.f32 0.0, %v2242
      %v2244 = vpop.f32.mrf.mxu0
      %2245 = vmatprep.mubr.bf16.mxu0 0
      %2246 = vmatmul.mubr.bf16.gmra.mxu0 %v1708
      %v2247 = vpop.f32.mrf.mxu0
      %v2248 = vadd.f32 0.0, %v2247
      %v2249 = vpop.f32.mrf.mxu0
      %v2250 = vpop.f32.mrf.mxu0
      %v2251 = vadd.f32 0.0, %v2250
      %v2252 = vpop.f32.mrf.mxu0
      %2253 = vmatprep.mubr.bf16.mxu0 0
      %2254 = vmatmul.mubr.bf16.gmra.mxu0 %v1711
      %v2255 = vpop.f32.mrf.mxu0
      %v2256 = vadd.f32 0.0, %v2255
      %v2257 = vpop.f32.mrf.mxu0
      %v2258 = vpop.f32.mrf.mxu0
      %v2259 = vadd.f32 0.0, %v2258
      %v2260 = vpop.f32.mrf.mxu0
      %2261 = vmatprep.mubr.bf16.mxu0 0
      %2262 = vmatmul.mubr.bf16.gmra.mxu0 %v1714
      %v2263 = vpop.f32.mrf.mxu0
      %v2264 = vadd.f32 0.0, %v2263
      %v2265 = vpop.f32.mrf.mxu0
      %v2266 = vpop.f32.mrf.mxu0
      %v2267 = vadd.f32 0.0, %v2266
      %v2268 = vpop.f32.mrf.mxu0
      %2269 = vmatprep.mubr.bf16.mxu0 0
      %2270 = vmatmul.mubr.bf16.gmra.mxu0 %v1717
      %v2271 = vpop.f32.mrf.mxu0
      %v2272 = vadd.f32 0.0, %v2271
      %v2273 = vpop.f32.mrf.mxu0
      %v2274 = vpop.f32.mrf.mxu0
      %v2275 = vadd.f32 0.0, %v2274
      %v2276 = vpop.f32.mrf.mxu0
      %2277 = vmatprep.mubr.bf16.mxu0 0
      %2278 = vmatmul.mubr.bf16.gmra.mxu0 %v1720
      %v2279 = vpop.f32.mrf.mxu0
      %v2280 = vadd.f32 0.0, %v2279
      %v2281 = vpop.f32.mrf.mxu0
      %v2282 = vpop.f32.mrf.mxu0
      %v2283 = vadd.f32 0.0, %v2282
      %v2284 = vpop.f32.mrf.mxu0
      %2285 = vmatprep.mubr.bf16.mxu0 0
      %2286 = vmatmul.mubr.bf16.gmra.mxu0 %v1723
      %v2287 = vpop.f32.mrf.mxu0
      %v2288 = vadd.f32 0.0, %v2287
      %v2289 = vpop.f32.mrf.mxu0
      %v2290 = vpop.f32.mrf.mxu0
      %v2291 = vadd.f32 0.0, %v2290
      %v2292 = vpop.f32.mrf.mxu0
      %2293 = vmatprep.mubr.bf16.mxu0 0
      %2294 = vmatmul.mubr.bf16.gmra.mxu0 %v1726
      %v2295 = vpop.f32.mrf.mxu0
      %v2296 = vadd.f32 0.0, %v2295
      %v2297 = vpop.f32.mrf.mxu0
      %v2298 = vpop.f32.mrf.mxu0
      %v2299 = vadd.f32 0.0, %v2298
      %v2300 = vpop.f32.mrf.mxu0
      %2301 = vmatprep.mubr.bf16.mxu0 0
      %2302 = vmatmul.mubr.bf16.gmra.mxu0 %v1729
      %v2303 = vpop.f32.mrf.mxu0
      %v2304 = vadd.f32 0.0, %v2303
      %v2305 = vpop.f32.mrf.mxu0
      %v2306 = vpop.f32.mrf.mxu0
      %v2307 = vadd.f32 0.0, %v2306
      %v2308 = vpop.f32.mrf.mxu0
      %2309 = vmatprep.mubr.bf16.mxu0 0
      %2310 = vmatmul.mubr.bf16.gmra.mxu0 %v1732
      %v2311 = vpop.f32.mrf.mxu0
      %v2312 = vadd.f32 0.0, %v2311
      %v2313 = vpop.f32.mrf.mxu0
      %v2314 = vpop.f32.mrf.mxu0
      %v2315 = vadd.f32 0.0, %v2314
      %v2316 = vpop.f32.mrf.mxu0
      %2317 = vdwg.mxu0
      %v2318 = vld [vmem:[%s6] sm:$0xff]
      %v2319 = vld [vmem:[%s6 + $0x8] sm:$0xff]
      %v2320 = vld [vmem:[%s6 + $0x10] sm:$0xff]
      %v2321 = vld [vmem:[%s6 + $0x18] sm:$0xff]
      %v2322 = vpack.c.bf16 %v2319, %v2318
      %v2323 = vpack.c.bf16 %v2321, %v2320
      %2324 = vmatprep.subr.bf16.mxu0 0
      %2325 = vmatpush1.bf16.msra.mxu0 0
      %2326 = vmatprep.subr.bf16.mxu0 0
      %2327 = vmatpush1.bf16.msra.mxu0 0
      %2328 = vmatprep.subr.bf16.mxu0 0
      %2329 = vmatpush1.bf16.msra.mxu0 0
      %2330 = vmatprep.subr.bf16.mxu0 0
      %2331 = vmatpush1.bf16.msra.mxu0 0
      %2332 = vmatprep.subr.bf16.mxu0 0
      %2333 = vmatpush1.bf16.msra.mxu0 0
      %2334 = vmatprep.subr.bf16.mxu0 0
      %2335 = vmatpush1.bf16.msra.mxu0 0
      %2336 = vmatprep.subr.bf16.mxu0 0
      %2337 = vmatpush1.bf16.msra.mxu0 %v2323
      %2338 = vmatprep.subr.bf16.mxu0 0
      %2339 = vmatpush1.bf16.msra.mxu0 %v2322
      %2340 = vmatprep.subr.bf16.mxu0 0
      %2341 = vmatpush2.bf16.msra.mxu0 0
      %2342 = vmatprep.subr.bf16.mxu0 0
      %2343 = vmatpush2.bf16.msra.mxu0 0
      %2344 = vmatprep.subr.bf16.mxu0 0
      %2345 = vmatpush2.bf16.msra.mxu0 0
      %2346 = vmatprep.subr.bf16.mxu0 0
      %2347 = vmatpush2.bf16.msra.mxu0 0
      %2348 = vmatprep.subr.bf16.mxu0 0
      %2349 = vmatpush2.bf16.msra.mxu0 0
      %2350 = vmatprep.subr.bf16.mxu0 0
      %2351 = vmatpush2.bf16.msra.mxu0 0
      %2352 = vmatprep.subr.bf16.mxu0 0
      %2353 = vmatpush2.bf16.msra.mxu0 0
      %2354 = vmatprep.subr.bf16.mxu0 0
      %2355 = vmatpush2.bf16.msra.mxu0 0
      %2356 = vmatprep.mubr.bf16.mxu0 0
      %2357 = vmatmul.mubr.bf16.gmra.mxu0 %v1639
      %v2358 = vpop.f32.mrf.mxu0
      %v2359 = vadd.f32 0.0, %v2358
      %v2360 = vpop.f32.mrf.mxu0
      %v2361 = vpop.f32.mrf.mxu0
      %v2362 = vadd.f32 0.0, %v2361
      %v2363 = vpop.f32.mrf.mxu0
      %2364 = vmatprep.mubr.bf16.mxu0 0
      %2365 = vmatmul.mubr.bf16.gmra.mxu0 %v1642
      %v2366 = vpop.f32.mrf.mxu0
      %v2367 = vadd.f32 0.0, %v2366
      %v2368 = vpop.f32.mrf.mxu0
      %v2369 = vpop.f32.mrf.mxu0
      %v2370 = vadd.f32 0.0, %v2369
      %v2371 = vpop.f32.mrf.mxu0
      %2372 = vmatprep.mubr.bf16.mxu0 0
      %2373 = vmatmul.mubr.bf16.gmra.mxu0 %v1645
      %v2374 = vpop.f32.mrf.mxu0
      %v2375 = vadd.f32 0.0, %v2374
      %v2376 = vpop.f32.mrf.mxu0
      %v2377 = vpop.f32.mrf.mxu0
      %v2378 = vadd.f32 0.0, %v2377
      %v2379 = vpop.f32.mrf.mxu0
      %2380 = vmatprep.mubr.bf16.mxu0 0
      %2381 = vmatmul.mubr.bf16.gmra.mxu0 %v1648
      %v2382 = vpop.f32.mrf.mxu0
      %v2383 = vadd.f32 0.0, %v2382
      %v2384 = vpop.f32.mrf.mxu0
      %v2385 = vpop.f32.mrf.mxu0
      %v2386 = vadd.f32 0.0, %v2385
      %v2387 = vpop.f32.mrf.mxu0
      %2388 = vmatprep.mubr.bf16.mxu0 0
      %2389 = vmatmul.mubr.bf16.gmra.mxu0 %v1687
      %v2390 = vpop.f32.mrf.mxu0
      %v2391 = vadd.f32 0.0, %v2390
      %v2392 = vpop.f32.mrf.mxu0
      %v2393 = vpop.f32.mrf.mxu0
      %v2394 = vadd.f32 0.0, %v2393
      %v2395 = vpop.f32.mrf.mxu0
      %2396 = vmatprep.mubr.bf16.mxu0 0
      %2397 = vmatmul.mubr.bf16.gmra.mxu0 %v1690
      %v2398 = vpop.f32.mrf.mxu0
      %v2399 = vadd.f32 0.0, %v2398
      %v2400 = vpop.f32.mrf.mxu0
      %v2401 = vpop.f32.mrf.mxu0
      %v2402 = vadd.f32 0.0, %v2401
      %v2403 = vpop.f32.mrf.mxu0
      %2404 = vmatprep.mubr.bf16.mxu0 0
      %2405 = vmatmul.mubr.bf16.gmra.mxu0 %v1693
      %v2406 = vpop.f32.mrf.mxu0
      %v2407 = vadd.f32 0.0, %v2406
      %v2408 = vpop.f32.mrf.mxu0
      %v2409 = vpop.f32.mrf.mxu0
      %v2410 = vadd.f32 0.0, %v2409
      %v2411 = vpop.f32.mrf.mxu0
      %2412 = vmatprep.mubr.bf16.mxu0 0
      %2413 = vmatmul.mubr.bf16.gmra.mxu0 %v1696
      %v2414 = vpop.f32.mrf.mxu0
      %v2415 = vadd.f32 0.0, %v2414
      %v2416 = vpop.f32.mrf.mxu0
      %v2417 = vpop.f32.mrf.mxu0
      %v2418 = vadd.f32 0.0, %v2417
      %v2419 = vpop.f32.mrf.mxu0
      %2420 = vmatprep.mubr.bf16.mxu0 0
      %2421 = vmatmul.mubr.bf16.gmra.mxu0 %v1651
      %v2422 = vpop.f32.mrf.mxu0
      %v2423 = vadd.f32 0.0, %v2422
      %v2424 = vpop.f32.mrf.mxu0
      %v2425 = vpop.f32.mrf.mxu0
      %v2426 = vadd.f32 0.0, %v2425
      %v2427 = vpop.f32.mrf.mxu0
      %2428 = vmatprep.mubr.bf16.mxu0 0
      %2429 = vmatmul.mubr.bf16.gmra.mxu0 %v1654
      %v2430 = vpop.f32.mrf.mxu0
      %v2431 = vadd.f32 0.0, %v2430
      %v2432 = vpop.f32.mrf.mxu0
      %v2433 = vpop.f32.mrf.mxu0
      %v2434 = vadd.f32 0.0, %v2433
      %v2435 = vpop.f32.mrf.mxu0
      %2436 = vmatprep.mubr.bf16.mxu0 0
      %2437 = vmatmul.mubr.bf16.gmra.mxu0 %v1657
      %v2438 = vpop.f32.mrf.mxu0
      %v2439 = vadd.f32 0.0, %v2438
      %v2440 = vpop.f32.mrf.mxu0
      %v2441 = vpop.f32.mrf.mxu0
      %v2442 = vadd.f32 0.0, %v2441
      %v2443 = vpop.f32.mrf.mxu0
      %2444 = vmatprep.mubr.bf16.mxu0 0
      %2445 = vmatmul.mubr.bf16.gmra.mxu0 %v1660
      %v2446 = vpop.f32.mrf.mxu0
      %v2447 = vadd.f32 0.0, %v2446
      %v2448 = vpop.f32.mrf.mxu0
      %v2449 = vpop.f32.mrf.mxu0
      %v2450 = vadd.f32 0.0, %v2449
      %v2451 = vpop.f32.mrf.mxu0
      %2452 = vmatprep.mubr.bf16.mxu0 0
      %2453 = vmatmul.mubr.bf16.gmra.mxu0 %v1699
      %v2454 = vpop.f32.mrf.mxu0
      %v2455 = vadd.f32 0.0, %v2454
      %v2456 = vpop.f32.mrf.mxu0
      %v2457 = vpop.f32.mrf.mxu0
      %v2458 = vadd.f32 0.0, %v2457
      %v2459 = vpop.f32.mrf.mxu0
      %2460 = vmatprep.mubr.bf16.mxu0 0
      %2461 = vmatmul.mubr.bf16.gmra.mxu0 %v1702
      %v2462 = vpop.f32.mrf.mxu0
      %v2463 = vadd.f32 0.0, %v2462
      %v2464 = vpop.f32.mrf.mxu0
      %v2465 = vpop.f32.mrf.mxu0
      %v2466 = vadd.f32 0.0, %v2465
      %v2467 = vpop.f32.mrf.mxu0
      %2468 = vmatprep.mubr.bf16.mxu0 0
      %2469 = vmatmul.mubr.bf16.gmra.mxu0 %v1705
      %v2470 = vpop.f32.mrf.mxu0
      %v2471 = vadd.f32 0.0, %v2470
      %v2472 = vpop.f32.mrf.mxu0
      %v2473 = vpop.f32.mrf.mxu0
      %v2474 = vadd.f32 0.0, %v2473
      %v2475 = vpop.f32.mrf.mxu0
      %2476 = vmatprep.mubr.bf16.mxu0 0
      %2477 = vmatmul.mubr.bf16.gmra.mxu0 %v1708
      %v2478 = vpop.f32.mrf.mxu0
      %v2479 = vadd.f32 0.0, %v2478
      %v2480 = vpop.f32.mrf.mxu0
      %v2481 = vpop.f32.mrf.mxu0
      %v2482 = vadd.f32 0.0, %v2481
      %v2483 = vpop.f32.mrf.mxu0
      %2484 = vmatprep.mubr.bf16.mxu0 0
      %2485 = vmatmul.mubr.bf16.gmra.mxu0 %v1663
      %v2486 = vpop.f32.mrf.mxu0
      %v2487 = vadd.f32 0.0, %v2486
      %v2488 = vpop.f32.mrf.mxu0
      %v2489 = vpop.f32.mrf.mxu0
      %v2490 = vadd.f32 0.0, %v2489
      %v2491 = vpop.f32.mrf.mxu0
      %2492 = vmatprep.mubr.bf16.mxu0 0
      %2493 = vmatmul.mubr.bf16.gmra.mxu0 %v1666
      %v2494 = vpop.f32.mrf.mxu0
      %v2495 = vadd.f32 0.0, %v2494
      %v2496 = vpop.f32.mrf.mxu0
      %v2497 = vpop.f32.mrf.mxu0
      %v2498 = vadd.f32 0.0, %v2497
      %v2499 = vpop.f32.mrf.mxu0
      %2500 = vmatprep.mubr.bf16.mxu0 0
      %2501 = vmatmul.mubr.bf16.gmra.mxu0 %v1669
      %v2502 = vpop.f32.mrf.mxu0
      %v2503 = vadd.f32 0.0, %v2502
      %v2504 = vpop.f32.mrf.mxu0
      %v2505 = vpop.f32.mrf.mxu0
      %v2506 = vadd.f32 0.0, %v2505
      %v2507 = vpop.f32.mrf.mxu0
      %2508 = vmatprep.mubr.bf16.mxu0 0
      %2509 = vmatmul.mubr.bf16.gmra.mxu0 %v1672
      %v2510 = vpop.f32.mrf.mxu0
      %v2511 = vadd.f32 0.0, %v2510
      %v2512 = vpop.f32.mrf.mxu0
      %v2513 = vpop.f32.mrf.mxu0
      %v2514 = vadd.f32 0.0, %v2513
      %v2515 = vpop.f32.mrf.mxu0
      %2516 = vmatprep.mubr.bf16.mxu0 0
      %2517 = vmatmul.mubr.bf16.gmra.mxu0 %v1711
      %v2518 = vpop.f32.mrf.mxu0
      %v2519 = vadd.f32 0.0, %v2518
      %v2520 = vpop.f32.mrf.mxu0
      %v2521 = vpop.f32.mrf.mxu0
      %v2522 = vadd.f32 0.0, %v2521
      %v2523 = vpop.f32.mrf.mxu0
      %2524 = vmatprep.mubr.bf16.mxu0 0
      %2525 = vmatmul.mubr.bf16.gmra.mxu0 %v1714
      %v2526 = vpop.f32.mrf.mxu0
      %v2527 = vadd.f32 0.0, %v2526
      %v2528 = vpop.f32.mrf.mxu0
      %v2529 = vpop.f32.mrf.mxu0
      %v2530 = vadd.f32 0.0, %v2529
      %v2531 = vpop.f32.mrf.mxu0
      %2532 = vmatprep.mubr.bf16.mxu0 0
      %2533 = vmatmul.mubr.bf16.gmra.mxu0 %v1717
      %v2534 = vpop.f32.mrf.mxu0
      %v2535 = vadd.f32 0.0, %v2534
      %v2536 = vpop.f32.mrf.mxu0
      %v2537 = vpop.f32.mrf.mxu0
      %v2538 = vadd.f32 0.0, %v2537
      %v2539 = vpop.f32.mrf.mxu0
      %2540 = vmatprep.mubr.bf16.mxu0 0
      %2541 = vmatmul.mubr.bf16.gmra.mxu0 %v1720
      %v2542 = vpop.f32.mrf.mxu0
      %v2543 = vadd.f32 0.0, %v2542
      %v2544 = vpop.f32.mrf.mxu0
      %v2545 = vpop.f32.mrf.mxu0
      %v2546 = vadd.f32 0.0, %v2545
      %v2547 = vpop.f32.mrf.mxu0
      %2548 = vmatprep.mubr.bf16.mxu0 0
      %2549 = vmatmul.mubr.bf16.gmra.mxu0 %v1675
      %v2550 = vpop.f32.mrf.mxu0
      %v2551 = vadd.f32 0.0, %v2550
      %v2552 = vpop.f32.mrf.mxu0
      %v2553 = vpop.f32.mrf.mxu0
      %v2554 = vadd.f32 0.0, %v2553
      %v2555 = vpop.f32.mrf.mxu0
      %2556 = vmatprep.mubr.bf16.mxu0 0
      %2557 = vmatmul.mubr.bf16.gmra.mxu0 %v1678
      %v2558 = vpop.f32.mrf.mxu0
      %v2559 = vadd.f32 0.0, %v2558
      %v2560 = vpop.f32.mrf.mxu0
      %v2561 = vpop.f32.mrf.mxu0
      %v2562 = vadd.f32 0.0, %v2561
      %v2563 = vpop.f32.mrf.mxu0
      %2564 = vmatprep.mubr.bf16.mxu0 0
      %2565 = vmatmul.mubr.bf16.gmra.mxu0 %v1681
      %v2566 = vpop.f32.mrf.mxu0
      %v2567 = vadd.f32 0.0, %v2566
      %v2568 = vpop.f32.mrf.mxu0
      %v2569 = vpop.f32.mrf.mxu0
      %v2570 = vadd.f32 0.0, %v2569
      %v2571 = vpop.f32.mrf.mxu0
      %2572 = vmatprep.mubr.bf16.mxu0 0
      %2573 = vmatmul.mubr.bf16.gmra.mxu0 %v1684
      %v2574 = vpop.f32.mrf.mxu0
      %v2575 = vadd.f32 0.0, %v2574
      %v2576 = vpop.f32.mrf.mxu0
      %v2577 = vpop.f32.mrf.mxu0
      %v2578 = vadd.f32 0.0, %v2577
      %v2579 = vpop.f32.mrf.mxu0
      %2580 = vmatprep.mubr.bf16.mxu0 0
      %2581 = vmatmul.mubr.bf16.gmra.mxu0 %v1723
      %v2582 = vpop.f32.mrf.mxu0
      %v2583 = vadd.f32 0.0, %v2582
      %v2584 = vpop.f32.mrf.mxu0
      %v2585 = vpop.f32.mrf.mxu0
      %v2586 = vadd.f32 0.0, %v2585
      %v2587 = vpop.f32.mrf.mxu0
      %2588 = vmatprep.mubr.bf16.mxu0 0
      %2589 = vmatmul.mubr.bf16.gmra.mxu0 %v1726
      %v2590 = vpop.f32.mrf.mxu0
      %v2591 = vadd.f32 0.0, %v2590
      %v2592 = vpop.f32.mrf.mxu0
      %v2593 = vpop.f32.mrf.mxu0
      %v2594 = vadd.f32 0.0, %v2593
      %v2595 = vpop.f32.mrf.mxu0
      %2596 = vmatprep.mubr.bf16.mxu0 0
      %2597 = vmatmul.mubr.bf16.gmra.mxu0 %v1729
      %v2598 = vpop.f32.mrf.mxu0
      %v2599 = vadd.f32 0.0, %v2598
      %v2600 = vpop.f32.mrf.mxu0
      %v2601 = vpop.f32.mrf.mxu0
      %v2602 = vadd.f32 0.0, %v2601
      %v2603 = vpop.f32.mrf.mxu0
      %2604 = vmatprep.mubr.bf16.mxu0 0
      %2605 = vmatmul.mubr.bf16.gmra.mxu0 %v1732
      %v2606 = vpop.f32.mrf.mxu0
      %v2607 = vadd.f32 0.0, %v2606
      %v2608 = vpop.f32.mrf.mxu0
      %v2609 = vpop.f32.mrf.mxu0
      %v2610 = vadd.f32 0.0, %v2609
      %v2611 = vpop.f32.mrf.mxu0
      %2612 = vdwg.mxu0
      %v2613 = vpack.c.bf16 %v1772, %v1769
      %v2614 = vpack.c.bf16 %v1780, %v1777
      %v2615 = vpack.c.bf16 %v1788, %v1785
      %v2616 = vpack.c.bf16 %v1796, %v1793
      %v2617 = vpack.c.bf16 %v1804, %v1801
      %v2618 = vpack.c.bf16 %v1812, %v1809
      %v2619 = vpack.c.bf16 %v1820, %v1817
      %v2620 = vpack.c.bf16 %v1828, %v1825
      %v2621 = vpack.c.bf16 %v1836, %v1833
      %v2622 = vpack.c.bf16 %v1844, %v1841
      %v2623 = vpack.c.bf16 %v1852, %v1849
      %v2624 = vpack.c.bf16 %v1860, %v1857
      %v2625 = vpack.c.bf16 %v1868, %v1865
      %v2626 = vpack.c.bf16 %v1876, %v1873
      %v2627 = vpack.c.bf16 %v1884, %v1881
      %v2628 = vpack.c.bf16 %v1892, %v1889
      %v2629 = vpack.c.bf16 %v1900, %v1897
      %v2630 = vpack.c.bf16 %v1908, %v1905
      %v2631 = vpack.c.bf16 %v1916, %v1913
      %v2632 = vpack.c.bf16 %v1924, %v1921
      %v2633 = vpack.c.bf16 %v1932, %v1929
      %v2634 = vpack.c.bf16 %v1940, %v1937
      %v2635 = vpack.c.bf16 %v1948, %v1945
      %v2636 = vpack.c.bf16 %v1956, %v1953
      %v2637 = vpack.c.bf16 %v1964, %v1961
      %v2638 = vpack.c.bf16 %v1972, %v1969
      %v2639 = vpack.c.bf16 %v1980, %v1977
      %v2640 = vpack.c.bf16 %v1988, %v1985
      %v2641 = vpack.c.bf16 %v1996, %v1993
      %v2642 = vpack.c.bf16 %v2004, %v2001
      %v2643 = vpack.c.bf16 %v2012, %v2009
      %v2644 = vpack.c.bf16 %v2020, %v2017
      %v2645 = vpack.c.bf16 %v2067, %v2064
      %v2646 = vpack.c.bf16 %v2075, %v2072
      %v2647 = vpack.c.bf16 %v2083, %v2080
      %v2648 = vpack.c.bf16 %v2091, %v2088
      %v2649 = vpack.c.bf16 %v2099, %v2096
      %v2650 = vpack.c.bf16 %v2107, %v2104
      %v2651 = vpack.c.bf16 %v2115, %v2112
      %v2652 = vpack.c.bf16 %v2123, %v2120
      %v2653 = vpack.c.bf16 %v2131, %v2128
      %v2654 = vpack.c.bf16 %v2139, %v2136
      %v2655 = vpack.c.bf16 %v2147, %v2144
      %v2656 = vpack.c.bf16 %v2155, %v2152
      %v2657 = vpack.c.bf16 %v2163, %v2160
      %v2658 = vpack.c.bf16 %v2171, %v2168
      %v2659 = vpack.c.bf16 %v2179, %v2176
      %v2660 = vpack.c.bf16 %v2187, %v2184
      %v2661 = vpack.c.bf16 %v2195, %v2192
      %v2662 = vpack.c.bf16 %v2203, %v2200
      %v2663 = vpack.c.bf16 %v2211, %v2208
      %v2664 = vpack.c.bf16 %v2219, %v2216
      %v2665 = vpack.c.bf16 %v2227, %v2224
      %v2666 = vpack.c.bf16 %v2235, %v2232
      %v2667 = vpack.c.bf16 %v2243, %v2240
      %v2668 = vpack.c.bf16 %v2251, %v2248
      %v2669 = vpack.c.bf16 %v2259, %v2256
      %v2670 = vpack.c.bf16 %v2267, %v2264
      %v2671 = vpack.c.bf16 %v2275, %v2272
      %v2672 = vpack.c.bf16 %v2283, %v2280
      %v2673 = vpack.c.bf16 %v2291, %v2288
      %v2674 = vpack.c.bf16 %v2299, %v2296
      %v2675 = vpack.c.bf16 %v2307, %v2304
      %v2676 = vpack.c.bf16 %v2315, %v2312
      %v2677 = vpack.c.bf16 %v2362, %v2359
      %v2678 = vpack.c.bf16 %v2370, %v2367
      %v2679 = vpack.c.bf16 %v2378, %v2375
      %v2680 = vpack.c.bf16 %v2386, %v2383
      %v2681 = vpack.c.bf16 %v2394, %v2391
      %v2682 = vpack.c.bf16 %v2402, %v2399
      %v2683 = vpack.c.bf16 %v2410, %v2407
      %v2684 = vpack.c.bf16 %v2418, %v2415
      %v2685 = vpack.c.bf16 %v2426, %v2423
      %v2686 = vpack.c.bf16 %v2434, %v2431
      %v2687 = vpack.c.bf16 %v2442, %v2439
      %v2688 = vpack.c.bf16 %v2450, %v2447
      %v2689 = vpack.c.bf16 %v2458, %v2455
      %v2690 = vpack.c.bf16 %v2466, %v2463
      %v2691 = vpack.c.bf16 %v2474, %v2471
      %v2692 = vpack.c.bf16 %v2482, %v2479
      %v2693 = vpack.c.bf16 %v2490, %v2487
      %v2694 = vpack.c.bf16 %v2498, %v2495
      %v2695 = vpack.c.bf16 %v2506, %v2503
      %v2696 = vpack.c.bf16 %v2514, %v2511
      %v2697 = vpack.c.bf16 %v2522, %v2519
      %v2698 = vpack.c.bf16 %v2530, %v2527
      %v2699 = vpack.c.bf16 %v2538, %v2535
      %v2700 = vpack.c.bf16 %v2546, %v2543
      %v2701 = vpack.c.bf16 %v2554, %v2551
      %v2702 = vpack.c.bf16 %v2562, %v2559
      %v2703 = vpack.c.bf16 %v2570, %v2567
      %v2704 = vpack.c.bf16 %v2578, %v2575
      %v2705 = vpack.c.bf16 %v2586, %v2583
      %v2706 = vpack.c.bf16 %v2594, %v2591
      %v2707 = vpack.c.bf16 %v2602, %v2599
      %v2708 = vpack.c.bf16 %v2610, %v2607
      %vm2709 = vcmask 130048
      %v2711 = vsel %vm2709, %v2613, 0
      %v2714 = vsel %vm2709, %v2614, 0
      %v2717 = vsel %vm2709, %v2615, 0
      %v2720 = vsel %vm2709, %v2616, 0
      %v2723 = vsel %vm2709, %v2645, 0
      %v2726 = vsel %vm2709, %v2646, 0
      %v2729 = vsel %vm2709, %v2647, 0
      %v2732 = vsel %vm2709, %v2648, 0
      %2734 = vmatprep.subr.bf16.mxu0 0
      %2735 = vmatpush1.bf16.xpose.msra.mxu0 0
      %2736 = vmatprep.subr.bf16.mxu0 0
      %2737 = vmatpush1.bf16.xpose.msra.mxu0 0
      %2738 = vmatprep.subr.bf16.mxu0 0
      %2739 = vmatpush1.bf16.xpose.msra.mxu0 0
      %2740 = vmatprep.subr.bf16.mxu0 0
      %2741 = vmatpush1.bf16.xpose.msra.mxu0 0
      %2742 = vmatprep.subr.bf16.mxu0 0
      %2743 = vmatpush1.bf16.xpose.msra.mxu0 %v2732
      %2744 = vmatprep.subr.bf16.mxu0 0
      %2745 = vmatpush1.bf16.xpose.msra.mxu0 %v2729
      %2746 = vmatprep.subr.bf16.mxu0 0
      %2747 = vmatpush1.bf16.xpose.msra.mxu0 %v2726
      %2748 = vmatprep.subr.bf16.mxu0 0
      %2749 = vmatpush1.bf16.xpose.msra.mxu0 %v2723
      %2750 = vmatprep.subr.bf16.mxu0 0
      %2751 = vmatpush2.bf16.xpose.msra.mxu0 0
      %2752 = vmatprep.subr.bf16.mxu0 0
      %2753 = vmatpush2.bf16.xpose.msra.mxu0 0
      %2754 = vmatprep.subr.bf16.mxu0 0
      %2755 = vmatpush2.bf16.xpose.msra.mxu0 0
      %2756 = vmatprep.subr.bf16.mxu0 0
      %2757 = vmatpush2.bf16.xpose.msra.mxu0 0
      %2758 = vmatprep.subr.bf16.mxu0 0
      %2759 = vmatpush2.bf16.xpose.msra.mxu0 0
      %2760 = vmatprep.subr.bf16.mxu0 0
      %2761 = vmatpush2.bf16.xpose.msra.mxu0 0
      %2762 = vmatprep.subr.bf16.mxu0 0
      %2763 = vmatpush2.bf16.xpose.msra.mxu0 0
      %2764 = vmatprep.subr.bf16.mxu0 0
      %2765 = vmatpush2.bf16.xpose.msra.mxu0 0
      %2766 = vmatprep.mubr.bf16.mxu0 0
      %2767 = vmatmul.mubr.bf16.gmra.mxu0 %v2711
      %v2768 = vpop.f32.mrf.mxu0
      %v2769 = vadd.f32 %v1568, %v2768
      %v2770 = vpop.f32.mrf.mxu0
      %v2771 = vpop.f32.mrf.mxu0
      %v2772 = vadd.f32 %v1569, %v2771
      %v2773 = vpop.f32.mrf.mxu0
      %2774 = vmatprep.mubr.bf16.mxu0 0
      %2775 = vmatmul.mubr.bf16.gmra.mxu0 %v2714
      %v2776 = vpop.f32.mrf.mxu0
      %v2777 = vadd.f32 %v1570, %v2776
      %v2778 = vpop.f32.mrf.mxu0
      %v2779 = vpop.f32.mrf.mxu0
      %v2780 = vadd.f32 %v1571, %v2779
      %v2781 = vpop.f32.mrf.mxu0
      %2782 = vmatprep.mubr.bf16.mxu0 0
      %2783 = vmatmul.mubr.bf16.gmra.mxu0 %v2717
      %v2784 = vpop.f32.mrf.mxu0
      %v2785 = vadd.f32 %v1572, %v2784
      %v2786 = vpop.f32.mrf.mxu0
      %v2787 = vpop.f32.mrf.mxu0
      %v2788 = vadd.f32 %v1573, %v2787
      %v2789 = vpop.f32.mrf.mxu0
      %2790 = vmatprep.mubr.bf16.mxu0 0
      %2791 = vmatmul.mubr.bf16.gmra.mxu0 %v2720
      %v2792 = vpop.f32.mrf.mxu0
      %v2793 = vadd.f32 %v1574, %v2792
      %v2794 = vpop.f32.mrf.mxu0
      %v2795 = vpop.f32.mrf.mxu0
      %v2796 = vadd.f32 %v1575, %v2795
      %v2797 = vpop.f32.mrf.mxu0
      %2798 = vdwg.mxu0
      %v2800 = vsel %vm2709, %v2617, 0
      %v2803 = vsel %vm2709, %v2618, 0
      %v2806 = vsel %vm2709, %v2619, 0
      %v2809 = vsel %vm2709, %v2620, 0
      %v2812 = vsel %vm2709, %v2649, 0
      %v2815 = vsel %vm2709, %v2650, 0
      %v2818 = vsel %vm2709, %v2651, 0
      %v2821 = vsel %vm2709, %v2652, 0
      %2823 = vmatprep.subr.bf16.mxu0 0
      %2824 = vmatpush1.bf16.xpose.msra.mxu0 0
      %2825 = vmatprep.subr.bf16.mxu0 0
      %2826 = vmatpush1.bf16.xpose.msra.mxu0 0
      %2827 = vmatprep.subr.bf16.mxu0 0
      %2828 = vmatpush1.bf16.xpose.msra.mxu0 0
      %2829 = vmatprep.subr.bf16.mxu0 0
      %2830 = vmatpush1.bf16.xpose.msra.mxu0 0
      %2831 = vmatprep.subr.bf16.mxu0 0
      %2832 = vmatpush1.bf16.xpose.msra.mxu0 %v2821
      %2833 = vmatprep.subr.bf16.mxu0 0
      %2834 = vmatpush1.bf16.xpose.msra.mxu0 %v2818
      %2835 = vmatprep.subr.bf16.mxu0 0
      %2836 = vmatpush1.bf16.xpose.msra.mxu0 %v2815
      %2837 = vmatprep.subr.bf16.mxu0 0
      %2838 = vmatpush1.bf16.xpose.msra.mxu0 %v2812
      %2839 = vmatprep.subr.bf16.mxu0 0
      %2840 = vmatpush2.bf16.xpose.msra.mxu0 0
      %2841 = vmatprep.subr.bf16.mxu0 0
      %2842 = vmatpush2.bf16.xpose.msra.mxu0 0
      %2843 = vmatprep.subr.bf16.mxu0 0
      %2844 = vmatpush2.bf16.xpose.msra.mxu0 0
      %2845 = vmatprep.subr.bf16.mxu0 0
      %2846 = vmatpush2.bf16.xpose.msra.mxu0 0
      %2847 = vmatprep.subr.bf16.mxu0 0
      %2848 = vmatpush2.bf16.xpose.msra.mxu0 0
      %2849 = vmatprep.subr.bf16.mxu0 0
      %2850 = vmatpush2.bf16.xpose.msra.mxu0 0
      %2851 = vmatprep.subr.bf16.mxu0 0
      %2852 = vmatpush2.bf16.xpose.msra.mxu0 0
      %2853 = vmatprep.subr.bf16.mxu0 0
      %2854 = vmatpush2.bf16.xpose.msra.mxu0 0
      %2855 = vmatprep.mubr.bf16.mxu0 0
      %2856 = vmatmul.mubr.bf16.gmra.mxu0 %v2800
      %v2857 = vpop.f32.mrf.mxu0
      %v2858 = vadd.f32 %v1576, %v2857
      %v2859 = vpop.f32.mrf.mxu0
      %v2860 = vpop.f32.mrf.mxu0
      %v2861 = vadd.f32 %v1577, %v2860
      %v2862 = vpop.f32.mrf.mxu0
      %2863 = vmatprep.mubr.bf16.mxu0 0
      %2864 = vmatmul.mubr.bf16.gmra.mxu0 %v2803
      %v2865 = vpop.f32.mrf.mxu0
      %v2866 = vadd.f32 %v1578, %v2865
      %v2867 = vpop.f32.mrf.mxu0
      %v2868 = vpop.f32.mrf.mxu0
      %v2869 = vadd.f32 %v1579, %v2868
      %v2870 = vpop.f32.mrf.mxu0
      %2871 = vmatprep.mubr.bf16.mxu0 0
      %2872 = vmatmul.mubr.bf16.gmra.mxu0 %v2806
      %v2873 = vpop.f32.mrf.mxu0
      %v2874 = vadd.f32 %v1580, %v2873
      %v2875 = vpop.f32.mrf.mxu0
      %v2876 = vpop.f32.mrf.mxu0
      %v2877 = vadd.f32 %v1581, %v2876
      %v2878 = vpop.f32.mrf.mxu0
      %2879 = vmatprep.mubr.bf16.mxu0 0
      %2880 = vmatmul.mubr.bf16.gmra.mxu0 %v2809
      %v2881 = vpop.f32.mrf.mxu0
      %v2882 = vadd.f32 %v1582, %v2881
      %v2883 = vpop.f32.mrf.mxu0
      %v2884 = vpop.f32.mrf.mxu0
      %v2885 = vadd.f32 %v1583, %v2884
      %v2886 = vpop.f32.mrf.mxu0
      %2887 = vdwg.mxu0
      %v2889 = vsel %vm2709, %v2621, 0
      %v2892 = vsel %vm2709, %v2622, 0
      %v2895 = vsel %vm2709, %v2623, 0
      %v2898 = vsel %vm2709, %v2624, 0
      %v2901 = vsel %vm2709, %v2653, 0
      %v2904 = vsel %vm2709, %v2654, 0
      %v2907 = vsel %vm2709, %v2655, 0
      %v2910 = vsel %vm2709, %v2656, 0
      %2912 = vmatprep.subr.bf16.mxu0 0
      %2913 = vmatpush1.bf16.xpose.msra.mxu0 0
      %2914 = vmatprep.subr.bf16.mxu0 0
      %2915 = vmatpush1.bf16.xpose.msra.mxu0 0
      %2916 = vmatprep.subr.bf16.mxu0 0
      %2917 = vmatpush1.bf16.xpose.msra.mxu0 0
      %2918 = vmatprep.subr.bf16.mxu0 0
      %2919 = vmatpush1.bf16.xpose.msra.mxu0 0
      %2920 = vmatprep.subr.bf16.mxu0 0
      %2921 = vmatpush1.bf16.xpose.msra.mxu0 %v2910
      %2922 = vmatprep.subr.bf16.mxu0 0
      %2923 = vmatpush1.bf16.xpose.msra.mxu0 %v2907
      %2924 = vmatprep.subr.bf16.mxu0 0
      %2925 = vmatpush1.bf16.xpose.msra.mxu0 %v2904
      %2926 = vmatprep.subr.bf16.mxu0 0
      %2927 = vmatpush1.bf16.xpose.msra.mxu0 %v2901
      %2928 = vmatprep.subr.bf16.mxu0 0
      %2929 = vmatpush2.bf16.xpose.msra.mxu0 0
      %2930 = vmatprep.subr.bf16.mxu0 0
      %2931 = vmatpush2.bf16.xpose.msra.mxu0 0
      %2932 = vmatprep.subr.bf16.mxu0 0
      %2933 = vmatpush2.bf16.xpose.msra.mxu0 0
      %2934 = vmatprep.subr.bf16.mxu0 0
      %2935 = vmatpush2.bf16.xpose.msra.mxu0 0
      %2936 = vmatprep.subr.bf16.mxu0 0
      %2937 = vmatpush2.bf16.xpose.msra.mxu0 0
      %2938 = vmatprep.subr.bf16.mxu0 0
      %2939 = vmatpush2.bf16.xpose.msra.mxu0 0
      %2940 = vmatprep.subr.bf16.mxu0 0
      %2941 = vmatpush2.bf16.xpose.msra.mxu0 0
      %2942 = vmatprep.subr.bf16.mxu0 0
      %2943 = vmatpush2.bf16.xpose.msra.mxu0 0
      %2944 = vmatprep.mubr.bf16.mxu0 0
      %2945 = vmatmul.mubr.bf16.gmra.mxu0 %v2889
      %v2946 = vpop.f32.mrf.mxu0
      %v2947 = vadd.f32 %v1584, %v2946
      %v2948 = vpop.f32.mrf.mxu0
      %v2949 = vpop.f32.mrf.mxu0
      %v2950 = vadd.f32 %v1585, %v2949
      %v2951 = vpop.f32.mrf.mxu0
      %2952 = vmatprep.mubr.bf16.mxu0 0
      %2953 = vmatmul.mubr.bf16.gmra.mxu0 %v2892
      %v2954 = vpop.f32.mrf.mxu0
      %v2955 = vadd.f32 %v1586, %v2954
      %v2956 = vpop.f32.mrf.mxu0
      %v2957 = vpop.f32.mrf.mxu0
      %v2958 = vadd.f32 %v1587, %v2957
      %v2959 = vpop.f32.mrf.mxu0
      %2960 = vmatprep.mubr.bf16.mxu0 0
      %2961 = vmatmul.mubr.bf16.gmra.mxu0 %v2895
      %v2962 = vpop.f32.mrf.mxu0
      %v2963 = vadd.f32 %v1588, %v2962
      %v2964 = vpop.f32.mrf.mxu0
      %v2965 = vpop.f32.mrf.mxu0
      %v2966 = vadd.f32 %v1589, %v2965
      %v2967 = vpop.f32.mrf.mxu0
      %2968 = vmatprep.mubr.bf16.mxu0 0
      %2969 = vmatmul.mubr.bf16.gmra.mxu0 %v2898
      %v2970 = vpop.f32.mrf.mxu0
      %v2971 = vadd.f32 %v1590, %v2970
      %v2972 = vpop.f32.mrf.mxu0
      %v2973 = vpop.f32.mrf.mxu0
      %v2974 = vadd.f32 %v1591, %v2973
      %v2975 = vpop.f32.mrf.mxu0
      %2976 = vdwg.mxu0
      %v2978 = vsel %vm2709, %v2625, 0
      %v2981 = vsel %vm2709, %v2626, 0
      %v2984 = vsel %vm2709, %v2627, 0
      %v2987 = vsel %vm2709, %v2628, 0
      %v2990 = vsel %vm2709, %v2657, 0
      %v2993 = vsel %vm2709, %v2658, 0
      %v2996 = vsel %vm2709, %v2659, 0
      %v2999 = vsel %vm2709, %v2660, 0
      %3001 = vmatprep.subr.bf16.mxu0 0
      %3002 = vmatpush1.bf16.xpose.msra.mxu0 0
      %3003 = vmatprep.subr.bf16.mxu0 0
      %3004 = vmatpush1.bf16.xpose.msra.mxu0 0
      %3005 = vmatprep.subr.bf16.mxu0 0
      %3006 = vmatpush1.bf16.xpose.msra.mxu0 0
      %3007 = vmatprep.subr.bf16.mxu0 0
      %3008 = vmatpush1.bf16.xpose.msra.mxu0 0
      %3009 = vmatprep.subr.bf16.mxu0 0
      %3010 = vmatpush1.bf16.xpose.msra.mxu0 %v2999
      %3011 = vmatprep.subr.bf16.mxu0 0
      %3012 = vmatpush1.bf16.xpose.msra.mxu0 %v2996
      %3013 = vmatprep.subr.bf16.mxu0 0
      %3014 = vmatpush1.bf16.xpose.msra.mxu0 %v2993
      %3015 = vmatprep.subr.bf16.mxu0 0
      %3016 = vmatpush1.bf16.xpose.msra.mxu0 %v2990
      %3017 = vmatprep.subr.bf16.mxu0 0
      %3018 = vmatpush2.bf16.xpose.msra.mxu0 0
      %3019 = vmatprep.subr.bf16.mxu0 0
      %3020 = vmatpush2.bf16.xpose.msra.mxu0 0
      %3021 = vmatprep.subr.bf16.mxu0 0
      %3022 = vmatpush2.bf16.xpose.msra.mxu0 0
      %3023 = vmatprep.subr.bf16.mxu0 0
      %3024 = vmatpush2.bf16.xpose.msra.mxu0 0
      %3025 = vmatprep.subr.bf16.mxu0 0
      %3026 = vmatpush2.bf16.xpose.msra.mxu0 0
      %3027 = vmatprep.subr.bf16.mxu0 0
      %3028 = vmatpush2.bf16.xpose.msra.mxu0 0
      %3029 = vmatprep.subr.bf16.mxu0 0
      %3030 = vmatpush2.bf16.xpose.msra.mxu0 0
      %3031 = vmatprep.subr.bf16.mxu0 0
      %3032 = vmatpush2.bf16.xpose.msra.mxu0 0
      %3033 = vmatprep.mubr.bf16.mxu0 0
      %3034 = vmatmul.mubr.bf16.gmra.mxu0 %v2978
      %v3035 = vpop.f32.mrf.mxu0
      %v3036 = vadd.f32 %v1592, %v3035
      %v3037 = vpop.f32.mrf.mxu0
      %v3038 = vpop.f32.mrf.mxu0
      %v3039 = vadd.f32 %v1593, %v3038
      %v3040 = vpop.f32.mrf.mxu0
      %3041 = vmatprep.mubr.bf16.mxu0 0
      %3042 = vmatmul.mubr.bf16.gmra.mxu0 %v2981
      %v3043 = vpop.f32.mrf.mxu0
      %v3044 = vadd.f32 %v1594, %v3043
      %v3045 = vpop.f32.mrf.mxu0
      %v3046 = vpop.f32.mrf.mxu0
      %v3047 = vadd.f32 %v1595, %v3046
      %v3048 = vpop.f32.mrf.mxu0
      %3049 = vmatprep.mubr.bf16.mxu0 0
      %3050 = vmatmul.mubr.bf16.gmra.mxu0 %v2984
      %v3051 = vpop.f32.mrf.mxu0
      %v3052 = vadd.f32 %v1596, %v3051
      %v3053 = vpop.f32.mrf.mxu0
      %v3054 = vpop.f32.mrf.mxu0
      %v3055 = vadd.f32 %v1597, %v3054
      %v3056 = vpop.f32.mrf.mxu0
      %3057 = vmatprep.mubr.bf16.mxu0 0
      %3058 = vmatmul.mubr.bf16.gmra.mxu0 %v2987
      %v3059 = vpop.f32.mrf.mxu0
      %v3060 = vadd.f32 %v1598, %v3059
      %v3061 = vpop.f32.mrf.mxu0
      %v3062 = vpop.f32.mrf.mxu0
      %v3063 = vadd.f32 %v1599, %v3062
      %v3064 = vpop.f32.mrf.mxu0
      %3065 = vdwg.mxu0
      %v3067 = vsel %vm2709, %v2629, 0
      %v3070 = vsel %vm2709, %v2630, 0
      %v3073 = vsel %vm2709, %v2631, 0
      %v3076 = vsel %vm2709, %v2632, 0
      %v3079 = vsel %vm2709, %v2661, 0
      %v3082 = vsel %vm2709, %v2662, 0
      %v3085 = vsel %vm2709, %v2663, 0
      %v3088 = vsel %vm2709, %v2664, 0
      %3090 = vmatprep.subr.bf16.mxu0 0
      %3091 = vmatpush1.bf16.xpose.msra.mxu0 0
      %3092 = vmatprep.subr.bf16.mxu0 0
      %3093 = vmatpush1.bf16.xpose.msra.mxu0 0
      %3094 = vmatprep.subr.bf16.mxu0 0
      %3095 = vmatpush1.bf16.xpose.msra.mxu0 0
      %3096 = vmatprep.subr.bf16.mxu0 0
      %3097 = vmatpush1.bf16.xpose.msra.mxu0 0
      %3098 = vmatprep.subr.bf16.mxu0 0
      %3099 = vmatpush1.bf16.xpose.msra.mxu0 %v3088
      %3100 = vmatprep.subr.bf16.mxu0 0
      %3101 = vmatpush1.bf16.xpose.msra.mxu0 %v3085
      %3102 = vmatprep.subr.bf16.mxu0 0
      %3103 = vmatpush1.bf16.xpose.msra.mxu0 %v3082
      %3104 = vmatprep.subr.bf16.mxu0 0
      %3105 = vmatpush1.bf16.xpose.msra.mxu0 %v3079
      %3106 = vmatprep.subr.bf16.mxu0 0
      %3107 = vmatpush2.bf16.xpose.msra.mxu0 0
      %3108 = vmatprep.subr.bf16.mxu0 0
      %3109 = vmatpush2.bf16.xpose.msra.mxu0 0
      %3110 = vmatprep.subr.bf16.mxu0 0
      %3111 = vmatpush2.bf16.xpose.msra.mxu0 0
      %3112 = vmatprep.subr.bf16.mxu0 0
      %3113 = vmatpush2.bf16.xpose.msra.mxu0 0
      %3114 = vmatprep.subr.bf16.mxu0 0
      %3115 = vmatpush2.bf16.xpose.msra.mxu0 0
      %3116 = vmatprep.subr.bf16.mxu0 0
      %3117 = vmatpush2.bf16.xpose.msra.mxu0 0
      %3118 = vmatprep.subr.bf16.mxu0 0
      %3119 = vmatpush2.bf16.xpose.msra.mxu0 0
      %3120 = vmatprep.subr.bf16.mxu0 0
      %3121 = vmatpush2.bf16.xpose.msra.mxu0 0
      %3122 = vmatprep.mubr.bf16.mxu0 0
      %3123 = vmatmul.mubr.bf16.gmra.mxu0 %v3067
      %v3124 = vpop.f32.mrf.mxu0
      %v3125 = vadd.f32 %v1600, %v3124
      %v3126 = vpop.f32.mrf.mxu0
      %v3127 = vpop.f32.mrf.mxu0
      %v3128 = vadd.f32 %v1601, %v3127
      %v3129 = vpop.f32.mrf.mxu0
      %3130 = vmatprep.mubr.bf16.mxu0 0
      %3131 = vmatmul.mubr.bf16.gmra.mxu0 %v3070
      %v3132 = vpop.f32.mrf.mxu0
      %v3133 = vadd.f32 %v1602, %v3132
      %v3134 = vpop.f32.mrf.mxu0
      %v3135 = vpop.f32.mrf.mxu0
      %v3136 = vadd.f32 %v1603, %v3135
      %v3137 = vpop.f32.mrf.mxu0
      %3138 = vmatprep.mubr.bf16.mxu0 0
      %3139 = vmatmul.mubr.bf16.gmra.mxu0 %v3073
      %v3140 = vpop.f32.mrf.mxu0
      %v3141 = vadd.f32 %v1604, %v3140
      %v3142 = vpop.f32.mrf.mxu0
      %v3143 = vpop.f32.mrf.mxu0
      %v3144 = vadd.f32 %v1605, %v3143
      %v3145 = vpop.f32.mrf.mxu0
      %3146 = vmatprep.mubr.bf16.mxu0 0
      %3147 = vmatmul.mubr.bf16.gmra.mxu0 %v3076
      %v3148 = vpop.f32.mrf.mxu0
      %v3149 = vadd.f32 %v1606, %v3148
      %v3150 = vpop.f32.mrf.mxu0
      %v3151 = vpop.f32.mrf.mxu0
      %v3152 = vadd.f32 %v1607, %v3151
      %v3153 = vpop.f32.mrf.mxu0
      %3154 = vdwg.mxu0
      %v3156 = vsel %vm2709, %v2633, 0
      %v3159 = vsel %vm2709, %v2634, 0
      %v3162 = vsel %vm2709, %v2635, 0
      %v3165 = vsel %vm2709, %v2636, 0
      %v3168 = vsel %vm2709, %v2665, 0
      %v3171 = vsel %vm2709, %v2666, 0
      %v3174 = vsel %vm2709, %v2667, 0
      %v3177 = vsel %vm2709, %v2668, 0
      %3179 = vmatprep.subr.bf16.mxu0 0
      %3180 = vmatpush1.bf16.xpose.msra.mxu0 0
      %3181 = vmatprep.subr.bf16.mxu0 0
      %3182 = vmatpush1.bf16.xpose.msra.mxu0 0
      %3183 = vmatprep.subr.bf16.mxu0 0
      %3184 = vmatpush1.bf16.xpose.msra.mxu0 0
      %3185 = vmatprep.subr.bf16.mxu0 0
      %3186 = vmatpush1.bf16.xpose.msra.mxu0 0
      %3187 = vmatprep.subr.bf16.mxu0 0
      %3188 = vmatpush1.bf16.xpose.msra.mxu0 %v3177
      %3189 = vmatprep.subr.bf16.mxu0 0
      %3190 = vmatpush1.bf16.xpose.msra.mxu0 %v3174
      %3191 = vmatprep.subr.bf16.mxu0 0
      %3192 = vmatpush1.bf16.xpose.msra.mxu0 %v3171
      %3193 = vmatprep.subr.bf16.mxu0 0
      %3194 = vmatpush1.bf16.xpose.msra.mxu0 %v3168
      %3195 = vmatprep.subr.bf16.mxu0 0
      %3196 = vmatpush2.bf16.xpose.msra.mxu0 0
      %3197 = vmatprep.subr.bf16.mxu0 0
      %3198 = vmatpush2.bf16.xpose.msra.mxu0 0
      %3199 = vmatprep.subr.bf16.mxu0 0
      %3200 = vmatpush2.bf16.xpose.msra.mxu0 0
      %3201 = vmatprep.subr.bf16.mxu0 0
      %3202 = vmatpush2.bf16.xpose.msra.mxu0 0
      %3203 = vmatprep.subr.bf16.mxu0 0
      %3204 = vmatpush2.bf16.xpose.msra.mxu0 0
      %3205 = vmatprep.subr.bf16.mxu0 0
      %3206 = vmatpush2.bf16.xpose.msra.mxu0 0
      %3207 = vmatprep.subr.bf16.mxu0 0
      %3208 = vmatpush2.bf16.xpose.msra.mxu0 0
      %3209 = vmatprep.subr.bf16.mxu0 0
      %3210 = vmatpush2.bf16.xpose.msra.mxu0 0
      %3211 = vmatprep.mubr.bf16.mxu0 0
      %3212 = vmatmul.mubr.bf16.gmra.mxu0 %v3156
      %v3213 = vpop.f32.mrf.mxu0
      %v3214 = vadd.f32 %v1608, %v3213
      %v3215 = vpop.f32.mrf.mxu0
      %v3216 = vpop.f32.mrf.mxu0
      %v3217 = vadd.f32 %v1609, %v3216
      %v3218 = vpop.f32.mrf.mxu0
      %3219 = vmatprep.mubr.bf16.mxu0 0
      %3220 = vmatmul.mubr.bf16.gmra.mxu0 %v3159
      %v3221 = vpop.f32.mrf.mxu0
      %v3222 = vadd.f32 %v1610, %v3221
      %v3223 = vpop.f32.mrf.mxu0
      %v3224 = vpop.f32.mrf.mxu0
      %v3225 = vadd.f32 %v1611, %v3224
      %v3226 = vpop.f32.mrf.mxu0
      %3227 = vmatprep.mubr.bf16.mxu0 0
      %3228 = vmatmul.mubr.bf16.gmra.mxu0 %v3162
      %v3229 = vpop.f32.mrf.mxu0
      %v3230 = vadd.f32 %v1612, %v3229
      %v3231 = vpop.f32.mrf.mxu0
      %v3232 = vpop.f32.mrf.mxu0
      %v3233 = vadd.f32 %v1613, %v3232
      %v3234 = vpop.f32.mrf.mxu0
      %3235 = vmatprep.mubr.bf16.mxu0 0
      %3236 = vmatmul.mubr.bf16.gmra.mxu0 %v3165
      %v3237 = vpop.f32.mrf.mxu0
      %v3238 = vadd.f32 %v1614, %v3237
      %v3239 = vpop.f32.mrf.mxu0
      %v3240 = vpop.f32.mrf.mxu0
      %v3241 = vadd.f32 %v1615, %v3240
      %v3242 = vpop.f32.mrf.mxu0
      %3243 = vdwg.mxu0
      %v3245 = vsel %vm2709, %v2637, 0
      %v3248 = vsel %vm2709, %v2638, 0
      %v3251 = vsel %vm2709, %v2639, 0
      %v3254 = vsel %vm2709, %v2640, 0
      %v3257 = vsel %vm2709, %v2669, 0
      %v3260 = vsel %vm2709, %v2670, 0
      %v3263 = vsel %vm2709, %v2671, 0
      %v3266 = vsel %vm2709, %v2672, 0
      %3268 = vmatprep.subr.bf16.mxu0 0
      %3269 = vmatpush1.bf16.xpose.msra.mxu0 0
      %3270 = vmatprep.subr.bf16.mxu0 0
      %3271 = vmatpush1.bf16.xpose.msra.mxu0 0
      %3272 = vmatprep.subr.bf16.mxu0 0
      %3273 = vmatpush1.bf16.xpose.msra.mxu0 0
      %3274 = vmatprep.subr.bf16.mxu0 0
      %3275 = vmatpush1.bf16.xpose.msra.mxu0 0
      %3276 = vmatprep.subr.bf16.mxu0 0
      %3277 = vmatpush1.bf16.xpose.msra.mxu0 %v3266
      %3278 = vmatprep.subr.bf16.mxu0 0
      %3279 = vmatpush1.bf16.xpose.msra.mxu0 %v3263
      %3280 = vmatprep.subr.bf16.mxu0 0
      %3281 = vmatpush1.bf16.xpose.msra.mxu0 %v3260
      %3282 = vmatprep.subr.bf16.mxu0 0
      %3283 = vmatpush1.bf16.xpose.msra.mxu0 %v3257
      %3284 = vmatprep.subr.bf16.mxu0 0
      %3285 = vmatpush2.bf16.xpose.msra.mxu0 0
      %3286 = vmatprep.subr.bf16.mxu0 0
      %3287 = vmatpush2.bf16.xpose.msra.mxu0 0
      %3288 = vmatprep.subr.bf16.mxu0 0
      %3289 = vmatpush2.bf16.xpose.msra.mxu0 0
      %3290 = vmatprep.subr.bf16.mxu0 0
      %3291 = vmatpush2.bf16.xpose.msra.mxu0 0
      %3292 = vmatprep.subr.bf16.mxu0 0
      %3293 = vmatpush2.bf16.xpose.msra.mxu0 0
      %3294 = vmatprep.subr.bf16.mxu0 0
      %3295 = vmatpush2.bf16.xpose.msra.mxu0 0
      %3296 = vmatprep.subr.bf16.mxu0 0
      %3297 = vmatpush2.bf16.xpose.msra.mxu0 0
      %3298 = vmatprep.subr.bf16.mxu0 0
      %3299 = vmatpush2.bf16.xpose.msra.mxu0 0
      %3300 = vmatprep.mubr.bf16.mxu0 0
      %3301 = vmatmul.mubr.bf16.gmra.mxu0 %v3245
      %v3302 = vpop.f32.mrf.mxu0
      %v3303 = vadd.f32 %v1616, %v3302
      %v3304 = vpop.f32.mrf.mxu0
      %v3305 = vpop.f32.mrf.mxu0
      %v3306 = vadd.f32 %v1617, %v3305
      %v3307 = vpop.f32.mrf.mxu0
      %3308 = vmatprep.mubr.bf16.mxu0 0
      %3309 = vmatmul.mubr.bf16.gmra.mxu0 %v3248
      %v3310 = vpop.f32.mrf.mxu0
      %v3311 = vadd.f32 %v1618, %v3310
      %v3312 = vpop.f32.mrf.mxu0
      %v3313 = vpop.f32.mrf.mxu0
      %v3314 = vadd.f32 %v1619, %v3313
      %v3315 = vpop.f32.mrf.mxu0
      %3316 = vmatprep.mubr.bf16.mxu0 0
      %3317 = vmatmul.mubr.bf16.gmra.mxu0 %v3251
      %v3318 = vpop.f32.mrf.mxu0
      %v3319 = vadd.f32 %v1620, %v3318
      %v3320 = vpop.f32.mrf.mxu0
      %v3321 = vpop.f32.mrf.mxu0
      %v3322 = vadd.f32 %v1621, %v3321
      %v3323 = vpop.f32.mrf.mxu0
      %3324 = vmatprep.mubr.bf16.mxu0 0
      %3325 = vmatmul.mubr.bf16.gmra.mxu0 %v3254
      %v3326 = vpop.f32.mrf.mxu0
      %v3327 = vadd.f32 %v1622, %v3326
      %v3328 = vpop.f32.mrf.mxu0
      %v3329 = vpop.f32.mrf.mxu0
      %v3330 = vadd.f32 %v1623, %v3329
      %v3331 = vpop.f32.mrf.mxu0
      %3332 = vdwg.mxu0
      %v3334 = vsel %vm2709, %v2641, 0
      %v3337 = vsel %vm2709, %v2642, 0
      %v3340 = vsel %vm2709, %v2643, 0
      %v3343 = vsel %vm2709, %v2644, 0
      %v3346 = vsel %vm2709, %v2673, 0
      %v3349 = vsel %vm2709, %v2674, 0
      %v3352 = vsel %vm2709, %v2675, 0
      %v3355 = vsel %vm2709, %v2676, 0
      %3357 = vmatprep.subr.bf16.mxu0 0
      %3358 = vmatpush1.bf16.xpose.msra.mxu0 0
      %3359 = vmatprep.subr.bf16.mxu0 0
      %3360 = vmatpush1.bf16.xpose.msra.mxu0 0
      %3361 = vmatprep.subr.bf16.mxu0 0
      %3362 = vmatpush1.bf16.xpose.msra.mxu0 0
      %3363 = vmatprep.subr.bf16.mxu0 0
      %3364 = vmatpush1.bf16.xpose.msra.mxu0 0
      %3365 = vmatprep.subr.bf16.mxu0 0
      %3366 = vmatpush1.bf16.xpose.msra.mxu0 %v3355
      %3367 = vmatprep.subr.bf16.mxu0 0
      %3368 = vmatpush1.bf16.xpose.msra.mxu0 %v3352
      %3369 = vmatprep.subr.bf16.mxu0 0
      %3370 = vmatpush1.bf16.xpose.msra.mxu0 %v3349
      %3371 = vmatprep.subr.bf16.mxu0 0
      %3372 = vmatpush1.bf16.xpose.msra.mxu0 %v3346
      %3373 = vmatprep.subr.bf16.mxu0 0
      %3374 = vmatpush2.bf16.xpose.msra.mxu0 0
      %3375 = vmatprep.subr.bf16.mxu0 0
      %3376 = vmatpush2.bf16.xpose.msra.mxu0 0
      %3377 = vmatprep.subr.bf16.mxu0 0
      %3378 = vmatpush2.bf16.xpose.msra.mxu0 0
      %3379 = vmatprep.subr.bf16.mxu0 0
      %3380 = vmatpush2.bf16.xpose.msra.mxu0 0
      %3381 = vmatprep.subr.bf16.mxu0 0
      %3382 = vmatpush2.bf16.xpose.msra.mxu0 0
      %3383 = vmatprep.subr.bf16.mxu0 0
      %3384 = vmatpush2.bf16.xpose.msra.mxu0 0
      %3385 = vmatprep.subr.bf16.mxu0 0
      %3386 = vmatpush2.bf16.xpose.msra.mxu0 0
      %3387 = vmatprep.subr.bf16.mxu0 0
      %3388 = vmatpush2.bf16.xpose.msra.mxu0 0
      %3389 = vmatprep.mubr.bf16.mxu0 0
      %3390 = vmatmul.mubr.bf16.gmra.mxu0 %v3334
      %v3391 = vpop.f32.mrf.mxu0
      %v3392 = vadd.f32 %v1624, %v3391
      %v3393 = vpop.f32.mrf.mxu0
      %v3394 = vpop.f32.mrf.mxu0
      %v3395 = vadd.f32 %v1625, %v3394
      %v3396 = vpop.f32.mrf.mxu0
      %3397 = vmatprep.mubr.bf16.mxu0 0
      %3398 = vmatmul.mubr.bf16.gmra.mxu0 %v3337
      %v3399 = vpop.f32.mrf.mxu0
      %v3400 = vadd.f32 %v1626, %v3399
      %v3401 = vpop.f32.mrf.mxu0
      %v3402 = vpop.f32.mrf.mxu0
      %v3403 = vadd.f32 %v1627, %v3402
      %v3404 = vpop.f32.mrf.mxu0
      %3405 = vmatprep.mubr.bf16.mxu0 0
      %3406 = vmatmul.mubr.bf16.gmra.mxu0 %v3340
      %v3407 = vpop.f32.mrf.mxu0
      %v3408 = vadd.f32 %v1628, %v3407
      %v3409 = vpop.f32.mrf.mxu0
      %v3410 = vpop.f32.mrf.mxu0
      %v3411 = vadd.f32 %v1629, %v3410
      %v3412 = vpop.f32.mrf.mxu0
      %3413 = vmatprep.mubr.bf16.mxu0 0
      %3414 = vmatmul.mubr.bf16.gmra.mxu0 %v3343
      %v3415 = vpop.f32.mrf.mxu0
      %v3416 = vadd.f32 %v1630, %v3415
      %v3417 = vpop.f32.mrf.mxu0
      %v3418 = vpop.f32.mrf.mxu0
      %v3419 = vadd.f32 %v1631, %v3418
      %v3420 = vpop.f32.mrf.mxu0
      %3421 = vdwg.mxu0
      %vm3422 = vcmask 523264
      %v3423 = vsel %vm3422, %v2769, -inf
      %3424 = vmax.xlane.f32.xlu0 %v3423
      %v3425 = vpop.xlane.xlu0 %3424
      %v3426 = vsel %vm3422, %v2772, -inf
      %3427 = vmax.xlane.f32.xlu0 %v3426
      %v3428 = vpop.xlane.xlu0 %3427
      %v3429 = vsel %vm3422, %v2777, -inf
      %3430 = vmax.xlane.f32.xlu0 %v3429
      %v3431 = vpop.xlane.xlu0 %3430
      %v3432 = vsel %vm3422, %v2780, -inf
      %3433 = vmax.xlane.f32.xlu0 %v3432
      %v3434 = vpop.xlane.xlu0 %3433
      %v3435 = vsel %vm3422, %v2785, -inf
      %3436 = vmax.xlane.f32.xlu0 %v3435
      %v3437 = vpop.xlane.xlu0 %3436
      %v3438 = vsel %vm3422, %v2788, -inf
      %3439 = vmax.xlane.f32.xlu0 %v3438
      %v3440 = vpop.xlane.xlu0 %3439
      %v3441 = vsel %vm3422, %v2793, -inf
      %3442 = vmax.xlane.f32.xlu0 %v3441
      %v3443 = vpop.xlane.xlu0 %3442
      %v3444 = vsel %vm3422, %v2796, -inf
      %3445 = vmax.xlane.f32.xlu0 %v3444
      %v3446 = vpop.xlane.xlu0 %3445
      %v3447 = vsel %vm3422, %v2858, -inf
      %3448 = vmax.xlane.f32.xlu0 %v3447
      %v3449 = vpop.xlane.xlu0 %3448
      %v3450 = vsel %vm3422, %v2861, -inf
      %3451 = vmax.xlane.f32.xlu0 %v3450
      %v3452 = vpop.xlane.xlu0 %3451
      %v3453 = vsel %vm3422, %v2866, -inf
      %3454 = vmax.xlane.f32.xlu0 %v3453
      %v3455 = vpop.xlane.xlu0 %3454
      %v3456 = vsel %vm3422, %v2869, -inf
      %3457 = vmax.xlane.f32.xlu0 %v3456
      %v3458 = vpop.xlane.xlu0 %3457
      %v3459 = vsel %vm3422, %v2874, -inf
      %3460 = vmax.xlane.f32.xlu0 %v3459
      %v3461 = vpop.xlane.xlu0 %3460
      %v3462 = vsel %vm3422, %v2877, -inf
      %3463 = vmax.xlane.f32.xlu0 %v3462
      %v3464 = vpop.xlane.xlu0 %3463
      %v3465 = vsel %vm3422, %v2882, -inf
      %3466 = vmax.xlane.f32.xlu0 %v3465
      %v3467 = vpop.xlane.xlu0 %3466
      %v3468 = vsel %vm3422, %v2885, -inf
      %3469 = vmax.xlane.f32.xlu0 %v3468
      %v3470 = vpop.xlane.xlu0 %3469
      %v3471 = vsel %vm3422, %v2947, -inf
      %3472 = vmax.xlane.f32.xlu0 %v3471
      %v3473 = vpop.xlane.xlu0 %3472
      %v3474 = vsel %vm3422, %v2950, -inf
      %3475 = vmax.xlane.f32.xlu0 %v3474
      %v3476 = vpop.xlane.xlu0 %3475
      %v3477 = vsel %vm3422, %v2955, -inf
      %3478 = vmax.xlane.f32.xlu0 %v3477
      %v3479 = vpop.xlane.xlu0 %3478
      %v3480 = vsel %vm3422, %v2958, -inf
      %3481 = vmax.xlane.f32.xlu0 %v3480
      %v3482 = vpop.xlane.xlu0 %3481
      %v3483 = vsel %vm3422, %v2963, -inf
      %3484 = vmax.xlane.f32.xlu0 %v3483
      %v3485 = vpop.xlane.xlu0 %3484
      %v3486 = vsel %vm3422, %v2966, -inf
      %3487 = vmax.xlane.f32.xlu0 %v3486
      %v3488 = vpop.xlane.xlu0 %3487
      %v3489 = vsel %vm3422, %v2971, -inf
      %3490 = vmax.xlane.f32.xlu0 %v3489
      %v3491 = vpop.xlane.xlu0 %3490
      %v3492 = vsel %vm3422, %v2974, -inf
      %3493 = vmax.xlane.f32.xlu0 %v3492
      %v3494 = vpop.xlane.xlu0 %3493
      %v3495 = vsel %vm3422, %v3036, -inf
      %3496 = vmax.xlane.f32.xlu0 %v3495
      %v3497 = vpop.xlane.xlu0 %3496
      %v3498 = vsel %vm3422, %v3039, -inf
      %3499 = vmax.xlane.f32.xlu0 %v3498
      %v3500 = vpop.xlane.xlu0 %3499
      %v3501 = vsel %vm3422, %v3044, -inf
      %3502 = vmax.xlane.f32.xlu0 %v3501
      %v3503 = vpop.xlane.xlu0 %3502
      %v3504 = vsel %vm3422, %v3047, -inf
      %3505 = vmax.xlane.f32.xlu0 %v3504
      %v3506 = vpop.xlane.xlu0 %3505
      %v3507 = vsel %vm3422, %v3052, -inf
      %3508 = vmax.xlane.f32.xlu0 %v3507
      %v3509 = vpop.xlane.xlu0 %3508
      %v3510 = vsel %vm3422, %v3055, -inf
      %3511 = vmax.xlane.f32.xlu0 %v3510
      %v3512 = vpop.xlane.xlu0 %3511
      %v3513 = vsel %vm3422, %v3060, -inf
      %3514 = vmax.xlane.f32.xlu0 %v3513
      %v3515 = vpop.xlane.xlu0 %3514
      %v3516 = vsel %vm3422, %v3063, -inf
      %3517 = vmax.xlane.f32.xlu0 %v3516
      %v3518 = vpop.xlane.xlu0 %3517
      %v3519 = vsel %vm3422, %v3125, -inf
      %3520 = vmax.xlane.f32.xlu0 %v3519
      %v3521 = vpop.xlane.xlu0 %3520
      %v3522 = vsel %vm3422, %v3128, -inf
      %3523 = vmax.xlane.f32.xlu0 %v3522
      %v3524 = vpop.xlane.xlu0 %3523
      %v3525 = vsel %vm3422, %v3133, -inf
      %3526 = vmax.xlane.f32.xlu0 %v3525
      %v3527 = vpop.xlane.xlu0 %3526
      %v3528 = vsel %vm3422, %v3136, -inf
      %3529 = vmax.xlane.f32.xlu0 %v3528
      %v3530 = vpop.xlane.xlu0 %3529
      %v3531 = vsel %vm3422, %v3141, -inf
      %3532 = vmax.xlane.f32.xlu0 %v3531
      %v3533 = vpop.xlane.xlu0 %3532
      %v3534 = vsel %vm3422, %v3144, -inf
      %3535 = vmax.xlane.f32.xlu0 %v3534
      %v3536 = vpop.xlane.xlu0 %3535
      %v3537 = vsel %vm3422, %v3149, -inf
      %3538 = vmax.xlane.f32.xlu0 %v3537
      %v3539 = vpop.xlane.xlu0 %3538
      %v3540 = vsel %vm3422, %v3152, -inf
      %3541 = vmax.xlane.f32.xlu0 %v3540
      %v3542 = vpop.xlane.xlu0 %3541
      %v3543 = vsel %vm3422, %v3214, -inf
      %3544 = vmax.xlane.f32.xlu0 %v3543
      %v3545 = vpop.xlane.xlu0 %3544
      %v3546 = vsel %vm3422, %v3217, -inf
      %3547 = vmax.xlane.f32.xlu0 %v3546
      %v3548 = vpop.xlane.xlu0 %3547
      %v3549 = vsel %vm3422, %v3222, -inf
      %3550 = vmax.xlane.f32.xlu0 %v3549
      %v3551 = vpop.xlane.xlu0 %3550
      %v3552 = vsel %vm3422, %v3225, -inf
      %3553 = vmax.xlane.f32.xlu0 %v3552
      %v3554 = vpop.xlane.xlu0 %3553
      %v3555 = vsel %vm3422, %v3230, -inf
      %3556 = vmax.xlane.f32.xlu0 %v3555
      %v3557 = vpop.xlane.xlu0 %3556
      %v3558 = vsel %vm3422, %v3233, -inf
      %3559 = vmax.xlane.f32.xlu0 %v3558
      %v3560 = vpop.xlane.xlu0 %3559
      %v3561 = vsel %vm3422, %v3238, -inf
      %3562 = vmax.xlane.f32.xlu0 %v3561
      %v3563 = vpop.xlane.xlu0 %3562
      %v3564 = vsel %vm3422, %v3241, -inf
      %3565 = vmax.xlane.f32.xlu0 %v3564
      %v3566 = vpop.xlane.xlu0 %3565
      %v3567 = vsel %vm3422, %v3303, -inf
      %3568 = vmax.xlane.f32.xlu0 %v3567
      %v3569 = vpop.xlane.xlu0 %3568
      %v3570 = vsel %vm3422, %v3306, -inf
      %3571 = vmax.xlane.f32.xlu0 %v3570
      %v3572 = vpop.xlane.xlu0 %3571
      %v3573 = vsel %vm3422, %v3311, -inf
      %3574 = vmax.xlane.f32.xlu0 %v3573
      %v3575 = vpop.xlane.xlu0 %3574
      %v3576 = vsel %vm3422, %v3314, -inf
      %3577 = vmax.xlane.f32.xlu0 %v3576
      %v3578 = vpop.xlane.xlu0 %3577
      %v3579 = vsel %vm3422, %v3319, -inf
      %3580 = vmax.xlane.f32.xlu0 %v3579
      %v3581 = vpop.xlane.xlu0 %3580
      %v3582 = vsel %vm3422, %v3322, -inf
      %3583 = vmax.xlane.f32.xlu0 %v3582
      %v3584 = vpop.xlane.xlu0 %3583
      %v3585 = vsel %vm3422, %v3327, -inf
      %3586 = vmax.xlane.f32.xlu0 %v3585
      %v3587 = vpop.xlane.xlu0 %3586
      %v3588 = vsel %vm3422, %v3330, -inf
      %3589 = vmax.xlane.f32.xlu0 %v3588
      %v3590 = vpop.xlane.xlu0 %3589
      %v3591 = vsel %vm3422, %v3392, -inf
      %3592 = vmax.xlane.f32.xlu0 %v3591
      %v3593 = vpop.xlane.xlu0 %3592
      %v3594 = vsel %vm3422, %v3395, -inf
      %3595 = vmax.xlane.f32.xlu0 %v3594
      %v3596 = vpop.xlane.xlu0 %3595
      %v3597 = vsel %vm3422, %v3400, -inf
      %3598 = vmax.xlane.f32.xlu0 %v3597
      %v3599 = vpop.xlane.xlu0 %3598
      %v3600 = vsel %vm3422, %v3403, -inf
      %3601 = vmax.xlane.f32.xlu0 %v3600
      %v3602 = vpop.xlane.xlu0 %3601
      %v3603 = vsel %vm3422, %v3408, -inf
      %3604 = vmax.xlane.f32.xlu0 %v3603
      %v3605 = vpop.xlane.xlu0 %3604
      %v3606 = vsel %vm3422, %v3411, -inf
      %3607 = vmax.xlane.f32.xlu0 %v3606
      %v3608 = vpop.xlane.xlu0 %3607
      %v3609 = vsel %vm3422, %v3416, -inf
      %3610 = vmax.xlane.f32.xlu0 %v3609
      %v3611 = vpop.xlane.xlu0 %3610
      %v3612 = vsel %vm3422, %v3419, -inf
      %3613 = vmax.xlane.f32.xlu0 %v3612
      %v3614 = vpop.xlane.xlu0 %3613
      %v3615 = vsub.f32 %v2769, %v3425
      %v3616 = vsub.f32 %v2772, %v3428
      %v3617 = vsub.f32 %v2777, %v3431
      %v3618 = vsub.f32 %v2780, %v3434
      %v3619 = vsub.f32 %v2785, %v3437
      %v3620 = vsub.f32 %v2788, %v3440
      %v3621 = vsub.f32 %v2793, %v3443
      %v3622 = vsub.f32 %v2796, %v3446
      %v3623 = vsub.f32 %v2858, %v3449
      %v3624 = vsub.f32 %v2861, %v3452
      %v3625 = vsub.f32 %v2866, %v3455
      %v3626 = vsub.f32 %v2869, %v3458
      %v3627 = vsub.f32 %v2874, %v3461
      %v3628 = vsub.f32 %v2877, %v3464
      %v3629 = vsub.f32 %v2882, %v3467
      %v3630 = vsub.f32 %v2885, %v3470
      %v3631 = vsub.f32 %v2947, %v3473
      %v3632 = vsub.f32 %v2950, %v3476
      %v3633 = vsub.f32 %v2955, %v3479
      %v3634 = vsub.f32 %v2958, %v3482
      %v3635 = vsub.f32 %v2963, %v3485
      %v3636 = vsub.f32 %v2966, %v3488
      %v3637 = vsub.f32 %v2971, %v3491
      %v3638 = vsub.f32 %v2974, %v3494
      %v3639 = vsub.f32 %v3036, %v3497
      %v3640 = vsub.f32 %v3039, %v3500
      %v3641 = vsub.f32 %v3044, %v3503
      %v3642 = vsub.f32 %v3047, %v3506
      %v3643 = vsub.f32 %v3052, %v3509
      %v3644 = vsub.f32 %v3055, %v3512
      %v3645 = vsub.f32 %v3060, %v3515
      %v3646 = vsub.f32 %v3063, %v3518
      %v3647 = vsub.f32 %v3125, %v3521
      %v3648 = vsub.f32 %v3128, %v3524
      %v3649 = vsub.f32 %v3133, %v3527
      %v3650 = vsub.f32 %v3136, %v3530
      %v3651 = vsub.f32 %v3141, %v3533
      %v3652 = vsub.f32 %v3144, %v3536
      %v3653 = vsub.f32 %v3149, %v3539
      %v3654 = vsub.f32 %v3152, %v3542
      %v3655 = vsub.f32 %v3214, %v3545
      %v3656 = vsub.f32 %v3217, %v3548
      %v3657 = vsub.f32 %v3222, %v3551
      %v3658 = vsub.f32 %v3225, %v3554
      %v3659 = vsub.f32 %v3230, %v3557
      %v3660 = vsub.f32 %v3233, %v3560
      %v3661 = vsub.f32 %v3238, %v3563
      %v3662 = vsub.f32 %v3241, %v3566
      %v3663 = vsub.f32 %v3303, %v3569
      %v3664 = vsub.f32 %v3306, %v3572
      %v3665 = vsub.f32 %v3311, %v3575
      %v3666 = vsub.f32 %v3314, %v3578
      %v3667 = vsub.f32 %v3319, %v3581
      %v3668 = vsub.f32 %v3322, %v3584
      %v3669 = vsub.f32 %v3327, %v3587
      %v3670 = vsub.f32 %v3330, %v3590
      %v3671 = vsub.f32 %v3392, %v3593
      %v3672 = vsub.f32 %v3395, %v3596
      %v3673 = vsub.f32 %v3400, %v3599
      %v3674 = vsub.f32 %v3403, %v3602
      %v3675 = vsub.f32 %v3408, %v3605
      %v3676 = vsub.f32 %v3411, %v3608
      %v3677 = vsub.f32 %v3416, %v3611
      %v3678 = vsub.f32 %v3419, %v3614
      %v3679 = vmul.f32 %v3615, 1.442695
      %v3680 = vpow.pop %v3679
      %v3681 = vmul.f32 %v3616, 1.442695
      %v3682 = vpow.pop %v3681
      %v3683 = vmul.f32 %v3617, 1.442695
      %v3684 = vpow.pop %v3683
      %v3685 = vmul.f32 %v3618, 1.442695
      %v3686 = vpow.pop %v3685
      %v3687 = vmul.f32 %v3619, 1.442695
      %v3688 = vpow.pop %v3687
      %v3689 = vmul.f32 %v3620, 1.442695
      %v3690 = vpow.pop %v3689
      %v3691 = vmul.f32 %v3621, 1.442695
      %v3692 = vpow.pop %v3691
      %v3693 = vmul.f32 %v3622, 1.442695
      %v3694 = vpow.pop %v3693
      %v3695 = vmul.f32 %v3623, 1.442695
      %v3696 = vpow.pop %v3695
      %v3697 = vmul.f32 %v3624, 1.442695
      %v3698 = vpow.pop %v3697
      %v3699 = vmul.f32 %v3625, 1.442695
      %v3700 = vpow.pop %v3699
      %v3701 = vmul.f32 %v3626, 1.442695
      %v3702 = vpow.pop %v3701
      %v3703 = vmul.f32 %v3627, 1.442695
      %v3704 = vpow.pop %v3703
      %v3705 = vmul.f32 %v3628, 1.442695
      %v3706 = vpow.pop %v3705
      %v3707 = vmul.f32 %v3629, 1.442695
      %v3708 = vpow.pop %v3707
      %v3709 = vmul.f32 %v3630, 1.442695
      %v3710 = vpow.pop %v3709
      %v3711 = vmul.f32 %v3631, 1.442695
      %v3712 = vpow.pop %v3711
      %v3713 = vmul.f32 %v3632, 1.442695
      %v3714 = vpow.pop %v3713
      %v3715 = vmul.f32 %v3633, 1.442695
      %v3716 = vpow.pop %v3715
      %v3717 = vmul.f32 %v3634, 1.442695
      %v3718 = vpow.pop %v3717
      %v3719 = vmul.f32 %v3635, 1.442695
      %v3720 = vpow.pop %v3719
      %v3721 = vmul.f32 %v3636, 1.442695
      %v3722 = vpow.pop %v3721
      %v3723 = vmul.f32 %v3637, 1.442695
      %v3724 = vpow.pop %v3723
      %v3725 = vmul.f32 %v3638, 1.442695
      %v3726 = vpow.pop %v3725
      %v3727 = vmul.f32 %v3639, 1.442695
      %v3728 = vpow.pop %v3727
      %v3729 = vmul.f32 %v3640, 1.442695
      %v3730 = vpow.pop %v3729
      %v3731 = vmul.f32 %v3641, 1.442695
      %v3732 = vpow.pop %v3731
      %v3733 = vmul.f32 %v3642, 1.442695
      %v3734 = vpow.pop %v3733
      %v3735 = vmul.f32 %v3643, 1.442695
      %v3736 = vpow.pop %v3735
      %v3737 = vmul.f32 %v3644, 1.442695
      %v3738 = vpow.pop %v3737
      %v3739 = vmul.f32 %v3645, 1.442695
      %v3740 = vpow.pop %v3739
      %v3741 = vmul.f32 %v3646, 1.442695
      %v3742 = vpow.pop %v3741
      %v3743 = vmul.f32 %v3647, 1.442695
      %v3744 = vpow.pop %v3743
      %v3745 = vmul.f32 %v3648, 1.442695
      %v3746 = vpow.pop %v3745
      %v3747 = vmul.f32 %v3649, 1.442695
      %v3748 = vpow.pop %v3747
      %v3749 = vmul.f32 %v3650, 1.442695
      %v3750 = vpow.pop %v3749
      %v3751 = vmul.f32 %v3651, 1.442695
      %v3752 = vpow.pop %v3751
      %v3753 = vmul.f32 %v3652, 1.442695
      %v3754 = vpow.pop %v3753
      %v3755 = vmul.f32 %v3653, 1.442695
      %v3756 = vpow.pop %v3755
      %v3757 = vmul.f32 %v3654, 1.442695
      %v3758 = vpow.pop %v3757
      %v3759 = vmul.f32 %v3655, 1.442695
      %v3760 = vpow.pop %v3759
      %v3761 = vmul.f32 %v3656, 1.442695
      %v3762 = vpow.pop %v3761
      %v3763 = vmul.f32 %v3657, 1.442695
      %v3764 = vpow.pop %v3763
      %v3765 = vmul.f32 %v3658, 1.442695
      %v3766 = vpow.pop %v3765
      %v3767 = vmul.f32 %v3659, 1.442695
      %v3768 = vpow.pop %v3767
      %v3769 = vmul.f32 %v3660, 1.442695
      %v3770 = vpow.pop %v3769
      %v3771 = vmul.f32 %v3661, 1.442695
      %v3772 = vpow.pop %v3771
      %v3773 = vmul.f32 %v3662, 1.442695
      %v3774 = vpow.pop %v3773
      %v3775 = vmul.f32 %v3663, 1.442695
      %v3776 = vpow.pop %v3775
      %v3777 = vmul.f32 %v3664, 1.442695
      %v3778 = vpow.pop %v3777
      %v3779 = vmul.f32 %v3665, 1.442695
      %v3780 = vpow.pop %v3779
      %v3781 = vmul.f32 %v3666, 1.442695
      %v3782 = vpow.pop %v3781
      %v3783 = vmul.f32 %v3667, 1.442695
      %v3784 = vpow.pop %v3783
      %v3785 = vmul.f32 %v3668, 1.442695
      %v3786 = vpow.pop %v3785
      %v3787 = vmul.f32 %v3669, 1.442695
      %v3788 = vpow.pop %v3787
      %v3789 = vmul.f32 %v3670, 1.442695
      %v3790 = vpow.pop %v3789
      %v3791 = vmul.f32 %v3671, 1.442695
      %v3792 = vpow.pop %v3791
      %v3793 = vmul.f32 %v3672, 1.442695
      %v3794 = vpow.pop %v3793
      %v3795 = vmul.f32 %v3673, 1.442695
      %v3796 = vpow.pop %v3795
      %v3797 = vmul.f32 %v3674, 1.442695
      %v3798 = vpow.pop %v3797
      %v3799 = vmul.f32 %v3675, 1.442695
      %v3800 = vpow.pop %v3799
      %v3801 = vmul.f32 %v3676, 1.442695
      %v3802 = vpow.pop %v3801
      %v3803 = vmul.f32 %v3677, 1.442695
      %v3804 = vpow.pop %v3803
      %v3805 = vmul.f32 %v3678, 1.442695
      %v3806 = vpow.pop %v3805
      %v3807 = vsel %vm3422, %v3680, 0.0
      %3808 = vadd.xlane.f32.xlu0 %v3807
      %v3809 = vpop.xlane.xlu0 %3808
      %v3810 = vsel %vm3422, %v3682, 0.0
      %3811 = vadd.xlane.f32.xlu0 %v3810
      %v3812 = vpop.xlane.xlu0 %3811
      %v3813 = vsel %vm3422, %v3684, 0.0
      %3814 = vadd.xlane.f32.xlu0 %v3813
      %v3815 = vpop.xlane.xlu0 %3814
      %v3816 = vsel %vm3422, %v3686, 0.0
      %3817 = vadd.xlane.f32.xlu0 %v3816
      %v3818 = vpop.xlane.xlu0 %3817
      %v3819 = vsel %vm3422, %v3688, 0.0
      %3820 = vadd.xlane.f32.xlu0 %v3819
      %v3821 = vpop.xlane.xlu0 %3820
      %v3822 = vsel %vm3422, %v3690, 0.0
      %3823 = vadd.xlane.f32.xlu0 %v3822
      %v3824 = vpop.xlane.xlu0 %3823
      %v3825 = vsel %vm3422, %v3692, 0.0
      %3826 = vadd.xlane.f32.xlu0 %v3825
      %v3827 = vpop.xlane.xlu0 %3826
      %v3828 = vsel %vm3422, %v3694, 0.0
      %3829 = vadd.xlane.f32.xlu0 %v3828
      %v3830 = vpop.xlane.xlu0 %3829
      %v3831 = vsel %vm3422, %v3696, 0.0
      %3832 = vadd.xlane.f32.xlu0 %v3831
      %v3833 = vpop.xlane.xlu0 %3832
      %v3834 = vsel %vm3422, %v3698, 0.0
      %3835 = vadd.xlane.f32.xlu0 %v3834
      %v3836 = vpop.xlane.xlu0 %3835
      %v3837 = vsel %vm3422, %v3700, 0.0
      %3838 = vadd.xlane.f32.xlu0 %v3837
      %v3839 = vpop.xlane.xlu0 %3838
      %v3840 = vsel %vm3422, %v3702, 0.0
      %3841 = vadd.xlane.f32.xlu0 %v3840
      %v3842 = vpop.xlane.xlu0 %3841
      %v3843 = vsel %vm3422, %v3704, 0.0
      %3844 = vadd.xlane.f32.xlu0 %v3843
      %v3845 = vpop.xlane.xlu0 %3844
      %v3846 = vsel %vm3422, %v3706, 0.0
      %3847 = vadd.xlane.f32.xlu0 %v3846
      %v3848 = vpop.xlane.xlu0 %3847
      %v3849 = vsel %vm3422, %v3708, 0.0
      %3850 = vadd.xlane.f32.xlu0 %v3849
      %v3851 = vpop.xlane.xlu0 %3850
      %v3852 = vsel %vm3422, %v3710, 0.0
      %3853 = vadd.xlane.f32.xlu0 %v3852
      %v3854 = vpop.xlane.xlu0 %3853
      %v3855 = vsel %vm3422, %v3712, 0.0
      %3856 = vadd.xlane.f32.xlu0 %v3855
      %v3857 = vpop.xlane.xlu0 %3856
      %v3858 = vsel %vm3422, %v3714, 0.0
      %3859 = vadd.xlane.f32.xlu0 %v3858
      %v3860 = vpop.xlane.xlu0 %3859
      %v3861 = vsel %vm3422, %v3716, 0.0
      %3862 = vadd.xlane.f32.xlu0 %v3861
      %v3863 = vpop.xlane.xlu0 %3862
      %v3864 = vsel %vm3422, %v3718, 0.0
      %3865 = vadd.xlane.f32.xlu0 %v3864
      %v3866 = vpop.xlane.xlu0 %3865
      %v3867 = vsel %vm3422, %v3720, 0.0
      %3868 = vadd.xlane.f32.xlu0 %v3867
      %v3869 = vpop.xlane.xlu0 %3868
      %v3870 = vsel %vm3422, %v3722, 0.0
      %3871 = vadd.xlane.f32.xlu0 %v3870
      %v3872 = vpop.xlane.xlu0 %3871
      %v3873 = vsel %vm3422, %v3724, 0.0
      %3874 = vadd.xlane.f32.xlu0 %v3873
      %v3875 = vpop.xlane.xlu0 %3874
      %v3876 = vsel %vm3422, %v3726, 0.0
      %3877 = vadd.xlane.f32.xlu0 %v3876
      %v3878 = vpop.xlane.xlu0 %3877
      %v3879 = vsel %vm3422, %v3728, 0.0
      %3880 = vadd.xlane.f32.xlu0 %v3879
      %v3881 = vpop.xlane.xlu0 %3880
      %v3882 = vsel %vm3422, %v3730, 0.0
      %3883 = vadd.xlane.f32.xlu0 %v3882
      %v3884 = vpop.xlane.xlu0 %3883
      %v3885 = vsel %vm3422, %v3732, 0.0
      %3886 = vadd.xlane.f32.xlu0 %v3885
      %v3887 = vpop.xlane.xlu0 %3886
      %v3888 = vsel %vm3422, %v3734, 0.0
      %3889 = vadd.xlane.f32.xlu0 %v3888
      %v3890 = vpop.xlane.xlu0 %3889
      %v3891 = vsel %vm3422, %v3736, 0.0
      %3892 = vadd.xlane.f32.xlu0 %v3891
      %v3893 = vpop.xlane.xlu0 %3892
      %v3894 = vsel %vm3422, %v3738, 0.0
      %3895 = vadd.xlane.f32.xlu0 %v3894
      %v3896 = vpop.xlane.xlu0 %3895
      %v3897 = vsel %vm3422, %v3740, 0.0
      %3898 = vadd.xlane.f32.xlu0 %v3897
      %v3899 = vpop.xlane.xlu0 %3898
      %v3900 = vsel %vm3422, %v3742, 0.0
      %3901 = vadd.xlane.f32.xlu0 %v3900
      %v3902 = vpop.xlane.xlu0 %3901
      %v3903 = vsel %vm3422, %v3744, 0.0
      %3904 = vadd.xlane.f32.xlu0 %v3903
      %v3905 = vpop.xlane.xlu0 %3904
      %v3906 = vsel %vm3422, %v3746, 0.0
      %3907 = vadd.xlane.f32.xlu0 %v3906
      %v3908 = vpop.xlane.xlu0 %3907
      %v3909 = vsel %vm3422, %v3748, 0.0
      %3910 = vadd.xlane.f32.xlu0 %v3909
      %v3911 = vpop.xlane.xlu0 %3910
      %v3912 = vsel %vm3422, %v3750, 0.0
      %3913 = vadd.xlane.f32.xlu0 %v3912
      %v3914 = vpop.xlane.xlu0 %3913
      %v3915 = vsel %vm3422, %v3752, 0.0
      %3916 = vadd.xlane.f32.xlu0 %v3915
      %v3917 = vpop.xlane.xlu0 %3916
      %v3918 = vsel %vm3422, %v3754, 0.0
      %3919 = vadd.xlane.f32.xlu0 %v3918
      %v3920 = vpop.xlane.xlu0 %3919
      %v3921 = vsel %vm3422, %v3756, 0.0
      %3922 = vadd.xlane.f32.xlu0 %v3921
      %v3923 = vpop.xlane.xlu0 %3922
      %v3924 = vsel %vm3422, %v3758, 0.0
      %3925 = vadd.xlane.f32.xlu0 %v3924
      %v3926 = vpop.xlane.xlu0 %3925
      %v3927 = vsel %vm3422, %v3760, 0.0
      %3928 = vadd.xlane.f32.xlu0 %v3927
      %v3929 = vpop.xlane.xlu0 %3928
      %v3930 = vsel %vm3422, %v3762, 0.0
      %3931 = vadd.xlane.f32.xlu0 %v3930
      %v3932 = vpop.xlane.xlu0 %3931
      %v3933 = vsel %vm3422, %v3764, 0.0
      %3934 = vadd.xlane.f32.xlu0 %v3933
      %v3935 = vpop.xlane.xlu0 %3934
      %v3936 = vsel %vm3422, %v3766, 0.0
      %3937 = vadd.xlane.f32.xlu0 %v3936
      %v3938 = vpop.xlane.xlu0 %3937
      %v3939 = vsel %vm3422, %v3768, 0.0
      %3940 = vadd.xlane.f32.xlu0 %v3939
      %v3941 = vpop.xlane.xlu0 %3940
      %v3942 = vsel %vm3422, %v3770, 0.0
      %3943 = vadd.xlane.f32.xlu0 %v3942
      %v3944 = vpop.xlane.xlu0 %3943
      %v3945 = vsel %vm3422, %v3772, 0.0
      %3946 = vadd.xlane.f32.xlu0 %v3945
      %v3947 = vpop.xlane.xlu0 %3946
      %v3948 = vsel %vm3422, %v3774, 0.0
      %3949 = vadd.xlane.f32.xlu0 %v3948
      %v3950 = vpop.xlane.xlu0 %3949
      %v3951 = vsel %vm3422, %v3776, 0.0
      %3952 = vadd.xlane.f32.xlu0 %v3951
      %v3953 = vpop.xlane.xlu0 %3952
      %v3954 = vsel %vm3422, %v3778, 0.0
      %3955 = vadd.xlane.f32.xlu0 %v3954
      %v3956 = vpop.xlane.xlu0 %3955
      %v3957 = vsel %vm3422, %v3780, 0.0
      %3958 = vadd.xlane.f32.xlu0 %v3957
      %v3959 = vpop.xlane.xlu0 %3958
      %v3960 = vsel %vm3422, %v3782, 0.0
      %3961 = vadd.xlane.f32.xlu0 %v3960
      %v3962 = vpop.xlane.xlu0 %3961
      %v3963 = vsel %vm3422, %v3784, 0.0
      %3964 = vadd.xlane.f32.xlu0 %v3963
      %v3965 = vpop.xlane.xlu0 %3964
      %v3966 = vsel %vm3422, %v3786, 0.0
      %3967 = vadd.xlane.f32.xlu0 %v3966
      %v3968 = vpop.xlane.xlu0 %3967
      %v3969 = vsel %vm3422, %v3788, 0.0
      %3970 = vadd.xlane.f32.xlu0 %v3969
      %v3971 = vpop.xlane.xlu0 %3970
      %v3972 = vsel %vm3422, %v3790, 0.0
      %3973 = vadd.xlane.f32.xlu0 %v3972
      %v3974 = vpop.xlane.xlu0 %3973
      %v3975 = vsel %vm3422, %v3792, 0.0
      %3976 = vadd.xlane.f32.xlu0 %v3975
      %v3977 = vpop.xlane.xlu0 %3976
      %v3978 = vsel %vm3422, %v3794, 0.0
      %3979 = vadd.xlane.f32.xlu0 %v3978
      %v3980 = vpop.xlane.xlu0 %3979
      %v3981 = vsel %vm3422, %v3796, 0.0
      %3982 = vadd.xlane.f32.xlu0 %v3981
      %v3983 = vpop.xlane.xlu0 %3982
      %v3984 = vsel %vm3422, %v3798, 0.0
      %3985 = vadd.xlane.f32.xlu0 %v3984
      %v3986 = vpop.xlane.xlu0 %3985
      %v3987 = vsel %vm3422, %v3800, 0.0
      %3988 = vadd.xlane.f32.xlu0 %v3987
      %v3989 = vpop.xlane.xlu0 %3988
      %v3990 = vsel %vm3422, %v3802, 0.0
      %3991 = vadd.xlane.f32.xlu0 %v3990
      %v3992 = vpop.xlane.xlu0 %3991
      %v3993 = vsel %vm3422, %v3804, 0.0
      %3994 = vadd.xlane.f32.xlu0 %v3993
      %v3995 = vpop.xlane.xlu0 %3994
      %v3996 = vsel %vm3422, %v3806, 0.0
      %3997 = vadd.xlane.f32.xlu0 %v3996
      %v3998 = vpop.xlane.xlu0 %3997
      %v3999 = vrcp.pop %v3809
      %v4000 = vrcp.pop %v3812
      %v4001 = vrcp.pop %v3815
      %v4002 = vrcp.pop %v3818
      %v4003 = vrcp.pop %v3821
      %v4004 = vrcp.pop %v3824
      %v4005 = vrcp.pop %v3827
      %v4006 = vrcp.pop %v3830
      %v4007 = vrcp.pop %v3833
      %v4008 = vrcp.pop %v3836
      %v4009 = vrcp.pop %v3839
      %v4010 = vrcp.pop %v3842
      %v4011 = vrcp.pop %v3845
      %v4012 = vrcp.pop %v3848
      %v4013 = vrcp.pop %v3851
      %v4014 = vrcp.pop %v3854
      %v4015 = vrcp.pop %v3857
      %v4016 = vrcp.pop %v3860
      %v4017 = vrcp.pop %v3863
      %v4018 = vrcp.pop %v3866
      %v4019 = vrcp.pop %v3869
      %v4020 = vrcp.pop %v3872
      %v4021 = vrcp.pop %v3875
      %v4022 = vrcp.pop %v3878
      %v4023 = vrcp.pop %v3881
      %v4024 = vrcp.pop %v3884
      %v4025 = vrcp.pop %v3887
      %v4026 = vrcp.pop %v3890
      %v4027 = vrcp.pop %v3893
      %v4028 = vrcp.pop %v3896
      %v4029 = vrcp.pop %v3899
      %v4030 = vrcp.pop %v3902
      %v4031 = vrcp.pop %v3905
      %v4032 = vrcp.pop %v3908
      %v4033 = vrcp.pop %v3911
      %v4034 = vrcp.pop %v3914
      %v4035 = vrcp.pop %v3917
      %v4036 = vrcp.pop %v3920
      %v4037 = vrcp.pop %v3923
      %v4038 = vrcp.pop %v3926
      %v4039 = vrcp.pop %v3929
      %v4040 = vrcp.pop %v3932
      %v4041 = vrcp.pop %v3935
      %v4042 = vrcp.pop %v3938
      %v4043 = vrcp.pop %v3941
      %v4044 = vrcp.pop %v3944
      %v4045 = vrcp.pop %v3947
      %v4046 = vrcp.pop %v3950
      %v4047 = vrcp.pop %v3953
      %v4048 = vrcp.pop %v3956
      %v4049 = vrcp.pop %v3959
      %v4050 = vrcp.pop %v3962
      %v4051 = vrcp.pop %v3965
      %v4052 = vrcp.pop %v3968
      %v4053 = vrcp.pop %v3971
      %v4054 = vrcp.pop %v3974
      %v4055 = vrcp.pop %v3977
      %v4056 = vrcp.pop %v3980
      %v4057 = vrcp.pop %v3983
      %v4058 = vrcp.pop %v3986
      %v4059 = vrcp.pop %v3989
      %v4060 = vrcp.pop %v3992
      %v4061 = vrcp.pop %v3995
      %v4062 = vrcp.pop %v3998
      %v4063 = vmul.f32 %v3680, %v3999
      %v4064 = vmul.f32 %v3682, %v4000
      %v4065 = vmul.f32 %v3684, %v4001
      %v4066 = vmul.f32 %v3686, %v4002
      %v4067 = vmul.f32 %v3688, %v4003
      %v4068 = vmul.f32 %v3690, %v4004
      %v4069 = vmul.f32 %v3692, %v4005
      %v4070 = vmul.f32 %v3694, %v4006
      %v4071 = vmul.f32 %v3696, %v4007
      %v4072 = vmul.f32 %v3698, %v4008
      %v4073 = vmul.f32 %v3700, %v4009
      %v4074 = vmul.f32 %v3702, %v4010
      %v4075 = vmul.f32 %v3704, %v4011
      %v4076 = vmul.f32 %v3706, %v4012
      %v4077 = vmul.f32 %v3708, %v4013
      %v4078 = vmul.f32 %v3710, %v4014
      %v4079 = vmul.f32 %v3712, %v4015
      %v4080 = vmul.f32 %v3714, %v4016
      %v4081 = vmul.f32 %v3716, %v4017
      %v4082 = vmul.f32 %v3718, %v4018
      %v4083 = vmul.f32 %v3720, %v4019
      %v4084 = vmul.f32 %v3722, %v4020
      %v4085 = vmul.f32 %v3724, %v4021
      %v4086 = vmul.f32 %v3726, %v4022
      %v4087 = vmul.f32 %v3728, %v4023
      %v4088 = vmul.f32 %v3730, %v4024
      %v4089 = vmul.f32 %v3732, %v4025
      %v4090 = vmul.f32 %v3734, %v4026
      %v4091 = vmul.f32 %v3736, %v4027
      %v4092 = vmul.f32 %v3738, %v4028
      %v4093 = vmul.f32 %v3740, %v4029
      %v4094 = vmul.f32 %v3742, %v4030
      %v4095 = vmul.f32 %v3744, %v4031
      %v4096 = vmul.f32 %v3746, %v4032
      %v4097 = vmul.f32 %v3748, %v4033
      %v4098 = vmul.f32 %v3750, %v4034
      %v4099 = vmul.f32 %v3752, %v4035
      %v4100 = vmul.f32 %v3754, %v4036
      %v4101 = vmul.f32 %v3756, %v4037
      %v4102 = vmul.f32 %v3758, %v4038
      %v4103 = vmul.f32 %v3760, %v4039
      %v4104 = vmul.f32 %v3762, %v4040
      %v4105 = vmul.f32 %v3764, %v4041
      %v4106 = vmul.f32 %v3766, %v4042
      %v4107 = vmul.f32 %v3768, %v4043
      %v4108 = vmul.f32 %v3770, %v4044
      %v4109 = vmul.f32 %v3772, %v4045
      %v4110 = vmul.f32 %v3774, %v4046
      %v4111 = vmul.f32 %v3776, %v4047
      %v4112 = vmul.f32 %v3778, %v4048
      %v4113 = vmul.f32 %v3780, %v4049
      %v4114 = vmul.f32 %v3782, %v4050
      %v4115 = vmul.f32 %v3784, %v4051
      %v4116 = vmul.f32 %v3786, %v4052
      %v4117 = vmul.f32 %v3788, %v4053
      %v4118 = vmul.f32 %v3790, %v4054
      %v4119 = vmul.f32 %v3792, %v4055
      %v4120 = vmul.f32 %v3794, %v4056
      %v4121 = vmul.f32 %v3796, %v4057
      %v4122 = vmul.f32 %v3798, %v4058
      %v4123 = vmul.f32 %v3800, %v4059
      %v4124 = vmul.f32 %v3802, %v4060
      %v4125 = vmul.f32 %v3804, %v4061
      %v4126 = vmul.f32 %v3806, %v4062
      %v4127 = vpack.c.bf16 %v4064, %v4063
      %v4128 = vpack.c.bf16 %v4066, %v4065
      %v4129 = vpack.c.bf16 %v4068, %v4067
      %v4130 = vpack.c.bf16 %v4070, %v4069
      %v4131 = vpack.c.bf16 %v4072, %v4071
      %v4132 = vpack.c.bf16 %v4074, %v4073
      %v4133 = vpack.c.bf16 %v4076, %v4075
      %v4134 = vpack.c.bf16 %v4078, %v4077
      %v4135 = vpack.c.bf16 %v4080, %v4079
      %v4136 = vpack.c.bf16 %v4082, %v4081
      %v4137 = vpack.c.bf16 %v4084, %v4083
      %v4138 = vpack.c.bf16 %v4086, %v4085
      %v4139 = vpack.c.bf16 %v4088, %v4087
      %v4140 = vpack.c.bf16 %v4090, %v4089
      %v4141 = vpack.c.bf16 %v4092, %v4091
      %v4142 = vpack.c.bf16 %v4094, %v4093
      %v4143 = vpack.c.bf16 %v4096, %v4095
      %v4144 = vpack.c.bf16 %v4098, %v4097
      %v4145 = vpack.c.bf16 %v4100, %v4099
      %v4146 = vpack.c.bf16 %v4102, %v4101
      %v4147 = vpack.c.bf16 %v4104, %v4103
      %v4148 = vpack.c.bf16 %v4106, %v4105
      %v4149 = vpack.c.bf16 %v4108, %v4107
      %v4150 = vpack.c.bf16 %v4110, %v4109
      %v4151 = vpack.c.bf16 %v4112, %v4111
      %v4152 = vpack.c.bf16 %v4114, %v4113
      %v4153 = vpack.c.bf16 %v4116, %v4115
      %v4154 = vpack.c.bf16 %v4118, %v4117
      %v4155 = vpack.c.bf16 %v4120, %v4119
      %v4156 = vpack.c.bf16 %v4122, %v4121
      %v4157 = vpack.c.bf16 %v4124, %v4123
      %v4158 = vpack.c.bf16 %v4126, %v4125
      %v4160 = vsel %vm3422, %v4127, 0
      %v4163 = vsel %vm3422, %v4128, 0
      %v4166 = vsel %vm3422, %v4129, 0
      %v4169 = vsel %vm3422, %v4130, 0
      %4171 = vmatprep.subr.bf16.mxu0 0
      %4172 = vmatpush1.bf16.msra.mxu0 0
      %4173 = vmatprep.subr.bf16.mxu0 0
      %4174 = vmatpush1.bf16.msra.mxu0 0
      %4175 = vmatprep.subr.bf16.mxu0 0
      %4176 = vmatpush1.bf16.msra.mxu0 0
      %4177 = vmatprep.subr.bf16.mxu0 0
      %4178 = vmatpush1.bf16.msra.mxu0 0
      %4179 = vmatprep.subr.bf16.mxu0 0
      %4180 = vmatpush1.bf16.msra.mxu0 %v2680
      %4181 = vmatprep.subr.bf16.mxu0 0
      %4182 = vmatpush1.bf16.msra.mxu0 %v2679
      %4183 = vmatprep.subr.bf16.mxu0 0
      %4184 = vmatpush1.bf16.msra.mxu0 %v2678
      %4185 = vmatprep.subr.bf16.mxu0 0
      %4186 = vmatpush1.bf16.msra.mxu0 %v2677
      %4187 = vmatprep.subr.bf16.mxu0 0
      %4188 = vmatpush2.bf16.msra.mxu0 0
      %4189 = vmatprep.subr.bf16.mxu0 0
      %4190 = vmatpush2.bf16.msra.mxu0 0
      %4191 = vmatprep.subr.bf16.mxu0 0
      %4192 = vmatpush2.bf16.msra.mxu0 0
      %4193 = vmatprep.subr.bf16.mxu0 0
      %4194 = vmatpush2.bf16.msra.mxu0 0
      %4195 = vmatprep.subr.bf16.mxu0 0
      %4196 = vmatpush2.bf16.msra.mxu0 0
      %4197 = vmatprep.subr.bf16.mxu0 0
      %4198 = vmatpush2.bf16.msra.mxu0 0
      %4199 = vmatprep.subr.bf16.mxu0 0
      %4200 = vmatpush2.bf16.msra.mxu0 0
      %4201 = vmatprep.subr.bf16.mxu0 0
      %4202 = vmatpush2.bf16.msra.mxu0 0
      %4203 = vmatprep.mubr.bf16.mxu0 0
      %4204 = vmatmul.mubr.bf16.gmra.mxu0 %v4160
      %v4205 = vpop.f32.mrf.mxu0
      %v4206 = vadd.f32 0.0, %v4205
      %v4207 = vpop.f32.mrf.mxu0
      %v4208 = vpop.f32.mrf.mxu0
      %v4209 = vadd.f32 0.0, %v4208
      %v4210 = vpop.f32.mrf.mxu0
      %4211 = vmatprep.mubr.bf16.mxu0 0
      %4212 = vmatmul.mubr.bf16.gmra.mxu0 %v4163
      %v4213 = vpop.f32.mrf.mxu0
      %v4214 = vadd.f32 0.0, %v4213
      %v4215 = vpop.f32.mrf.mxu0
      %v4216 = vpop.f32.mrf.mxu0
      %v4217 = vadd.f32 0.0, %v4216
      %v4218 = vpop.f32.mrf.mxu0
      %4219 = vmatprep.mubr.bf16.mxu0 0
      %4220 = vmatmul.mubr.bf16.gmra.mxu0 %v4166
      %v4221 = vpop.f32.mrf.mxu0
      %v4222 = vadd.f32 0.0, %v4221
      %v4223 = vpop.f32.mrf.mxu0
      %v4224 = vpop.f32.mrf.mxu0
      %v4225 = vadd.f32 0.0, %v4224
      %v4226 = vpop.f32.mrf.mxu0
      %4227 = vmatprep.mubr.bf16.mxu0 0
      %4228 = vmatmul.mubr.bf16.gmra.mxu0 %v4169
      %v4229 = vpop.f32.mrf.mxu0
      %v4230 = vadd.f32 0.0, %v4229
      %v4231 = vpop.f32.mrf.mxu0
      %v4232 = vpop.f32.mrf.mxu0
      %v4233 = vadd.f32 0.0, %v4232
      %v4234 = vpop.f32.mrf.mxu0
      %4235 = vdwg.mxu0
      %v4237 = vsel %vm3422, %v4131, 0
      %v4240 = vsel %vm3422, %v4132, 0
      %v4243 = vsel %vm3422, %v4133, 0
      %v4246 = vsel %vm3422, %v4134, 0
      %4248 = vmatprep.subr.bf16.mxu0 0
      %4249 = vmatpush1.bf16.msra.mxu0 0
      %4250 = vmatprep.subr.bf16.mxu0 0
      %4251 = vmatpush1.bf16.msra.mxu0 0
      %4252 = vmatprep.subr.bf16.mxu0 0
      %4253 = vmatpush1.bf16.msra.mxu0 0
      %4254 = vmatprep.subr.bf16.mxu0 0
      %4255 = vmatpush1.bf16.msra.mxu0 0
      %4256 = vmatprep.subr.bf16.mxu0 0
      %4257 = vmatpush1.bf16.msra.mxu0 %v2684
      %4258 = vmatprep.subr.bf16.mxu0 0
      %4259 = vmatpush1.bf16.msra.mxu0 %v2683
      %4260 = vmatprep.subr.bf16.mxu0 0
      %4261 = vmatpush1.bf16.msra.mxu0 %v2682
      %4262 = vmatprep.subr.bf16.mxu0 0
      %4263 = vmatpush1.bf16.msra.mxu0 %v2681
      %4264 = vmatprep.subr.bf16.mxu0 0
      %4265 = vmatpush2.bf16.msra.mxu0 0
      %4266 = vmatprep.subr.bf16.mxu0 0
      %4267 = vmatpush2.bf16.msra.mxu0 0
      %4268 = vmatprep.subr.bf16.mxu0 0
      %4269 = vmatpush2.bf16.msra.mxu0 0
      %4270 = vmatprep.subr.bf16.mxu0 0
      %4271 = vmatpush2.bf16.msra.mxu0 0
      %4272 = vmatprep.subr.bf16.mxu0 0
      %4273 = vmatpush2.bf16.msra.mxu0 0
      %4274 = vmatprep.subr.bf16.mxu0 0
      %4275 = vmatpush2.bf16.msra.mxu0 0
      %4276 = vmatprep.subr.bf16.mxu0 0
      %4277 = vmatpush2.bf16.msra.mxu0 0
      %4278 = vmatprep.subr.bf16.mxu0 0
      %4279 = vmatpush2.bf16.msra.mxu0 0
      %4280 = vmatprep.mubr.bf16.mxu0 0
      %4281 = vmatmul.mubr.bf16.gmra.mxu0 %v4237
      %v4282 = vpop.f32.mrf.mxu0
      %v4283 = vadd.f32 0.0, %v4282
      %v4284 = vpop.f32.mrf.mxu0
      %v4285 = vpop.f32.mrf.mxu0
      %v4286 = vadd.f32 0.0, %v4285
      %v4287 = vpop.f32.mrf.mxu0
      %4288 = vmatprep.mubr.bf16.mxu0 0
      %4289 = vmatmul.mubr.bf16.gmra.mxu0 %v4240
      %v4290 = vpop.f32.mrf.mxu0
      %v4291 = vadd.f32 0.0, %v4290
      %v4292 = vpop.f32.mrf.mxu0
      %v4293 = vpop.f32.mrf.mxu0
      %v4294 = vadd.f32 0.0, %v4293
      %v4295 = vpop.f32.mrf.mxu0
      %4296 = vmatprep.mubr.bf16.mxu0 0
      %4297 = vmatmul.mubr.bf16.gmra.mxu0 %v4243
      %v4298 = vpop.f32.mrf.mxu0
      %v4299 = vadd.f32 0.0, %v4298
      %v4300 = vpop.f32.mrf.mxu0
      %v4301 = vpop.f32.mrf.mxu0
      %v4302 = vadd.f32 0.0, %v4301
      %v4303 = vpop.f32.mrf.mxu0
      %4304 = vmatprep.mubr.bf16.mxu0 0
      %4305 = vmatmul.mubr.bf16.gmra.mxu0 %v4246
      %v4306 = vpop.f32.mrf.mxu0
      %v4307 = vadd.f32 0.0, %v4306
      %v4308 = vpop.f32.mrf.mxu0
      %v4309 = vpop.f32.mrf.mxu0
      %v4310 = vadd.f32 0.0, %v4309
      %v4311 = vpop.f32.mrf.mxu0
      %4312 = vdwg.mxu0
      %v4314 = vsel %vm3422, %v4135, 0
      %v4317 = vsel %vm3422, %v4136, 0
      %v4320 = vsel %vm3422, %v4137, 0
      %v4323 = vsel %vm3422, %v4138, 0
      %4325 = vmatprep.subr.bf16.mxu0 0
      %4326 = vmatpush1.bf16.msra.mxu0 0
      %4327 = vmatprep.subr.bf16.mxu0 0
      %4328 = vmatpush1.bf16.msra.mxu0 0
      %4329 = vmatprep.subr.bf16.mxu0 0
      %4330 = vmatpush1.bf16.msra.mxu0 0
      %4331 = vmatprep.subr.bf16.mxu0 0
      %4332 = vmatpush1.bf16.msra.mxu0 0
      %4333 = vmatprep.subr.bf16.mxu0 0
      %4334 = vmatpush1.bf16.msra.mxu0 %v2688
      %4335 = vmatprep.subr.bf16.mxu0 0
      %4336 = vmatpush1.bf16.msra.mxu0 %v2687
      %4337 = vmatprep.subr.bf16.mxu0 0
      %4338 = vmatpush1.bf16.msra.mxu0 %v2686
      %4339 = vmatprep.subr.bf16.mxu0 0
      %4340 = vmatpush1.bf16.msra.mxu0 %v2685
      %4341 = vmatprep.subr.bf16.mxu0 0
      %4342 = vmatpush2.bf16.msra.mxu0 0
      %4343 = vmatprep.subr.bf16.mxu0 0
      %4344 = vmatpush2.bf16.msra.mxu0 0
      %4345 = vmatprep.subr.bf16.mxu0 0
      %4346 = vmatpush2.bf16.msra.mxu0 0
      %4347 = vmatprep.subr.bf16.mxu0 0
      %4348 = vmatpush2.bf16.msra.mxu0 0
      %4349 = vmatprep.subr.bf16.mxu0 0
      %4350 = vmatpush2.bf16.msra.mxu0 0
      %4351 = vmatprep.subr.bf16.mxu0 0
      %4352 = vmatpush2.bf16.msra.mxu0 0
      %4353 = vmatprep.subr.bf16.mxu0 0
      %4354 = vmatpush2.bf16.msra.mxu0 0
      %4355 = vmatprep.subr.bf16.mxu0 0
      %4356 = vmatpush2.bf16.msra.mxu0 0
      %4357 = vmatprep.mubr.bf16.mxu0 0
      %4358 = vmatmul.mubr.bf16.gmra.mxu0 %v4314
      %v4359 = vpop.f32.mrf.mxu0
      %v4360 = vadd.f32 0.0, %v4359
      %v4361 = vpop.f32.mrf.mxu0
      %v4362 = vpop.f32.mrf.mxu0
      %v4363 = vadd.f32 0.0, %v4362
      %v4364 = vpop.f32.mrf.mxu0
      %4365 = vmatprep.mubr.bf16.mxu0 0
      %4366 = vmatmul.mubr.bf16.gmra.mxu0 %v4317
      %v4367 = vpop.f32.mrf.mxu0
      %v4368 = vadd.f32 0.0, %v4367
      %v4369 = vpop.f32.mrf.mxu0
      %v4370 = vpop.f32.mrf.mxu0
      %v4371 = vadd.f32 0.0, %v4370
      %v4372 = vpop.f32.mrf.mxu0
      %4373 = vmatprep.mubr.bf16.mxu0 0
      %4374 = vmatmul.mubr.bf16.gmra.mxu0 %v4320
      %v4375 = vpop.f32.mrf.mxu0
      %v4376 = vadd.f32 0.0, %v4375
      %v4377 = vpop.f32.mrf.mxu0
      %v4378 = vpop.f32.mrf.mxu0
      %v4379 = vadd.f32 0.0, %v4378
      %v4380 = vpop.f32.mrf.mxu0
      %4381 = vmatprep.mubr.bf16.mxu0 0
      %4382 = vmatmul.mubr.bf16.gmra.mxu0 %v4323
      %v4383 = vpop.f32.mrf.mxu0
      %v4384 = vadd.f32 0.0, %v4383
      %v4385 = vpop.f32.mrf.mxu0
      %v4386 = vpop.f32.mrf.mxu0
      %v4387 = vadd.f32 0.0, %v4386
      %v4388 = vpop.f32.mrf.mxu0
      %4389 = vdwg.mxu0
      %v4391 = vsel %vm3422, %v4139, 0
      %v4394 = vsel %vm3422, %v4140, 0
      %v4397 = vsel %vm3422, %v4141, 0
      %v4400 = vsel %vm3422, %v4142, 0
      %4402 = vmatprep.subr.bf16.mxu0 0
      %4403 = vmatpush1.bf16.msra.mxu0 0
      %4404 = vmatprep.subr.bf16.mxu0 0
      %4405 = vmatpush1.bf16.msra.mxu0 0
      %4406 = vmatprep.subr.bf16.mxu0 0
      %4407 = vmatpush1.bf16.msra.mxu0 0
      %4408 = vmatprep.subr.bf16.mxu0 0
      %4409 = vmatpush1.bf16.msra.mxu0 0
      %4410 = vmatprep.subr.bf16.mxu0 0
      %4411 = vmatpush1.bf16.msra.mxu0 %v2692
      %4412 = vmatprep.subr.bf16.mxu0 0
      %4413 = vmatpush1.bf16.msra.mxu0 %v2691
      %4414 = vmatprep.subr.bf16.mxu0 0
      %4415 = vmatpush1.bf16.msra.mxu0 %v2690
      %4416 = vmatprep.subr.bf16.mxu0 0
      %4417 = vmatpush1.bf16.msra.mxu0 %v2689
      %4418 = vmatprep.subr.bf16.mxu0 0
      %4419 = vmatpush2.bf16.msra.mxu0 0
      %4420 = vmatprep.subr.bf16.mxu0 0
      %4421 = vmatpush2.bf16.msra.mxu0 0
      %4422 = vmatprep.subr.bf16.mxu0 0
      %4423 = vmatpush2.bf16.msra.mxu0 0
      %4424 = vmatprep.subr.bf16.mxu0 0
      %4425 = vmatpush2.bf16.msra.mxu0 0
      %4426 = vmatprep.subr.bf16.mxu0 0
      %4427 = vmatpush2.bf16.msra.mxu0 0
      %4428 = vmatprep.subr.bf16.mxu0 0
      %4429 = vmatpush2.bf16.msra.mxu0 0
      %4430 = vmatprep.subr.bf16.mxu0 0
      %4431 = vmatpush2.bf16.msra.mxu0 0
      %4432 = vmatprep.subr.bf16.mxu0 0
      %4433 = vmatpush2.bf16.msra.mxu0 0
      %4434 = vmatprep.mubr.bf16.mxu0 0
      %4435 = vmatmul.mubr.bf16.gmra.mxu0 %v4391
      %v4436 = vpop.f32.mrf.mxu0
      %v4437 = vadd.f32 0.0, %v4436
      %v4438 = vpop.f32.mrf.mxu0
      %v4439 = vpop.f32.mrf.mxu0
      %v4440 = vadd.f32 0.0, %v4439
      %v4441 = vpop.f32.mrf.mxu0
      %4442 = vmatprep.mubr.bf16.mxu0 0
      %4443 = vmatmul.mubr.bf16.gmra.mxu0 %v4394
      %v4444 = vpop.f32.mrf.mxu0
      %v4445 = vadd.f32 0.0, %v4444
      %v4446 = vpop.f32.mrf.mxu0
      %v4447 = vpop.f32.mrf.mxu0
      %v4448 = vadd.f32 0.0, %v4447
      %v4449 = vpop.f32.mrf.mxu0
      %4450 = vmatprep.mubr.bf16.mxu0 0
      %4451 = vmatmul.mubr.bf16.gmra.mxu0 %v4397
      %v4452 = vpop.f32.mrf.mxu0
      %v4453 = vadd.f32 0.0, %v4452
      %v4454 = vpop.f32.mrf.mxu0
      %v4455 = vpop.f32.mrf.mxu0
      %v4456 = vadd.f32 0.0, %v4455
      %v4457 = vpop.f32.mrf.mxu0
      %4458 = vmatprep.mubr.bf16.mxu0 0
      %4459 = vmatmul.mubr.bf16.gmra.mxu0 %v4400
      %v4460 = vpop.f32.mrf.mxu0
      %v4461 = vadd.f32 0.0, %v4460
      %v4462 = vpop.f32.mrf.mxu0
      %v4463 = vpop.f32.mrf.mxu0
      %v4464 = vadd.f32 0.0, %v4463
      %v4465 = vpop.f32.mrf.mxu0
      %4466 = vdwg.mxu0
      %v4468 = vsel %vm3422, %v4143, 0
      %v4471 = vsel %vm3422, %v4144, 0
      %v4474 = vsel %vm3422, %v4145, 0
      %v4477 = vsel %vm3422, %v4146, 0
      %4479 = vmatprep.subr.bf16.mxu0 0
      %4480 = vmatpush1.bf16.msra.mxu0 0
      %4481 = vmatprep.subr.bf16.mxu0 0
      %4482 = vmatpush1.bf16.msra.mxu0 0
      %4483 = vmatprep.subr.bf16.mxu0 0
      %4484 = vmatpush1.bf16.msra.mxu0 0
      %4485 = vmatprep.subr.bf16.mxu0 0
      %4486 = vmatpush1.bf16.msra.mxu0 0
      %4487 = vmatprep.subr.bf16.mxu0 0
      %4488 = vmatpush1.bf16.msra.mxu0 %v2696
      %4489 = vmatprep.subr.bf16.mxu0 0
      %4490 = vmatpush1.bf16.msra.mxu0 %v2695
      %4491 = vmatprep.subr.bf16.mxu0 0
      %4492 = vmatpush1.bf16.msra.mxu0 %v2694
      %4493 = vmatprep.subr.bf16.mxu0 0
      %4494 = vmatpush1.bf16.msra.mxu0 %v2693
      %4495 = vmatprep.subr.bf16.mxu0 0
      %4496 = vmatpush2.bf16.msra.mxu0 0
      %4497 = vmatprep.subr.bf16.mxu0 0
      %4498 = vmatpush2.bf16.msra.mxu0 0
      %4499 = vmatprep.subr.bf16.mxu0 0
      %4500 = vmatpush2.bf16.msra.mxu0 0
      %4501 = vmatprep.subr.bf16.mxu0 0
      %4502 = vmatpush2.bf16.msra.mxu0 0
      %4503 = vmatprep.subr.bf16.mxu0 0
      %4504 = vmatpush2.bf16.msra.mxu0 0
      %4505 = vmatprep.subr.bf16.mxu0 0
      %4506 = vmatpush2.bf16.msra.mxu0 0
      %4507 = vmatprep.subr.bf16.mxu0 0
      %4508 = vmatpush2.bf16.msra.mxu0 0
      %4509 = vmatprep.subr.bf16.mxu0 0
      %4510 = vmatpush2.bf16.msra.mxu0 0
      %4511 = vmatprep.mubr.bf16.mxu0 0
      %4512 = vmatmul.mubr.bf16.gmra.mxu0 %v4468
      %v4513 = vpop.f32.mrf.mxu0
      %v4514 = vadd.f32 0.0, %v4513
      %v4515 = vpop.f32.mrf.mxu0
      %v4516 = vpop.f32.mrf.mxu0
      %v4517 = vadd.f32 0.0, %v4516
      %v4518 = vpop.f32.mrf.mxu0
      %4519 = vmatprep.mubr.bf16.mxu0 0
      %4520 = vmatmul.mubr.bf16.gmra.mxu0 %v4471
      %v4521 = vpop.f32.mrf.mxu0
      %v4522 = vadd.f32 0.0, %v4521
      %v4523 = vpop.f32.mrf.mxu0
      %v4524 = vpop.f32.mrf.mxu0
      %v4525 = vadd.f32 0.0, %v4524
      %v4526 = vpop.f32.mrf.mxu0
      %4527 = vmatprep.mubr.bf16.mxu0 0
      %4528 = vmatmul.mubr.bf16.gmra.mxu0 %v4474
      %v4529 = vpop.f32.mrf.mxu0
      %v4530 = vadd.f32 0.0, %v4529
      %v4531 = vpop.f32.mrf.mxu0
      %v4532 = vpop.f32.mrf.mxu0
      %v4533 = vadd.f32 0.0, %v4532
      %v4534 = vpop.f32.mrf.mxu0
      %4535 = vmatprep.mubr.bf16.mxu0 0
      %4536 = vmatmul.mubr.bf16.gmra.mxu0 %v4477
      %v4537 = vpop.f32.mrf.mxu0
      %v4538 = vadd.f32 0.0, %v4537
      %v4539 = vpop.f32.mrf.mxu0
      %v4540 = vpop.f32.mrf.mxu0
      %v4541 = vadd.f32 0.0, %v4540
      %v4542 = vpop.f32.mrf.mxu0
      %4543 = vdwg.mxu0
      %v4545 = vsel %vm3422, %v4147, 0
      %v4548 = vsel %vm3422, %v4148, 0
      %v4551 = vsel %vm3422, %v4149, 0
      %v4554 = vsel %vm3422, %v4150, 0
      %4556 = vmatprep.subr.bf16.mxu0 0
      %4557 = vmatpush1.bf16.msra.mxu0 0
      %4558 = vmatprep.subr.bf16.mxu0 0
      %4559 = vmatpush1.bf16.msra.mxu0 0
      %4560 = vmatprep.subr.bf16.mxu0 0
      %4561 = vmatpush1.bf16.msra.mxu0 0
      %4562 = vmatprep.subr.bf16.mxu0 0
      %4563 = vmatpush1.bf16.msra.mxu0 0
      %4564 = vmatprep.subr.bf16.mxu0 0
      %4565 = vmatpush1.bf16.msra.mxu0 %v2700
      %4566 = vmatprep.subr.bf16.mxu0 0
      %4567 = vmatpush1.bf16.msra.mxu0 %v2699
      %4568 = vmatprep.subr.bf16.mxu0 0
      %4569 = vmatpush1.bf16.msra.mxu0 %v2698
      %4570 = vmatprep.subr.bf16.mxu0 0
      %4571 = vmatpush1.bf16.msra.mxu0 %v2697
      %4572 = vmatprep.subr.bf16.mxu0 0
      %4573 = vmatpush2.bf16.msra.mxu0 0
      %4574 = vmatprep.subr.bf16.mxu0 0
      %4575 = vmatpush2.bf16.msra.mxu0 0
      %4576 = vmatprep.subr.bf16.mxu0 0
      %4577 = vmatpush2.bf16.msra.mxu0 0
      %4578 = vmatprep.subr.bf16.mxu0 0
      %4579 = vmatpush2.bf16.msra.mxu0 0
      %4580 = vmatprep.subr.bf16.mxu0 0
      %4581 = vmatpush2.bf16.msra.mxu0 0
      %4582 = vmatprep.subr.bf16.mxu0 0
      %4583 = vmatpush2.bf16.msra.mxu0 0
      %4584 = vmatprep.subr.bf16.mxu0 0
      %4585 = vmatpush2.bf16.msra.mxu0 0
      %4586 = vmatprep.subr.bf16.mxu0 0
      %4587 = vmatpush2.bf16.msra.mxu0 0
      %4588 = vmatprep.mubr.bf16.mxu0 0
      %4589 = vmatmul.mubr.bf16.gmra.mxu0 %v4545
      %v4590 = vpop.f32.mrf.mxu0
      %v4591 = vadd.f32 0.0, %v4590
      %v4592 = vpop.f32.mrf.mxu0
      %v4593 = vpop.f32.mrf.mxu0
      %v4594 = vadd.f32 0.0, %v4593
      %v4595 = vpop.f32.mrf.mxu0
      %4596 = vmatprep.mubr.bf16.mxu0 0
      %4597 = vmatmul.mubr.bf16.gmra.mxu0 %v4548
      %v4598 = vpop.f32.mrf.mxu0
      %v4599 = vadd.f32 0.0, %v4598
      %v4600 = vpop.f32.mrf.mxu0
      %v4601 = vpop.f32.mrf.mxu0
      %v4602 = vadd.f32 0.0, %v4601
      %v4603 = vpop.f32.mrf.mxu0
      %4604 = vmatprep.mubr.bf16.mxu0 0
      %4605 = vmatmul.mubr.bf16.gmra.mxu0 %v4551
      %v4606 = vpop.f32.mrf.mxu0
      %v4607 = vadd.f32 0.0, %v4606
      %v4608 = vpop.f32.mrf.mxu0
      %v4609 = vpop.f32.mrf.mxu0
      %v4610 = vadd.f32 0.0, %v4609
      %v4611 = vpop.f32.mrf.mxu0
      %4612 = vmatprep.mubr.bf16.mxu0 0
      %4613 = vmatmul.mubr.bf16.gmra.mxu0 %v4554
      %v4614 = vpop.f32.mrf.mxu0
      %v4615 = vadd.f32 0.0, %v4614
      %v4616 = vpop.f32.mrf.mxu0
      %v4617 = vpop.f32.mrf.mxu0
      %v4618 = vadd.f32 0.0, %v4617
      %v4619 = vpop.f32.mrf.mxu0
      %4620 = vdwg.mxu0
      %v4622 = vsel %vm3422, %v4151, 0
      %v4625 = vsel %vm3422, %v4152, 0
      %v4628 = vsel %vm3422, %v4153, 0
      %v4631 = vsel %vm3422, %v4154, 0
      %4633 = vmatprep.subr.bf16.mxu0 0
      %4634 = vmatpush1.bf16.msra.mxu0 0
      %4635 = vmatprep.subr.bf16.mxu0 0
      %4636 = vmatpush1.bf16.msra.mxu0 0
      %4637 = vmatprep.subr.bf16.mxu0 0
      %4638 = vmatpush1.bf16.msra.mxu0 0
      %4639 = vmatprep.subr.bf16.mxu0 0
      %4640 = vmatpush1.bf16.msra.mxu0 0
      %4641 = vmatprep.subr.bf16.mxu0 0
      %4642 = vmatpush1.bf16.msra.mxu0 %v2704
      %4643 = vmatprep.subr.bf16.mxu0 0
      %4644 = vmatpush1.bf16.msra.mxu0 %v2703
      %4645 = vmatprep.subr.bf16.mxu0 0
      %4646 = vmatpush1.bf16.msra.mxu0 %v2702
      %4647 = vmatprep.subr.bf16.mxu0 0
      %4648 = vmatpush1.bf16.msra.mxu0 %v2701
      %4649 = vmatprep.subr.bf16.mxu0 0
      %4650 = vmatpush2.bf16.msra.mxu0 0
      %4651 = vmatprep.subr.bf16.mxu0 0
      %4652 = vmatpush2.bf16.msra.mxu0 0
      %4653 = vmatprep.subr.bf16.mxu0 0
      %4654 = vmatpush2.bf16.msra.mxu0 0
      %4655 = vmatprep.subr.bf16.mxu0 0
      %4656 = vmatpush2.bf16.msra.mxu0 0
      %4657 = vmatprep.subr.bf16.mxu0 0
      %4658 = vmatpush2.bf16.msra.mxu0 0
      %4659 = vmatprep.subr.bf16.mxu0 0
      %4660 = vmatpush2.bf16.msra.mxu0 0
      %4661 = vmatprep.subr.bf16.mxu0 0
      %4662 = vmatpush2.bf16.msra.mxu0 0
      %4663 = vmatprep.subr.bf16.mxu0 0
      %4664 = vmatpush2.bf16.msra.mxu0 0
      %4665 = vmatprep.mubr.bf16.mxu0 0
      %4666 = vmatmul.mubr.bf16.gmra.mxu0 %v4622
      %v4667 = vpop.f32.mrf.mxu0
      %v4668 = vadd.f32 0.0, %v4667
      %v4669 = vpop.f32.mrf.mxu0
      %v4670 = vpop.f32.mrf.mxu0
      %v4671 = vadd.f32 0.0, %v4670
      %v4672 = vpop.f32.mrf.mxu0
      %4673 = vmatprep.mubr.bf16.mxu0 0
      %4674 = vmatmul.mubr.bf16.gmra.mxu0 %v4625
      %v4675 = vpop.f32.mrf.mxu0
      %v4676 = vadd.f32 0.0, %v4675
      %v4677 = vpop.f32.mrf.mxu0
      %v4678 = vpop.f32.mrf.mxu0
      %v4679 = vadd.f32 0.0, %v4678
      %v4680 = vpop.f32.mrf.mxu0
      %4681 = vmatprep.mubr.bf16.mxu0 0
      %4682 = vmatmul.mubr.bf16.gmra.mxu0 %v4628
      %v4683 = vpop.f32.mrf.mxu0
      %v4684 = vadd.f32 0.0, %v4683
      %v4685 = vpop.f32.mrf.mxu0
      %v4686 = vpop.f32.mrf.mxu0
      %v4687 = vadd.f32 0.0, %v4686
      %v4688 = vpop.f32.mrf.mxu0
      %4689 = vmatprep.mubr.bf16.mxu0 0
      %4690 = vmatmul.mubr.bf16.gmra.mxu0 %v4631
      %v4691 = vpop.f32.mrf.mxu0
      %v4692 = vadd.f32 0.0, %v4691
      %v4693 = vpop.f32.mrf.mxu0
      %v4694 = vpop.f32.mrf.mxu0
      %v4695 = vadd.f32 0.0, %v4694
      %v4696 = vpop.f32.mrf.mxu0
      %4697 = vdwg.mxu0
      %v4699 = vsel %vm3422, %v4155, 0
      %v4702 = vsel %vm3422, %v4156, 0
      %v4705 = vsel %vm3422, %v4157, 0
      %v4708 = vsel %vm3422, %v4158, 0
      %4710 = vmatprep.subr.bf16.mxu0 0
      %4711 = vmatpush1.bf16.msra.mxu0 0
      %4712 = vmatprep.subr.bf16.mxu0 0
      %4713 = vmatpush1.bf16.msra.mxu0 0
      %4714 = vmatprep.subr.bf16.mxu0 0
      %4715 = vmatpush1.bf16.msra.mxu0 0
      %4716 = vmatprep.subr.bf16.mxu0 0
      %4717 = vmatpush1.bf16.msra.mxu0 0
      %4718 = vmatprep.subr.bf16.mxu0 0
      %4719 = vmatpush1.bf16.msra.mxu0 %v2708
      %4720 = vmatprep.subr.bf16.mxu0 0
      %4721 = vmatpush1.bf16.msra.mxu0 %v2707
      %4722 = vmatprep.subr.bf16.mxu0 0
      %4723 = vmatpush1.bf16.msra.mxu0 %v2706
      %4724 = vmatprep.subr.bf16.mxu0 0
      %4725 = vmatpush1.bf16.msra.mxu0 %v2705
      %4726 = vmatprep.subr.bf16.mxu0 0
      %4727 = vmatpush2.bf16.msra.mxu0 0
      %4728 = vmatprep.subr.bf16.mxu0 0
      %4729 = vmatpush2.bf16.msra.mxu0 0
      %4730 = vmatprep.subr.bf16.mxu0 0
      %4731 = vmatpush2.bf16.msra.mxu0 0
      %4732 = vmatprep.subr.bf16.mxu0 0
      %4733 = vmatpush2.bf16.msra.mxu0 0
      %4734 = vmatprep.subr.bf16.mxu0 0
      %4735 = vmatpush2.bf16.msra.mxu0 0
      %4736 = vmatprep.subr.bf16.mxu0 0
      %4737 = vmatpush2.bf16.msra.mxu0 0
      %4738 = vmatprep.subr.bf16.mxu0 0
      %4739 = vmatpush2.bf16.msra.mxu0 0
      %4740 = vmatprep.subr.bf16.mxu0 0
      %4741 = vmatpush2.bf16.msra.mxu0 0
      %4742 = vmatprep.mubr.bf16.mxu0 0
      %4743 = vmatmul.mubr.bf16.gmra.mxu0 %v4699
      %v4744 = vpop.f32.mrf.mxu0
      %v4745 = vadd.f32 0.0, %v4744
      %v4746 = vpop.f32.mrf.mxu0
      %v4747 = vpop.f32.mrf.mxu0
      %v4748 = vadd.f32 0.0, %v4747
      %v4749 = vpop.f32.mrf.mxu0
      %4750 = vmatprep.mubr.bf16.mxu0 0
      %4751 = vmatmul.mubr.bf16.gmra.mxu0 %v4702
      %v4752 = vpop.f32.mrf.mxu0
      %v4753 = vadd.f32 0.0, %v4752
      %v4754 = vpop.f32.mrf.mxu0
      %v4755 = vpop.f32.mrf.mxu0
      %v4756 = vadd.f32 0.0, %v4755
      %v4757 = vpop.f32.mrf.mxu0
      %4758 = vmatprep.mubr.bf16.mxu0 0
      %4759 = vmatmul.mubr.bf16.gmra.mxu0 %v4705
      %v4760 = vpop.f32.mrf.mxu0
      %v4761 = vadd.f32 0.0, %v4760
      %v4762 = vpop.f32.mrf.mxu0
      %v4763 = vpop.f32.mrf.mxu0
      %v4764 = vadd.f32 0.0, %v4763
      %v4765 = vpop.f32.mrf.mxu0
      %4766 = vmatprep.mubr.bf16.mxu0 0
      %4767 = vmatmul.mubr.bf16.gmra.mxu0 %v4708
      %v4768 = vpop.f32.mrf.mxu0
      %v4769 = vadd.f32 0.0, %v4768
      %v4770 = vpop.f32.mrf.mxu0
      %v4771 = vpop.f32.mrf.mxu0
      %v4772 = vadd.f32 0.0, %v4771
      %v4773 = vpop.f32.mrf.mxu0
      %4774 = vdwg.mxu0
      %s4775 = scalar_lea.vmem %s4, 32
      %v4776 = vld [vmem:[%s4775] sm:$0xff]
      %v4777 = vld [vmem:[%s4775 + $0x8] sm:$0xff]
      %v4778 = vld [vmem:[%s4775 + $0x10] sm:$0xff]
      %v4779 = vld [vmem:[%s4775 + $0x18] sm:$0xff]
      %v4780 = vpack.c.bf16 %v4777, %v4776
      %v4781 = vpack.c.bf16 %v4779, %v4778
      %4782 = vmatprep.subr.bf16.mxu0 0
      %4783 = vmatpush1.bf16.msra.mxu0 0
      %4784 = vmatprep.subr.bf16.mxu0 0
      %4785 = vmatpush1.bf16.msra.mxu0 0
      %4786 = vmatprep.subr.bf16.mxu0 0
      %4787 = vmatpush1.bf16.msra.mxu0 0
      %4788 = vmatprep.subr.bf16.mxu0 0
      %4789 = vmatpush1.bf16.msra.mxu0 0
      %4790 = vmatprep.subr.bf16.mxu0 0
      %4791 = vmatpush1.bf16.msra.mxu0 0
      %4792 = vmatprep.subr.bf16.mxu0 0
      %4793 = vmatpush1.bf16.msra.mxu0 0
      %4794 = vmatprep.subr.bf16.mxu0 0
      %4795 = vmatpush1.bf16.msra.mxu0 %v4781
      %4796 = vmatprep.subr.bf16.mxu0 0
      %4797 = vmatpush1.bf16.msra.mxu0 %v4780
      %4798 = vmatprep.subr.bf16.mxu0 0
      %4799 = vmatpush2.bf16.msra.mxu0 0
      %4800 = vmatprep.subr.bf16.mxu0 0
      %4801 = vmatpush2.bf16.msra.mxu0 0
      %4802 = vmatprep.subr.bf16.mxu0 0
      %4803 = vmatpush2.bf16.msra.mxu0 0
      %4804 = vmatprep.subr.bf16.mxu0 0
      %4805 = vmatpush2.bf16.msra.mxu0 0
      %4806 = vmatprep.subr.bf16.mxu0 0
      %4807 = vmatpush2.bf16.msra.mxu0 0
      %4808 = vmatprep.subr.bf16.mxu0 0
      %4809 = vmatpush2.bf16.msra.mxu0 0
      %4810 = vmatprep.subr.bf16.mxu0 0
      %4811 = vmatpush2.bf16.msra.mxu0 0
      %4812 = vmatprep.subr.bf16.mxu0 0
      %4813 = vmatpush2.bf16.msra.mxu0 0
      %4814 = vmatprep.mubr.bf16.mxu0 0
      %4815 = vmatmul.mubr.bf16.gmra.mxu0 %v1639
      %v4816 = vpop.f32.mrf.mxu0
      %v4817 = vadd.f32 0.0, %v4816
      %v4818 = vpop.f32.mrf.mxu0
      %v4819 = vpop.f32.mrf.mxu0
      %v4820 = vadd.f32 0.0, %v4819
      %v4821 = vpop.f32.mrf.mxu0
      %4822 = vmatprep.mubr.bf16.mxu0 0
      %4823 = vmatmul.mubr.bf16.gmra.mxu0 %v1642
      %v4824 = vpop.f32.mrf.mxu0
      %v4825 = vadd.f32 0.0, %v4824
      %v4826 = vpop.f32.mrf.mxu0
      %v4827 = vpop.f32.mrf.mxu0
      %v4828 = vadd.f32 0.0, %v4827
      %v4829 = vpop.f32.mrf.mxu0
      %4830 = vmatprep.mubr.bf16.mxu0 0
      %4831 = vmatmul.mubr.bf16.gmra.mxu0 %v1645
      %v4832 = vpop.f32.mrf.mxu0
      %v4833 = vadd.f32 0.0, %v4832
      %v4834 = vpop.f32.mrf.mxu0
      %v4835 = vpop.f32.mrf.mxu0
      %v4836 = vadd.f32 0.0, %v4835
      %v4837 = vpop.f32.mrf.mxu0
      %4838 = vmatprep.mubr.bf16.mxu0 0
      %4839 = vmatmul.mubr.bf16.gmra.mxu0 %v1648
      %v4840 = vpop.f32.mrf.mxu0
      %v4841 = vadd.f32 0.0, %v4840
      %v4842 = vpop.f32.mrf.mxu0
      %v4843 = vpop.f32.mrf.mxu0
      %v4844 = vadd.f32 0.0, %v4843
      %v4845 = vpop.f32.mrf.mxu0
      %4846 = vmatprep.mubr.bf16.mxu0 0
      %4847 = vmatmul.mubr.bf16.gmra.mxu0 %v1651
      %v4848 = vpop.f32.mrf.mxu0
      %v4849 = vadd.f32 0.0, %v4848
      %v4850 = vpop.f32.mrf.mxu0
      %v4851 = vpop.f32.mrf.mxu0
      %v4852 = vadd.f32 0.0, %v4851
      %v4853 = vpop.f32.mrf.mxu0
      %4854 = vmatprep.mubr.bf16.mxu0 0
      %4855 = vmatmul.mubr.bf16.gmra.mxu0 %v1654
      %v4856 = vpop.f32.mrf.mxu0
      %v4857 = vadd.f32 0.0, %v4856
      %v4858 = vpop.f32.mrf.mxu0
      %v4859 = vpop.f32.mrf.mxu0
      %v4860 = vadd.f32 0.0, %v4859
      %v4861 = vpop.f32.mrf.mxu0
      %4862 = vmatprep.mubr.bf16.mxu0 0
      %4863 = vmatmul.mubr.bf16.gmra.mxu0 %v1657
      %v4864 = vpop.f32.mrf.mxu0
      %v4865 = vadd.f32 0.0, %v4864
      %v4866 = vpop.f32.mrf.mxu0
      %v4867 = vpop.f32.mrf.mxu0
      %v4868 = vadd.f32 0.0, %v4867
      %v4869 = vpop.f32.mrf.mxu0
      %4870 = vmatprep.mubr.bf16.mxu0 0
      %4871 = vmatmul.mubr.bf16.gmra.mxu0 %v1660
      %v4872 = vpop.f32.mrf.mxu0
      %v4873 = vadd.f32 0.0, %v4872
      %v4874 = vpop.f32.mrf.mxu0
      %v4875 = vpop.f32.mrf.mxu0
      %v4876 = vadd.f32 0.0, %v4875
      %v4877 = vpop.f32.mrf.mxu0
      %4878 = vmatprep.mubr.bf16.mxu0 0
      %4879 = vmatmul.mubr.bf16.gmra.mxu0 %v1663
      %v4880 = vpop.f32.mrf.mxu0
      %v4881 = vadd.f32 0.0, %v4880
      %v4882 = vpop.f32.mrf.mxu0
      %v4883 = vpop.f32.mrf.mxu0
      %v4884 = vadd.f32 0.0, %v4883
      %v4885 = vpop.f32.mrf.mxu0
      %4886 = vmatprep.mubr.bf16.mxu0 0
      %4887 = vmatmul.mubr.bf16.gmra.mxu0 %v1666
      %v4888 = vpop.f32.mrf.mxu0
      %v4889 = vadd.f32 0.0, %v4888
      %v4890 = vpop.f32.mrf.mxu0
      %v4891 = vpop.f32.mrf.mxu0
      %v4892 = vadd.f32 0.0, %v4891
      %v4893 = vpop.f32.mrf.mxu0
      %4894 = vmatprep.mubr.bf16.mxu0 0
      %4895 = vmatmul.mubr.bf16.gmra.mxu0 %v1669
      %v4896 = vpop.f32.mrf.mxu0
      %v4897 = vadd.f32 0.0, %v4896
      %v4898 = vpop.f32.mrf.mxu0
      %v4899 = vpop.f32.mrf.mxu0
      %v4900 = vadd.f32 0.0, %v4899
      %v4901 = vpop.f32.mrf.mxu0
      %4902 = vmatprep.mubr.bf16.mxu0 0
      %4903 = vmatmul.mubr.bf16.gmra.mxu0 %v1672
      %v4904 = vpop.f32.mrf.mxu0
      %v4905 = vadd.f32 0.0, %v4904
      %v4906 = vpop.f32.mrf.mxu0
      %v4907 = vpop.f32.mrf.mxu0
      %v4908 = vadd.f32 0.0, %v4907
      %v4909 = vpop.f32.mrf.mxu0
      %4910 = vmatprep.mubr.bf16.mxu0 0
      %4911 = vmatmul.mubr.bf16.gmra.mxu0 %v1675
      %v4912 = vpop.f32.mrf.mxu0
      %v4913 = vadd.f32 0.0, %v4912
      %v4914 = vpop.f32.mrf.mxu0
      %v4915 = vpop.f32.mrf.mxu0
      %v4916 = vadd.f32 0.0, %v4915
      %v4917 = vpop.f32.mrf.mxu0
      %4918 = vmatprep.mubr.bf16.mxu0 0
      %4919 = vmatmul.mubr.bf16.gmra.mxu0 %v1678
      %v4920 = vpop.f32.mrf.mxu0
      %v4921 = vadd.f32 0.0, %v4920
      %v4922 = vpop.f32.mrf.mxu0
      %v4923 = vpop.f32.mrf.mxu0
      %v4924 = vadd.f32 0.0, %v4923
      %v4925 = vpop.f32.mrf.mxu0
      %4926 = vmatprep.mubr.bf16.mxu0 0
      %4927 = vmatmul.mubr.bf16.gmra.mxu0 %v1681
      %v4928 = vpop.f32.mrf.mxu0
      %v4929 = vadd.f32 0.0, %v4928
      %v4930 = vpop.f32.mrf.mxu0
      %v4931 = vpop.f32.mrf.mxu0
      %v4932 = vadd.f32 0.0, %v4931
      %v4933 = vpop.f32.mrf.mxu0
      %4934 = vmatprep.mubr.bf16.mxu0 0
      %4935 = vmatmul.mubr.bf16.gmra.mxu0 %v1684
      %v4936 = vpop.f32.mrf.mxu0
      %v4937 = vadd.f32 0.0, %v4936
      %v4938 = vpop.f32.mrf.mxu0
      %v4939 = vpop.f32.mrf.mxu0
      %v4940 = vadd.f32 0.0, %v4939
      %v4941 = vpop.f32.mrf.mxu0
      %4942 = vmatprep.mubr.bf16.mxu0 0
      %4943 = vmatmul.mubr.bf16.gmra.mxu0 %v1687
      %v4944 = vpop.f32.mrf.mxu0
      %v4945 = vadd.f32 0.0, %v4944
      %v4946 = vpop.f32.mrf.mxu0
      %v4947 = vpop.f32.mrf.mxu0
      %v4948 = vadd.f32 0.0, %v4947
      %v4949 = vpop.f32.mrf.mxu0
      %4950 = vmatprep.mubr.bf16.mxu0 0
      %4951 = vmatmul.mubr.bf16.gmra.mxu0 %v1690
      %v4952 = vpop.f32.mrf.mxu0
      %v4953 = vadd.f32 0.0, %v4952
      %v4954 = vpop.f32.mrf.mxu0
      %v4955 = vpop.f32.mrf.mxu0
      %v4956 = vadd.f32 0.0, %v4955
      %v4957 = vpop.f32.mrf.mxu0
      %4958 = vmatprep.mubr.bf16.mxu0 0
      %4959 = vmatmul.mubr.bf16.gmra.mxu0 %v1693
      %v4960 = vpop.f32.mrf.mxu0
      %v4961 = vadd.f32 0.0, %v4960
      %v4962 = vpop.f32.mrf.mxu0
      %v4963 = vpop.f32.mrf.mxu0
      %v4964 = vadd.f32 0.0, %v4963
      %v4965 = vpop.f32.mrf.mxu0
      %4966 = vmatprep.mubr.bf16.mxu0 0
      %4967 = vmatmul.mubr.bf16.gmra.mxu0 %v1696
      %v4968 = vpop.f32.mrf.mxu0
      %v4969 = vadd.f32 0.0, %v4968
      %v4970 = vpop.f32.mrf.mxu0
      %v4971 = vpop.f32.mrf.mxu0
      %v4972 = vadd.f32 0.0, %v4971
      %v4973 = vpop.f32.mrf.mxu0
      %4974 = vmatprep.mubr.bf16.mxu0 0
      %4975 = vmatmul.mubr.bf16.gmra.mxu0 %v1699
      %v4976 = vpop.f32.mrf.mxu0
      %v4977 = vadd.f32 0.0, %v4976
      %v4978 = vpop.f32.mrf.mxu0
      %v4979 = vpop.f32.mrf.mxu0
      %v4980 = vadd.f32 0.0, %v4979
      %v4981 = vpop.f32.mrf.mxu0
      %4982 = vmatprep.mubr.bf16.mxu0 0
      %4983 = vmatmul.mubr.bf16.gmra.mxu0 %v1702
      %v4984 = vpop.f32.mrf.mxu0
      %v4985 = vadd.f32 0.0, %v4984
      %v4986 = vpop.f32.mrf.mxu0
      %v4987 = vpop.f32.mrf.mxu0
      %v4988 = vadd.f32 0.0, %v4987
      %v4989 = vpop.f32.mrf.mxu0
      %4990 = vmatprep.mubr.bf16.mxu0 0
      %4991 = vmatmul.mubr.bf16.gmra.mxu0 %v1705
      %v4992 = vpop.f32.mrf.mxu0
      %v4993 = vadd.f32 0.0, %v4992
      %v4994 = vpop.f32.mrf.mxu0
      %v4995 = vpop.f32.mrf.mxu0
      %v4996 = vadd.f32 0.0, %v4995
      %v4997 = vpop.f32.mrf.mxu0
      %4998 = vmatprep.mubr.bf16.mxu0 0
      %4999 = vmatmul.mubr.bf16.gmra.mxu0 %v1708
      %v5000 = vpop.f32.mrf.mxu0
      %v5001 = vadd.f32 0.0, %v5000
      %v5002 = vpop.f32.mrf.mxu0
      %v5003 = vpop.f32.mrf.mxu0
      %v5004 = vadd.f32 0.0, %v5003
      %v5005 = vpop.f32.mrf.mxu0
      %5006 = vmatprep.mubr.bf16.mxu0 0
      %5007 = vmatmul.mubr.bf16.gmra.mxu0 %v1711
      %v5008 = vpop.f32.mrf.mxu0
      %v5009 = vadd.f32 0.0, %v5008
      %v5010 = vpop.f32.mrf.mxu0
      %v5011 = vpop.f32.mrf.mxu0
      %v5012 = vadd.f32 0.0, %v5011
      %v5013 = vpop.f32.mrf.mxu0
      %5014 = vmatprep.mubr.bf16.mxu0 0
      %5015 = vmatmul.mubr.bf16.gmra.mxu0 %v1714
      %v5016 = vpop.f32.mrf.mxu0
      %v5017 = vadd.f32 0.0, %v5016
      %v5018 = vpop.f32.mrf.mxu0
      %v5019 = vpop.f32.mrf.mxu0
      %v5020 = vadd.f32 0.0, %v5019
      %v5021 = vpop.f32.mrf.mxu0
      %5022 = vmatprep.mubr.bf16.mxu0 0
      %5023 = vmatmul.mubr.bf16.gmra.mxu0 %v1717
      %v5024 = vpop.f32.mrf.mxu0
      %v5025 = vadd.f32 0.0, %v5024
      %v5026 = vpop.f32.mrf.mxu0
      %v5027 = vpop.f32.mrf.mxu0
      %v5028 = vadd.f32 0.0, %v5027
      %v5029 = vpop.f32.mrf.mxu0
      %5030 = vmatprep.mubr.bf16.mxu0 0
      %5031 = vmatmul.mubr.bf16.gmra.mxu0 %v1720
      %v5032 = vpop.f32.mrf.mxu0
      %v5033 = vadd.f32 0.0, %v5032
      %v5034 = vpop.f32.mrf.mxu0
      %v5035 = vpop.f32.mrf.mxu0
      %v5036 = vadd.f32 0.0, %v5035
      %v5037 = vpop.f32.mrf.mxu0
      %5038 = vmatprep.mubr.bf16.mxu0 0
      %5039 = vmatmul.mubr.bf16.gmra.mxu0 %v1723
      %v5040 = vpop.f32.mrf.mxu0
      %v5041 = vadd.f32 0.0, %v5040
      %v5042 = vpop.f32.mrf.mxu0
      %v5043 = vpop.f32.mrf.mxu0
      %v5044 = vadd.f32 0.0, %v5043
      %v5045 = vpop.f32.mrf.mxu0
      %5046 = vmatprep.mubr.bf16.mxu0 0
      %5047 = vmatmul.mubr.bf16.gmra.mxu0 %v1726
      %v5048 = vpop.f32.mrf.mxu0
      %v5049 = vadd.f32 0.0, %v5048
      %v5050 = vpop.f32.mrf.mxu0
      %v5051 = vpop.f32.mrf.mxu0
      %v5052 = vadd.f32 0.0, %v5051
      %v5053 = vpop.f32.mrf.mxu0
      %5054 = vmatprep.mubr.bf16.mxu0 0
      %5055 = vmatmul.mubr.bf16.gmra.mxu0 %v1729
      %v5056 = vpop.f32.mrf.mxu0
      %v5057 = vadd.f32 0.0, %v5056
      %v5058 = vpop.f32.mrf.mxu0
      %v5059 = vpop.f32.mrf.mxu0
      %v5060 = vadd.f32 0.0, %v5059
      %v5061 = vpop.f32.mrf.mxu0
      %5062 = vmatprep.mubr.bf16.mxu0 0
      %5063 = vmatmul.mubr.bf16.gmra.mxu0 %v1732
      %v5064 = vpop.f32.mrf.mxu0
      %v5065 = vadd.f32 0.0, %v5064
      %v5066 = vpop.f32.mrf.mxu0
      %v5067 = vpop.f32.mrf.mxu0
      %v5068 = vadd.f32 0.0, %v5067
      %v5069 = vpop.f32.mrf.mxu0
      %5070 = vdwg.mxu0
      %s5071 = scalar_lea.vmem %s5, 32
      %v5072 = vld [vmem:[%s5071] sm:$0xff]
      %v5073 = vld [vmem:[%s5071 + $0x8] sm:$0xff]
      %v5074 = vld [vmem:[%s5071 + $0x10] sm:$0xff]
      %v5075 = vld [vmem:[%s5071 + $0x18] sm:$0xff]
      %v5076 = vpack.c.bf16 %v5073, %v5072
      %v5077 = vpack.c.bf16 %v5075, %v5074
      %5078 = vmatprep.subr.bf16.mxu0 0
      %5079 = vmatpush1.bf16.msra.mxu0 0
      %5080 = vmatprep.subr.bf16.mxu0 0
      %5081 = vmatpush1.bf16.msra.mxu0 0
      %5082 = vmatprep.subr.bf16.mxu0 0
      %5083 = vmatpush1.bf16.msra.mxu0 0
      %5084 = vmatprep.subr.bf16.mxu0 0
      %5085 = vmatpush1.bf16.msra.mxu0 0
      %5086 = vmatprep.subr.bf16.mxu0 0
      %5087 = vmatpush1.bf16.msra.mxu0 0
      %5088 = vmatprep.subr.bf16.mxu0 0
      %5089 = vmatpush1.bf16.msra.mxu0 0
      %5090 = vmatprep.subr.bf16.mxu0 0
      %5091 = vmatpush1.bf16.msra.mxu0 %v5077
      %5092 = vmatprep.subr.bf16.mxu0 0
      %5093 = vmatpush1.bf16.msra.mxu0 %v5076
      %5094 = vmatprep.subr.bf16.mxu0 0
      %5095 = vmatpush2.bf16.msra.mxu0 0
      %5096 = vmatprep.subr.bf16.mxu0 0
      %5097 = vmatpush2.bf16.msra.mxu0 0
      %5098 = vmatprep.subr.bf16.mxu0 0
      %5099 = vmatpush2.bf16.msra.mxu0 0
      %5100 = vmatprep.subr.bf16.mxu0 0
      %5101 = vmatpush2.bf16.msra.mxu0 0
      %5102 = vmatprep.subr.bf16.mxu0 0
      %5103 = vmatpush2.bf16.msra.mxu0 0
      %5104 = vmatprep.subr.bf16.mxu0 0
      %5105 = vmatpush2.bf16.msra.mxu0 0
      %5106 = vmatprep.subr.bf16.mxu0 0
      %5107 = vmatpush2.bf16.msra.mxu0 0
      %5108 = vmatprep.subr.bf16.mxu0 0
      %5109 = vmatpush2.bf16.msra.mxu0 0
      %5110 = vmatprep.mubr.bf16.mxu0 0
      %5111 = vmatmul.mubr.bf16.gmra.mxu0 %v1639
      %v5112 = vpop.f32.mrf.mxu0
      %v5113 = vadd.f32 0.0, %v5112
      %v5114 = vpop.f32.mrf.mxu0
      %v5115 = vpop.f32.mrf.mxu0
      %v5116 = vadd.f32 0.0, %v5115
      %v5117 = vpop.f32.mrf.mxu0
      %5118 = vmatprep.mubr.bf16.mxu0 0
      %5119 = vmatmul.mubr.bf16.gmra.mxu0 %v1642
      %v5120 = vpop.f32.mrf.mxu0
      %v5121 = vadd.f32 0.0, %v5120
      %v5122 = vpop.f32.mrf.mxu0
      %v5123 = vpop.f32.mrf.mxu0
      %v5124 = vadd.f32 0.0, %v5123
      %v5125 = vpop.f32.mrf.mxu0
      %5126 = vmatprep.mubr.bf16.mxu0 0
      %5127 = vmatmul.mubr.bf16.gmra.mxu0 %v1645
      %v5128 = vpop.f32.mrf.mxu0
      %v5129 = vadd.f32 0.0, %v5128
      %v5130 = vpop.f32.mrf.mxu0
      %v5131 = vpop.f32.mrf.mxu0
      %v5132 = vadd.f32 0.0, %v5131
      %v5133 = vpop.f32.mrf.mxu0
      %5134 = vmatprep.mubr.bf16.mxu0 0
      %5135 = vmatmul.mubr.bf16.gmra.mxu0 %v1648
      %v5136 = vpop.f32.mrf.mxu0
      %v5137 = vadd.f32 0.0, %v5136
      %v5138 = vpop.f32.mrf.mxu0
      %v5139 = vpop.f32.mrf.mxu0
      %v5140 = vadd.f32 0.0, %v5139
      %v5141 = vpop.f32.mrf.mxu0
      %5142 = vmatprep.mubr.bf16.mxu0 0
      %5143 = vmatmul.mubr.bf16.gmra.mxu0 %v1651
      %v5144 = vpop.f32.mrf.mxu0
      %v5145 = vadd.f32 0.0, %v5144
      %v5146 = vpop.f32.mrf.mxu0
      %v5147 = vpop.f32.mrf.mxu0
      %v5148 = vadd.f32 0.0, %v5147
      %v5149 = vpop.f32.mrf.mxu0
      %5150 = vmatprep.mubr.bf16.mxu0 0
      %5151 = vmatmul.mubr.bf16.gmra.mxu0 %v1654
      %v5152 = vpop.f32.mrf.mxu0
      %v5153 = vadd.f32 0.0, %v5152
      %v5154 = vpop.f32.mrf.mxu0
      %v5155 = vpop.f32.mrf.mxu0
      %v5156 = vadd.f32 0.0, %v5155
      %v5157 = vpop.f32.mrf.mxu0
      %5158 = vmatprep.mubr.bf16.mxu0 0
      %5159 = vmatmul.mubr.bf16.gmra.mxu0 %v1657
      %v5160 = vpop.f32.mrf.mxu0
      %v5161 = vadd.f32 0.0, %v5160
      %v5162 = vpop.f32.mrf.mxu0
      %v5163 = vpop.f32.mrf.mxu0
      %v5164 = vadd.f32 0.0, %v5163
      %v5165 = vpop.f32.mrf.mxu0
      %5166 = vmatprep.mubr.bf16.mxu0 0
      %5167 = vmatmul.mubr.bf16.gmra.mxu0 %v1660
      %v5168 = vpop.f32.mrf.mxu0
      %v5169 = vadd.f32 0.0, %v5168
      %v5170 = vpop.f32.mrf.mxu0
      %v5171 = vpop.f32.mrf.mxu0
      %v5172 = vadd.f32 0.0, %v5171
      %v5173 = vpop.f32.mrf.mxu0
      %5174 = vmatprep.mubr.bf16.mxu0 0
      %5175 = vmatmul.mubr.bf16.gmra.mxu0 %v1663
      %v5176 = vpop.f32.mrf.mxu0
      %v5177 = vadd.f32 0.0, %v5176
      %v5178 = vpop.f32.mrf.mxu0
      %v5179 = vpop.f32.mrf.mxu0
      %v5180 = vadd.f32 0.0, %v5179
      %v5181 = vpop.f32.mrf.mxu0
      %5182 = vmatprep.mubr.bf16.mxu0 0
      %5183 = vmatmul.mubr.bf16.gmra.mxu0 %v1666
      %v5184 = vpop.f32.mrf.mxu0
      %v5185 = vadd.f32 0.0, %v5184
      %v5186 = vpop.f32.mrf.mxu0
      %v5187 = vpop.f32.mrf.mxu0
      %v5188 = vadd.f32 0.0, %v5187
      %v5189 = vpop.f32.mrf.mxu0
      %5190 = vmatprep.mubr.bf16.mxu0 0
      %5191 = vmatmul.mubr.bf16.gmra.mxu0 %v1669
      %v5192 = vpop.f32.mrf.mxu0
      %v5193 = vadd.f32 0.0, %v5192
      %v5194 = vpop.f32.mrf.mxu0
      %v5195 = vpop.f32.mrf.mxu0
      %v5196 = vadd.f32 0.0, %v5195
      %v5197 = vpop.f32.mrf.mxu0
      %5198 = vmatprep.mubr.bf16.mxu0 0
      %5199 = vmatmul.mubr.bf16.gmra.mxu0 %v1672
      %v5200 = vpop.f32.mrf.mxu0
      %v5201 = vadd.f32 0.0, %v5200
      %v5202 = vpop.f32.mrf.mxu0
      %v5203 = vpop.f32.mrf.mxu0
      %v5204 = vadd.f32 0.0, %v5203
      %v5205 = vpop.f32.mrf.mxu0
      %5206 = vmatprep.mubr.bf16.mxu0 0
      %5207 = vmatmul.mubr.bf16.gmra.mxu0 %v1675
      %v5208 = vpop.f32.mrf.mxu0
      %v5209 = vadd.f32 0.0, %v5208
      %v5210 = vpop.f32.mrf.mxu0
      %v5211 = vpop.f32.mrf.mxu0
      %v5212 = vadd.f32 0.0, %v5211
      %v5213 = vpop.f32.mrf.mxu0
      %5214 = vmatprep.mubr.bf16.mxu0 0
      %5215 = vmatmul.mubr.bf16.gmra.mxu0 %v1678
      %v5216 = vpop.f32.mrf.mxu0
      %v5217 = vadd.f32 0.0, %v5216
      %v5218 = vpop.f32.mrf.mxu0
      %v5219 = vpop.f32.mrf.mxu0
      %v5220 = vadd.f32 0.0, %v5219
      %v5221 = vpop.f32.mrf.mxu0
      %5222 = vmatprep.mubr.bf16.mxu0 0
      %5223 = vmatmul.mubr.bf16.gmra.mxu0 %v1681
      %v5224 = vpop.f32.mrf.mxu0
      %v5225 = vadd.f32 0.0, %v5224
      %v5226 = vpop.f32.mrf.mxu0
      %v5227 = vpop.f32.mrf.mxu0
      %v5228 = vadd.f32 0.0, %v5227
      %v5229 = vpop.f32.mrf.mxu0
      %5230 = vmatprep.mubr.bf16.mxu0 0
      %5231 = vmatmul.mubr.bf16.gmra.mxu0 %v1684
      %v5232 = vpop.f32.mrf.mxu0
      %v5233 = vadd.f32 0.0, %v5232
      %v5234 = vpop.f32.mrf.mxu0
      %v5235 = vpop.f32.mrf.mxu0
      %v5236 = vadd.f32 0.0, %v5235
      %v5237 = vpop.f32.mrf.mxu0
      %5238 = vmatprep.mubr.bf16.mxu0 0
      %5239 = vmatmul.mubr.bf16.gmra.mxu0 %v1687
      %v5240 = vpop.f32.mrf.mxu0
      %v5241 = vadd.f32 0.0, %v5240
      %v5242 = vpop.f32.mrf.mxu0
      %v5243 = vpop.f32.mrf.mxu0
      %v5244 = vadd.f32 0.0, %v5243
      %v5245 = vpop.f32.mrf.mxu0
      %5246 = vmatprep.mubr.bf16.mxu0 0
      %5247 = vmatmul.mubr.bf16.gmra.mxu0 %v1690
      %v5248 = vpop.f32.mrf.mxu0
      %v5249 = vadd.f32 0.0, %v5248
      %v5250 = vpop.f32.mrf.mxu0
      %v5251 = vpop.f32.mrf.mxu0
      %v5252 = vadd.f32 0.0, %v5251
      %v5253 = vpop.f32.mrf.mxu0
      %5254 = vmatprep.mubr.bf16.mxu0 0
      %5255 = vmatmul.mubr.bf16.gmra.mxu0 %v1693
      %v5256 = vpop.f32.mrf.mxu0
      %v5257 = vadd.f32 0.0, %v5256
      %v5258 = vpop.f32.mrf.mxu0
      %v5259 = vpop.f32.mrf.mxu0
      %v5260 = vadd.f32 0.0, %v5259
      %v5261 = vpop.f32.mrf.mxu0
      %5262 = vmatprep.mubr.bf16.mxu0 0
      %5263 = vmatmul.mubr.bf16.gmra.mxu0 %v1696
      %v5264 = vpop.f32.mrf.mxu0
      %v5265 = vadd.f32 0.0, %v5264
      %v5266 = vpop.f32.mrf.mxu0
      %v5267 = vpop.f32.mrf.mxu0
      %v5268 = vadd.f32 0.0, %v5267
      %v5269 = vpop.f32.mrf.mxu0
      %5270 = vmatprep.mubr.bf16.mxu0 0
      %5271 = vmatmul.mubr.bf16.gmra.mxu0 %v1699
      %v5272 = vpop.f32.mrf.mxu0
      %v5273 = vadd.f32 0.0, %v5272
      %v5274 = vpop.f32.mrf.mxu0
      %v5275 = vpop.f32.mrf.mxu0
      %v5276 = vadd.f32 0.0, %v5275
      %v5277 = vpop.f32.mrf.mxu0
      %5278 = vmatprep.mubr.bf16.mxu0 0
      %5279 = vmatmul.mubr.bf16.gmra.mxu0 %v1702
      %v5280 = vpop.f32.mrf.mxu0
      %v5281 = vadd.f32 0.0, %v5280
      %v5282 = vpop.f32.mrf.mxu0
      %v5283 = vpop.f32.mrf.mxu0
      %v5284 = vadd.f32 0.0, %v5283
      %v5285 = vpop.f32.mrf.mxu0
      %5286 = vmatprep.mubr.bf16.mxu0 0
      %5287 = vmatmul.mubr.bf16.gmra.mxu0 %v1705
      %v5288 = vpop.f32.mrf.mxu0
      %v5289 = vadd.f32 0.0, %v5288
      %v5290 = vpop.f32.mrf.mxu0
      %v5291 = vpop.f32.mrf.mxu0
      %v5292 = vadd.f32 0.0, %v5291
      %v5293 = vpop.f32.mrf.mxu0
      %5294 = vmatprep.mubr.bf16.mxu0 0
      %5295 = vmatmul.mubr.bf16.gmra.mxu0 %v1708
      %v5296 = vpop.f32.mrf.mxu0
      %v5297 = vadd.f32 0.0, %v5296
      %v5298 = vpop.f32.mrf.mxu0
      %v5299 = vpop.f32.mrf.mxu0
      %v5300 = vadd.f32 0.0, %v5299
      %v5301 = vpop.f32.mrf.mxu0
      %5302 = vmatprep.mubr.bf16.mxu0 0
      %5303 = vmatmul.mubr.bf16.gmra.mxu0 %v1711
      %v5304 = vpop.f32.mrf.mxu0
      %v5305 = vadd.f32 0.0, %v5304
      %v5306 = vpop.f32.mrf.mxu0
      %v5307 = vpop.f32.mrf.mxu0
      %v5308 = vadd.f32 0.0, %v5307
      %v5309 = vpop.f32.mrf.mxu0
      %5310 = vmatprep.mubr.bf16.mxu0 0
      %5311 = vmatmul.mubr.bf16.gmra.mxu0 %v1714
      %v5312 = vpop.f32.mrf.mxu0
      %v5313 = vadd.f32 0.0, %v5312
      %v5314 = vpop.f32.mrf.mxu0
      %v5315 = vpop.f32.mrf.mxu0
      %v5316 = vadd.f32 0.0, %v5315
      %v5317 = vpop.f32.mrf.mxu0
      %5318 = vmatprep.mubr.bf16.mxu0 0
      %5319 = vmatmul.mubr.bf16.gmra.mxu0 %v1717
      %v5320 = vpop.f32.mrf.mxu0
      %v5321 = vadd.f32 0.0, %v5320
      %v5322 = vpop.f32.mrf.mxu0
      %v5323 = vpop.f32.mrf.mxu0
      %v5324 = vadd.f32 0.0, %v5323
      %v5325 = vpop.f32.mrf.mxu0
      %5326 = vmatprep.mubr.bf16.mxu0 0
      %5327 = vmatmul.mubr.bf16.gmra.mxu0 %v1720
      %v5328 = vpop.f32.mrf.mxu0
      %v5329 = vadd.f32 0.0, %v5328
      %v5330 = vpop.f32.mrf.mxu0
      %v5331 = vpop.f32.mrf.mxu0
      %v5332 = vadd.f32 0.0, %v5331
      %v5333 = vpop.f32.mrf.mxu0
      %5334 = vmatprep.mubr.bf16.mxu0 0
      %5335 = vmatmul.mubr.bf16.gmra.mxu0 %v1723
      %v5336 = vpop.f32.mrf.mxu0
      %v5337 = vadd.f32 0.0, %v5336
      %v5338 = vpop.f32.mrf.mxu0
      %v5339 = vpop.f32.mrf.mxu0
      %v5340 = vadd.f32 0.0, %v5339
      %v5341 = vpop.f32.mrf.mxu0
      %5342 = vmatprep.mubr.bf16.mxu0 0
      %5343 = vmatmul.mubr.bf16.gmra.mxu0 %v1726
      %v5344 = vpop.f32.mrf.mxu0
      %v5345 = vadd.f32 0.0, %v5344
      %v5346 = vpop.f32.mrf.mxu0
      %v5347 = vpop.f32.mrf.mxu0
      %v5348 = vadd.f32 0.0, %v5347
      %v5349 = vpop.f32.mrf.mxu0
      %5350 = vmatprep.mubr.bf16.mxu0 0
      %5351 = vmatmul.mubr.bf16.gmra.mxu0 %v1729
      %v5352 = vpop.f32.mrf.mxu0
      %v5353 = vadd.f32 0.0, %v5352
      %v5354 = vpop.f32.mrf.mxu0
      %v5355 = vpop.f32.mrf.mxu0
      %v5356 = vadd.f32 0.0, %v5355
      %v5357 = vpop.f32.mrf.mxu0
      %5358 = vmatprep.mubr.bf16.mxu0 0
      %5359 = vmatmul.mubr.bf16.gmra.mxu0 %v1732
      %v5360 = vpop.f32.mrf.mxu0
      %v5361 = vadd.f32 0.0, %v5360
      %v5362 = vpop.f32.mrf.mxu0
      %v5363 = vpop.f32.mrf.mxu0
      %v5364 = vadd.f32 0.0, %v5363
      %v5365 = vpop.f32.mrf.mxu0
      %5366 = vdwg.mxu0
      %s5367 = scalar_lea.vmem %s6, 32
      %v5368 = vld [vmem:[%s5367] sm:$0xff]
      %v5369 = vld [vmem:[%s5367 + $0x8] sm:$0xff]
      %v5370 = vld [vmem:[%s5367 + $0x10] sm:$0xff]
      %v5371 = vld [vmem:[%s5367 + $0x18] sm:$0xff]
      %v5372 = vpack.c.bf16 %v5369, %v5368
      %v5373 = vpack.c.bf16 %v5371, %v5370
      %5374 = vmatprep.subr.bf16.mxu0 0
      %5375 = vmatpush1.bf16.msra.mxu0 0
      %5376 = vmatprep.subr.bf16.mxu0 0
      %5377 = vmatpush1.bf16.msra.mxu0 0
      %5378 = vmatprep.subr.bf16.mxu0 0
      %5379 = vmatpush1.bf16.msra.mxu0 0
      %5380 = vmatprep.subr.bf16.mxu0 0
      %5381 = vmatpush1.bf16.msra.mxu0 0
      %5382 = vmatprep.subr.bf16.mxu0 0
      %5383 = vmatpush1.bf16.msra.mxu0 0
      %5384 = vmatprep.subr.bf16.mxu0 0
      %5385 = vmatpush1.bf16.msra.mxu0 0
      %5386 = vmatprep.subr.bf16.mxu0 0
      %5387 = vmatpush1.bf16.msra.mxu0 %v5373
      %5388 = vmatprep.subr.bf16.mxu0 0
      %5389 = vmatpush1.bf16.msra.mxu0 %v5372
      %5390 = vmatprep.subr.bf16.mxu0 0
      %5391 = vmatpush2.bf16.msra.mxu0 0
      %5392 = vmatprep.subr.bf16.mxu0 0
      %5393 = vmatpush2.bf16.msra.mxu0 0
      %5394 = vmatprep.subr.bf16.mxu0 0
      %5395 = vmatpush2.bf16.msra.mxu0 0
      %5396 = vmatprep.subr.bf16.mxu0 0
      %5397 = vmatpush2.bf16.msra.mxu0 0
      %5398 = vmatprep.subr.bf16.mxu0 0
      %5399 = vmatpush2.bf16.msra.mxu0 0
      %5400 = vmatprep.subr.bf16.mxu0 0
      %5401 = vmatpush2.bf16.msra.mxu0 0
      %5402 = vmatprep.subr.bf16.mxu0 0
      %5403 = vmatpush2.bf16.msra.mxu0 0
      %5404 = vmatprep.subr.bf16.mxu0 0
      %5405 = vmatpush2.bf16.msra.mxu0 0
      %5406 = vmatprep.mubr.bf16.mxu0 0
      %5407 = vmatmul.mubr.bf16.gmra.mxu0 %v1639
      %v5408 = vpop.f32.mrf.mxu0
      %v5409 = vadd.f32 0.0, %v5408
      %v5410 = vpop.f32.mrf.mxu0
      %v5411 = vpop.f32.mrf.mxu0
      %v5412 = vadd.f32 0.0, %v5411
      %v5413 = vpop.f32.mrf.mxu0
      %5414 = vmatprep.mubr.bf16.mxu0 0
      %5415 = vmatmul.mubr.bf16.gmra.mxu0 %v1642
      %v5416 = vpop.f32.mrf.mxu0
      %v5417 = vadd.f32 0.0, %v5416
      %v5418 = vpop.f32.mrf.mxu0
      %v5419 = vpop.f32.mrf.mxu0
      %v5420 = vadd.f32 0.0, %v5419
      %v5421 = vpop.f32.mrf.mxu0
      %5422 = vmatprep.mubr.bf16.mxu0 0
      %5423 = vmatmul.mubr.bf16.gmra.mxu0 %v1645
      %v5424 = vpop.f32.mrf.mxu0
      %v5425 = vadd.f32 0.0, %v5424
      %v5426 = vpop.f32.mrf.mxu0
      %v5427 = vpop.f32.mrf.mxu0
      %v5428 = vadd.f32 0.0, %v5427
      %v5429 = vpop.f32.mrf.mxu0
      %5430 = vmatprep.mubr.bf16.mxu0 0
      %5431 = vmatmul.mubr.bf16.gmra.mxu0 %v1648
      %v5432 = vpop.f32.mrf.mxu0
      %v5433 = vadd.f32 0.0, %v5432
      %v5434 = vpop.f32.mrf.mxu0
      %v5435 = vpop.f32.mrf.mxu0
      %v5436 = vadd.f32 0.0, %v5435
      %v5437 = vpop.f32.mrf.mxu0
      %5438 = vmatprep.mubr.bf16.mxu0 0
      %5439 = vmatmul.mubr.bf16.gmra.mxu0 %v1687
      %v5440 = vpop.f32.mrf.mxu0
      %v5441 = vadd.f32 0.0, %v5440
      %v5442 = vpop.f32.mrf.mxu0
      %v5443 = vpop.f32.mrf.mxu0
      %v5444 = vadd.f32 0.0, %v5443
      %v5445 = vpop.f32.mrf.mxu0
      %5446 = vmatprep.mubr.bf16.mxu0 0
      %5447 = vmatmul.mubr.bf16.gmra.mxu0 %v1690
      %v5448 = vpop.f32.mrf.mxu0
      %v5449 = vadd.f32 0.0, %v5448
      %v5450 = vpop.f32.mrf.mxu0
      %v5451 = vpop.f32.mrf.mxu0
      %v5452 = vadd.f32 0.0, %v5451
      %v5453 = vpop.f32.mrf.mxu0
      %5454 = vmatprep.mubr.bf16.mxu0 0
      %5455 = vmatmul.mubr.bf16.gmra.mxu0 %v1693
      %v5456 = vpop.f32.mrf.mxu0
      %v5457 = vadd.f32 0.0, %v5456
      %v5458 = vpop.f32.mrf.mxu0
      %v5459 = vpop.f32.mrf.mxu0
      %v5460 = vadd.f32 0.0, %v5459
      %v5461 = vpop.f32.mrf.mxu0
      %5462 = vmatprep.mubr.bf16.mxu0 0
      %5463 = vmatmul.mubr.bf16.gmra.mxu0 %v1696
      %v5464 = vpop.f32.mrf.mxu0
      %v5465 = vadd.f32 0.0, %v5464
      %v5466 = vpop.f32.mrf.mxu0
      %v5467 = vpop.f32.mrf.mxu0
      %v5468 = vadd.f32 0.0, %v5467
      %v5469 = vpop.f32.mrf.mxu0
      %5470 = vmatprep.mubr.bf16.mxu0 0
      %5471 = vmatmul.mubr.bf16.gmra.mxu0 %v1651
      %v5472 = vpop.f32.mrf.mxu0
      %v5473 = vadd.f32 0.0, %v5472
      %v5474 = vpop.f32.mrf.mxu0
      %v5475 = vpop.f32.mrf.mxu0
      %v5476 = vadd.f32 0.0, %v5475
      %v5477 = vpop.f32.mrf.mxu0
      %5478 = vmatprep.mubr.bf16.mxu0 0
      %5479 = vmatmul.mubr.bf16.gmra.mxu0 %v1654
      %v5480 = vpop.f32.mrf.mxu0
      %v5481 = vadd.f32 0.0, %v5480
      %v5482 = vpop.f32.mrf.mxu0
      %v5483 = vpop.f32.mrf.mxu0
      %v5484 = vadd.f32 0.0, %v5483
      %v5485 = vpop.f32.mrf.mxu0
      %5486 = vmatprep.mubr.bf16.mxu0 0
      %5487 = vmatmul.mubr.bf16.gmra.mxu0 %v1657
      %v5488 = vpop.f32.mrf.mxu0
      %v5489 = vadd.f32 0.0, %v5488
      %v5490 = vpop.f32.mrf.mxu0
      %v5491 = vpop.f32.mrf.mxu0
      %v5492 = vadd.f32 0.0, %v5491
      %v5493 = vpop.f32.mrf.mxu0
      %5494 = vmatprep.mubr.bf16.mxu0 0
      %5495 = vmatmul.mubr.bf16.gmra.mxu0 %v1660
      %v5496 = vpop.f32.mrf.mxu0
      %v5497 = vadd.f32 0.0, %v5496
      %v5498 = vpop.f32.mrf.mxu0
      %v5499 = vpop.f32.mrf.mxu0
      %v5500 = vadd.f32 0.0, %v5499
      %v5501 = vpop.f32.mrf.mxu0
      %5502 = vmatprep.mubr.bf16.mxu0 0
      %5503 = vmatmul.mubr.bf16.gmra.mxu0 %v1699
      %v5504 = vpop.f32.mrf.mxu0
      %v5505 = vadd.f32 0.0, %v5504
      %v5506 = vpop.f32.mrf.mxu0
      %v5507 = vpop.f32.mrf.mxu0
      %v5508 = vadd.f32 0.0, %v5507
      %v5509 = vpop.f32.mrf.mxu0
      %5510 = vmatprep.mubr.bf16.mxu0 0
      %5511 = vmatmul.mubr.bf16.gmra.mxu0 %v1702
      %v5512 = vpop.f32.mrf.mxu0
      %v5513 = vadd.f32 0.0, %v5512
      %v5514 = vpop.f32.mrf.mxu0
      %v5515 = vpop.f32.mrf.mxu0
      %v5516 = vadd.f32 0.0, %v5515
      %v5517 = vpop.f32.mrf.mxu0
      %5518 = vmatprep.mubr.bf16.mxu0 0
      %5519 = vmatmul.mubr.bf16.gmra.mxu0 %v1705
      %v5520 = vpop.f32.mrf.mxu0
      %v5521 = vadd.f32 0.0, %v5520
      %v5522 = vpop.f32.mrf.mxu0
      %v5523 = vpop.f32.mrf.mxu0
      %v5524 = vadd.f32 0.0, %v5523
      %v5525 = vpop.f32.mrf.mxu0
      %5526 = vmatprep.mubr.bf16.mxu0 0
      %5527 = vmatmul.mubr.bf16.gmra.mxu0 %v1708
      %v5528 = vpop.f32.mrf.mxu0
      %v5529 = vadd.f32 0.0, %v5528
      %v5530 = vpop.f32.mrf.mxu0
      %v5531 = vpop.f32.mrf.mxu0
      %v5532 = vadd.f32 0.0, %v5531
      %v5533 = vpop.f32.mrf.mxu0
      %5534 = vmatprep.mubr.bf16.mxu0 0
      %5535 = vmatmul.mubr.bf16.gmra.mxu0 %v1663
      %v5536 = vpop.f32.mrf.mxu0
      %v5537 = vadd.f32 0.0, %v5536
      %v5538 = vpop.f32.mrf.mxu0
      %v5539 = vpop.f32.mrf.mxu0
      %v5540 = vadd.f32 0.0, %v5539
      %v5541 = vpop.f32.mrf.mxu0
      %5542 = vmatprep.mubr.bf16.mxu0 0
      %5543 = vmatmul.mubr.bf16.gmra.mxu0 %v1666
      %v5544 = vpop.f32.mrf.mxu0
      %v5545 = vadd.f32 0.0, %v5544
      %v5546 = vpop.f32.mrf.mxu0
      %v5547 = vpop.f32.mrf.mxu0
      %v5548 = vadd.f32 0.0, %v5547
      %v5549 = vpop.f32.mrf.mxu0
      %5550 = vmatprep.mubr.bf16.mxu0 0
      %5551 = vmatmul.mubr.bf16.gmra.mxu0 %v1669
      %v5552 = vpop.f32.mrf.mxu0
      %v5553 = vadd.f32 0.0, %v5552
      %v5554 = vpop.f32.mrf.mxu0
      %v5555 = vpop.f32.mrf.mxu0
      %v5556 = vadd.f32 0.0, %v5555
      %v5557 = vpop.f32.mrf.mxu0
      %5558 = vmatprep.mubr.bf16.mxu0 0
      %5559 = vmatmul.mubr.bf16.gmra.mxu0 %v1672
      %v5560 = vpop.f32.mrf.mxu0
      %v5561 = vadd.f32 0.0, %v5560
      %v5562 = vpop.f32.mrf.mxu0
      %v5563 = vpop.f32.mrf.mxu0
      %v5564 = vadd.f32 0.0, %v5563
      %v5565 = vpop.f32.mrf.mxu0
      %5566 = vmatprep.mubr.bf16.mxu0 0
      %5567 = vmatmul.mubr.bf16.gmra.mxu0 %v1711
      %v5568 = vpop.f32.mrf.mxu0
      %v5569 = vadd.f32 0.0, %v5568
      %v5570 = vpop.f32.mrf.mxu0
      %v5571 = vpop.f32.mrf.mxu0
      %v5572 = vadd.f32 0.0, %v5571
      %v5573 = vpop.f32.mrf.mxu0
      %5574 = vmatprep.mubr.bf16.mxu0 0
      %5575 = vmatmul.mubr.bf16.gmra.mxu0 %v1714
      %v5576 = vpop.f32.mrf.mxu0
      %v5577 = vadd.f32 0.0, %v5576
      %v5578 = vpop.f32.mrf.mxu0
      %v5579 = vpop.f32.mrf.mxu0
      %v5580 = vadd.f32 0.0, %v5579
      %v5581 = vpop.f32.mrf.mxu0
      %5582 = vmatprep.mubr.bf16.mxu0 0
      %5583 = vmatmul.mubr.bf16.gmra.mxu0 %v1717
      %v5584 = vpop.f32.mrf.mxu0
      %v5585 = vadd.f32 0.0, %v5584
      %v5586 = vpop.f32.mrf.mxu0
      %v5587 = vpop.f32.mrf.mxu0
      %v5588 = vadd.f32 0.0, %v5587
      %v5589 = vpop.f32.mrf.mxu0
      %5590 = vmatprep.mubr.bf16.mxu0 0
      %5591 = vmatmul.mubr.bf16.gmra.mxu0 %v1720
      %v5592 = vpop.f32.mrf.mxu0
      %v5593 = vadd.f32 0.0, %v5592
      %v5594 = vpop.f32.mrf.mxu0
      %v5595 = vpop.f32.mrf.mxu0
      %v5596 = vadd.f32 0.0, %v5595
      %v5597 = vpop.f32.mrf.mxu0
      %5598 = vmatprep.mubr.bf16.mxu0 0
      %5599 = vmatmul.mubr.bf16.gmra.mxu0 %v1675
      %v5600 = vpop.f32.mrf.mxu0
      %v5601 = vadd.f32 0.0, %v5600
      %v5602 = vpop.f32.mrf.mxu0
      %v5603 = vpop.f32.mrf.mxu0
      %v5604 = vadd.f32 0.0, %v5603
      %v5605 = vpop.f32.mrf.mxu0
      %5606 = vmatprep.mubr.bf16.mxu0 0
      %5607 = vmatmul.mubr.bf16.gmra.mxu0 %v1678
      %v5608 = vpop.f32.mrf.mxu0
      %v5609 = vadd.f32 0.0, %v5608
      %v5610 = vpop.f32.mrf.mxu0
      %v5611 = vpop.f32.mrf.mxu0
      %v5612 = vadd.f32 0.0, %v5611
      %v5613 = vpop.f32.mrf.mxu0
      %5614 = vmatprep.mubr.bf16.mxu0 0
      %5615 = vmatmul.mubr.bf16.gmra.mxu0 %v1681
      %v5616 = vpop.f32.mrf.mxu0
      %v5617 = vadd.f32 0.0, %v5616
      %v5618 = vpop.f32.mrf.mxu0
      %v5619 = vpop.f32.mrf.mxu0
      %v5620 = vadd.f32 0.0, %v5619
      %v5621 = vpop.f32.mrf.mxu0
      %5622 = vmatprep.mubr.bf16.mxu0 0
      %5623 = vmatmul.mubr.bf16.gmra.mxu0 %v1684
      %v5624 = vpop.f32.mrf.mxu0
      %v5625 = vadd.f32 0.0, %v5624
      %v5626 = vpop.f32.mrf.mxu0
      %v5627 = vpop.f32.mrf.mxu0
      %v5628 = vadd.f32 0.0, %v5627
      %v5629 = vpop.f32.mrf.mxu0
      %5630 = vmatprep.mubr.bf16.mxu0 0
      %5631 = vmatmul.mubr.bf16.gmra.mxu0 %v1723
      %v5632 = vpop.f32.mrf.mxu0
      %v5633 = vadd.f32 0.0, %v5632
      %v5634 = vpop.f32.mrf.mxu0
      %v5635 = vpop.f32.mrf.mxu0
      %v5636 = vadd.f32 0.0, %v5635
      %v5637 = vpop.f32.mrf.mxu0
      %5638 = vmatprep.mubr.bf16.mxu0 0
      %5639 = vmatmul.mubr.bf16.gmra.mxu0 %v1726
      %v5640 = vpop.f32.mrf.mxu0
      %v5641 = vadd.f32 0.0, %v5640
      %v5642 = vpop.f32.mrf.mxu0
      %v5643 = vpop.f32.mrf.mxu0
      %v5644 = vadd.f32 0.0, %v5643
      %v5645 = vpop.f32.mrf.mxu0
      %5646 = vmatprep.mubr.bf16.mxu0 0
      %5647 = vmatmul.mubr.bf16.gmra.mxu0 %v1729
      %v5648 = vpop.f32.mrf.mxu0
      %v5649 = vadd.f32 0.0, %v5648
      %v5650 = vpop.f32.mrf.mxu0
      %v5651 = vpop.f32.mrf.mxu0
      %v5652 = vadd.f32 0.0, %v5651
      %v5653 = vpop.f32.mrf.mxu0
      %5654 = vmatprep.mubr.bf16.mxu0 0
      %5655 = vmatmul.mubr.bf16.gmra.mxu0 %v1732
      %v5656 = vpop.f32.mrf.mxu0
      %v5657 = vadd.f32 0.0, %v5656
      %v5658 = vpop.f32.mrf.mxu0
      %v5659 = vpop.f32.mrf.mxu0
      %v5660 = vadd.f32 0.0, %v5659
      %v5661 = vpop.f32.mrf.mxu0
      %5662 = vdwg.mxu0
      %v5663 = vpack.c.bf16 %v4820, %v4817
      %v5664 = vpack.c.bf16 %v4828, %v4825
      %v5665 = vpack.c.bf16 %v4836, %v4833
      %v5666 = vpack.c.bf16 %v4844, %v4841
      %v5667 = vpack.c.bf16 %v4852, %v4849
      %v5668 = vpack.c.bf16 %v4860, %v4857
      %v5669 = vpack.c.bf16 %v4868, %v4865
      %v5670 = vpack.c.bf16 %v4876, %v4873
      %v5671 = vpack.c.bf16 %v4884, %v4881
      %v5672 = vpack.c.bf16 %v4892, %v4889
      %v5673 = vpack.c.bf16 %v4900, %v4897
      %v5674 = vpack.c.bf16 %v4908, %v4905
      %v5675 = vpack.c.bf16 %v4916, %v4913
      %v5676 = vpack.c.bf16 %v4924, %v4921
      %v5677 = vpack.c.bf16 %v4932, %v4929
      %v5678 = vpack.c.bf16 %v4940, %v4937
      %v5679 = vpack.c.bf16 %v4948, %v4945
      %v5680 = vpack.c.bf16 %v4956, %v4953
      %v5681 = vpack.c.bf16 %v4964, %v4961
      %v5682 = vpack.c.bf16 %v4972, %v4969
      %v5683 = vpack.c.bf16 %v4980, %v4977
      %v5684 = vpack.c.bf16 %v4988, %v4985
      %v5685 = vpack.c.bf16 %v4996, %v4993
      %v5686 = vpack.c.bf16 %v5004, %v5001
      %v5687 = vpack.c.bf16 %v5012, %v5009
      %v5688 = vpack.c.bf16 %v5020, %v5017
      %v5689 = vpack.c.bf16 %v5028, %v5025
      %v5690 = vpack.c.bf16 %v5036, %v5033
      %v5691 = vpack.c.bf16 %v5044, %v5041
      %v5692 = vpack.c.bf16 %v5052, %v5049
      %v5693 = vpack.c.bf16 %v5060, %v5057
      %v5694 = vpack.c.bf16 %v5068, %v5065
      %v5695 = vpack.c.bf16 %v5116, %v5113
      %v5696 = vpack.c.bf16 %v5124, %v5121
      %v5697 = vpack.c.bf16 %v5132, %v5129
      %v5698 = vpack.c.bf16 %v5140, %v5137
      %v5699 = vpack.c.bf16 %v5148, %v5145
      %v5700 = vpack.c.bf16 %v5156, %v5153
      %v5701 = vpack.c.bf16 %v5164, %v5161
      %v5702 = vpack.c.bf16 %v5172, %v5169
      %v5703 = vpack.c.bf16 %v5180, %v5177
      %v5704 = vpack.c.bf16 %v5188, %v5185
      %v5705 = vpack.c.bf16 %v5196, %v5193
      %v5706 = vpack.c.bf16 %v5204, %v5201
      %v5707 = vpack.c.bf16 %v5212, %v5209
      %v5708 = vpack.c.bf16 %v5220, %v5217
      %v5709 = vpack.c.bf16 %v5228, %v5225
      %v5710 = vpack.c.bf16 %v5236, %v5233
      %v5711 = vpack.c.bf16 %v5244, %v5241
      %v5712 = vpack.c.bf16 %v5252, %v5249
      %v5713 = vpack.c.bf16 %v5260, %v5257
      %v5714 = vpack.c.bf16 %v5268, %v5265
      %v5715 = vpack.c.bf16 %v5276, %v5273
      %v5716 = vpack.c.bf16 %v5284, %v5281
      %v5717 = vpack.c.bf16 %v5292, %v5289
      %v5718 = vpack.c.bf16 %v5300, %v5297
      %v5719 = vpack.c.bf16 %v5308, %v5305
      %v5720 = vpack.c.bf16 %v5316, %v5313
      %v5721 = vpack.c.bf16 %v5324, %v5321
      %v5722 = vpack.c.bf16 %v5332, %v5329
      %v5723 = vpack.c.bf16 %v5340, %v5337
      %v5724 = vpack.c.bf16 %v5348, %v5345
      %v5725 = vpack.c.bf16 %v5356, %v5353
      %v5726 = vpack.c.bf16 %v5364, %v5361
      %v5727 = vpack.c.bf16 %v5412, %v5409
      %v5728 = vpack.c.bf16 %v5420, %v5417
      %v5729 = vpack.c.bf16 %v5428, %v5425
      %v5730 = vpack.c.bf16 %v5436, %v5433
      %v5731 = vpack.c.bf16 %v5444, %v5441
      %v5732 = vpack.c.bf16 %v5452, %v5449
      %v5733 = vpack.c.bf16 %v5460, %v5457
      %v5734 = vpack.c.bf16 %v5468, %v5465
      %v5735 = vpack.c.bf16 %v5476, %v5473
      %v5736 = vpack.c.bf16 %v5484, %v5481
      %v5737 = vpack.c.bf16 %v5492, %v5489
      %v5738 = vpack.c.bf16 %v5500, %v5497
      %v5739 = vpack.c.bf16 %v5508, %v5505
      %v5740 = vpack.c.bf16 %v5516, %v5513
      %v5741 = vpack.c.bf16 %v5524, %v5521
      %v5742 = vpack.c.bf16 %v5532, %v5529
      %v5743 = vpack.c.bf16 %v5540, %v5537
      %v5744 = vpack.c.bf16 %v5548, %v5545
      %v5745 = vpack.c.bf16 %v5556, %v5553
      %v5746 = vpack.c.bf16 %v5564, %v5561
      %v5747 = vpack.c.bf16 %v5572, %v5569
      %v5748 = vpack.c.bf16 %v5580, %v5577
      %v5749 = vpack.c.bf16 %v5588, %v5585
      %v5750 = vpack.c.bf16 %v5596, %v5593
      %v5751 = vpack.c.bf16 %v5604, %v5601
      %v5752 = vpack.c.bf16 %v5612, %v5609
      %v5753 = vpack.c.bf16 %v5620, %v5617
      %v5754 = vpack.c.bf16 %v5628, %v5625
      %v5755 = vpack.c.bf16 %v5636, %v5633
      %v5756 = vpack.c.bf16 %v5644, %v5641
      %v5757 = vpack.c.bf16 %v5652, %v5649
      %v5758 = vpack.c.bf16 %v5660, %v5657
      %v5760 = vsel %vm2709, %v5663, 0
      %v5763 = vsel %vm2709, %v5664, 0
      %v5766 = vsel %vm2709, %v5665, 0
      %v5769 = vsel %vm2709, %v5666, 0
      %v5772 = vsel %vm2709, %v5695, 0
      %v5775 = vsel %vm2709, %v5696, 0
      %v5778 = vsel %vm2709, %v5697, 0
      %v5781 = vsel %vm2709, %v5698, 0
      %5783 = vmatprep.subr.bf16.mxu0 0
      %5784 = vmatpush1.bf16.xpose.msra.mxu0 0
      %5785 = vmatprep.subr.bf16.mxu0 0
      %5786 = vmatpush1.bf16.xpose.msra.mxu0 0
      %5787 = vmatprep.subr.bf16.mxu0 0
      %5788 = vmatpush1.bf16.xpose.msra.mxu0 0
      %5789 = vmatprep.subr.bf16.mxu0 0
      %5790 = vmatpush1.bf16.xpose.msra.mxu0 0
      %5791 = vmatprep.subr.bf16.mxu0 0
      %5792 = vmatpush1.bf16.xpose.msra.mxu0 %v5781
      %5793 = vmatprep.subr.bf16.mxu0 0
      %5794 = vmatpush1.bf16.xpose.msra.mxu0 %v5778
      %5795 = vmatprep.subr.bf16.mxu0 0
      %5796 = vmatpush1.bf16.xpose.msra.mxu0 %v5775
      %5797 = vmatprep.subr.bf16.mxu0 0
      %5798 = vmatpush1.bf16.xpose.msra.mxu0 %v5772
      %5799 = vmatprep.subr.bf16.mxu0 0
      %5800 = vmatpush2.bf16.xpose.msra.mxu0 0
      %5801 = vmatprep.subr.bf16.mxu0 0
      %5802 = vmatpush2.bf16.xpose.msra.mxu0 0
      %5803 = vmatprep.subr.bf16.mxu0 0
      %5804 = vmatpush2.bf16.xpose.msra.mxu0 0
      %5805 = vmatprep.subr.bf16.mxu0 0
      %5806 = vmatpush2.bf16.xpose.msra.mxu0 0
      %5807 = vmatprep.subr.bf16.mxu0 0
      %5808 = vmatpush2.bf16.xpose.msra.mxu0 0
      %5809 = vmatprep.subr.bf16.mxu0 0
      %5810 = vmatpush2.bf16.xpose.msra.mxu0 0
      %5811 = vmatprep.subr.bf16.mxu0 0
      %5812 = vmatpush2.bf16.xpose.msra.mxu0 0
      %5813 = vmatprep.subr.bf16.mxu0 0
      %5814 = vmatpush2.bf16.xpose.msra.mxu0 0
      %5815 = vmatprep.mubr.bf16.mxu0 0
      %5816 = vmatmul.mubr.bf16.gmra.mxu0 %v5760
      %v5817 = vpop.f32.mrf.mxu0
      %v5818 = vadd.f32 %v1568, %v5817
      %v5819 = vpop.f32.mrf.mxu0
      %v5820 = vpop.f32.mrf.mxu0
      %v5821 = vadd.f32 %v1569, %v5820
      %v5822 = vpop.f32.mrf.mxu0
      %5823 = vmatprep.mubr.bf16.mxu0 0
      %5824 = vmatmul.mubr.bf16.gmra.mxu0 %v5763
      %v5825 = vpop.f32.mrf.mxu0
      %v5826 = vadd.f32 %v1570, %v5825
      %v5827 = vpop.f32.mrf.mxu0
      %v5828 = vpop.f32.mrf.mxu0
      %v5829 = vadd.f32 %v1571, %v5828
      %v5830 = vpop.f32.mrf.mxu0
      %5831 = vmatprep.mubr.bf16.mxu0 0
      %5832 = vmatmul.mubr.bf16.gmra.mxu0 %v5766
      %v5833 = vpop.f32.mrf.mxu0
      %v5834 = vadd.f32 %v1572, %v5833
      %v5835 = vpop.f32.mrf.mxu0
      %v5836 = vpop.f32.mrf.mxu0
      %v5837 = vadd.f32 %v1573, %v5836
      %v5838 = vpop.f32.mrf.mxu0
      %5839 = vmatprep.mubr.bf16.mxu0 0
      %5840 = vmatmul.mubr.bf16.gmra.mxu0 %v5769
      %v5841 = vpop.f32.mrf.mxu0
      %v5842 = vadd.f32 %v1574, %v5841
      %v5843 = vpop.f32.mrf.mxu0
      %v5844 = vpop.f32.mrf.mxu0
      %v5845 = vadd.f32 %v1575, %v5844
      %v5846 = vpop.f32.mrf.mxu0
      %5847 = vdwg.mxu0
      %v5849 = vsel %vm2709, %v5667, 0
      %v5852 = vsel %vm2709, %v5668, 0
      %v5855 = vsel %vm2709, %v5669, 0
      %v5858 = vsel %vm2709, %v5670, 0
      %v5861 = vsel %vm2709, %v5699, 0
      %v5864 = vsel %vm2709, %v5700, 0
      %v5867 = vsel %vm2709, %v5701, 0
      %v5870 = vsel %vm2709, %v5702, 0
      %5872 = vmatprep.subr.bf16.mxu0 0
      %5873 = vmatpush1.bf16.xpose.msra.mxu0 0
      %5874 = vmatprep.subr.bf16.mxu0 0
      %5875 = vmatpush1.bf16.xpose.msra.mxu0 0
      %5876 = vmatprep.subr.bf16.mxu0 0
      %5877 = vmatpush1.bf16.xpose.msra.mxu0 0
      %5878 = vmatprep.subr.bf16.mxu0 0
      %5879 = vmatpush1.bf16.xpose.msra.mxu0 0
      %5880 = vmatprep.subr.bf16.mxu0 0
      %5881 = vmatpush1.bf16.xpose.msra.mxu0 %v5870
      %5882 = vmatprep.subr.bf16.mxu0 0
      %5883 = vmatpush1.bf16.xpose.msra.mxu0 %v5867
      %5884 = vmatprep.subr.bf16.mxu0 0
      %5885 = vmatpush1.bf16.xpose.msra.mxu0 %v5864
      %5886 = vmatprep.subr.bf16.mxu0 0
      %5887 = vmatpush1.bf16.xpose.msra.mxu0 %v5861
      %5888 = vmatprep.subr.bf16.mxu0 0
      %5889 = vmatpush2.bf16.xpose.msra.mxu0 0
      %5890 = vmatprep.subr.bf16.mxu0 0
      %5891 = vmatpush2.bf16.xpose.msra.mxu0 0
      %5892 = vmatprep.subr.bf16.mxu0 0
      %5893 = vmatpush2.bf16.xpose.msra.mxu0 0
      %5894 = vmatprep.subr.bf16.mxu0 0
      %5895 = vmatpush2.bf16.xpose.msra.mxu0 0
      %5896 = vmatprep.subr.bf16.mxu0 0
      %5897 = vmatpush2.bf16.xpose.msra.mxu0 0
      %5898 = vmatprep.subr.bf16.mxu0 0
      %5899 = vmatpush2.bf16.xpose.msra.mxu0 0
      %5900 = vmatprep.subr.bf16.mxu0 0
      %5901 = vmatpush2.bf16.xpose.msra.mxu0 0
      %5902 = vmatprep.subr.bf16.mxu0 0
      %5903 = vmatpush2.bf16.xpose.msra.mxu0 0
      %5904 = vmatprep.mubr.bf16.mxu0 0
      %5905 = vmatmul.mubr.bf16.gmra.mxu0 %v5849
      %v5906 = vpop.f32.mrf.mxu0
      %v5907 = vadd.f32 %v1576, %v5906
      %v5908 = vpop.f32.mrf.mxu0
      %v5909 = vpop.f32.mrf.mxu0
      %v5910 = vadd.f32 %v1577, %v5909
      %v5911 = vpop.f32.mrf.mxu0
      %5912 = vmatprep.mubr.bf16.mxu0 0
      %5913 = vmatmul.mubr.bf16.gmra.mxu0 %v5852
      %v5914 = vpop.f32.mrf.mxu0
      %v5915 = vadd.f32 %v1578, %v5914
      %v5916 = vpop.f32.mrf.mxu0
      %v5917 = vpop.f32.mrf.mxu0
      %v5918 = vadd.f32 %v1579, %v5917
      %v5919 = vpop.f32.mrf.mxu0
      %5920 = vmatprep.mubr.bf16.mxu0 0
      %5921 = vmatmul.mubr.bf16.gmra.mxu0 %v5855
      %v5922 = vpop.f32.mrf.mxu0
      %v5923 = vadd.f32 %v1580, %v5922
      %v5924 = vpop.f32.mrf.mxu0
      %v5925 = vpop.f32.mrf.mxu0
      %v5926 = vadd.f32 %v1581, %v5925
      %v5927 = vpop.f32.mrf.mxu0
      %5928 = vmatprep.mubr.bf16.mxu0 0
      %5929 = vmatmul.mubr.bf16.gmra.mxu0 %v5858
      %v5930 = vpop.f32.mrf.mxu0
      %v5931 = vadd.f32 %v1582, %v5930
      %v5932 = vpop.f32.mrf.mxu0
      %v5933 = vpop.f32.mrf.mxu0
      %v5934 = vadd.f32 %v1583, %v5933
      %v5935 = vpop.f32.mrf.mxu0
      %5936 = vdwg.mxu0
      %v5938 = vsel %vm2709, %v5671, 0
      %v5941 = vsel %vm2709, %v5672, 0
      %v5944 = vsel %vm2709, %v5673, 0
      %v5947 = vsel %vm2709, %v5674, 0
      %v5950 = vsel %vm2709, %v5703, 0
      %v5953 = vsel %vm2709, %v5704, 0
      %v5956 = vsel %vm2709, %v5705, 0
      %v5959 = vsel %vm2709, %v5706, 0
      %5961 = vmatprep.subr.bf16.mxu0 0
      %5962 = vmatpush1.bf16.xpose.msra.mxu0 0
      %5963 = vmatprep.subr.bf16.mxu0 0
      %5964 = vmatpush1.bf16.xpose.msra.mxu0 0
      %5965 = vmatprep.subr.bf16.mxu0 0
      %5966 = vmatpush1.bf16.xpose.msra.mxu0 0
      %5967 = vmatprep.subr.bf16.mxu0 0
      %5968 = vmatpush1.bf16.xpose.msra.mxu0 0
      %5969 = vmatprep.subr.bf16.mxu0 0
      %5970 = vmatpush1.bf16.xpose.msra.mxu0 %v5959
      %5971 = vmatprep.subr.bf16.mxu0 0
      %5972 = vmatpush1.bf16.xpose.msra.mxu0 %v5956
      %5973 = vmatprep.subr.bf16.mxu0 0
      %5974 = vmatpush1.bf16.xpose.msra.mxu0 %v5953
      %5975 = vmatprep.subr.bf16.mxu0 0
      %5976 = vmatpush1.bf16.xpose.msra.mxu0 %v5950
      %5977 = vmatprep.subr.bf16.mxu0 0
      %5978 = vmatpush2.bf16.xpose.msra.mxu0 0
      %5979 = vmatprep.subr.bf16.mxu0 0
      %5980 = vmatpush2.bf16.xpose.msra.mxu0 0
      %5981 = vmatprep.subr.bf16.mxu0 0
      %5982 = vmatpush2.bf16.xpose.msra.mxu0 0
      %5983 = vmatprep.subr.bf16.mxu0 0
      %5984 = vmatpush2.bf16.xpose.msra.mxu0 0
      %5985 = vmatprep.subr.bf16.mxu0 0
      %5986 = vmatpush2.bf16.xpose.msra.mxu0 0
      %5987 = vmatprep.subr.bf16.mxu0 0
      %5988 = vmatpush2.bf16.xpose.msra.mxu0 0
      %5989 = vmatprep.subr.bf16.mxu0 0
      %5990 = vmatpush2.bf16.xpose.msra.mxu0 0
      %5991 = vmatprep.subr.bf16.mxu0 0
      %5992 = vmatpush2.bf16.xpose.msra.mxu0 0
      %5993 = vmatprep.mubr.bf16.mxu0 0
      %5994 = vmatmul.mubr.bf16.gmra.mxu0 %v5938
      %v5995 = vpop.f32.mrf.mxu0
      %v5996 = vadd.f32 %v1584, %v5995
      %v5997 = vpop.f32.mrf.mxu0
      %v5998 = vpop.f32.mrf.mxu0
      %v5999 = vadd.f32 %v1585, %v5998
      %v6000 = vpop.f32.mrf.mxu0
      %6001 = vmatprep.mubr.bf16.mxu0 0
      %6002 = vmatmul.mubr.bf16.gmra.mxu0 %v5941
      %v6003 = vpop.f32.mrf.mxu0
      %v6004 = vadd.f32 %v1586, %v6003
      %v6005 = vpop.f32.mrf.mxu0
      %v6006 = vpop.f32.mrf.mxu0
      %v6007 = vadd.f32 %v1587, %v6006
      %v6008 = vpop.f32.mrf.mxu0
      %6009 = vmatprep.mubr.bf16.mxu0 0
      %6010 = vmatmul.mubr.bf16.gmra.mxu0 %v5944
      %v6011 = vpop.f32.mrf.mxu0
      %v6012 = vadd.f32 %v1588, %v6011
      %v6013 = vpop.f32.mrf.mxu0
      %v6014 = vpop.f32.mrf.mxu0
      %v6015 = vadd.f32 %v1589, %v6014
      %v6016 = vpop.f32.mrf.mxu0
      %6017 = vmatprep.mubr.bf16.mxu0 0
      %6018 = vmatmul.mubr.bf16.gmra.mxu0 %v5947
      %v6019 = vpop.f32.mrf.mxu0
      %v6020 = vadd.f32 %v1590, %v6019
      %v6021 = vpop.f32.mrf.mxu0
      %v6022 = vpop.f32.mrf.mxu0
      %v6023 = vadd.f32 %v1591, %v6022
      %v6024 = vpop.f32.mrf.mxu0
      %6025 = vdwg.mxu0
      %v6027 = vsel %vm2709, %v5675, 0
      %v6030 = vsel %vm2709, %v5676, 0
      %v6033 = vsel %vm2709, %v5677, 0
      %v6036 = vsel %vm2709, %v5678, 0
      %v6039 = vsel %vm2709, %v5707, 0
      %v6042 = vsel %vm2709, %v5708, 0
      %v6045 = vsel %vm2709, %v5709, 0
      %v6048 = vsel %vm2709, %v5710, 0
      %6050 = vmatprep.subr.bf16.mxu0 0
      %6051 = vmatpush1.bf16.xpose.msra.mxu0 0
      %6052 = vmatprep.subr.bf16.mxu0 0
      %6053 = vmatpush1.bf16.xpose.msra.mxu0 0
      %6054 = vmatprep.subr.bf16.mxu0 0
      %6055 = vmatpush1.bf16.xpose.msra.mxu0 0
      %6056 = vmatprep.subr.bf16.mxu0 0
      %6057 = vmatpush1.bf16.xpose.msra.mxu0 0
      %6058 = vmatprep.subr.bf16.mxu0 0
      %6059 = vmatpush1.bf16.xpose.msra.mxu0 %v6048
      %6060 = vmatprep.subr.bf16.mxu0 0
      %6061 = vmatpush1.bf16.xpose.msra.mxu0 %v6045
      %6062 = vmatprep.subr.bf16.mxu0 0
      %6063 = vmatpush1.bf16.xpose.msra.mxu0 %v6042
      %6064 = vmatprep.subr.bf16.mxu0 0
      %6065 = vmatpush1.bf16.xpose.msra.mxu0 %v6039
      %6066 = vmatprep.subr.bf16.mxu0 0
      %6067 = vmatpush2.bf16.xpose.msra.mxu0 0
      %6068 = vmatprep.subr.bf16.mxu0 0
      %6069 = vmatpush2.bf16.xpose.msra.mxu0 0
      %6070 = vmatprep.subr.bf16.mxu0 0
      %6071 = vmatpush2.bf16.xpose.msra.mxu0 0
      %6072 = vmatprep.subr.bf16.mxu0 0
      %6073 = vmatpush2.bf16.xpose.msra.mxu0 0
      %6074 = vmatprep.subr.bf16.mxu0 0
      %6075 = vmatpush2.bf16.xpose.msra.mxu0 0
      %6076 = vmatprep.subr.bf16.mxu0 0
      %6077 = vmatpush2.bf16.xpose.msra.mxu0 0
      %6078 = vmatprep.subr.bf16.mxu0 0
      %6079 = vmatpush2.bf16.xpose.msra.mxu0 0
      %6080 = vmatprep.subr.bf16.mxu0 0
      %6081 = vmatpush2.bf16.xpose.msra.mxu0 0
      %6082 = vmatprep.mubr.bf16.mxu0 0
      %6083 = vmatmul.mubr.bf16.gmra.mxu0 %v6027
      %v6084 = vpop.f32.mrf.mxu0
      %v6085 = vadd.f32 %v1592, %v6084
      %v6086 = vpop.f32.mrf.mxu0
      %v6087 = vpop.f32.mrf.mxu0
      %v6088 = vadd.f32 %v1593, %v6087
      %v6089 = vpop.f32.mrf.mxu0
      %6090 = vmatprep.mubr.bf16.mxu0 0
      %6091 = vmatmul.mubr.bf16.gmra.mxu0 %v6030
      %v6092 = vpop.f32.mrf.mxu0
      %v6093 = vadd.f32 %v1594, %v6092
      %v6094 = vpop.f32.mrf.mxu0
      %v6095 = vpop.f32.mrf.mxu0
      %v6096 = vadd.f32 %v1595, %v6095
      %v6097 = vpop.f32.mrf.mxu0
      %6098 = vmatprep.mubr.bf16.mxu0 0
      %6099 = vmatmul.mubr.bf16.gmra.mxu0 %v6033
      %v6100 = vpop.f32.mrf.mxu0
      %v6101 = vadd.f32 %v1596, %v6100
      %v6102 = vpop.f32.mrf.mxu0
      %v6103 = vpop.f32.mrf.mxu0
      %v6104 = vadd.f32 %v1597, %v6103
      %v6105 = vpop.f32.mrf.mxu0
      %6106 = vmatprep.mubr.bf16.mxu0 0
      %6107 = vmatmul.mubr.bf16.gmra.mxu0 %v6036
      %v6108 = vpop.f32.mrf.mxu0
      %v6109 = vadd.f32 %v1598, %v6108
      %v6110 = vpop.f32.mrf.mxu0
      %v6111 = vpop.f32.mrf.mxu0
      %v6112 = vadd.f32 %v1599, %v6111
      %v6113 = vpop.f32.mrf.mxu0
      %6114 = vdwg.mxu0
      %v6116 = vsel %vm2709, %v5679, 0
      %v6119 = vsel %vm2709, %v5680, 0
      %v6122 = vsel %vm2709, %v5681, 0
      %v6125 = vsel %vm2709, %v5682, 0
      %v6128 = vsel %vm2709, %v5711, 0
      %v6131 = vsel %vm2709, %v5712, 0
      %v6134 = vsel %vm2709, %v5713, 0
      %v6137 = vsel %vm2709, %v5714, 0
      %6139 = vmatprep.subr.bf16.mxu0 0
      %6140 = vmatpush1.bf16.xpose.msra.mxu0 0
      %6141 = vmatprep.subr.bf16.mxu0 0
      %6142 = vmatpush1.bf16.xpose.msra.mxu0 0
      %6143 = vmatprep.subr.bf16.mxu0 0
      %6144 = vmatpush1.bf16.xpose.msra.mxu0 0
      %6145 = vmatprep.subr.bf16.mxu0 0
      %6146 = vmatpush1.bf16.xpose.msra.mxu0 0
      %6147 = vmatprep.subr.bf16.mxu0 0
      %6148 = vmatpush1.bf16.xpose.msra.mxu0 %v6137
      %6149 = vmatprep.subr.bf16.mxu0 0
      %6150 = vmatpush1.bf16.xpose.msra.mxu0 %v6134
      %6151 = vmatprep.subr.bf16.mxu0 0
      %6152 = vmatpush1.bf16.xpose.msra.mxu0 %v6131
      %6153 = vmatprep.subr.bf16.mxu0 0
      %6154 = vmatpush1.bf16.xpose.msra.mxu0 %v6128
      %6155 = vmatprep.subr.bf16.mxu0 0
      %6156 = vmatpush2.bf16.xpose.msra.mxu0 0
      %6157 = vmatprep.subr.bf16.mxu0 0
      %6158 = vmatpush2.bf16.xpose.msra.mxu0 0
      %6159 = vmatprep.subr.bf16.mxu0 0
      %6160 = vmatpush2.bf16.xpose.msra.mxu0 0
      %6161 = vmatprep.subr.bf16.mxu0 0
      %6162 = vmatpush2.bf16.xpose.msra.mxu0 0
      %6163 = vmatprep.subr.bf16.mxu0 0
      %6164 = vmatpush2.bf16.xpose.msra.mxu0 0
      %6165 = vmatprep.subr.bf16.mxu0 0
      %6166 = vmatpush2.bf16.xpose.msra.mxu0 0
      %6167 = vmatprep.subr.bf16.mxu0 0
      %6168 = vmatpush2.bf16.xpose.msra.mxu0 0
      %6169 = vmatprep.subr.bf16.mxu0 0
      %6170 = vmatpush2.bf16.xpose.msra.mxu0 0
      %6171 = vmatprep.mubr.bf16.mxu0 0
      %6172 = vmatmul.mubr.bf16.gmra.mxu0 %v6116
      %v6173 = vpop.f32.mrf.mxu0
      %v6174 = vadd.f32 %v1600, %v6173
      %v6175 = vpop.f32.mrf.mxu0
      %v6176 = vpop.f32.mrf.mxu0
      %v6177 = vadd.f32 %v1601, %v6176
      %v6178 = vpop.f32.mrf.mxu0
      %6179 = vmatprep.mubr.bf16.mxu0 0
      %6180 = vmatmul.mubr.bf16.gmra.mxu0 %v6119
      %v6181 = vpop.f32.mrf.mxu0
      %v6182 = vadd.f32 %v1602, %v6181
      %v6183 = vpop.f32.mrf.mxu0
      %v6184 = vpop.f32.mrf.mxu0
      %v6185 = vadd.f32 %v1603, %v6184
      %v6186 = vpop.f32.mrf.mxu0
      %6187 = vmatprep.mubr.bf16.mxu0 0
      %6188 = vmatmul.mubr.bf16.gmra.mxu0 %v6122
      %v6189 = vpop.f32.mrf.mxu0
      %v6190 = vadd.f32 %v1604, %v6189
      %v6191 = vpop.f32.mrf.mxu0
      %v6192 = vpop.f32.mrf.mxu0
      %v6193 = vadd.f32 %v1605, %v6192
      %v6194 = vpop.f32.mrf.mxu0
      %6195 = vmatprep.mubr.bf16.mxu0 0
      %6196 = vmatmul.mubr.bf16.gmra.mxu0 %v6125
      %v6197 = vpop.f32.mrf.mxu0
      %v6198 = vadd.f32 %v1606, %v6197
      %v6199 = vpop.f32.mrf.mxu0
      %v6200 = vpop.f32.mrf.mxu0
      %v6201 = vadd.f32 %v1607, %v6200
      %v6202 = vpop.f32.mrf.mxu0
      %6203 = vdwg.mxu0
      %v6205 = vsel %vm2709, %v5683, 0
      %v6208 = vsel %vm2709, %v5684, 0
      %v6211 = vsel %vm2709, %v5685, 0
      %v6214 = vsel %vm2709, %v5686, 0
      %v6217 = vsel %vm2709, %v5715, 0
      %v6220 = vsel %vm2709, %v5716, 0
      %v6223 = vsel %vm2709, %v5717, 0
      %v6226 = vsel %vm2709, %v5718, 0
      %6228 = vmatprep.subr.bf16.mxu0 0
      %6229 = vmatpush1.bf16.xpose.msra.mxu0 0
      %6230 = vmatprep.subr.bf16.mxu0 0
      %6231 = vmatpush1.bf16.xpose.msra.mxu0 0
      %6232 = vmatprep.subr.bf16.mxu0 0
      %6233 = vmatpush1.bf16.xpose.msra.mxu0 0
      %6234 = vmatprep.subr.bf16.mxu0 0
      %6235 = vmatpush1.bf16.xpose.msra.mxu0 0
      %6236 = vmatprep.subr.bf16.mxu0 0
      %6237 = vmatpush1.bf16.xpose.msra.mxu0 %v6226
      %6238 = vmatprep.subr.bf16.mxu0 0
      %6239 = vmatpush1.bf16.xpose.msra.mxu0 %v6223
      %6240 = vmatprep.subr.bf16.mxu0 0
      %6241 = vmatpush1.bf16.xpose.msra.mxu0 %v6220
      %6242 = vmatprep.subr.bf16.mxu0 0
      %6243 = vmatpush1.bf16.xpose.msra.mxu0 %v6217
      %6244 = vmatprep.subr.bf16.mxu0 0
      %6245 = vmatpush2.bf16.xpose.msra.mxu0 0
      %6246 = vmatprep.subr.bf16.mxu0 0
      %6247 = vmatpush2.bf16.xpose.msra.mxu0 0
      %6248 = vmatprep.subr.bf16.mxu0 0
      %6249 = vmatpush2.bf16.xpose.msra.mxu0 0
      %6250 = vmatprep.subr.bf16.mxu0 0
      %6251 = vmatpush2.bf16.xpose.msra.mxu0 0
      %6252 = vmatprep.subr.bf16.mxu0 0
      %6253 = vmatpush2.bf16.xpose.msra.mxu0 0
      %6254 = vmatprep.subr.bf16.mxu0 0
      %6255 = vmatpush2.bf16.xpose.msra.mxu0 0
      %6256 = vmatprep.subr.bf16.mxu0 0
      %6257 = vmatpush2.bf16.xpose.msra.mxu0 0
      %6258 = vmatprep.subr.bf16.mxu0 0
      %6259 = vmatpush2.bf16.xpose.msra.mxu0 0
      %6260 = vmatprep.mubr.bf16.mxu0 0
      %6261 = vmatmul.mubr.bf16.gmra.mxu0 %v6205
      %v6262 = vpop.f32.mrf.mxu0
      %v6263 = vadd.f32 %v1608, %v6262
      %v6264 = vpop.f32.mrf.mxu0
      %v6265 = vpop.f32.mrf.mxu0
      %v6266 = vadd.f32 %v1609, %v6265
      %v6267 = vpop.f32.mrf.mxu0
      %6268 = vmatprep.mubr.bf16.mxu0 0
      %6269 = vmatmul.mubr.bf16.gmra.mxu0 %v6208
      %v6270 = vpop.f32.mrf.mxu0
      %v6271 = vadd.f32 %v1610, %v6270
      %v6272 = vpop.f32.mrf.mxu0
      %v6273 = vpop.f32.mrf.mxu0
      %v6274 = vadd.f32 %v1611, %v6273
      %v6275 = vpop.f32.mrf.mxu0
      %6276 = vmatprep.mubr.bf16.mxu0 0
      %6277 = vmatmul.mubr.bf16.gmra.mxu0 %v6211
      %v6278 = vpop.f32.mrf.mxu0
      %v6279 = vadd.f32 %v1612, %v6278
      %v6280 = vpop.f32.mrf.mxu0
      %v6281 = vpop.f32.mrf.mxu0
      %v6282 = vadd.f32 %v1613, %v6281
      %v6283 = vpop.f32.mrf.mxu0
      %6284 = vmatprep.mubr.bf16.mxu0 0
      %6285 = vmatmul.mubr.bf16.gmra.mxu0 %v6214
      %v6286 = vpop.f32.mrf.mxu0
      %v6287 = vadd.f32 %v1614, %v6286
      %v6288 = vpop.f32.mrf.mxu0
      %v6289 = vpop.f32.mrf.mxu0
      %v6290 = vadd.f32 %v1615, %v6289
      %v6291 = vpop.f32.mrf.mxu0
      %6292 = vdwg.mxu0
      %v6294 = vsel %vm2709, %v5687, 0
      %v6297 = vsel %vm2709, %v5688, 0
      %v6300 = vsel %vm2709, %v5689, 0
      %v6303 = vsel %vm2709, %v5690, 0
      %v6306 = vsel %vm2709, %v5719, 0
      %v6309 = vsel %vm2709, %v5720, 0
      %v6312 = vsel %vm2709, %v5721, 0
      %v6315 = vsel %vm2709, %v5722, 0
      %6317 = vmatprep.subr.bf16.mxu0 0
      %6318 = vmatpush1.bf16.xpose.msra.mxu0 0
      %6319 = vmatprep.subr.bf16.mxu0 0
      %6320 = vmatpush1.bf16.xpose.msra.mxu0 0
      %6321 = vmatprep.subr.bf16.mxu0 0
      %6322 = vmatpush1.bf16.xpose.msra.mxu0 0
      %6323 = vmatprep.subr.bf16.mxu0 0
      %6324 = vmatpush1.bf16.xpose.msra.mxu0 0
      %6325 = vmatprep.subr.bf16.mxu0 0
      %6326 = vmatpush1.bf16.xpose.msra.mxu0 %v6315
      %6327 = vmatprep.subr.bf16.mxu0 0
      %6328 = vmatpush1.bf16.xpose.msra.mxu0 %v6312
      %6329 = vmatprep.subr.bf16.mxu0 0
      %6330 = vmatpush1.bf16.xpose.msra.mxu0 %v6309
      %6331 = vmatprep.subr.bf16.mxu0 0
      %6332 = vmatpush1.bf16.xpose.msra.mxu0 %v6306
      %6333 = vmatprep.subr.bf16.mxu0 0
      %6334 = vmatpush2.bf16.xpose.msra.mxu0 0
      %6335 = vmatprep.subr.bf16.mxu0 0
      %6336 = vmatpush2.bf16.xpose.msra.mxu0 0
      %6337 = vmatprep.subr.bf16.mxu0 0
      %6338 = vmatpush2.bf16.xpose.msra.mxu0 0
      %6339 = vmatprep.subr.bf16.mxu0 0
      %6340 = vmatpush2.bf16.xpose.msra.mxu0 0
      %6341 = vmatprep.subr.bf16.mxu0 0
      %6342 = vmatpush2.bf16.xpose.msra.mxu0 0
      %6343 = vmatprep.subr.bf16.mxu0 0
      %6344 = vmatpush2.bf16.xpose.msra.mxu0 0
      %6345 = vmatprep.subr.bf16.mxu0 0
      %6346 = vmatpush2.bf16.xpose.msra.mxu0 0
      %6347 = vmatprep.subr.bf16.mxu0 0
      %6348 = vmatpush2.bf16.xpose.msra.mxu0 0
      %6349 = vmatprep.mubr.bf16.mxu0 0
      %6350 = vmatmul.mubr.bf16.gmra.mxu0 %v6294
      %v6351 = vpop.f32.mrf.mxu0
      %v6352 = vadd.f32 %v1616, %v6351
      %v6353 = vpop.f32.mrf.mxu0
      %v6354 = vpop.f32.mrf.mxu0
      %v6355 = vadd.f32 %v1617, %v6354
      %v6356 = vpop.f32.mrf.mxu0
      %6357 = vmatprep.mubr.bf16.mxu0 0
      %6358 = vmatmul.mubr.bf16.gmra.mxu0 %v6297
      %v6359 = vpop.f32.mrf.mxu0
      %v6360 = vadd.f32 %v1618, %v6359
      %v6361 = vpop.f32.mrf.mxu0
      %v6362 = vpop.f32.mrf.mxu0
      %v6363 = vadd.f32 %v1619, %v6362
      %v6364 = vpop.f32.mrf.mxu0
      %6365 = vmatprep.mubr.bf16.mxu0 0
      %6366 = vmatmul.mubr.bf16.gmra.mxu0 %v6300
      %v6367 = vpop.f32.mrf.mxu0
      %v6368 = vadd.f32 %v1620, %v6367
      %v6369 = vpop.f32.mrf.mxu0
      %v6370 = vpop.f32.mrf.mxu0
      %v6371 = vadd.f32 %v1621, %v6370
      %v6372 = vpop.f32.mrf.mxu0
      %6373 = vmatprep.mubr.bf16.mxu0 0
      %6374 = vmatmul.mubr.bf16.gmra.mxu0 %v6303
      %v6375 = vpop.f32.mrf.mxu0
      %v6376 = vadd.f32 %v1622, %v6375
      %v6377 = vpop.f32.mrf.mxu0
      %v6378 = vpop.f32.mrf.mxu0
      %v6379 = vadd.f32 %v1623, %v6378
      %v6380 = vpop.f32.mrf.mxu0
      %6381 = vdwg.mxu0
      %v6383 = vsel %vm2709, %v5691, 0
      %v6386 = vsel %vm2709, %v5692, 0
      %v6389 = vsel %vm2709, %v5693, 0
      %v6392 = vsel %vm2709, %v5694, 0
      %v6395 = vsel %vm2709, %v5723, 0
      %v6398 = vsel %vm2709, %v5724, 0
      %v6401 = vsel %vm2709, %v5725, 0
      %v6404 = vsel %vm2709, %v5726, 0
      %6406 = vmatprep.subr.bf16.mxu0 0
      %6407 = vmatpush1.bf16.xpose.msra.mxu0 0
      %6408 = vmatprep.subr.bf16.mxu0 0
      %6409 = vmatpush1.bf16.xpose.msra.mxu0 0
      %6410 = vmatprep.subr.bf16.mxu0 0
      %6411 = vmatpush1.bf16.xpose.msra.mxu0 0
      %6412 = vmatprep.subr.bf16.mxu0 0
      %6413 = vmatpush1.bf16.xpose.msra.mxu0 0
      %6414 = vmatprep.subr.bf16.mxu0 0
      %6415 = vmatpush1.bf16.xpose.msra.mxu0 %v6404
      %6416 = vmatprep.subr.bf16.mxu0 0
      %6417 = vmatpush1.bf16.xpose.msra.mxu0 %v6401
      %6418 = vmatprep.subr.bf16.mxu0 0
      %6419 = vmatpush1.bf16.xpose.msra.mxu0 %v6398
      %6420 = vmatprep.subr.bf16.mxu0 0
      %6421 = vmatpush1.bf16.xpose.msra.mxu0 %v6395
      %6422 = vmatprep.subr.bf16.mxu0 0
      %6423 = vmatpush2.bf16.xpose.msra.mxu0 0
      %6424 = vmatprep.subr.bf16.mxu0 0
      %6425 = vmatpush2.bf16.xpose.msra.mxu0 0
      %6426 = vmatprep.subr.bf16.mxu0 0
      %6427 = vmatpush2.bf16.xpose.msra.mxu0 0
      %6428 = vmatprep.subr.bf16.mxu0 0
      %6429 = vmatpush2.bf16.xpose.msra.mxu0 0
      %6430 = vmatprep.subr.bf16.mxu0 0
      %6431 = vmatpush2.bf16.xpose.msra.mxu0 0
      %6432 = vmatprep.subr.bf16.mxu0 0
      %6433 = vmatpush2.bf16.xpose.msra.mxu0 0
      %6434 = vmatprep.subr.bf16.mxu0 0
      %6435 = vmatpush2.bf16.xpose.msra.mxu0 0
      %6436 = vmatprep.subr.bf16.mxu0 0
      %6437 = vmatpush2.bf16.xpose.msra.mxu0 0
      %6438 = vmatprep.mubr.bf16.mxu0 0
      %6439 = vmatmul.mubr.bf16.gmra.mxu0 %v6383
      %v6440 = vpop.f32.mrf.mxu0
      %v6441 = vadd.f32 %v1624, %v6440
      %v6442 = vpop.f32.mrf.mxu0
      %v6443 = vpop.f32.mrf.mxu0
      %v6444 = vadd.f32 %v1625, %v6443
      %v6445 = vpop.f32.mrf.mxu0
      %6446 = vmatprep.mubr.bf16.mxu0 0
      %6447 = vmatmul.mubr.bf16.gmra.mxu0 %v6386
      %v6448 = vpop.f32.mrf.mxu0
      %v6449 = vadd.f32 %v1626, %v6448
      %v6450 = vpop.f32.mrf.mxu0
      %v6451 = vpop.f32.mrf.mxu0
      %v6452 = vadd.f32 %v1627, %v6451
      %v6453 = vpop.f32.mrf.mxu0
      %6454 = vmatprep.mubr.bf16.mxu0 0
      %6455 = vmatmul.mubr.bf16.gmra.mxu0 %v6389
      %v6456 = vpop.f32.mrf.mxu0
      %v6457 = vadd.f32 %v1628, %v6456
      %v6458 = vpop.f32.mrf.mxu0
      %v6459 = vpop.f32.mrf.mxu0
      %v6460 = vadd.f32 %v1629, %v6459
      %v6461 = vpop.f32.mrf.mxu0
      %6462 = vmatprep.mubr.bf16.mxu0 0
      %6463 = vmatmul.mubr.bf16.gmra.mxu0 %v6392
      %v6464 = vpop.f32.mrf.mxu0
      %v6465 = vadd.f32 %v1630, %v6464
      %v6466 = vpop.f32.mrf.mxu0
      %v6467 = vpop.f32.mrf.mxu0
      %v6468 = vadd.f32 %v1631, %v6467
      %v6469 = vpop.f32.mrf.mxu0
      %6470 = vdwg.mxu0
      %v6471 = vsel %vm3422, %v5818, -inf
      %6472 = vmax.xlane.f32.xlu0 %v6471
      %v6473 = vpop.xlane.xlu0 %6472
      %v6474 = vsel %vm3422, %v5821, -inf
      %6475 = vmax.xlane.f32.xlu0 %v6474
      %v6476 = vpop.xlane.xlu0 %6475
      %v6477 = vsel %vm3422, %v5826, -inf
      %6478 = vmax.xlane.f32.xlu0 %v6477
      %v6479 = vpop.xlane.xlu0 %6478
      %v6480 = vsel %vm3422, %v5829, -inf
      %6481 = vmax.xlane.f32.xlu0 %v6480
      %v6482 = vpop.xlane.xlu0 %6481
      %v6483 = vsel %vm3422, %v5834, -inf
      %6484 = vmax.xlane.f32.xlu0 %v6483
      %v6485 = vpop.xlane.xlu0 %6484
      %v6486 = vsel %vm3422, %v5837, -inf
      %6487 = vmax.xlane.f32.xlu0 %v6486
      %v6488 = vpop.xlane.xlu0 %6487
      %v6489 = vsel %vm3422, %v5842, -inf
      %6490 = vmax.xlane.f32.xlu0 %v6489
      %v6491 = vpop.xlane.xlu0 %6490
      %v6492 = vsel %vm3422, %v5845, -inf
      %6493 = vmax.xlane.f32.xlu0 %v6492
      %v6494 = vpop.xlane.xlu0 %6493
      %v6495 = vsel %vm3422, %v5907, -inf
      %6496 = vmax.xlane.f32.xlu0 %v6495
      %v6497 = vpop.xlane.xlu0 %6496
      %v6498 = vsel %vm3422, %v5910, -inf
      %6499 = vmax.xlane.f32.xlu0 %v6498
      %v6500 = vpop.xlane.xlu0 %6499
      %v6501 = vsel %vm3422, %v5915, -inf
      %6502 = vmax.xlane.f32.xlu0 %v6501
      %v6503 = vpop.xlane.xlu0 %6502
      %v6504 = vsel %vm3422, %v5918, -inf
      %6505 = vmax.xlane.f32.xlu0 %v6504
      %v6506 = vpop.xlane.xlu0 %6505
      %v6507 = vsel %vm3422, %v5923, -inf
      %6508 = vmax.xlane.f32.xlu0 %v6507
      %v6509 = vpop.xlane.xlu0 %6508
      %v6510 = vsel %vm3422, %v5926, -inf
      %6511 = vmax.xlane.f32.xlu0 %v6510
      %v6512 = vpop.xlane.xlu0 %6511
      %v6513 = vsel %vm3422, %v5931, -inf
      %6514 = vmax.xlane.f32.xlu0 %v6513
      %v6515 = vpop.xlane.xlu0 %6514
      %v6516 = vsel %vm3422, %v5934, -inf
      %6517 = vmax.xlane.f32.xlu0 %v6516
      %v6518 = vpop.xlane.xlu0 %6517
      %v6519 = vsel %vm3422, %v5996, -inf
      %6520 = vmax.xlane.f32.xlu0 %v6519
      %v6521 = vpop.xlane.xlu0 %6520
      %v6522 = vsel %vm3422, %v5999, -inf
      %6523 = vmax.xlane.f32.xlu0 %v6522
      %v6524 = vpop.xlane.xlu0 %6523
      %v6525 = vsel %vm3422, %v6004, -inf
      %6526 = vmax.xlane.f32.xlu0 %v6525
      %v6527 = vpop.xlane.xlu0 %6526
      %v6528 = vsel %vm3422, %v6007, -inf
      %6529 = vmax.xlane.f32.xlu0 %v6528
      %v6530 = vpop.xlane.xlu0 %6529
      %v6531 = vsel %vm3422, %v6012, -inf
      %6532 = vmax.xlane.f32.xlu0 %v6531
      %v6533 = vpop.xlane.xlu0 %6532
      %v6534 = vsel %vm3422, %v6015, -inf
      %6535 = vmax.xlane.f32.xlu0 %v6534
      %v6536 = vpop.xlane.xlu0 %6535
      %v6537 = vsel %vm3422, %v6020, -inf
      %6538 = vmax.xlane.f32.xlu0 %v6537
      %v6539 = vpop.xlane.xlu0 %6538
      %v6540 = vsel %vm3422, %v6023, -inf
      %6541 = vmax.xlane.f32.xlu0 %v6540
      %v6542 = vpop.xlane.xlu0 %6541
      %v6543 = vsel %vm3422, %v6085, -inf
      %6544 = vmax.xlane.f32.xlu0 %v6543
      %v6545 = vpop.xlane.xlu0 %6544
      %v6546 = vsel %vm3422, %v6088, -inf
      %6547 = vmax.xlane.f32.xlu0 %v6546
      %v6548 = vpop.xlane.xlu0 %6547
      %v6549 = vsel %vm3422, %v6093, -inf
      %6550 = vmax.xlane.f32.xlu0 %v6549
      %v6551 = vpop.xlane.xlu0 %6550
      %v6552 = vsel %vm3422, %v6096, -inf
      %6553 = vmax.xlane.f32.xlu0 %v6552
      %v6554 = vpop.xlane.xlu0 %6553
      %v6555 = vsel %vm3422, %v6101, -inf
      %6556 = vmax.xlane.f32.xlu0 %v6555
      %v6557 = vpop.xlane.xlu0 %6556
      %v6558 = vsel %vm3422, %v6104, -inf
      %6559 = vmax.xlane.f32.xlu0 %v6558
      %v6560 = vpop.xlane.xlu0 %6559
      %v6561 = vsel %vm3422, %v6109, -inf
      %6562 = vmax.xlane.f32.xlu0 %v6561
      %v6563 = vpop.xlane.xlu0 %6562
      %v6564 = vsel %vm3422, %v6112, -inf
      %6565 = vmax.xlane.f32.xlu0 %v6564
      %v6566 = vpop.xlane.xlu0 %6565
      %v6567 = vsel %vm3422, %v6174, -inf
      %6568 = vmax.xlane.f32.xlu0 %v6567
      %v6569 = vpop.xlane.xlu0 %6568
      %v6570 = vsel %vm3422, %v6177, -inf
      %6571 = vmax.xlane.f32.xlu0 %v6570
      %v6572 = vpop.xlane.xlu0 %6571
      %v6573 = vsel %vm3422, %v6182, -inf
      %6574 = vmax.xlane.f32.xlu0 %v6573
      %v6575 = vpop.xlane.xlu0 %6574
      %v6576 = vsel %vm3422, %v6185, -inf
      %6577 = vmax.xlane.f32.xlu0 %v6576
      %v6578 = vpop.xlane.xlu0 %6577
      %v6579 = vsel %vm3422, %v6190, -inf
      %6580 = vmax.xlane.f32.xlu0 %v6579
      %v6581 = vpop.xlane.xlu0 %6580
      %v6582 = vsel %vm3422, %v6193, -inf
      %6583 = vmax.xlane.f32.xlu0 %v6582
      %v6584 = vpop.xlane.xlu0 %6583
      %v6585 = vsel %vm3422, %v6198, -inf
      %6586 = vmax.xlane.f32.xlu0 %v6585
      %v6587 = vpop.xlane.xlu0 %6586
      %v6588 = vsel %vm3422, %v6201, -inf
      %6589 = vmax.xlane.f32.xlu0 %v6588
      %v6590 = vpop.xlane.xlu0 %6589
      %v6591 = vsel %vm3422, %v6263, -inf
      %6592 = vmax.xlane.f32.xlu0 %v6591
      %v6593 = vpop.xlane.xlu0 %6592
      %v6594 = vsel %vm3422, %v6266, -inf
      %6595 = vmax.xlane.f32.xlu0 %v6594
      %v6596 = vpop.xlane.xlu0 %6595
      %v6597 = vsel %vm3422, %v6271, -inf
      %6598 = vmax.xlane.f32.xlu0 %v6597
      %v6599 = vpop.xlane.xlu0 %6598
      %v6600 = vsel %vm3422, %v6274, -inf
      %6601 = vmax.xlane.f32.xlu0 %v6600
      %v6602 = vpop.xlane.xlu0 %6601
      %v6603 = vsel %vm3422, %v6279, -inf
      %6604 = vmax.xlane.f32.xlu0 %v6603
      %v6605 = vpop.xlane.xlu0 %6604
      %v6606 = vsel %vm3422, %v6282, -inf
      %6607 = vmax.xlane.f32.xlu0 %v6606
      %v6608 = vpop.xlane.xlu0 %6607
      %v6609 = vsel %vm3422, %v6287, -inf
      %6610 = vmax.xlane.f32.xlu0 %v6609
      %v6611 = vpop.xlane.xlu0 %6610
      %v6612 = vsel %vm3422, %v6290, -inf
      %6613 = vmax.xlane.f32.xlu0 %v6612
      %v6614 = vpop.xlane.xlu0 %6613
      %v6615 = vsel %vm3422, %v6352, -inf
      %6616 = vmax.xlane.f32.xlu0 %v6615
      %v6617 = vpop.xlane.xlu0 %6616
      %v6618 = vsel %vm3422, %v6355, -inf
      %6619 = vmax.xlane.f32.xlu0 %v6618
      %v6620 = vpop.xlane.xlu0 %6619
      %v6621 = vsel %vm3422, %v6360, -inf
      %6622 = vmax.xlane.f32.xlu0 %v6621
      %v6623 = vpop.xlane.xlu0 %6622
      %v6624 = vsel %vm3422, %v6363, -inf
      %6625 = vmax.xlane.f32.xlu0 %v6624
      %v6626 = vpop.xlane.xlu0 %6625
      %v6627 = vsel %vm3422, %v6368, -inf
      %6628 = vmax.xlane.f32.xlu0 %v6627
      %v6629 = vpop.xlane.xlu0 %6628
      %v6630 = vsel %vm3422, %v6371, -inf
      %6631 = vmax.xlane.f32.xlu0 %v6630
      %v6632 = vpop.xlane.xlu0 %6631
      %v6633 = vsel %vm3422, %v6376, -inf
      %6634 = vmax.xlane.f32.xlu0 %v6633
      %v6635 = vpop.xlane.xlu0 %6634
      %v6636 = vsel %vm3422, %v6379, -inf
      %6637 = vmax.xlane.f32.xlu0 %v6636
      %v6638 = vpop.xlane.xlu0 %6637
      %v6639 = vsel %vm3422, %v6441, -inf
      %6640 = vmax.xlane.f32.xlu0 %v6639
      %v6641 = vpop.xlane.xlu0 %6640
      %v6642 = vsel %vm3422, %v6444, -inf
      %6643 = vmax.xlane.f32.xlu0 %v6642
      %v6644 = vpop.xlane.xlu0 %6643
      %v6645 = vsel %vm3422, %v6449, -inf
      %6646 = vmax.xlane.f32.xlu0 %v6645
      %v6647 = vpop.xlane.xlu0 %6646
      %v6648 = vsel %vm3422, %v6452, -inf
      %6649 = vmax.xlane.f32.xlu0 %v6648
      %v6650 = vpop.xlane.xlu0 %6649
      %v6651 = vsel %vm3422, %v6457, -inf
      %6652 = vmax.xlane.f32.xlu0 %v6651
      %v6653 = vpop.xlane.xlu0 %6652
      %v6654 = vsel %vm3422, %v6460, -inf
      %6655 = vmax.xlane.f32.xlu0 %v6654
      %v6656 = vpop.xlane.xlu0 %6655
      %v6657 = vsel %vm3422, %v6465, -inf
      %6658 = vmax.xlane.f32.xlu0 %v6657
      %v6659 = vpop.xlane.xlu0 %6658
      %v6660 = vsel %vm3422, %v6468, -inf
      %6661 = vmax.xlane.f32.xlu0 %v6660
      %v6662 = vpop.xlane.xlu0 %6661
      %v6663 = vsub.f32 %v5818, %v6473
      %v6664 = vsub.f32 %v5821, %v6476
      %v6665 = vsub.f32 %v5826, %v6479
      %v6666 = vsub.f32 %v5829, %v6482
      %v6667 = vsub.f32 %v5834, %v6485
      %v6668 = vsub.f32 %v5837, %v6488
      %v6669 = vsub.f32 %v5842, %v6491
      %v6670 = vsub.f32 %v5845, %v6494
      %v6671 = vsub.f32 %v5907, %v6497
      %v6672 = vsub.f32 %v5910, %v6500
      %v6673 = vsub.f32 %v5915, %v6503
      %v6674 = vsub.f32 %v5918, %v6506
      %v6675 = vsub.f32 %v5923, %v6509
      %v6676 = vsub.f32 %v5926, %v6512
      %v6677 = vsub.f32 %v5931, %v6515
      %v6678 = vsub.f32 %v5934, %v6518
      %v6679 = vsub.f32 %v5996, %v6521
      %v6680 = vsub.f32 %v5999, %v6524
      %v6681 = vsub.f32 %v6004, %v6527
      %v6682 = vsub.f32 %v6007, %v6530
      %v6683 = vsub.f32 %v6012, %v6533
      %v6684 = vsub.f32 %v6015, %v6536
      %v6685 = vsub.f32 %v6020, %v6539
      %v6686 = vsub.f32 %v6023, %v6542
      %v6687 = vsub.f32 %v6085, %v6545
      %v6688 = vsub.f32 %v6088, %v6548
      %v6689 = vsub.f32 %v6093, %v6551
      %v6690 = vsub.f32 %v6096, %v6554
      %v6691 = vsub.f32 %v6101, %v6557
      %v6692 = vsub.f32 %v6104, %v6560
      %v6693 = vsub.f32 %v6109, %v6563
      %v6694 = vsub.f32 %v6112, %v6566
      %v6695 = vsub.f32 %v6174, %v6569
      %v6696 = vsub.f32 %v6177, %v6572
      %v6697 = vsub.f32 %v6182, %v6575
      %v6698 = vsub.f32 %v6185, %v6578
      %v6699 = vsub.f32 %v6190, %v6581
      %v6700 = vsub.f32 %v6193, %v6584
      %v6701 = vsub.f32 %v6198, %v6587
      %v6702 = vsub.f32 %v6201, %v6590
      %v6703 = vsub.f32 %v6263, %v6593
      %v6704 = vsub.f32 %v6266, %v6596
      %v6705 = vsub.f32 %v6271, %v6599
      %v6706 = vsub.f32 %v6274, %v6602
      %v6707 = vsub.f32 %v6279, %v6605
      %v6708 = vsub.f32 %v6282, %v6608
      %v6709 = vsub.f32 %v6287, %v6611
      %v6710 = vsub.f32 %v6290, %v6614
      %v6711 = vsub.f32 %v6352, %v6617
      %v6712 = vsub.f32 %v6355, %v6620
      %v6713 = vsub.f32 %v6360, %v6623
      %v6714 = vsub.f32 %v6363, %v6626
      %v6715 = vsub.f32 %v6368, %v6629
      %v6716 = vsub.f32 %v6371, %v6632
      %v6717 = vsub.f32 %v6376, %v6635
      %v6718 = vsub.f32 %v6379, %v6638
      %v6719 = vsub.f32 %v6441, %v6641
      %v6720 = vsub.f32 %v6444, %v6644
      %v6721 = vsub.f32 %v6449, %v6647
      %v6722 = vsub.f32 %v6452, %v6650
      %v6723 = vsub.f32 %v6457, %v6653
      %v6724 = vsub.f32 %v6460, %v6656
      %v6725 = vsub.f32 %v6465, %v6659
      %v6726 = vsub.f32 %v6468, %v6662
      %v6727 = vmul.f32 %v6663, 1.442695
      %v6728 = vpow.pop %v6727
      %v6729 = vmul.f32 %v6664, 1.442695
      %v6730 = vpow.pop %v6729
      %v6731 = vmul.f32 %v6665, 1.442695
      %v6732 = vpow.pop %v6731
      %v6733 = vmul.f32 %v6666, 1.442695
      %v6734 = vpow.pop %v6733
      %v6735 = vmul.f32 %v6667, 1.442695
      %v6736 = vpow.pop %v6735
      %v6737 = vmul.f32 %v6668, 1.442695
      %v6738 = vpow.pop %v6737
      %v6739 = vmul.f32 %v6669, 1.442695
      %v6740 = vpow.pop %v6739
      %v6741 = vmul.f32 %v6670, 1.442695
      %v6742 = vpow.pop %v6741
      %v6743 = vmul.f32 %v6671, 1.442695
      %v6744 = vpow.pop %v6743
      %v6745 = vmul.f32 %v6672, 1.442695
      %v6746 = vpow.pop %v6745
      %v6747 = vmul.f32 %v6673, 1.442695
      %v6748 = vpow.pop %v6747
      %v6749 = vmul.f32 %v6674, 1.442695
      %v6750 = vpow.pop %v6749
      %v6751 = vmul.f32 %v6675, 1.442695
      %v6752 = vpow.pop %v6751
      %v6753 = vmul.f32 %v6676, 1.442695
      %v6754 = vpow.pop %v6753
      %v6755 = vmul.f32 %v6677, 1.442695
      %v6756 = vpow.pop %v6755
      %v6757 = vmul.f32 %v6678, 1.442695
      %v6758 = vpow.pop %v6757
      %v6759 = vmul.f32 %v6679, 1.442695
      %v6760 = vpow.pop %v6759
      %v6761 = vmul.f32 %v6680, 1.442695
      %v6762 = vpow.pop %v6761
      %v6763 = vmul.f32 %v6681, 1.442695
      %v6764 = vpow.pop %v6763
      %v6765 = vmul.f32 %v6682, 1.442695
      %v6766 = vpow.pop %v6765
      %v6767 = vmul.f32 %v6683, 1.442695
      %v6768 = vpow.pop %v6767
      %v6769 = vmul.f32 %v6684, 1.442695
      %v6770 = vpow.pop %v6769
      %v6771 = vmul.f32 %v6685, 1.442695
      %v6772 = vpow.pop %v6771
      %v6773 = vmul.f32 %v6686, 1.442695
      %v6774 = vpow.pop %v6773
      %v6775 = vmul.f32 %v6687, 1.442695
      %v6776 = vpow.pop %v6775
      %v6777 = vmul.f32 %v6688, 1.442695
      %v6778 = vpow.pop %v6777
      %v6779 = vmul.f32 %v6689, 1.442695
      %v6780 = vpow.pop %v6779
      %v6781 = vmul.f32 %v6690, 1.442695
      %v6782 = vpow.pop %v6781
      %v6783 = vmul.f32 %v6691, 1.442695
      %v6784 = vpow.pop %v6783
      %v6785 = vmul.f32 %v6692, 1.442695
      %v6786 = vpow.pop %v6785
      %v6787 = vmul.f32 %v6693, 1.442695
      %v6788 = vpow.pop %v6787
      %v6789 = vmul.f32 %v6694, 1.442695
      %v6790 = vpow.pop %v6789
      %v6791 = vmul.f32 %v6695, 1.442695
      %v6792 = vpow.pop %v6791
      %v6793 = vmul.f32 %v6696, 1.442695
      %v6794 = vpow.pop %v6793
      %v6795 = vmul.f32 %v6697, 1.442695
      %v6796 = vpow.pop %v6795
      %v6797 = vmul.f32 %v6698, 1.442695
      %v6798 = vpow.pop %v6797
      %v6799 = vmul.f32 %v6699, 1.442695
      %v6800 = vpow.pop %v6799
      %v6801 = vmul.f32 %v6700, 1.442695
      %v6802 = vpow.pop %v6801
      %v6803 = vmul.f32 %v6701, 1.442695
      %v6804 = vpow.pop %v6803
      %v6805 = vmul.f32 %v6702, 1.442695
      %v6806 = vpow.pop %v6805
      %v6807 = vmul.f32 %v6703, 1.442695
      %v6808 = vpow.pop %v6807
      %v6809 = vmul.f32 %v6704, 1.442695
      %v6810 = vpow.pop %v6809
      %v6811 = vmul.f32 %v6705, 1.442695
      %v6812 = vpow.pop %v6811
      %v6813 = vmul.f32 %v6706, 1.442695
      %v6814 = vpow.pop %v6813
      %v6815 = vmul.f32 %v6707, 1.442695
      %v6816 = vpow.pop %v6815
      %v6817 = vmul.f32 %v6708, 1.442695
      %v6818 = vpow.pop %v6817
      %v6819 = vmul.f32 %v6709, 1.442695
      %v6820 = vpow.pop %v6819
      %v6821 = vmul.f32 %v6710, 1.442695
      %v6822 = vpow.pop %v6821
      %v6823 = vmul.f32 %v6711, 1.442695
      %v6824 = vpow.pop %v6823
      %v6825 = vmul.f32 %v6712, 1.442695
      %v6826 = vpow.pop %v6825
      %v6827 = vmul.f32 %v6713, 1.442695
      %v6828 = vpow.pop %v6827
      %v6829 = vmul.f32 %v6714, 1.442695
      %v6830 = vpow.pop %v6829
      %v6831 = vmul.f32 %v6715, 1.442695
      %v6832 = vpow.pop %v6831
      %v6833 = vmul.f32 %v6716, 1.442695
      %v6834 = vpow.pop %v6833
      %v6835 = vmul.f32 %v6717, 1.442695
      %v6836 = vpow.pop %v6835
      %v6837 = vmul.f32 %v6718, 1.442695
      %v6838 = vpow.pop %v6837
      %v6839 = vmul.f32 %v6719, 1.442695
      %v6840 = vpow.pop %v6839
      %v6841 = vmul.f32 %v6720, 1.442695
      %v6842 = vpow.pop %v6841
      %v6843 = vmul.f32 %v6721, 1.442695
      %v6844 = vpow.pop %v6843
      %v6845 = vmul.f32 %v6722, 1.442695
      %v6846 = vpow.pop %v6845
      %v6847 = vmul.f32 %v6723, 1.442695
      %v6848 = vpow.pop %v6847
      %v6849 = vmul.f32 %v6724, 1.442695
      %v6850 = vpow.pop %v6849
      %v6851 = vmul.f32 %v6725, 1.442695
      %v6852 = vpow.pop %v6851
      %v6853 = vmul.f32 %v6726, 1.442695
      %v6854 = vpow.pop %v6853
      %v6855 = vsel %vm3422, %v6728, 0.0
      %6856 = vadd.xlane.f32.xlu0 %v6855
      %v6857 = vpop.xlane.xlu0 %6856
      %v6858 = vsel %vm3422, %v6730, 0.0
      %6859 = vadd.xlane.f32.xlu0 %v6858
      %v6860 = vpop.xlane.xlu0 %6859
      %v6861 = vsel %vm3422, %v6732, 0.0
      %6862 = vadd.xlane.f32.xlu0 %v6861
      %v6863 = vpop.xlane.xlu0 %6862
      %v6864 = vsel %vm3422, %v6734, 0.0
      %6865 = vadd.xlane.f32.xlu0 %v6864
      %v6866 = vpop.xlane.xlu0 %6865
      %v6867 = vsel %vm3422, %v6736, 0.0
      %6868 = vadd.xlane.f32.xlu0 %v6867
      %v6869 = vpop.xlane.xlu0 %6868
      %v6870 = vsel %vm3422, %v6738, 0.0
      %6871 = vadd.xlane.f32.xlu0 %v6870
      %v6872 = vpop.xlane.xlu0 %6871
      %v6873 = vsel %vm3422, %v6740, 0.0
      %6874 = vadd.xlane.f32.xlu0 %v6873
      %v6875 = vpop.xlane.xlu0 %6874
      %v6876 = vsel %vm3422, %v6742, 0.0
      %6877 = vadd.xlane.f32.xlu0 %v6876
      %v6878 = vpop.xlane.xlu0 %6877
      %v6879 = vsel %vm3422, %v6744, 0.0
      %6880 = vadd.xlane.f32.xlu0 %v6879
      %v6881 = vpop.xlane.xlu0 %6880
      %v6882 = vsel %vm3422, %v6746, 0.0
      %6883 = vadd.xlane.f32.xlu0 %v6882
      %v6884 = vpop.xlane.xlu0 %6883
      %v6885 = vsel %vm3422, %v6748, 0.0
      %6886 = vadd.xlane.f32.xlu0 %v6885
      %v6887 = vpop.xlane.xlu0 %6886
      %v6888 = vsel %vm3422, %v6750, 0.0
      %6889 = vadd.xlane.f32.xlu0 %v6888
      %v6890 = vpop.xlane.xlu0 %6889
      %v6891 = vsel %vm3422, %v6752, 0.0
      %6892 = vadd.xlane.f32.xlu0 %v6891
      %v6893 = vpop.xlane.xlu0 %6892
      %v6894 = vsel %vm3422, %v6754, 0.0
      %6895 = vadd.xlane.f32.xlu0 %v6894
      %v6896 = vpop.xlane.xlu0 %6895
      %v6897 = vsel %vm3422, %v6756, 0.0
      %6898 = vadd.xlane.f32.xlu0 %v6897
      %v6899 = vpop.xlane.xlu0 %6898
      %v6900 = vsel %vm3422, %v6758, 0.0
      %6901 = vadd.xlane.f32.xlu0 %v6900
      %v6902 = vpop.xlane.xlu0 %6901
      %v6903 = vsel %vm3422, %v6760, 0.0
      %6904 = vadd.xlane.f32.xlu0 %v6903
      %v6905 = vpop.xlane.xlu0 %6904
      %v6906 = vsel %vm3422, %v6762, 0.0
      %6907 = vadd.xlane.f32.xlu0 %v6906
      %v6908 = vpop.xlane.xlu0 %6907
      %v6909 = vsel %vm3422, %v6764, 0.0
      %6910 = vadd.xlane.f32.xlu0 %v6909
      %v6911 = vpop.xlane.xlu0 %6910
      %v6912 = vsel %vm3422, %v6766, 0.0
      %6913 = vadd.xlane.f32.xlu0 %v6912
      %v6914 = vpop.xlane.xlu0 %6913
      %v6915 = vsel %vm3422, %v6768, 0.0
      %6916 = vadd.xlane.f32.xlu0 %v6915
      %v6917 = vpop.xlane.xlu0 %6916
      %v6918 = vsel %vm3422, %v6770, 0.0
      %6919 = vadd.xlane.f32.xlu0 %v6918
      %v6920 = vpop.xlane.xlu0 %6919
      %v6921 = vsel %vm3422, %v6772, 0.0
      %6922 = vadd.xlane.f32.xlu0 %v6921
      %v6923 = vpop.xlane.xlu0 %6922
      %v6924 = vsel %vm3422, %v6774, 0.0
      %6925 = vadd.xlane.f32.xlu0 %v6924
      %v6926 = vpop.xlane.xlu0 %6925
      %v6927 = vsel %vm3422, %v6776, 0.0
      %6928 = vadd.xlane.f32.xlu0 %v6927
      %v6929 = vpop.xlane.xlu0 %6928
      %v6930 = vsel %vm3422, %v6778, 0.0
      %6931 = vadd.xlane.f32.xlu0 %v6930
      %v6932 = vpop.xlane.xlu0 %6931
      %v6933 = vsel %vm3422, %v6780, 0.0
      %6934 = vadd.xlane.f32.xlu0 %v6933
      %v6935 = vpop.xlane.xlu0 %6934
      %v6936 = vsel %vm3422, %v6782, 0.0
      %6937 = vadd.xlane.f32.xlu0 %v6936
      %v6938 = vpop.xlane.xlu0 %6937
      %v6939 = vsel %vm3422, %v6784, 0.0
      %6940 = vadd.xlane.f32.xlu0 %v6939
      %v6941 = vpop.xlane.xlu0 %6940
      %v6942 = vsel %vm3422, %v6786, 0.0
      %6943 = vadd.xlane.f32.xlu0 %v6942
      %v6944 = vpop.xlane.xlu0 %6943
      %v6945 = vsel %vm3422, %v6788, 0.0
      %6946 = vadd.xlane.f32.xlu0 %v6945
      %v6947 = vpop.xlane.xlu0 %6946
      %v6948 = vsel %vm3422, %v6790, 0.0
      %6949 = vadd.xlane.f32.xlu0 %v6948
      %v6950 = vpop.xlane.xlu0 %6949
      %v6951 = vsel %vm3422, %v6792, 0.0
      %6952 = vadd.xlane.f32.xlu0 %v6951
      %v6953 = vpop.xlane.xlu0 %6952
      %v6954 = vsel %vm3422, %v6794, 0.0
      %6955 = vadd.xlane.f32.xlu0 %v6954
      %v6956 = vpop.xlane.xlu0 %6955
      %v6957 = vsel %vm3422, %v6796, 0.0
      %6958 = vadd.xlane.f32.xlu0 %v6957
      %v6959 = vpop.xlane.xlu0 %6958
      %v6960 = vsel %vm3422, %v6798, 0.0
      %6961 = vadd.xlane.f32.xlu0 %v6960
      %v6962 = vpop.xlane.xlu0 %6961
      %v6963 = vsel %vm3422, %v6800, 0.0
      %6964 = vadd.xlane.f32.xlu0 %v6963
      %v6965 = vpop.xlane.xlu0 %6964
      %v6966 = vsel %vm3422, %v6802, 0.0
      %6967 = vadd.xlane.f32.xlu0 %v6966
      %v6968 = vpop.xlane.xlu0 %6967
      %v6969 = vsel %vm3422, %v6804, 0.0
      %6970 = vadd.xlane.f32.xlu0 %v6969
      %v6971 = vpop.xlane.xlu0 %6970
      %v6972 = vsel %vm3422, %v6806, 0.0
      %6973 = vadd.xlane.f32.xlu0 %v6972
      %v6974 = vpop.xlane.xlu0 %6973
      %v6975 = vsel %vm3422, %v6808, 0.0
      %6976 = vadd.xlane.f32.xlu0 %v6975
      %v6977 = vpop.xlane.xlu0 %6976
      %v6978 = vsel %vm3422, %v6810, 0.0
      %6979 = vadd.xlane.f32.xlu0 %v6978
      %v6980 = vpop.xlane.xlu0 %6979
      %v6981 = vsel %vm3422, %v6812, 0.0
      %6982 = vadd.xlane.f32.xlu0 %v6981
      %v6983 = vpop.xlane.xlu0 %6982
      %v6984 = vsel %vm3422, %v6814, 0.0
      %6985 = vadd.xlane.f32.xlu0 %v6984
      %v6986 = vpop.xlane.xlu0 %6985
      %v6987 = vsel %vm3422, %v6816, 0.0
      %6988 = vadd.xlane.f32.xlu0 %v6987
      %v6989 = vpop.xlane.xlu0 %6988
      %v6990 = vsel %vm3422, %v6818, 0.0
      %6991 = vadd.xlane.f32.xlu0 %v6990
      %v6992 = vpop.xlane.xlu0 %6991
      %v6993 = vsel %vm3422, %v6820, 0.0
      %6994 = vadd.xlane.f32.xlu0 %v6993
      %v6995 = vpop.xlane.xlu0 %6994
      %v6996 = vsel %vm3422, %v6822, 0.0
      %6997 = vadd.xlane.f32.xlu0 %v6996
      %v6998 = vpop.xlane.xlu0 %6997
      %v6999 = vsel %vm3422, %v6824, 0.0
      %7000 = vadd.xlane.f32.xlu0 %v6999
      %v7001 = vpop.xlane.xlu0 %7000
      %v7002 = vsel %vm3422, %v6826, 0.0
      %7003 = vadd.xlane.f32.xlu0 %v7002
      %v7004 = vpop.xlane.xlu0 %7003
      %v7005 = vsel %vm3422, %v6828, 0.0
      %7006 = vadd.xlane.f32.xlu0 %v7005
      %v7007 = vpop.xlane.xlu0 %7006
      %v7008 = vsel %vm3422, %v6830, 0.0
      %7009 = vadd.xlane.f32.xlu0 %v7008
      %v7010 = vpop.xlane.xlu0 %7009
      %v7011 = vsel %vm3422, %v6832, 0.0
      %7012 = vadd.xlane.f32.xlu0 %v7011
      %v7013 = vpop.xlane.xlu0 %7012
      %v7014 = vsel %vm3422, %v6834, 0.0
      %7015 = vadd.xlane.f32.xlu0 %v7014
      %v7016 = vpop.xlane.xlu0 %7015
      %v7017 = vsel %vm3422, %v6836, 0.0
      %7018 = vadd.xlane.f32.xlu0 %v7017
      %v7019 = vpop.xlane.xlu0 %7018
      %v7020 = vsel %vm3422, %v6838, 0.0
      %7021 = vadd.xlane.f32.xlu0 %v7020
      %v7022 = vpop.xlane.xlu0 %7021
      %v7023 = vsel %vm3422, %v6840, 0.0
      %7024 = vadd.xlane.f32.xlu0 %v7023
      %v7025 = vpop.xlane.xlu0 %7024
      %v7026 = vsel %vm3422, %v6842, 0.0
      %7027 = vadd.xlane.f32.xlu0 %v7026
      %v7028 = vpop.xlane.xlu0 %7027
      %v7029 = vsel %vm3422, %v6844, 0.0
      %7030 = vadd.xlane.f32.xlu0 %v7029
      %v7031 = vpop.xlane.xlu0 %7030
      %v7032 = vsel %vm3422, %v6846, 0.0
      %7033 = vadd.xlane.f32.xlu0 %v7032
      %v7034 = vpop.xlane.xlu0 %7033
      %v7035 = vsel %vm3422, %v6848, 0.0
      %7036 = vadd.xlane.f32.xlu0 %v7035
      %v7037 = vpop.xlane.xlu0 %7036
      %v7038 = vsel %vm3422, %v6850, 0.0
      %7039 = vadd.xlane.f32.xlu0 %v7038
      %v7040 = vpop.xlane.xlu0 %7039
      %v7041 = vsel %vm3422, %v6852, 0.0
      %7042 = vadd.xlane.f32.xlu0 %v7041
      %v7043 = vpop.xlane.xlu0 %7042
      %v7044 = vsel %vm3422, %v6854, 0.0
      %7045 = vadd.xlane.f32.xlu0 %v7044
      %v7046 = vpop.xlane.xlu0 %7045
      %v7047 = vrcp.pop %v6857
      %v7048 = vrcp.pop %v6860
      %v7049 = vrcp.pop %v6863
      %v7050 = vrcp.pop %v6866
      %v7051 = vrcp.pop %v6869
      %v7052 = vrcp.pop %v6872
      %v7053 = vrcp.pop %v6875
      %v7054 = vrcp.pop %v6878
      %v7055 = vrcp.pop %v6881
      %v7056 = vrcp.pop %v6884
      %v7057 = vrcp.pop %v6887
      %v7058 = vrcp.pop %v6890
      %v7059 = vrcp.pop %v6893
      %v7060 = vrcp.pop %v6896
      %v7061 = vrcp.pop %v6899
      %v7062 = vrcp.pop %v6902
      %v7063 = vrcp.pop %v6905
      %v7064 = vrcp.pop %v6908
      %v7065 = vrcp.pop %v6911
      %v7066 = vrcp.pop %v6914
      %v7067 = vrcp.pop %v6917
      %v7068 = vrcp.pop %v6920
      %v7069 = vrcp.pop %v6923
      %v7070 = vrcp.pop %v6926
      %v7071 = vrcp.pop %v6929
      %v7072 = vrcp.pop %v6932
      %v7073 = vrcp.pop %v6935
      %v7074 = vrcp.pop %v6938
      %v7075 = vrcp.pop %v6941
      %v7076 = vrcp.pop %v6944
      %v7077 = vrcp.pop %v6947
      %v7078 = vrcp.pop %v6950
      %v7079 = vrcp.pop %v6953
      %v7080 = vrcp.pop %v6956
      %v7081 = vrcp.pop %v6959
      %v7082 = vrcp.pop %v6962
      %v7083 = vrcp.pop %v6965
      %v7084 = vrcp.pop %v6968
      %v7085 = vrcp.pop %v6971
      %v7086 = vrcp.pop %v6974
      %v7087 = vrcp.pop %v6977
      %v7088 = vrcp.pop %v6980
      %v7089 = vrcp.pop %v6983
      %v7090 = vrcp.pop %v6986
      %v7091 = vrcp.pop %v6989
      %v7092 = vrcp.pop %v6992
      %v7093 = vrcp.pop %v6995
      %v7094 = vrcp.pop %v6998
      %v7095 = vrcp.pop %v7001
      %v7096 = vrcp.pop %v7004
      %v7097 = vrcp.pop %v7007
      %v7098 = vrcp.pop %v7010
      %v7099 = vrcp.pop %v7013
      %v7100 = vrcp.pop %v7016
      %v7101 = vrcp.pop %v7019
      %v7102 = vrcp.pop %v7022
      %v7103 = vrcp.pop %v7025
      %v7104 = vrcp.pop %v7028
      %v7105 = vrcp.pop %v7031
      %v7106 = vrcp.pop %v7034
      %v7107 = vrcp.pop %v7037
      %v7108 = vrcp.pop %v7040
      %v7109 = vrcp.pop %v7043
      %v7110 = vrcp.pop %v7046
      %v7111 = vmul.f32 %v6728, %v7047
      %v7112 = vmul.f32 %v6730, %v7048
      %v7113 = vmul.f32 %v6732, %v7049
      %v7114 = vmul.f32 %v6734, %v7050
      %v7115 = vmul.f32 %v6736, %v7051
      %v7116 = vmul.f32 %v6738, %v7052
      %v7117 = vmul.f32 %v6740, %v7053
      %v7118 = vmul.f32 %v6742, %v7054
      %v7119 = vmul.f32 %v6744, %v7055
      %v7120 = vmul.f32 %v6746, %v7056
      %v7121 = vmul.f32 %v6748, %v7057
      %v7122 = vmul.f32 %v6750, %v7058
      %v7123 = vmul.f32 %v6752, %v7059
      %v7124 = vmul.f32 %v6754, %v7060
      %v7125 = vmul.f32 %v6756, %v7061
      %v7126 = vmul.f32 %v6758, %v7062
      %v7127 = vmul.f32 %v6760, %v7063
      %v7128 = vmul.f32 %v6762, %v7064
      %v7129 = vmul.f32 %v6764, %v7065
      %v7130 = vmul.f32 %v6766, %v7066
      %v7131 = vmul.f32 %v6768, %v7067
      %v7132 = vmul.f32 %v6770, %v7068
      %v7133 = vmul.f32 %v6772, %v7069
      %v7134 = vmul.f32 %v6774, %v7070
      %v7135 = vmul.f32 %v6776, %v7071
      %v7136 = vmul.f32 %v6778, %v7072
      %v7137 = vmul.f32 %v6780, %v7073
      %v7138 = vmul.f32 %v6782, %v7074
      %v7139 = vmul.f32 %v6784, %v7075
      %v7140 = vmul.f32 %v6786, %v7076
      %v7141 = vmul.f32 %v6788, %v7077
      %v7142 = vmul.f32 %v6790, %v7078
      %v7143 = vmul.f32 %v6792, %v7079
      %v7144 = vmul.f32 %v6794, %v7080
      %v7145 = vmul.f32 %v6796, %v7081
      %v7146 = vmul.f32 %v6798, %v7082
      %v7147 = vmul.f32 %v6800, %v7083
      %v7148 = vmul.f32 %v6802, %v7084
      %v7149 = vmul.f32 %v6804, %v7085
      %v7150 = vmul.f32 %v6806, %v7086
      %v7151 = vmul.f32 %v6808, %v7087
      %v7152 = vmul.f32 %v6810, %v7088
      %v7153 = vmul.f32 %v6812, %v7089
      %v7154 = vmul.f32 %v6814, %v7090
      %v7155 = vmul.f32 %v6816, %v7091
      %v7156 = vmul.f32 %v6818, %v7092
      %v7157 = vmul.f32 %v6820, %v7093
      %v7158 = vmul.f32 %v6822, %v7094
      %v7159 = vmul.f32 %v6824, %v7095
      %v7160 = vmul.f32 %v6826, %v7096
      %v7161 = vmul.f32 %v6828, %v7097
      %v7162 = vmul.f32 %v6830, %v7098
      %v7163 = vmul.f32 %v6832, %v7099
      %v7164 = vmul.f32 %v6834, %v7100
      %v7165 = vmul.f32 %v6836, %v7101
      %v7166 = vmul.f32 %v6838, %v7102
      %v7167 = vmul.f32 %v6840, %v7103
      %v7168 = vmul.f32 %v6842, %v7104
      %v7169 = vmul.f32 %v6844, %v7105
      %v7170 = vmul.f32 %v6846, %v7106
      %v7171 = vmul.f32 %v6848, %v7107
      %v7172 = vmul.f32 %v6850, %v7108
      %v7173 = vmul.f32 %v6852, %v7109
      %v7174 = vmul.f32 %v6854, %v7110
      %v7175 = vpack.c.bf16 %v7112, %v7111
      %v7176 = vpack.c.bf16 %v7114, %v7113
      %v7177 = vpack.c.bf16 %v7116, %v7115
      %v7178 = vpack.c.bf16 %v7118, %v7117
      %v7179 = vpack.c.bf16 %v7120, %v7119
      %v7180 = vpack.c.bf16 %v7122, %v7121
      %v7181 = vpack.c.bf16 %v7124, %v7123
      %v7182 = vpack.c.bf16 %v7126, %v7125
      %v7183 = vpack.c.bf16 %v7128, %v7127
      %v7184 = vpack.c.bf16 %v7130, %v7129
      %v7185 = vpack.c.bf16 %v7132, %v7131
      %v7186 = vpack.c.bf16 %v7134, %v7133
      %v7187 = vpack.c.bf16 %v7136, %v7135
      %v7188 = vpack.c.bf16 %v7138, %v7137
      %v7189 = vpack.c.bf16 %v7140, %v7139
      %v7190 = vpack.c.bf16 %v7142, %v7141
      %v7191 = vpack.c.bf16 %v7144, %v7143
      %v7192 = vpack.c.bf16 %v7146, %v7145
      %v7193 = vpack.c.bf16 %v7148, %v7147
      %v7194 = vpack.c.bf16 %v7150, %v7149
      %v7195 = vpack.c.bf16 %v7152, %v7151
      %v7196 = vpack.c.bf16 %v7154, %v7153
      %v7197 = vpack.c.bf16 %v7156, %v7155
      %v7198 = vpack.c.bf16 %v7158, %v7157
      %v7199 = vpack.c.bf16 %v7160, %v7159
      %v7200 = vpack.c.bf16 %v7162, %v7161
      %v7201 = vpack.c.bf16 %v7164, %v7163
      %v7202 = vpack.c.bf16 %v7166, %v7165
      %v7203 = vpack.c.bf16 %v7168, %v7167
      %v7204 = vpack.c.bf16 %v7170, %v7169
      %v7205 = vpack.c.bf16 %v7172, %v7171
      %v7206 = vpack.c.bf16 %v7174, %v7173
      %v7208 = vsel %vm3422, %v7175, 0
      %v7211 = vsel %vm3422, %v7176, 0
      %v7214 = vsel %vm3422, %v7177, 0
      %v7217 = vsel %vm3422, %v7178, 0
      %7219 = vmatprep.subr.bf16.mxu0 0
      %7220 = vmatpush1.bf16.msra.mxu0 0
      %7221 = vmatprep.subr.bf16.mxu0 0
      %7222 = vmatpush1.bf16.msra.mxu0 0
      %7223 = vmatprep.subr.bf16.mxu0 0
      %7224 = vmatpush1.bf16.msra.mxu0 0
      %7225 = vmatprep.subr.bf16.mxu0 0
      %7226 = vmatpush1.bf16.msra.mxu0 0
      %7227 = vmatprep.subr.bf16.mxu0 0
      %7228 = vmatpush1.bf16.msra.mxu0 %v5730
      %7229 = vmatprep.subr.bf16.mxu0 0
      %7230 = vmatpush1.bf16.msra.mxu0 %v5729
      %7231 = vmatprep.subr.bf16.mxu0 0
      %7232 = vmatpush1.bf16.msra.mxu0 %v5728
      %7233 = vmatprep.subr.bf16.mxu0 0
      %7234 = vmatpush1.bf16.msra.mxu0 %v5727
      %7235 = vmatprep.subr.bf16.mxu0 0
      %7236 = vmatpush2.bf16.msra.mxu0 0
      %7237 = vmatprep.subr.bf16.mxu0 0
      %7238 = vmatpush2.bf16.msra.mxu0 0
      %7239 = vmatprep.subr.bf16.mxu0 0
      %7240 = vmatpush2.bf16.msra.mxu0 0
      %7241 = vmatprep.subr.bf16.mxu0 0
      %7242 = vmatpush2.bf16.msra.mxu0 0
      %7243 = vmatprep.subr.bf16.mxu0 0
      %7244 = vmatpush2.bf16.msra.mxu0 0
      %7245 = vmatprep.subr.bf16.mxu0 0
      %7246 = vmatpush2.bf16.msra.mxu0 0
      %7247 = vmatprep.subr.bf16.mxu0 0
      %7248 = vmatpush2.bf16.msra.mxu0 0
      %7249 = vmatprep.subr.bf16.mxu0 0
      %7250 = vmatpush2.bf16.msra.mxu0 0
      %7251 = vmatprep.mubr.bf16.mxu0 0
      %7252 = vmatmul.mubr.bf16.gmra.mxu0 %v7208
      %v7253 = vpop.f32.mrf.mxu0
      %v7254 = vadd.f32 0.0, %v7253
      %v7255 = vpop.f32.mrf.mxu0
      %v7256 = vpop.f32.mrf.mxu0
      %v7257 = vadd.f32 0.0, %v7256
      %v7258 = vpop.f32.mrf.mxu0
      %7259 = vmatprep.mubr.bf16.mxu0 0
      %7260 = vmatmul.mubr.bf16.gmra.mxu0 %v7211
      %v7261 = vpop.f32.mrf.mxu0
      %v7262 = vadd.f32 0.0, %v7261
      %v7263 = vpop.f32.mrf.mxu0
      %v7264 = vpop.f32.mrf.mxu0
      %v7265 = vadd.f32 0.0, %v7264
      %v7266 = vpop.f32.mrf.mxu0
      %7267 = vmatprep.mubr.bf16.mxu0 0
      %7268 = vmatmul.mubr.bf16.gmra.mxu0 %v7214
      %v7269 = vpop.f32.mrf.mxu0
      %v7270 = vadd.f32 0.0, %v7269
      %v7271 = vpop.f32.mrf.mxu0
      %v7272 = vpop.f32.mrf.mxu0
      %v7273 = vadd.f32 0.0, %v7272
      %v7274 = vpop.f32.mrf.mxu0
      %7275 = vmatprep.mubr.bf16.mxu0 0
      %7276 = vmatmul.mubr.bf16.gmra.mxu0 %v7217
      %v7277 = vpop.f32.mrf.mxu0
      %v7278 = vadd.f32 0.0, %v7277
      %v7279 = vpop.f32.mrf.mxu0
      %v7280 = vpop.f32.mrf.mxu0
      %v7281 = vadd.f32 0.0, %v7280
      %v7282 = vpop.f32.mrf.mxu0
      %7283 = vdwg.mxu0
      %v7285 = vsel %vm3422, %v7179, 0
      %v7288 = vsel %vm3422, %v7180, 0
      %v7291 = vsel %vm3422, %v7181, 0
      %v7294 = vsel %vm3422, %v7182, 0
      %7296 = vmatprep.subr.bf16.mxu0 0
      %7297 = vmatpush1.bf16.msra.mxu0 0
      %7298 = vmatprep.subr.bf16.mxu0 0
      %7299 = vmatpush1.bf16.msra.mxu0 0
      %7300 = vmatprep.subr.bf16.mxu0 0
      %7301 = vmatpush1.bf16.msra.mxu0 0
      %7302 = vmatprep.subr.bf16.mxu0 0
      %7303 = vmatpush1.bf16.msra.mxu0 0
      %7304 = vmatprep.subr.bf16.mxu0 0
      %7305 = vmatpush1.bf16.msra.mxu0 %v5734
      %7306 = vmatprep.subr.bf16.mxu0 0
      %7307 = vmatpush1.bf16.msra.mxu0 %v5733
      %7308 = vmatprep.subr.bf16.mxu0 0
      %7309 = vmatpush1.bf16.msra.mxu0 %v5732
      %7310 = vmatprep.subr.bf16.mxu0 0
      %7311 = vmatpush1.bf16.msra.mxu0 %v5731
      %7312 = vmatprep.subr.bf16.mxu0 0
      %7313 = vmatpush2.bf16.msra.mxu0 0
      %7314 = vmatprep.subr.bf16.mxu0 0
      %7315 = vmatpush2.bf16.msra.mxu0 0
      %7316 = vmatprep.subr.bf16.mxu0 0
      %7317 = vmatpush2.bf16.msra.mxu0 0
      %7318 = vmatprep.subr.bf16.mxu0 0
      %7319 = vmatpush2.bf16.msra.mxu0 0
      %7320 = vmatprep.subr.bf16.mxu0 0
      %7321 = vmatpush2.bf16.msra.mxu0 0
      %7322 = vmatprep.subr.bf16.mxu0 0
      %7323 = vmatpush2.bf16.msra.mxu0 0
      %7324 = vmatprep.subr.bf16.mxu0 0
      %7325 = vmatpush2.bf16.msra.mxu0 0
      %7326 = vmatprep.subr.bf16.mxu0 0
      %7327 = vmatpush2.bf16.msra.mxu0 0
      %7328 = vmatprep.mubr.bf16.mxu0 0
      %7329 = vmatmul.mubr.bf16.gmra.mxu0 %v7285
      %v7330 = vpop.f32.mrf.mxu0
      %v7331 = vadd.f32 0.0, %v7330
      %v7332 = vpop.f32.mrf.mxu0
      %v7333 = vpop.f32.mrf.mxu0
      %v7334 = vadd.f32 0.0, %v7333
      %v7335 = vpop.f32.mrf.mxu0
      %7336 = vmatprep.mubr.bf16.mxu0 0
      %7337 = vmatmul.mubr.bf16.gmra.mxu0 %v7288
      %v7338 = vpop.f32.mrf.mxu0
      %v7339 = vadd.f32 0.0, %v7338
      %v7340 = vpop.f32.mrf.mxu0
      %v7341 = vpop.f32.mrf.mxu0
      %v7342 = vadd.f32 0.0, %v7341
      %v7343 = vpop.f32.mrf.mxu0
      %7344 = vmatprep.mubr.bf16.mxu0 0
      %7345 = vmatmul.mubr.bf16.gmra.mxu0 %v7291
      %v7346 = vpop.f32.mrf.mxu0
      %v7347 = vadd.f32 0.0, %v7346
      %v7348 = vpop.f32.mrf.mxu0
      %v7349 = vpop.f32.mrf.mxu0
      %v7350 = vadd.f32 0.0, %v7349
      %v7351 = vpop.f32.mrf.mxu0
      %7352 = vmatprep.mubr.bf16.mxu0 0
      %7353 = vmatmul.mubr.bf16.gmra.mxu0 %v7294
      %v7354 = vpop.f32.mrf.mxu0
      %v7355 = vadd.f32 0.0, %v7354
      %v7356 = vpop.f32.mrf.mxu0
      %v7357 = vpop.f32.mrf.mxu0
      %v7358 = vadd.f32 0.0, %v7357
      %v7359 = vpop.f32.mrf.mxu0
      %7360 = vdwg.mxu0
      %v7362 = vsel %vm3422, %v7183, 0
      %v7365 = vsel %vm3422, %v7184, 0
      %v7368 = vsel %vm3422, %v7185, 0
      %v7371 = vsel %vm3422, %v7186, 0
      %7373 = vmatprep.subr.bf16.mxu0 0
      %7374 = vmatpush1.bf16.msra.mxu0 0
      %7375 = vmatprep.subr.bf16.mxu0 0
      %7376 = vmatpush1.bf16.msra.mxu0 0
      %7377 = vmatprep.subr.bf16.mxu0 0
      %7378 = vmatpush1.bf16.msra.mxu0 0
      %7379 = vmatprep.subr.bf16.mxu0 0
      %7380 = vmatpush1.bf16.msra.mxu0 0
      %7381 = vmatprep.subr.bf16.mxu0 0
      %7382 = vmatpush1.bf16.msra.mxu0 %v5738
      %7383 = vmatprep.subr.bf16.mxu0 0
      %7384 = vmatpush1.bf16.msra.mxu0 %v5737
      %7385 = vmatprep.subr.bf16.mxu0 0
      %7386 = vmatpush1.bf16.msra.mxu0 %v5736
      %7387 = vmatprep.subr.bf16.mxu0 0
      %7388 = vmatpush1.bf16.msra.mxu0 %v5735
      %7389 = vmatprep.subr.bf16.mxu0 0
      %7390 = vmatpush2.bf16.msra.mxu0 0
      %7391 = vmatprep.subr.bf16.mxu0 0
      %7392 = vmatpush2.bf16.msra.mxu0 0
      %7393 = vmatprep.subr.bf16.mxu0 0
      %7394 = vmatpush2.bf16.msra.mxu0 0
      %7395 = vmatprep.subr.bf16.mxu0 0
      %7396 = vmatpush2.bf16.msra.mxu0 0
      %7397 = vmatprep.subr.bf16.mxu0 0
      %7398 = vmatpush2.bf16.msra.mxu0 0
      %7399 = vmatprep.subr.bf16.mxu0 0
      %7400 = vmatpush2.bf16.msra.mxu0 0
      %7401 = vmatprep.subr.bf16.mxu0 0
      %7402 = vmatpush2.bf16.msra.mxu0 0
      %7403 = vmatprep.subr.bf16.mxu0 0
      %7404 = vmatpush2.bf16.msra.mxu0 0
      %7405 = vmatprep.mubr.bf16.mxu0 0
      %7406 = vmatmul.mubr.bf16.gmra.mxu0 %v7362
      %v7407 = vpop.f32.mrf.mxu0
      %v7408 = vadd.f32 0.0, %v7407
      %v7409 = vpop.f32.mrf.mxu0
      %v7410 = vpop.f32.mrf.mxu0
      %v7411 = vadd.f32 0.0, %v7410
      %v7412 = vpop.f32.mrf.mxu0
      %7413 = vmatprep.mubr.bf16.mxu0 0
      %7414 = vmatmul.mubr.bf16.gmra.mxu0 %v7365
      %v7415 = vpop.f32.mrf.mxu0
      %v7416 = vadd.f32 0.0, %v7415
      %v7417 = vpop.f32.mrf.mxu0
      %v7418 = vpop.f32.mrf.mxu0
      %v7419 = vadd.f32 0.0, %v7418
      %v7420 = vpop.f32.mrf.mxu0
      %7421 = vmatprep.mubr.bf16.mxu0 0
      %7422 = vmatmul.mubr.bf16.gmra.mxu0 %v7368
      %v7423 = vpop.f32.mrf.mxu0
      %v7424 = vadd.f32 0.0, %v7423
      %v7425 = vpop.f32.mrf.mxu0
      %v7426 = vpop.f32.mrf.mxu0
      %v7427 = vadd.f32 0.0, %v7426
      %v7428 = vpop.f32.mrf.mxu0
      %7429 = vmatprep.mubr.bf16.mxu0 0
      %7430 = vmatmul.mubr.bf16.gmra.mxu0 %v7371
      %v7431 = vpop.f32.mrf.mxu0
      %v7432 = vadd.f32 0.0, %v7431
      %v7433 = vpop.f32.mrf.mxu0
      %v7434 = vpop.f32.mrf.mxu0
      %v7435 = vadd.f32 0.0, %v7434
      %v7436 = vpop.f32.mrf.mxu0
      %7437 = vdwg.mxu0
      %v7439 = vsel %vm3422, %v7187, 0
      %v7442 = vsel %vm3422, %v7188, 0
      %v7445 = vsel %vm3422, %v7189, 0
      %v7448 = vsel %vm3422, %v7190, 0
      %7450 = vmatprep.subr.bf16.mxu0 0
      %7451 = vmatpush1.bf16.msra.mxu0 0
      %7452 = vmatprep.subr.bf16.mxu0 0
      %7453 = vmatpush1.bf16.msra.mxu0 0
      %7454 = vmatprep.subr.bf16.mxu0 0
      %7455 = vmatpush1.bf16.msra.mxu0 0
      %7456 = vmatprep.subr.bf16.mxu0 0
      %7457 = vmatpush1.bf16.msra.mxu0 0
      %7458 = vmatprep.subr.bf16.mxu0 0
      %7459 = vmatpush1.bf16.msra.mxu0 %v5742
      %7460 = vmatprep.subr.bf16.mxu0 0
      %7461 = vmatpush1.bf16.msra.mxu0 %v5741
      %7462 = vmatprep.subr.bf16.mxu0 0
      %7463 = vmatpush1.bf16.msra.mxu0 %v5740
      %7464 = vmatprep.subr.bf16.mxu0 0
      %7465 = vmatpush1.bf16.msra.mxu0 %v5739
      %7466 = vmatprep.subr.bf16.mxu0 0
      %7467 = vmatpush2.bf16.msra.mxu0 0
      %7468 = vmatprep.subr.bf16.mxu0 0
      %7469 = vmatpush2.bf16.msra.mxu0 0
      %7470 = vmatprep.subr.bf16.mxu0 0
      %7471 = vmatpush2.bf16.msra.mxu0 0
      %7472 = vmatprep.subr.bf16.mxu0 0
      %7473 = vmatpush2.bf16.msra.mxu0 0
      %7474 = vmatprep.subr.bf16.mxu0 0
      %7475 = vmatpush2.bf16.msra.mxu0 0
      %7476 = vmatprep.subr.bf16.mxu0 0
      %7477 = vmatpush2.bf16.msra.mxu0 0
      %7478 = vmatprep.subr.bf16.mxu0 0
      %7479 = vmatpush2.bf16.msra.mxu0 0
      %7480 = vmatprep.subr.bf16.mxu0 0
      %7481 = vmatpush2.bf16.msra.mxu0 0
      %7482 = vmatprep.mubr.bf16.mxu0 0
      %7483 = vmatmul.mubr.bf16.gmra.mxu0 %v7439
      %v7484 = vpop.f32.mrf.mxu0
      %v7485 = vadd.f32 0.0, %v7484
      %v7486 = vpop.f32.mrf.mxu0
      %v7487 = vpop.f32.mrf.mxu0
      %v7488 = vadd.f32 0.0, %v7487
      %v7489 = vpop.f32.mrf.mxu0
      %7490 = vmatprep.mubr.bf16.mxu0 0
      %7491 = vmatmul.mubr.bf16.gmra.mxu0 %v7442
      %v7492 = vpop.f32.mrf.mxu0
      %v7493 = vadd.f32 0.0, %v7492
      %v7494 = vpop.f32.mrf.mxu0
      %v7495 = vpop.f32.mrf.mxu0
      %v7496 = vadd.f32 0.0, %v7495
      %v7497 = vpop.f32.mrf.mxu0
      %7498 = vmatprep.mubr.bf16.mxu0 0
      %7499 = vmatmul.mubr.bf16.gmra.mxu0 %v7445
      %v7500 = vpop.f32.mrf.mxu0
      %v7501 = vadd.f32 0.0, %v7500
      %v7502 = vpop.f32.mrf.mxu0
      %v7503 = vpop.f32.mrf.mxu0
      %v7504 = vadd.f32 0.0, %v7503
      %v7505 = vpop.f32.mrf.mxu0
      %7506 = vmatprep.mubr.bf16.mxu0 0
      %7507 = vmatmul.mubr.bf16.gmra.mxu0 %v7448
      %v7508 = vpop.f32.mrf.mxu0
      %v7509 = vadd.f32 0.0, %v7508
      %v7510 = vpop.f32.mrf.mxu0
      %v7511 = vpop.f32.mrf.mxu0
      %v7512 = vadd.f32 0.0, %v7511
      %v7513 = vpop.f32.mrf.mxu0
      %7514 = vdwg.mxu0
      %v7516 = vsel %vm3422, %v7191, 0
      %v7519 = vsel %vm3422, %v7192, 0
      %v7522 = vsel %vm3422, %v7193, 0
      %v7525 = vsel %vm3422, %v7194, 0
      %7527 = vmatprep.subr.bf16.mxu0 0
      %7528 = vmatpush1.bf16.msra.mxu0 0
      %7529 = vmatprep.subr.bf16.mxu0 0
      %7530 = vmatpush1.bf16.msra.mxu0 0
      %7531 = vmatprep.subr.bf16.mxu0 0
      %7532 = vmatpush1.bf16.msra.mxu0 0
      %7533 = vmatprep.subr.bf16.mxu0 0
      %7534 = vmatpush1.bf16.msra.mxu0 0
      %7535 = vmatprep.subr.bf16.mxu0 0
      %7536 = vmatpush1.bf16.msra.mxu0 %v5746
      %7537 = vmatprep.subr.bf16.mxu0 0
      %7538 = vmatpush1.bf16.msra.mxu0 %v5745
      %7539 = vmatprep.subr.bf16.mxu0 0
      %7540 = vmatpush1.bf16.msra.mxu0 %v5744
      %7541 = vmatprep.subr.bf16.mxu0 0
      %7542 = vmatpush1.bf16.msra.mxu0 %v5743
      %7543 = vmatprep.subr.bf16.mxu0 0
      %7544 = vmatpush2.bf16.msra.mxu0 0
      %7545 = vmatprep.subr.bf16.mxu0 0
      %7546 = vmatpush2.bf16.msra.mxu0 0
      %7547 = vmatprep.subr.bf16.mxu0 0
      %7548 = vmatpush2.bf16.msra.mxu0 0
      %7549 = vmatprep.subr.bf16.mxu0 0
      %7550 = vmatpush2.bf16.msra.mxu0 0
      %7551 = vmatprep.subr.bf16.mxu0 0
      %7552 = vmatpush2.bf16.msra.mxu0 0
      %7553 = vmatprep.subr.bf16.mxu0 0
      %7554 = vmatpush2.bf16.msra.mxu0 0
      %7555 = vmatprep.subr.bf16.mxu0 0
      %7556 = vmatpush2.bf16.msra.mxu0 0
      %7557 = vmatprep.subr.bf16.mxu0 0
      %7558 = vmatpush2.bf16.msra.mxu0 0
      %7559 = vmatprep.mubr.bf16.mxu0 0
      %7560 = vmatmul.mubr.bf16.gmra.mxu0 %v7516
      %v7561 = vpop.f32.mrf.mxu0
      %v7562 = vadd.f32 0.0, %v7561
      %v7563 = vpop.f32.mrf.mxu0
      %v7564 = vpop.f32.mrf.mxu0
      %v7565 = vadd.f32 0.0, %v7564
      %v7566 = vpop.f32.mrf.mxu0
      %7567 = vmatprep.mubr.bf16.mxu0 0
      %7568 = vmatmul.mubr.bf16.gmra.mxu0 %v7519
      %v7569 = vpop.f32.mrf.mxu0
      %v7570 = vadd.f32 0.0, %v7569
      %v7571 = vpop.f32.mrf.mxu0
      %v7572 = vpop.f32.mrf.mxu0
      %v7573 = vadd.f32 0.0, %v7572
      %v7574 = vpop.f32.mrf.mxu0
      %7575 = vmatprep.mubr.bf16.mxu0 0
      %7576 = vmatmul.mubr.bf16.gmra.mxu0 %v7522
      %v7577 = vpop.f32.mrf.mxu0
      %v7578 = vadd.f32 0.0, %v7577
      %v7579 = vpop.f32.mrf.mxu0
      %v7580 = vpop.f32.mrf.mxu0
      %v7581 = vadd.f32 0.0, %v7580
      %v7582 = vpop.f32.mrf.mxu0
      %7583 = vmatprep.mubr.bf16.mxu0 0
      %7584 = vmatmul.mubr.bf16.gmra.mxu0 %v7525
      %v7585 = vpop.f32.mrf.mxu0
      %v7586 = vadd.f32 0.0, %v7585
      %v7587 = vpop.f32.mrf.mxu0
      %v7588 = vpop.f32.mrf.mxu0
      %v7589 = vadd.f32 0.0, %v7588
      %v7590 = vpop.f32.mrf.mxu0
      %7591 = vdwg.mxu0
      %v7593 = vsel %vm3422, %v7195, 0
      %v7596 = vsel %vm3422, %v7196, 0
      %v7599 = vsel %vm3422, %v7197, 0
      %v7602 = vsel %vm3422, %v7198, 0
      %7604 = vmatprep.subr.bf16.mxu0 0
      %7605 = vmatpush1.bf16.msra.mxu0 0
      %7606 = vmatprep.subr.bf16.mxu0 0
      %7607 = vmatpush1.bf16.msra.mxu0 0
      %7608 = vmatprep.subr.bf16.mxu0 0
      %7609 = vmatpush1.bf16.msra.mxu0 0
      %7610 = vmatprep.subr.bf16.mxu0 0
      %7611 = vmatpush1.bf16.msra.mxu0 0
      %7612 = vmatprep.subr.bf16.mxu0 0
      %7613 = vmatpush1.bf16.msra.mxu0 %v5750
      %7614 = vmatprep.subr.bf16.mxu0 0
      %7615 = vmatpush1.bf16.msra.mxu0 %v5749
      %7616 = vmatprep.subr.bf16.mxu0 0
      %7617 = vmatpush1.bf16.msra.mxu0 %v5748
      %7618 = vmatprep.subr.bf16.mxu0 0
      %7619 = vmatpush1.bf16.msra.mxu0 %v5747
      %7620 = vmatprep.subr.bf16.mxu0 0
      %7621 = vmatpush2.bf16.msra.mxu0 0
      %7622 = vmatprep.subr.bf16.mxu0 0
      %7623 = vmatpush2.bf16.msra.mxu0 0
      %7624 = vmatprep.subr.bf16.mxu0 0
      %7625 = vmatpush2.bf16.msra.mxu0 0
      %7626 = vmatprep.subr.bf16.mxu0 0
      %7627 = vmatpush2.bf16.msra.mxu0 0
      %7628 = vmatprep.subr.bf16.mxu0 0
      %7629 = vmatpush2.bf16.msra.mxu0 0
      %7630 = vmatprep.subr.bf16.mxu0 0
      %7631 = vmatpush2.bf16.msra.mxu0 0
      %7632 = vmatprep.subr.bf16.mxu0 0
      %7633 = vmatpush2.bf16.msra.mxu0 0
      %7634 = vmatprep.subr.bf16.mxu0 0
      %7635 = vmatpush2.bf16.msra.mxu0 0
      %7636 = vmatprep.mubr.bf16.mxu0 0
      %7637 = vmatmul.mubr.bf16.gmra.mxu0 %v7593
      %v7638 = vpop.f32.mrf.mxu0
      %v7639 = vadd.f32 0.0, %v7638
      %v7640 = vpop.f32.mrf.mxu0
      %v7641 = vpop.f32.mrf.mxu0
      %v7642 = vadd.f32 0.0, %v7641
      %v7643 = vpop.f32.mrf.mxu0
      %7644 = vmatprep.mubr.bf16.mxu0 0
      %7645 = vmatmul.mubr.bf16.gmra.mxu0 %v7596
      %v7646 = vpop.f32.mrf.mxu0
      %v7647 = vadd.f32 0.0, %v7646
      %v7648 = vpop.f32.mrf.mxu0
      %v7649 = vpop.f32.mrf.mxu0
      %v7650 = vadd.f32 0.0, %v7649
      %v7651 = vpop.f32.mrf.mxu0
      %7652 = vmatprep.mubr.bf16.mxu0 0
      %7653 = vmatmul.mubr.bf16.gmra.mxu0 %v7599
      %v7654 = vpop.f32.mrf.mxu0
      %v7655 = vadd.f32 0.0, %v7654
      %v7656 = vpop.f32.mrf.mxu0
      %v7657 = vpop.f32.mrf.mxu0
      %v7658 = vadd.f32 0.0, %v7657
      %v7659 = vpop.f32.mrf.mxu0
      %7660 = vmatprep.mubr.bf16.mxu0 0
      %7661 = vmatmul.mubr.bf16.gmra.mxu0 %v7602
      %v7662 = vpop.f32.mrf.mxu0
      %v7663 = vadd.f32 0.0, %v7662
      %v7664 = vpop.f32.mrf.mxu0
      %v7665 = vpop.f32.mrf.mxu0
      %v7666 = vadd.f32 0.0, %v7665
      %v7667 = vpop.f32.mrf.mxu0
      %7668 = vdwg.mxu0
      %v7670 = vsel %vm3422, %v7199, 0
      %v7673 = vsel %vm3422, %v7200, 0
      %v7676 = vsel %vm3422, %v7201, 0
      %v7679 = vsel %vm3422, %v7202, 0
      %7681 = vmatprep.subr.bf16.mxu0 0
      %7682 = vmatpush1.bf16.msra.mxu0 0
      %7683 = vmatprep.subr.bf16.mxu0 0
      %7684 = vmatpush1.bf16.msra.mxu0 0
      %7685 = vmatprep.subr.bf16.mxu0 0
      %7686 = vmatpush1.bf16.msra.mxu0 0
      %7687 = vmatprep.subr.bf16.mxu0 0
      %7688 = vmatpush1.bf16.msra.mxu0 0
      %7689 = vmatprep.subr.bf16.mxu0 0
      %7690 = vmatpush1.bf16.msra.mxu0 %v5754
      %7691 = vmatprep.subr.bf16.mxu0 0
      %7692 = vmatpush1.bf16.msra.mxu0 %v5753
      %7693 = vmatprep.subr.bf16.mxu0 0
      %7694 = vmatpush1.bf16.msra.mxu0 %v5752
      %7695 = vmatprep.subr.bf16.mxu0 0
      %7696 = vmatpush1.bf16.msra.mxu0 %v5751
      %7697 = vmatprep.subr.bf16.mxu0 0
      %7698 = vmatpush2.bf16.msra.mxu0 0
      %7699 = vmatprep.subr.bf16.mxu0 0
      %7700 = vmatpush2.bf16.msra.mxu0 0
      %7701 = vmatprep.subr.bf16.mxu0 0
      %7702 = vmatpush2.bf16.msra.mxu0 0
      %7703 = vmatprep.subr.bf16.mxu0 0
      %7704 = vmatpush2.bf16.msra.mxu0 0
      %7705 = vmatprep.subr.bf16.mxu0 0
      %7706 = vmatpush2.bf16.msra.mxu0 0
      %7707 = vmatprep.subr.bf16.mxu0 0
      %7708 = vmatpush2.bf16.msra.mxu0 0
      %7709 = vmatprep.subr.bf16.mxu0 0
      %7710 = vmatpush2.bf16.msra.mxu0 0
      %7711 = vmatprep.subr.bf16.mxu0 0
      %7712 = vmatpush2.bf16.msra.mxu0 0
      %7713 = vmatprep.mubr.bf16.mxu0 0
      %7714 = vmatmul.mubr.bf16.gmra.mxu0 %v7670
      %v7715 = vpop.f32.mrf.mxu0
      %v7716 = vadd.f32 0.0, %v7715
      %v7717 = vpop.f32.mrf.mxu0
      %v7718 = vpop.f32.mrf.mxu0
      %v7719 = vadd.f32 0.0, %v7718
      %v7720 = vpop.f32.mrf.mxu0
      %7721 = vmatprep.mubr.bf16.mxu0 0
      %7722 = vmatmul.mubr.bf16.gmra.mxu0 %v7673
      %v7723 = vpop.f32.mrf.mxu0
      %v7724 = vadd.f32 0.0, %v7723
      %v7725 = vpop.f32.mrf.mxu0
      %v7726 = vpop.f32.mrf.mxu0
      %v7727 = vadd.f32 0.0, %v7726
      %v7728 = vpop.f32.mrf.mxu0
      %7729 = vmatprep.mubr.bf16.mxu0 0
      %7730 = vmatmul.mubr.bf16.gmra.mxu0 %v7676
      %v7731 = vpop.f32.mrf.mxu0
      %v7732 = vadd.f32 0.0, %v7731
      %v7733 = vpop.f32.mrf.mxu0
      %v7734 = vpop.f32.mrf.mxu0
      %v7735 = vadd.f32 0.0, %v7734
      %v7736 = vpop.f32.mrf.mxu0
      %7737 = vmatprep.mubr.bf16.mxu0 0
      %7738 = vmatmul.mubr.bf16.gmra.mxu0 %v7679
      %v7739 = vpop.f32.mrf.mxu0
      %v7740 = vadd.f32 0.0, %v7739
      %v7741 = vpop.f32.mrf.mxu0
      %v7742 = vpop.f32.mrf.mxu0
      %v7743 = vadd.f32 0.0, %v7742
      %v7744 = vpop.f32.mrf.mxu0
      %7745 = vdwg.mxu0
      %v7747 = vsel %vm3422, %v7203, 0
      %v7750 = vsel %vm3422, %v7204, 0
      %v7753 = vsel %vm3422, %v7205, 0
      %v7756 = vsel %vm3422, %v7206, 0
      %7758 = vmatprep.subr.bf16.mxu0 0
      %7759 = vmatpush1.bf16.msra.mxu0 0
      %7760 = vmatprep.subr.bf16.mxu0 0
      %7761 = vmatpush1.bf16.msra.mxu0 0
      %7762 = vmatprep.subr.bf16.mxu0 0
      %7763 = vmatpush1.bf16.msra.mxu0 0
      %7764 = vmatprep.subr.bf16.mxu0 0
      %7765 = vmatpush1.bf16.msra.mxu0 0
      %7766 = vmatprep.subr.bf16.mxu0 0
      %7767 = vmatpush1.bf16.msra.mxu0 %v5758
      %7768 = vmatprep.subr.bf16.mxu0 0
      %7769 = vmatpush1.bf16.msra.mxu0 %v5757
      %7770 = vmatprep.subr.bf16.mxu0 0
      %7771 = vmatpush1.bf16.msra.mxu0 %v5756
      %7772 = vmatprep.subr.bf16.mxu0 0
      %7773 = vmatpush1.bf16.msra.mxu0 %v5755
      %7774 = vmatprep.subr.bf16.mxu0 0
      %7775 = vmatpush2.bf16.msra.mxu0 0
      %7776 = vmatprep.subr.bf16.mxu0 0
      %7777 = vmatpush2.bf16.msra.mxu0 0
      %7778 = vmatprep.subr.bf16.mxu0 0
      %7779 = vmatpush2.bf16.msra.mxu0 0
      %7780 = vmatprep.subr.bf16.mxu0 0
      %7781 = vmatpush2.bf16.msra.mxu0 0
      %7782 = vmatprep.subr.bf16.mxu0 0
      %7783 = vmatpush2.bf16.msra.mxu0 0
      %7784 = vmatprep.subr.bf16.mxu0 0
      %7785 = vmatpush2.bf16.msra.mxu0 0
      %7786 = vmatprep.subr.bf16.mxu0 0
      %7787 = vmatpush2.bf16.msra.mxu0 0
      %7788 = vmatprep.subr.bf16.mxu0 0
      %7789 = vmatpush2.bf16.msra.mxu0 0
      %7790 = vmatprep.mubr.bf16.mxu0 0
      %7791 = vmatmul.mubr.bf16.gmra.mxu0 %v7747
      %v7792 = vpop.f32.mrf.mxu0
      %v7793 = vadd.f32 0.0, %v7792
      %v7794 = vpop.f32.mrf.mxu0
      %v7795 = vpop.f32.mrf.mxu0
      %v7796 = vadd.f32 0.0, %v7795
      %v7797 = vpop.f32.mrf.mxu0
      %7798 = vmatprep.mubr.bf16.mxu0 0
      %7799 = vmatmul.mubr.bf16.gmra.mxu0 %v7750
      %v7800 = vpop.f32.mrf.mxu0
      %v7801 = vadd.f32 0.0, %v7800
      %v7802 = vpop.f32.mrf.mxu0
      %v7803 = vpop.f32.mrf.mxu0
      %v7804 = vadd.f32 0.0, %v7803
      %v7805 = vpop.f32.mrf.mxu0
      %7806 = vmatprep.mubr.bf16.mxu0 0
      %7807 = vmatmul.mubr.bf16.gmra.mxu0 %v7753
      %v7808 = vpop.f32.mrf.mxu0
      %v7809 = vadd.f32 0.0, %v7808
      %v7810 = vpop.f32.mrf.mxu0
      %v7811 = vpop.f32.mrf.mxu0
      %v7812 = vadd.f32 0.0, %v7811
      %v7813 = vpop.f32.mrf.mxu0
      %7814 = vmatprep.mubr.bf16.mxu0 0
      %7815 = vmatmul.mubr.bf16.gmra.mxu0 %v7756
      %v7816 = vpop.f32.mrf.mxu0
      %v7817 = vadd.f32 0.0, %v7816
      %v7818 = vpop.f32.mrf.mxu0
      %v7819 = vpop.f32.mrf.mxu0
      %v7820 = vadd.f32 0.0, %v7819
      %v7821 = vpop.f32.mrf.mxu0
      %7822 = vdwg.mxu0
      %7887 = vrot.lane.b32.xlu0 %v7254, 16
      %v7888 = vpop.permute.xlu0 %7887
      %7889 = vrot.lane.b32.xlu0 %v7257, 16
      %v7890 = vpop.permute.xlu0 %7889
      %7891 = vrot.lane.b32.xlu0 %v7262, 16
      %v7892 = vpop.permute.xlu0 %7891
      %7893 = vrot.lane.b32.xlu0 %v7265, 16
      %v7894 = vpop.permute.xlu0 %7893
      %7895 = vrot.lane.b32.xlu0 %v7270, 16
      %v7896 = vpop.permute.xlu0 %7895
      %7897 = vrot.lane.b32.xlu0 %v7273, 16
      %v7898 = vpop.permute.xlu0 %7897
      %7899 = vrot.lane.b32.xlu0 %v7278, 16
      %v7900 = vpop.permute.xlu0 %7899
      %7901 = vrot.lane.b32.xlu0 %v7281, 16
      %v7902 = vpop.permute.xlu0 %7901
      %7903 = vrot.lane.b32.xlu0 %v7331, 16
      %v7904 = vpop.permute.xlu0 %7903
      %7905 = vrot.lane.b32.xlu0 %v7334, 16
      %v7906 = vpop.permute.xlu0 %7905
      %7907 = vrot.lane.b32.xlu0 %v7339, 16
      %v7908 = vpop.permute.xlu0 %7907
      %7909 = vrot.lane.b32.xlu0 %v7342, 16
      %v7910 = vpop.permute.xlu0 %7909
      %7911 = vrot.lane.b32.xlu0 %v7347, 16
      %v7912 = vpop.permute.xlu0 %7911
      %7913 = vrot.lane.b32.xlu0 %v7350, 16
      %v7914 = vpop.permute.xlu0 %7913
      %7915 = vrot.lane.b32.xlu0 %v7355, 16
      %v7916 = vpop.permute.xlu0 %7915
      %7917 = vrot.lane.b32.xlu0 %v7358, 16
      %v7918 = vpop.permute.xlu0 %7917
      %7919 = vrot.lane.b32.xlu0 %v7408, 16
      %v7920 = vpop.permute.xlu0 %7919
      %7921 = vrot.lane.b32.xlu0 %v7411, 16
      %v7922 = vpop.permute.xlu0 %7921
      %7923 = vrot.lane.b32.xlu0 %v7416, 16
      %v7924 = vpop.permute.xlu0 %7923
      %7925 = vrot.lane.b32.xlu0 %v7419, 16
      %v7926 = vpop.permute.xlu0 %7925
      %7927 = vrot.lane.b32.xlu0 %v7424, 16
      %v7928 = vpop.permute.xlu0 %7927
      %7929 = vrot.lane.b32.xlu0 %v7427, 16
      %v7930 = vpop.permute.xlu0 %7929
      %7931 = vrot.lane.b32.xlu0 %v7432, 16
      %v7932 = vpop.permute.xlu0 %7931
      %7933 = vrot.lane.b32.xlu0 %v7435, 16
      %v7934 = vpop.permute.xlu0 %7933
      %7935 = vrot.lane.b32.xlu0 %v7485, 16
      %v7936 = vpop.permute.xlu0 %7935
      %7937 = vrot.lane.b32.xlu0 %v7488, 16
      %v7938 = vpop.permute.xlu0 %7937
      %7939 = vrot.lane.b32.xlu0 %v7493, 16
      %v7940 = vpop.permute.xlu0 %7939
      %7941 = vrot.lane.b32.xlu0 %v7496, 16
      %v7942 = vpop.permute.xlu0 %7941
      %7943 = vrot.lane.b32.xlu0 %v7501, 16
      %v7944 = vpop.permute.xlu0 %7943
      %7945 = vrot.lane.b32.xlu0 %v7504, 16
      %v7946 = vpop.permute.xlu0 %7945
      %7947 = vrot.lane.b32.xlu0 %v7509, 16
      %v7948 = vpop.permute.xlu0 %7947
      %7949 = vrot.lane.b32.xlu0 %v7512, 16
      %v7950 = vpop.permute.xlu0 %7949
      %7951 = vrot.lane.b32.xlu0 %v7562, 16
      %v7952 = vpop.permute.xlu0 %7951
      %7953 = vrot.lane.b32.xlu0 %v7565, 16
      %v7954 = vpop.permute.xlu0 %7953
      %7955 = vrot.lane.b32.xlu0 %v7570, 16
      %v7956 = vpop.permute.xlu0 %7955
      %7957 = vrot.lane.b32.xlu0 %v7573, 16
      %v7958 = vpop.permute.xlu0 %7957
      %7959 = vrot.lane.b32.xlu0 %v7578, 16
      %v7960 = vpop.permute.xlu0 %7959
      %7961 = vrot.lane.b32.xlu0 %v7581, 16
      %v7962 = vpop.permute.xlu0 %7961
      %7963 = vrot.lane.b32.xlu0 %v7586, 16
      %v7964 = vpop.permute.xlu0 %7963
      %7965 = vrot.lane.b32.xlu0 %v7589, 16
      %v7966 = vpop.permute.xlu0 %7965
      %7967 = vrot.lane.b32.xlu0 %v7639, 16
      %v7968 = vpop.permute.xlu0 %7967
      %7969 = vrot.lane.b32.xlu0 %v7642, 16
      %v7970 = vpop.permute.xlu0 %7969
      %7971 = vrot.lane.b32.xlu0 %v7647, 16
      %v7972 = vpop.permute.xlu0 %7971
      %7973 = vrot.lane.b32.xlu0 %v7650, 16
      %v7974 = vpop.permute.xlu0 %7973
      %7975 = vrot.lane.b32.xlu0 %v7655, 16
      %v7976 = vpop.permute.xlu0 %7975
      %7977 = vrot.lane.b32.xlu0 %v7658, 16
      %v7978 = vpop.permute.xlu0 %7977
      %7979 = vrot.lane.b32.xlu0 %v7663, 16
      %v7980 = vpop.permute.xlu0 %7979
      %7981 = vrot.lane.b32.xlu0 %v7666, 16
      %v7982 = vpop.permute.xlu0 %7981
      %7983 = vrot.lane.b32.xlu0 %v7716, 16
      %v7984 = vpop.permute.xlu0 %7983
      %7985 = vrot.lane.b32.xlu0 %v7719, 16
      %v7986 = vpop.permute.xlu0 %7985
      %7987 = vrot.lane.b32.xlu0 %v7724, 16
      %v7988 = vpop.permute.xlu0 %7987
      %7989 = vrot.lane.b32.xlu0 %v7727, 16
      %v7990 = vpop.permute.xlu0 %7989
      %7991 = vrot.lane.b32.xlu0 %v7732, 16
      %v7992 = vpop.permute.xlu0 %7991
      %7993 = vrot.lane.b32.xlu0 %v7735, 16
      %v7994 = vpop.permute.xlu0 %7993
      %7995 = vrot.lane.b32.xlu0 %v7740, 16
      %v7996 = vpop.permute.xlu0 %7995
      %7997 = vrot.lane.b32.xlu0 %v7743, 16
      %v7998 = vpop.permute.xlu0 %7997
      %7999 = vrot.lane.b32.xlu0 %v7793, 16
      %v8000 = vpop.permute.xlu0 %7999
      %8001 = vrot.lane.b32.xlu0 %v7796, 16
      %v8002 = vpop.permute.xlu0 %8001
      %8003 = vrot.lane.b32.xlu0 %v7801, 16
      %v8004 = vpop.permute.xlu0 %8003
      %8005 = vrot.lane.b32.xlu0 %v7804, 16
      %v8006 = vpop.permute.xlu0 %8005
      %8007 = vrot.lane.b32.xlu0 %v7809, 16
      %v8008 = vpop.permute.xlu0 %8007
      %8009 = vrot.lane.b32.xlu0 %v7812, 16
      %v8010 = vpop.permute.xlu0 %8009
      %8011 = vrot.lane.b32.xlu0 %v7817, 16
      %v8012 = vpop.permute.xlu0 %8011
      %8013 = vrot.lane.b32.xlu0 %v7820, 16
      %v8014 = vpop.permute.xlu0 %8013
      %v8079 = vsel %vm2709, %v4206, %v7888
      %v8080 = vsel %vm2709, %v4209, %v7890
      %v8081 = vsel %vm2709, %v4214, %v7892
      %v8082 = vsel %vm2709, %v4217, %v7894
      %v8083 = vsel %vm2709, %v4222, %v7896
      %v8084 = vsel %vm2709, %v4225, %v7898
      %v8085 = vsel %vm2709, %v4230, %v7900
      %v8086 = vsel %vm2709, %v4233, %v7902
      %v8087 = vsel %vm2709, %v4283, %v7904
      %v8088 = vsel %vm2709, %v4286, %v7906
      %v8089 = vsel %vm2709, %v4291, %v7908
      %v8090 = vsel %vm2709, %v4294, %v7910
      %v8091 = vsel %vm2709, %v4299, %v7912
      %v8092 = vsel %vm2709, %v4302, %v7914
      %v8093 = vsel %vm2709, %v4307, %v7916
      %v8094 = vsel %vm2709, %v4310, %v7918
      %v8095 = vsel %vm2709, %v4360, %v7920
      %v8096 = vsel %vm2709, %v4363, %v7922
      %v8097 = vsel %vm2709, %v4368, %v7924
      %v8098 = vsel %vm2709, %v4371, %v7926
      %v8099 = vsel %vm2709, %v4376, %v7928
      %v8100 = vsel %vm2709, %v4379, %v7930
      %v8101 = vsel %vm2709, %v4384, %v7932
      %v8102 = vsel %vm2709, %v4387, %v7934
      %v8103 = vsel %vm2709, %v4437, %v7936
      %v8104 = vsel %vm2709, %v4440, %v7938
      %v8105 = vsel %vm2709, %v4445, %v7940
      %v8106 = vsel %vm2709, %v4448, %v7942
      %v8107 = vsel %vm2709, %v4453, %v7944
      %v8108 = vsel %vm2709, %v4456, %v7946
      %v8109 = vsel %vm2709, %v4461, %v7948
      %v8110 = vsel %vm2709, %v4464, %v7950
      %v8111 = vsel %vm2709, %v4514, %v7952
      %v8112 = vsel %vm2709, %v4517, %v7954
      %v8113 = vsel %vm2709, %v4522, %v7956
      %v8114 = vsel %vm2709, %v4525, %v7958
      %v8115 = vsel %vm2709, %v4530, %v7960
      %v8116 = vsel %vm2709, %v4533, %v7962
      %v8117 = vsel %vm2709, %v4538, %v7964
      %v8118 = vsel %vm2709, %v4541, %v7966
      %v8119 = vsel %vm2709, %v4591, %v7968
      %v8120 = vsel %vm2709, %v4594, %v7970
      %v8121 = vsel %vm2709, %v4599, %v7972
      %v8122 = vsel %vm2709, %v4602, %v7974
      %v8123 = vsel %vm2709, %v4607, %v7976
      %v8124 = vsel %vm2709, %v4610, %v7978
      %v8125 = vsel %vm2709, %v4615, %v7980
      %v8126 = vsel %vm2709, %v4618, %v7982
      %v8127 = vsel %vm2709, %v4668, %v7984
      %v8128 = vsel %vm2709, %v4671, %v7986
      %v8129 = vsel %vm2709, %v4676, %v7988
      %v8130 = vsel %vm2709, %v4679, %v7990
      %v8131 = vsel %vm2709, %v4684, %v7992
      %v8132 = vsel %vm2709, %v4687, %v7994
      %v8133 = vsel %vm2709, %v4692, %v7996
      %v8134 = vsel %vm2709, %v4695, %v7998
      %v8135 = vsel %vm2709, %v4745, %v8000
      %v8136 = vsel %vm2709, %v4748, %v8002
      %v8137 = vsel %vm2709, %v4753, %v8004
      %v8138 = vsel %vm2709, %v4756, %v8006
      %v8139 = vsel %vm2709, %v4761, %v8008
      %v8140 = vsel %vm2709, %v4764, %v8010
      %v8141 = vsel %vm2709, %v4769, %v8012
      %v8142 = vsel %vm2709, %v4772, %v8014
      %v8143 = vpack.c.bf16 %v8080, %v8079
      %v8144 = vpack.c.bf16 %v8082, %v8081
      %v8145 = vpack.c.bf16 %v8084, %v8083
      %v8146 = vpack.c.bf16 %v8086, %v8085
      %v8147 = vpack.c.bf16 %v8088, %v8087
      %v8148 = vpack.c.bf16 %v8090, %v8089
      %v8149 = vpack.c.bf16 %v8092, %v8091
      %v8150 = vpack.c.bf16 %v8094, %v8093
      %v8151 = vpack.c.bf16 %v8096, %v8095
      %v8152 = vpack.c.bf16 %v8098, %v8097
      %v8153 = vpack.c.bf16 %v8100, %v8099
      %v8154 = vpack.c.bf16 %v8102, %v8101
      %v8155 = vpack.c.bf16 %v8104, %v8103
      %v8156 = vpack.c.bf16 %v8106, %v8105
      %v8157 = vpack.c.bf16 %v8108, %v8107
      %v8158 = vpack.c.bf16 %v8110, %v8109
      %v8159 = vpack.c.bf16 %v8112, %v8111
      %v8160 = vpack.c.bf16 %v8114, %v8113
      %v8161 = vpack.c.bf16 %v8116, %v8115
      %v8162 = vpack.c.bf16 %v8118, %v8117
      %v8163 = vpack.c.bf16 %v8120, %v8119
      %v8164 = vpack.c.bf16 %v8122, %v8121
      %v8165 = vpack.c.bf16 %v8124, %v8123
      %v8166 = vpack.c.bf16 %v8126, %v8125
      %v8167 = vpack.c.bf16 %v8128, %v8127
      %v8168 = vpack.c.bf16 %v8130, %v8129
      %v8169 = vpack.c.bf16 %v8132, %v8131
      %v8170 = vpack.c.bf16 %v8134, %v8133
      %v8171 = vpack.c.bf16 %v8136, %v8135
      %v8172 = vpack.c.bf16 %v8138, %v8137
      %v8173 = vpack.c.bf16 %v8140, %v8139
      %v8174 = vpack.c.bf16 %v8142, %v8141
      %v8175 = vld [vmem:[%s7] sm:$0xff]
      %v8176 = vld [vmem:[%s7 + $0x8] sm:$0xff]
      %v8177 = vld [vmem:[%s7 + $0x10] sm:$0xff]
      %v8178 = vld [vmem:[%s7 + $0x18] sm:$0xff]
      %v8179 = vpack.c.bf16 %v8176, %v8175
      %v8180 = vpack.c.bf16 %v8178, %v8177
      %v8181 = vld [vmem:[%s8] sm:$0x1]
      %v8183 = vlaneseq
      %v8184 = vshrl.u32 %v8183, 7
      %v8185 = vsub.s32 0, %v8184
      %v8186 = vrot.slane %v8181, %v8185
      %v8189 = vsel %vm562, %v8143, 0
      %v8192 = vsel %vm562, %v8144, 0
      %v8195 = vsel %vm562, %v8145, 0
      %v8198 = vsel %vm562, %v8146, 0
      %v8201 = vsel %vm562, %v8147, 0
      %v8204 = vsel %vm562, %v8148, 0
      %v8207 = vsel %vm562, %v8149, 0
      %v8210 = vsel %vm562, %v8150, 0
      %v8213 = vsel %vm562, %v8151, 0
      %v8216 = vsel %vm562, %v8152, 0
      %v8219 = vsel %vm562, %v8153, 0
      %v8222 = vsel %vm562, %v8154, 0
      %v8225 = vsel %vm562, %v8155, 0
      %v8228 = vsel %vm562, %v8156, 0
      %v8231 = vsel %vm562, %v8157, 0
      %v8234 = vsel %vm562, %v8158, 0
      %v8237 = vsel %vm562, %v8159, 0
      %v8240 = vsel %vm562, %v8160, 0
      %v8243 = vsel %vm562, %v8161, 0
      %v8246 = vsel %vm562, %v8162, 0
      %v8249 = vsel %vm562, %v8163, 0
      %v8252 = vsel %vm562, %v8164, 0
      %v8255 = vsel %vm562, %v8165, 0
      %v8258 = vsel %vm562, %v8166, 0
      %v8261 = vsel %vm562, %v8167, 0
      %v8264 = vsel %vm562, %v8168, 0
      %v8267 = vsel %vm562, %v8169, 0
      %v8270 = vsel %vm562, %v8170, 0
      %v8273 = vsel %vm562, %v8171, 0
      %v8276 = vsel %vm562, %v8172, 0
      %v8279 = vsel %vm562, %v8173, 0
      %v8282 = vsel %vm562, %v8174, 0
      %8284 = vmatprep.subr.bf16.mxu0 0
      %8285 = vmatpush1.bf16.msra.mxu0 0
      %8286 = vmatprep.subr.bf16.mxu0 0
      %8287 = vmatpush1.bf16.msra.mxu0 0
      %8288 = vmatprep.subr.bf16.mxu0 0
      %8289 = vmatpush1.bf16.msra.mxu0 0
      %8290 = vmatprep.subr.bf16.mxu0 0
      %8291 = vmatpush1.bf16.msra.mxu0 0
      %8292 = vmatprep.subr.bf16.mxu0 0
      %8293 = vmatpush1.bf16.msra.mxu0 0
      %8294 = vmatprep.subr.bf16.mxu0 0
      %8295 = vmatpush1.bf16.msra.mxu0 0
      %8296 = vmatprep.subr.bf16.mxu0 0
      %8297 = vmatpush1.bf16.msra.mxu0 %v8180
      %8298 = vmatprep.subr.bf16.mxu0 0
      %8299 = vmatpush1.bf16.msra.mxu0 %v8179
      %8300 = vmatprep.subr.bf16.mxu0 0
      %8301 = vmatpush2.bf16.msra.mxu0 0
      %8302 = vmatprep.subr.bf16.mxu0 0
      %8303 = vmatpush2.bf16.msra.mxu0 0
      %8304 = vmatprep.subr.bf16.mxu0 0
      %8305 = vmatpush2.bf16.msra.mxu0 0
      %8306 = vmatprep.subr.bf16.mxu0 0
      %8307 = vmatpush2.bf16.msra.mxu0 0
      %8308 = vmatprep.subr.bf16.mxu0 0
      %8309 = vmatpush2.bf16.msra.mxu0 0
      %8310 = vmatprep.subr.bf16.mxu0 0
      %8311 = vmatpush2.bf16.msra.mxu0 0
      %8312 = vmatprep.subr.bf16.mxu0 0
      %8313 = vmatpush2.bf16.msra.mxu0 0
      %8314 = vmatprep.subr.bf16.mxu0 0
      %8315 = vmatpush2.bf16.msra.mxu0 0
      %8316 = vmatprep.mubr.bf16.mxu0 0
      %8317 = vmatmul.mubr.bf16.gmra.mxu0 %v8189
      %v8318 = vpop.f32.mrf.mxu0
      %v8319 = vadd.f32 %v8186, %v8318
      %v8320 = vpop.f32.mrf.mxu0
      %v8321 = vpop.f32.mrf.mxu0
      %v8322 = vadd.f32 %v8186, %v8321
      %v8323 = vpop.f32.mrf.mxu0
      %8324 = vmatprep.mubr.bf16.mxu0 0
      %8325 = vmatmul.mubr.bf16.gmra.mxu0 %v8192
      %v8326 = vpop.f32.mrf.mxu0
      %v8327 = vadd.f32 %v8186, %v8326
      %v8328 = vpop.f32.mrf.mxu0
      %v8329 = vpop.f32.mrf.mxu0
      %v8330 = vadd.f32 %v8186, %v8329
      %v8331 = vpop.f32.mrf.mxu0
      %8332 = vmatprep.mubr.bf16.mxu0 0
      %8333 = vmatmul.mubr.bf16.gmra.mxu0 %v8195
      %v8334 = vpop.f32.mrf.mxu0
      %v8335 = vadd.f32 %v8186, %v8334
      %v8336 = vpop.f32.mrf.mxu0
      %v8337 = vpop.f32.mrf.mxu0
      %v8338 = vadd.f32 %v8186, %v8337
      %v8339 = vpop.f32.mrf.mxu0
      %8340 = vmatprep.mubr.bf16.mxu0 0
      %8341 = vmatmul.mubr.bf16.gmra.mxu0 %v8198
      %v8342 = vpop.f32.mrf.mxu0
      %v8343 = vadd.f32 %v8186, %v8342
      %v8344 = vpop.f32.mrf.mxu0
      %v8345 = vpop.f32.mrf.mxu0
      %v8346 = vadd.f32 %v8186, %v8345
      %v8347 = vpop.f32.mrf.mxu0
      %8348 = vmatprep.mubr.bf16.mxu0 0
      %8349 = vmatmul.mubr.bf16.gmra.mxu0 %v8201
      %v8350 = vpop.f32.mrf.mxu0
      %v8351 = vadd.f32 %v8186, %v8350
      %v8352 = vpop.f32.mrf.mxu0
      %v8353 = vpop.f32.mrf.mxu0
      %v8354 = vadd.f32 %v8186, %v8353
      %v8355 = vpop.f32.mrf.mxu0
      %8356 = vmatprep.mubr.bf16.mxu0 0
      %8357 = vmatmul.mubr.bf16.gmra.mxu0 %v8204
      %v8358 = vpop.f32.mrf.mxu0
      %v8359 = vadd.f32 %v8186, %v8358
      %v8360 = vpop.f32.mrf.mxu0
      %v8361 = vpop.f32.mrf.mxu0
      %v8362 = vadd.f32 %v8186, %v8361
      %v8363 = vpop.f32.mrf.mxu0
      %8364 = vmatprep.mubr.bf16.mxu0 0
      %8365 = vmatmul.mubr.bf16.gmra.mxu0 %v8207
      %v8366 = vpop.f32.mrf.mxu0
      %v8367 = vadd.f32 %v8186, %v8366
      %v8368 = vpop.f32.mrf.mxu0
      %v8369 = vpop.f32.mrf.mxu0
      %v8370 = vadd.f32 %v8186, %v8369
      %v8371 = vpop.f32.mrf.mxu0
      %8372 = vmatprep.mubr.bf16.mxu0 0
      %8373 = vmatmul.mubr.bf16.gmra.mxu0 %v8210
      %v8374 = vpop.f32.mrf.mxu0
      %v8375 = vadd.f32 %v8186, %v8374
      %v8376 = vpop.f32.mrf.mxu0
      %v8377 = vpop.f32.mrf.mxu0
      %v8378 = vadd.f32 %v8186, %v8377
      %v8379 = vpop.f32.mrf.mxu0
      %8380 = vmatprep.mubr.bf16.mxu0 0
      %8381 = vmatmul.mubr.bf16.gmra.mxu0 %v8213
      %v8382 = vpop.f32.mrf.mxu0
      %v8383 = vadd.f32 %v8186, %v8382
      %v8384 = vpop.f32.mrf.mxu0
      %v8385 = vpop.f32.mrf.mxu0
      %v8386 = vadd.f32 %v8186, %v8385
      %v8387 = vpop.f32.mrf.mxu0
      %8388 = vmatprep.mubr.bf16.mxu0 0
      %8389 = vmatmul.mubr.bf16.gmra.mxu0 %v8216
      %v8390 = vpop.f32.mrf.mxu0
      %v8391 = vadd.f32 %v8186, %v8390
      %v8392 = vpop.f32.mrf.mxu0
      %v8393 = vpop.f32.mrf.mxu0
      %v8394 = vadd.f32 %v8186, %v8393
      %v8395 = vpop.f32.mrf.mxu0
      %8396 = vmatprep.mubr.bf16.mxu0 0
      %8397 = vmatmul.mubr.bf16.gmra.mxu0 %v8219
      %v8398 = vpop.f32.mrf.mxu0
      %v8399 = vadd.f32 %v8186, %v8398
      %v8400 = vpop.f32.mrf.mxu0
      %v8401 = vpop.f32.mrf.mxu0
      %v8402 = vadd.f32 %v8186, %v8401
      %v8403 = vpop.f32.mrf.mxu0
      %8404 = vmatprep.mubr.bf16.mxu0 0
      %8405 = vmatmul.mubr.bf16.gmra.mxu0 %v8222
      %v8406 = vpop.f32.mrf.mxu0
      %v8407 = vadd.f32 %v8186, %v8406
      %v8408 = vpop.f32.mrf.mxu0
      %v8409 = vpop.f32.mrf.mxu0
      %v8410 = vadd.f32 %v8186, %v8409
      %v8411 = vpop.f32.mrf.mxu0
      %8412 = vmatprep.mubr.bf16.mxu0 0
      %8413 = vmatmul.mubr.bf16.gmra.mxu0 %v8225
      %v8414 = vpop.f32.mrf.mxu0
      %v8415 = vadd.f32 %v8186, %v8414
      %v8416 = vpop.f32.mrf.mxu0
      %v8417 = vpop.f32.mrf.mxu0
      %v8418 = vadd.f32 %v8186, %v8417
      %v8419 = vpop.f32.mrf.mxu0
      %8420 = vmatprep.mubr.bf16.mxu0 0
      %8421 = vmatmul.mubr.bf16.gmra.mxu0 %v8228
      %v8422 = vpop.f32.mrf.mxu0
      %v8423 = vadd.f32 %v8186, %v8422
      %v8424 = vpop.f32.mrf.mxu0
      %v8425 = vpop.f32.mrf.mxu0
      %v8426 = vadd.f32 %v8186, %v8425
      %v8427 = vpop.f32.mrf.mxu0
      %8428 = vmatprep.mubr.bf16.mxu0 0
      %8429 = vmatmul.mubr.bf16.gmra.mxu0 %v8231
      %v8430 = vpop.f32.mrf.mxu0
      %v8431 = vadd.f32 %v8186, %v8430
      %v8432 = vpop.f32.mrf.mxu0
      %v8433 = vpop.f32.mrf.mxu0
      %v8434 = vadd.f32 %v8186, %v8433
      %v8435 = vpop.f32.mrf.mxu0
      %8436 = vmatprep.mubr.bf16.mxu0 0
      %8437 = vmatmul.mubr.bf16.gmra.mxu0 %v8234
      %v8438 = vpop.f32.mrf.mxu0
      %v8439 = vadd.f32 %v8186, %v8438
      %v8440 = vpop.f32.mrf.mxu0
      %v8441 = vpop.f32.mrf.mxu0
      %v8442 = vadd.f32 %v8186, %v8441
      %v8443 = vpop.f32.mrf.mxu0
      %8444 = vmatprep.mubr.bf16.mxu0 0
      %8445 = vmatmul.mubr.bf16.gmra.mxu0 %v8237
      %v8446 = vpop.f32.mrf.mxu0
      %v8447 = vadd.f32 %v8186, %v8446
      %v8448 = vpop.f32.mrf.mxu0
      %v8449 = vpop.f32.mrf.mxu0
      %v8450 = vadd.f32 %v8186, %v8449
      %v8451 = vpop.f32.mrf.mxu0
      %8452 = vmatprep.mubr.bf16.mxu0 0
      %8453 = vmatmul.mubr.bf16.gmra.mxu0 %v8240
      %v8454 = vpop.f32.mrf.mxu0
      %v8455 = vadd.f32 %v8186, %v8454
      %v8456 = vpop.f32.mrf.mxu0
      %v8457 = vpop.f32.mrf.mxu0
      %v8458 = vadd.f32 %v8186, %v8457
      %v8459 = vpop.f32.mrf.mxu0
      %8460 = vmatprep.mubr.bf16.mxu0 0
      %8461 = vmatmul.mubr.bf16.gmra.mxu0 %v8243
      %v8462 = vpop.f32.mrf.mxu0
      %v8463 = vadd.f32 %v8186, %v8462
      %v8464 = vpop.f32.mrf.mxu0
      %v8465 = vpop.f32.mrf.mxu0
      %v8466 = vadd.f32 %v8186, %v8465
      %v8467 = vpop.f32.mrf.mxu0
      %8468 = vmatprep.mubr.bf16.mxu0 0
      %8469 = vmatmul.mubr.bf16.gmra.mxu0 %v8246
      %v8470 = vpop.f32.mrf.mxu0
      %v8471 = vadd.f32 %v8186, %v8470
      %v8472 = vpop.f32.mrf.mxu0
      %v8473 = vpop.f32.mrf.mxu0
      %v8474 = vadd.f32 %v8186, %v8473
      %v8475 = vpop.f32.mrf.mxu0
      %8476 = vmatprep.mubr.bf16.mxu0 0
      %8477 = vmatmul.mubr.bf16.gmra.mxu0 %v8249
      %v8478 = vpop.f32.mrf.mxu0
      %v8479 = vadd.f32 %v8186, %v8478
      %v8480 = vpop.f32.mrf.mxu0
      %v8481 = vpop.f32.mrf.mxu0
      %v8482 = vadd.f32 %v8186, %v8481
      %v8483 = vpop.f32.mrf.mxu0
      %8484 = vmatprep.mubr.bf16.mxu0 0
      %8485 = vmatmul.mubr.bf16.gmra.mxu0 %v8252
      %v8486 = vpop.f32.mrf.mxu0
      %v8487 = vadd.f32 %v8186, %v8486
      %v8488 = vpop.f32.mrf.mxu0
      %v8489 = vpop.f32.mrf.mxu0
      %v8490 = vadd.f32 %v8186, %v8489
      %v8491 = vpop.f32.mrf.mxu0
      %8492 = vmatprep.mubr.bf16.mxu0 0
      %8493 = vmatmul.mubr.bf16.gmra.mxu0 %v8255
      %v8494 = vpop.f32.mrf.mxu0
      %v8495 = vadd.f32 %v8186, %v8494
      %v8496 = vpop.f32.mrf.mxu0
      %v8497 = vpop.f32.mrf.mxu0
      %v8498 = vadd.f32 %v8186, %v8497
      %v8499 = vpop.f32.mrf.mxu0
      %8500 = vmatprep.mubr.bf16.mxu0 0
      %8501 = vmatmul.mubr.bf16.gmra.mxu0 %v8258
      %v8502 = vpop.f32.mrf.mxu0
      %v8503 = vadd.f32 %v8186, %v8502
      %v8504 = vpop.f32.mrf.mxu0
      %v8505 = vpop.f32.mrf.mxu0
      %v8506 = vadd.f32 %v8186, %v8505
      %v8507 = vpop.f32.mrf.mxu0
      %8508 = vmatprep.mubr.bf16.mxu0 0
      %8509 = vmatmul.mubr.bf16.gmra.mxu0 %v8261
      %v8510 = vpop.f32.mrf.mxu0
      %v8511 = vadd.f32 %v8186, %v8510
      %v8512 = vpop.f32.mrf.mxu0
      %v8513 = vpop.f32.mrf.mxu0
      %v8514 = vadd.f32 %v8186, %v8513
      %v8515 = vpop.f32.mrf.mxu0
      %8516 = vmatprep.mubr.bf16.mxu0 0
      %8517 = vmatmul.mubr.bf16.gmra.mxu0 %v8264
      %v8518 = vpop.f32.mrf.mxu0
      %v8519 = vadd.f32 %v8186, %v8518
      %v8520 = vpop.f32.mrf.mxu0
      %v8521 = vpop.f32.mrf.mxu0
      %v8522 = vadd.f32 %v8186, %v8521
      %v8523 = vpop.f32.mrf.mxu0
      %8524 = vmatprep.mubr.bf16.mxu0 0
      %8525 = vmatmul.mubr.bf16.gmra.mxu0 %v8267
      %v8526 = vpop.f32.mrf.mxu0
      %v8527 = vadd.f32 %v8186, %v8526
      %v8528 = vpop.f32.mrf.mxu0
      %v8529 = vpop.f32.mrf.mxu0
      %v8530 = vadd.f32 %v8186, %v8529
      %v8531 = vpop.f32.mrf.mxu0
      %8532 = vmatprep.mubr.bf16.mxu0 0
      %8533 = vmatmul.mubr.bf16.gmra.mxu0 %v8270
      %v8534 = vpop.f32.mrf.mxu0
      %v8535 = vadd.f32 %v8186, %v8534
      %v8536 = vpop.f32.mrf.mxu0
      %v8537 = vpop.f32.mrf.mxu0
      %v8538 = vadd.f32 %v8186, %v8537
      %v8539 = vpop.f32.mrf.mxu0
      %8540 = vmatprep.mubr.bf16.mxu0 0
      %8541 = vmatmul.mubr.bf16.gmra.mxu0 %v8273
      %v8542 = vpop.f32.mrf.mxu0
      %v8543 = vadd.f32 %v8186, %v8542
      %v8544 = vpop.f32.mrf.mxu0
      %v8545 = vpop.f32.mrf.mxu0
      %v8546 = vadd.f32 %v8186, %v8545
      %v8547 = vpop.f32.mrf.mxu0
      %8548 = vmatprep.mubr.bf16.mxu0 0
      %8549 = vmatmul.mubr.bf16.gmra.mxu0 %v8276
      %v8550 = vpop.f32.mrf.mxu0
      %v8551 = vadd.f32 %v8186, %v8550
      %v8552 = vpop.f32.mrf.mxu0
      %v8553 = vpop.f32.mrf.mxu0
      %v8554 = vadd.f32 %v8186, %v8553
      %v8555 = vpop.f32.mrf.mxu0
      %8556 = vmatprep.mubr.bf16.mxu0 0
      %8557 = vmatmul.mubr.bf16.gmra.mxu0 %v8279
      %v8558 = vpop.f32.mrf.mxu0
      %v8559 = vadd.f32 %v8186, %v8558
      %v8560 = vpop.f32.mrf.mxu0
      %v8561 = vpop.f32.mrf.mxu0
      %v8562 = vadd.f32 %v8186, %v8561
      %v8563 = vpop.f32.mrf.mxu0
      %8564 = vmatprep.mubr.bf16.mxu0 0
      %8565 = vmatmul.mubr.bf16.gmra.mxu0 %v8282
      %v8566 = vpop.f32.mrf.mxu0
      %v8567 = vadd.f32 %v8186, %v8566
      %v8568 = vpop.f32.mrf.mxu0
      %v8569 = vpop.f32.mrf.mxu0
      %v8570 = vadd.f32 %v8186, %v8569
      %v8571 = vpop.f32.mrf.mxu0
      %8572 = vdwg.mxu0
      %v8573 = vadd.f32 %v8319, %v496
      %v8574 = vadd.f32 %v8322, %v497
      %v8575 = vadd.f32 %v8327, %v498
      %v8576 = vadd.f32 %v8330, %v499
      %v8577 = vadd.f32 %v8335, %v500
      %v8578 = vadd.f32 %v8338, %v501
      %v8579 = vadd.f32 %v8343, %v502
      %v8580 = vadd.f32 %v8346, %v503
      %v8581 = vadd.f32 %v8351, %v504
      %v8582 = vadd.f32 %v8354, %v505
      %v8583 = vadd.f32 %v8359, %v506
      %v8584 = vadd.f32 %v8362, %v507
      %v8585 = vadd.f32 %v8367, %v508
      %v8586 = vadd.f32 %v8370, %v509
      %v8587 = vadd.f32 %v8375, %v510
      %v8588 = vadd.f32 %v8378, %v511
      %v8589 = vadd.f32 %v8383, %v512
      %v8590 = vadd.f32 %v8386, %v513
      %v8591 = vadd.f32 %v8391, %v514
      %v8592 = vadd.f32 %v8394, %v515
      %v8593 = vadd.f32 %v8399, %v516
      %v8594 = vadd.f32 %v8402, %v517
      %v8595 = vadd.f32 %v8407, %v518
      %v8596 = vadd.f32 %v8410, %v519
      %v8597 = vadd.f32 %v8415, %v520
      %v8598 = vadd.f32 %v8418, %v521
      %v8599 = vadd.f32 %v8423, %v522
      %v8600 = vadd.f32 %v8426, %v523
      %v8601 = vadd.f32 %v8431, %v524
      %v8602 = vadd.f32 %v8434, %v525
      %v8603 = vadd.f32 %v8439, %v526
      %v8604 = vadd.f32 %v8442, %v527
      %v8605 = vadd.f32 %v8447, %v528
      %v8606 = vadd.f32 %v8450, %v529
      %v8607 = vadd.f32 %v8455, %v530
      %v8608 = vadd.f32 %v8458, %v531
      %v8609 = vadd.f32 %v8463, %v532
      %v8610 = vadd.f32 %v8466, %v533
      %v8611 = vadd.f32 %v8471, %v534
      %v8612 = vadd.f32 %v8474, %v535
      %v8613 = vadd.f32 %v8479, %v536
      %v8614 = vadd.f32 %v8482, %v537
      %v8615 = vadd.f32 %v8487, %v538
      %v8616 = vadd.f32 %v8490, %v539
      %v8617 = vadd.f32 %v8495, %v540
      %v8618 = vadd.f32 %v8498, %v541
      %v8619 = vadd.f32 %v8503, %v542
      %v8620 = vadd.f32 %v8506, %v543
      %v8621 = vadd.f32 %v8511, %v544
      %v8622 = vadd.f32 %v8514, %v545
      %v8623 = vadd.f32 %v8519, %v546
      %v8624 = vadd.f32 %v8522, %v547
      %v8625 = vadd.f32 %v8527, %v548
      %v8626 = vadd.f32 %v8530, %v549
      %v8627 = vadd.f32 %v8535, %v550
      %v8628 = vadd.f32 %v8538, %v551
      %v8629 = vadd.f32 %v8543, %v552
      %v8630 = vadd.f32 %v8546, %v553
      %v8631 = vadd.f32 %v8551, %v554
      %v8632 = vadd.f32 %v8554, %v555
      %v8633 = vadd.f32 %v8559, %v556
      %v8634 = vadd.f32 %v8562, %v557
      %v8635 = vadd.f32 %v8567, %v558
      %v8636 = vadd.f32 %v8570, %v559
      %v8637 = vld [vmem:[%s9] sm:$0x1]
      %v8638 = vld [vmem:[%s10] sm:$0x1]
      %v8639 = vsel %vm562, %v8573, 0.0
      %8640 = vadd.xlane.f32.xlu0 %v8639
      %v8641 = vpop.xlane.xlu0 %8640
      %v8642 = vsel %vm562, %v8574, 0.0
      %8643 = vadd.xlane.f32.xlu0 %v8642
      %v8644 = vpop.xlane.xlu0 %8643
      %v8645 = vsel %vm562, %v8575, 0.0
      %8646 = vadd.xlane.f32.xlu0 %v8645
      %v8647 = vpop.xlane.xlu0 %8646
      %v8648 = vsel %vm562, %v8576, 0.0
      %8649 = vadd.xlane.f32.xlu0 %v8648
      %v8650 = vpop.xlane.xlu0 %8649
      %v8651 = vsel %vm562, %v8577, 0.0
      %8652 = vadd.xlane.f32.xlu0 %v8651
      %v8653 = vpop.xlane.xlu0 %8652
      %v8654 = vsel %vm562, %v8578, 0.0
      %8655 = vadd.xlane.f32.xlu0 %v8654
      %v8656 = vpop.xlane.xlu0 %8655
      %v8657 = vsel %vm562, %v8579, 0.0
      %8658 = vadd.xlane.f32.xlu0 %v8657
      %v8659 = vpop.xlane.xlu0 %8658
      %v8660 = vsel %vm562, %v8580, 0.0
      %8661 = vadd.xlane.f32.xlu0 %v8660
      %v8662 = vpop.xlane.xlu0 %8661
      %v8663 = vsel %vm562, %v8581, 0.0
      %8664 = vadd.xlane.f32.xlu0 %v8663
      %v8665 = vpop.xlane.xlu0 %8664
      %v8666 = vsel %vm562, %v8582, 0.0
      %8667 = vadd.xlane.f32.xlu0 %v8666
      %v8668 = vpop.xlane.xlu0 %8667
      %v8669 = vsel %vm562, %v8583, 0.0
      %8670 = vadd.xlane.f32.xlu0 %v8669
      %v8671 = vpop.xlane.xlu0 %8670
      %v8672 = vsel %vm562, %v8584, 0.0
      %8673 = vadd.xlane.f32.xlu0 %v8672
      %v8674 = vpop.xlane.xlu0 %8673
      %v8675 = vsel %vm562, %v8585, 0.0
      %8676 = vadd.xlane.f32.xlu0 %v8675
      %v8677 = vpop.xlane.xlu0 %8676
      %v8678 = vsel %vm562, %v8586, 0.0
      %8679 = vadd.xlane.f32.xlu0 %v8678
      %v8680 = vpop.xlane.xlu0 %8679
      %v8681 = vsel %vm562, %v8587, 0.0
      %8682 = vadd.xlane.f32.xlu0 %v8681
      %v8683 = vpop.xlane.xlu0 %8682
      %v8684 = vsel %vm562, %v8588, 0.0
      %8685 = vadd.xlane.f32.xlu0 %v8684
      %v8686 = vpop.xlane.xlu0 %8685
      %v8687 = vsel %vm562, %v8589, 0.0
      %8688 = vadd.xlane.f32.xlu0 %v8687
      %v8689 = vpop.xlane.xlu0 %8688
      %v8690 = vsel %vm562, %v8590, 0.0
      %8691 = vadd.xlane.f32.xlu0 %v8690
      %v8692 = vpop.xlane.xlu0 %8691
      %v8693 = vsel %vm562, %v8591, 0.0
      %8694 = vadd.xlane.f32.xlu0 %v8693
      %v8695 = vpop.xlane.xlu0 %8694
      %v8696 = vsel %vm562, %v8592, 0.0
      %8697 = vadd.xlane.f32.xlu0 %v8696
      %v8698 = vpop.xlane.xlu0 %8697
      %v8699 = vsel %vm562, %v8593, 0.0
      %8700 = vadd.xlane.f32.xlu0 %v8699
      %v8701 = vpop.xlane.xlu0 %8700
      %v8702 = vsel %vm562, %v8594, 0.0
      %8703 = vadd.xlane.f32.xlu0 %v8702
      %v8704 = vpop.xlane.xlu0 %8703
      %v8705 = vsel %vm562, %v8595, 0.0
      %8706 = vadd.xlane.f32.xlu0 %v8705
      %v8707 = vpop.xlane.xlu0 %8706
      %v8708 = vsel %vm562, %v8596, 0.0
      %8709 = vadd.xlane.f32.xlu0 %v8708
      %v8710 = vpop.xlane.xlu0 %8709
      %v8711 = vsel %vm562, %v8597, 0.0
      %8712 = vadd.xlane.f32.xlu0 %v8711
      %v8713 = vpop.xlane.xlu0 %8712
      %v8714 = vsel %vm562, %v8598, 0.0
      %8715 = vadd.xlane.f32.xlu0 %v8714
      %v8716 = vpop.xlane.xlu0 %8715
      %v8717 = vsel %vm562, %v8599, 0.0
      %8718 = vadd.xlane.f32.xlu0 %v8717
      %v8719 = vpop.xlane.xlu0 %8718
      %v8720 = vsel %vm562, %v8600, 0.0
      %8721 = vadd.xlane.f32.xlu0 %v8720
      %v8722 = vpop.xlane.xlu0 %8721
      %v8723 = vsel %vm562, %v8601, 0.0
      %8724 = vadd.xlane.f32.xlu0 %v8723
      %v8725 = vpop.xlane.xlu0 %8724
      %v8726 = vsel %vm562, %v8602, 0.0
      %8727 = vadd.xlane.f32.xlu0 %v8726
      %v8728 = vpop.xlane.xlu0 %8727
      %v8729 = vsel %vm562, %v8603, 0.0
      %8730 = vadd.xlane.f32.xlu0 %v8729
      %v8731 = vpop.xlane.xlu0 %8730
      %v8732 = vsel %vm562, %v8604, 0.0
      %8733 = vadd.xlane.f32.xlu0 %v8732
      %v8734 = vpop.xlane.xlu0 %8733
      %v8735 = vsel %vm562, %v8605, 0.0
      %8736 = vadd.xlane.f32.xlu0 %v8735
      %v8737 = vpop.xlane.xlu0 %8736
      %v8738 = vsel %vm562, %v8606, 0.0
      %8739 = vadd.xlane.f32.xlu0 %v8738
      %v8740 = vpop.xlane.xlu0 %8739
      %v8741 = vsel %vm562, %v8607, 0.0
      %8742 = vadd.xlane.f32.xlu0 %v8741
      %v8743 = vpop.xlane.xlu0 %8742
      %v8744 = vsel %vm562, %v8608, 0.0
      %8745 = vadd.xlane.f32.xlu0 %v8744
      %v8746 = vpop.xlane.xlu0 %8745
      %v8747 = vsel %vm562, %v8609, 0.0
      %8748 = vadd.xlane.f32.xlu0 %v8747
      %v8749 = vpop.xlane.xlu0 %8748
      %v8750 = vsel %vm562, %v8610, 0.0
      %8751 = vadd.xlane.f32.xlu0 %v8750
      %v8752 = vpop.xlane.xlu0 %8751
      %v8753 = vsel %vm562, %v8611, 0.0
      %8754 = vadd.xlane.f32.xlu0 %v8753
      %v8755 = vpop.xlane.xlu0 %8754
      %v8756 = vsel %vm562, %v8612, 0.0
      %8757 = vadd.xlane.f32.xlu0 %v8756
      %v8758 = vpop.xlane.xlu0 %8757
      %v8759 = vsel %vm562, %v8613, 0.0
      %8760 = vadd.xlane.f32.xlu0 %v8759
      %v8761 = vpop.xlane.xlu0 %8760
      %v8762 = vsel %vm562, %v8614, 0.0
      %8763 = vadd.xlane.f32.xlu0 %v8762
      %v8764 = vpop.xlane.xlu0 %8763
      %v8765 = vsel %vm562, %v8615, 0.0
      %8766 = vadd.xlane.f32.xlu0 %v8765
      %v8767 = vpop.xlane.xlu0 %8766
      %v8768 = vsel %vm562, %v8616, 0.0
      %8769 = vadd.xlane.f32.xlu0 %v8768
      %v8770 = vpop.xlane.xlu0 %8769
      %v8771 = vsel %vm562, %v8617, 0.0
      %8772 = vadd.xlane.f32.xlu0 %v8771
      %v8773 = vpop.xlane.xlu0 %8772
      %v8774 = vsel %vm562, %v8618, 0.0
      %8775 = vadd.xlane.f32.xlu0 %v8774
      %v8776 = vpop.xlane.xlu0 %8775
      %v8777 = vsel %vm562, %v8619, 0.0
      %8778 = vadd.xlane.f32.xlu0 %v8777
      %v8779 = vpop.xlane.xlu0 %8778
      %v8780 = vsel %vm562, %v8620, 0.0
      %8781 = vadd.xlane.f32.xlu0 %v8780
      %v8782 = vpop.xlane.xlu0 %8781
      %v8783 = vsel %vm562, %v8621, 0.0
      %8784 = vadd.xlane.f32.xlu0 %v8783
      %v8785 = vpop.xlane.xlu0 %8784
      %v8786 = vsel %vm562, %v8622, 0.0
      %8787 = vadd.xlane.f32.xlu0 %v8786
      %v8788 = vpop.xlane.xlu0 %8787
      %v8789 = vsel %vm562, %v8623, 0.0
      %8790 = vadd.xlane.f32.xlu0 %v8789
      %v8791 = vpop.xlane.xlu0 %8790
      %v8792 = vsel %vm562, %v8624, 0.0
      %8793 = vadd.xlane.f32.xlu0 %v8792
      %v8794 = vpop.xlane.xlu0 %8793
      %v8795 = vsel %vm562, %v8625, 0.0
      %8796 = vadd.xlane.f32.xlu0 %v8795
      %v8797 = vpop.xlane.xlu0 %8796
      %v8798 = vsel %vm562, %v8626, 0.0
      %8799 = vadd.xlane.f32.xlu0 %v8798
      %v8800 = vpop.xlane.xlu0 %8799
      %v8801 = vsel %vm562, %v8627, 0.0
      %8802 = vadd.xlane.f32.xlu0 %v8801
      %v8803 = vpop.xlane.xlu0 %8802
      %v8804 = vsel %vm562, %v8628, 0.0
      %8805 = vadd.xlane.f32.xlu0 %v8804
      %v8806 = vpop.xlane.xlu0 %8805
      %v8807 = vsel %vm562, %v8629, 0.0
      %8808 = vadd.xlane.f32.xlu0 %v8807
      %v8809 = vpop.xlane.xlu0 %8808
      %v8810 = vsel %vm562, %v8630, 0.0
      %8811 = vadd.xlane.f32.xlu0 %v8810
      %v8812 = vpop.xlane.xlu0 %8811
      %v8813 = vsel %vm562, %v8631, 0.0
      %8814 = vadd.xlane.f32.xlu0 %v8813
      %v8815 = vpop.xlane.xlu0 %8814
      %v8816 = vsel %vm562, %v8632, 0.0
      %8817 = vadd.xlane.f32.xlu0 %v8816
      %v8818 = vpop.xlane.xlu0 %8817
      %v8819 = vsel %vm562, %v8633, 0.0
      %8820 = vadd.xlane.f32.xlu0 %v8819
      %v8821 = vpop.xlane.xlu0 %8820
      %v8822 = vsel %vm562, %v8634, 0.0
      %8823 = vadd.xlane.f32.xlu0 %v8822
      %v8824 = vpop.xlane.xlu0 %8823
      %v8825 = vsel %vm562, %v8635, 0.0
      %8826 = vadd.xlane.f32.xlu0 %v8825
      %v8827 = vpop.xlane.xlu0 %8826
      %v8828 = vsel %vm562, %v8636, 0.0
      %8829 = vadd.xlane.f32.xlu0 %v8828
      %v8830 = vpop.xlane.xlu0 %8829
      %v8831 = vmul.f32 %v8641, %v755
      %v8832 = vmul.f32 %v8644, %v755
      %v8833 = vmul.f32 %v8647, %v755
      %v8834 = vmul.f32 %v8650, %v755
      %v8835 = vmul.f32 %v8653, %v755
      %v8836 = vmul.f32 %v8656, %v755
      %v8837 = vmul.f32 %v8659, %v755
      %v8838 = vmul.f32 %v8662, %v755
      %v8839 = vmul.f32 %v8665, %v755
      %v8840 = vmul.f32 %v8668, %v755
      %v8841 = vmul.f32 %v8671, %v755
      %v8842 = vmul.f32 %v8674, %v755
      %v8843 = vmul.f32 %v8677, %v755
      %v8844 = vmul.f32 %v8680, %v755
      %v8845 = vmul.f32 %v8683, %v755
      %v8846 = vmul.f32 %v8686, %v755
      %v8847 = vmul.f32 %v8689, %v755
      %v8848 = vmul.f32 %v8692, %v755
      %v8849 = vmul.f32 %v8695, %v755
      %v8850 = vmul.f32 %v8698, %v755
      %v8851 = vmul.f32 %v8701, %v755
      %v8852 = vmul.f32 %v8704, %v755
      %v8853 = vmul.f32 %v8707, %v755
      %v8854 = vmul.f32 %v8710, %v755
      %v8855 = vmul.f32 %v8713, %v755
      %v8856 = vmul.f32 %v8716, %v755
      %v8857 = vmul.f32 %v8719, %v755
      %v8858 = vmul.f32 %v8722, %v755
      %v8859 = vmul.f32 %v8725, %v755
      %v8860 = vmul.f32 %v8728, %v755
      %v8861 = vmul.f32 %v8731, %v755
      %v8862 = vmul.f32 %v8734, %v755
      %v8863 = vmul.f32 %v8737, %v755
      %v8864 = vmul.f32 %v8740, %v755
      %v8865 = vmul.f32 %v8743, %v755
      %v8866 = vmul.f32 %v8746, %v755
      %v8867 = vmul.f32 %v8749, %v755
      %v8868 = vmul.f32 %v8752, %v755
      %v8869 = vmul.f32 %v8755, %v755
      %v8870 = vmul.f32 %v8758, %v755
      %v8871 = vmul.f32 %v8761, %v755
      %v8872 = vmul.f32 %v8764, %v755
      %v8873 = vmul.f32 %v8767, %v755
      %v8874 = vmul.f32 %v8770, %v755
      %v8875 = vmul.f32 %v8773, %v755
      %v8876 = vmul.f32 %v8776, %v755
      %v8877 = vmul.f32 %v8779, %v755
      %v8878 = vmul.f32 %v8782, %v755
      %v8879 = vmul.f32 %v8785, %v755
      %v8880 = vmul.f32 %v8788, %v755
      %v8881 = vmul.f32 %v8791, %v755
      %v8882 = vmul.f32 %v8794, %v755
      %v8883 = vmul.f32 %v8797, %v755
      %v8884 = vmul.f32 %v8800, %v755
      %v8885 = vmul.f32 %v8803, %v755
      %v8886 = vmul.f32 %v8806, %v755
      %v8887 = vmul.f32 %v8809, %v755
      %v8888 = vmul.f32 %v8812, %v755
      %v8889 = vmul.f32 %v8815, %v755
      %v8890 = vmul.f32 %v8818, %v755
      %v8891 = vmul.f32 %v8821, %v755
      %v8892 = vmul.f32 %v8824, %v755
      %v8893 = vmul.f32 %v8827, %v755
      %v8894 = vmul.f32 %v8830, %v755
      %v8895 = vsub.f32 %v8573, %v8831
      %v8896 = vsub.f32 %v8574, %v8832
      %v8897 = vsub.f32 %v8575, %v8833
      %v8898 = vsub.f32 %v8576, %v8834
      %v8899 = vsub.f32 %v8577, %v8835
      %v8900 = vsub.f32 %v8578, %v8836
      %v8901 = vsub.f32 %v8579, %v8837
      %v8902 = vsub.f32 %v8580, %v8838
      %v8903 = vsub.f32 %v8581, %v8839
      %v8904 = vsub.f32 %v8582, %v8840
      %v8905 = vsub.f32 %v8583, %v8841
      %v8906 = vsub.f32 %v8584, %v8842
      %v8907 = vsub.f32 %v8585, %v8843
      %v8908 = vsub.f32 %v8586, %v8844
      %v8909 = vsub.f32 %v8587, %v8845
      %v8910 = vsub.f32 %v8588, %v8846
      %v8911 = vsub.f32 %v8589, %v8847
      %v8912 = vsub.f32 %v8590, %v8848
      %v8913 = vsub.f32 %v8591, %v8849
      %v8914 = vsub.f32 %v8592, %v8850
      %v8915 = vsub.f32 %v8593, %v8851
      %v8916 = vsub.f32 %v8594, %v8852
      %v8917 = vsub.f32 %v8595, %v8853
      %v8918 = vsub.f32 %v8596, %v8854
      %v8919 = vsub.f32 %v8597, %v8855
      %v8920 = vsub.f32 %v8598, %v8856
      %v8921 = vsub.f32 %v8599, %v8857
      %v8922 = vsub.f32 %v8600, %v8858
      %v8923 = vsub.f32 %v8601, %v8859
      %v8924 = vsub.f32 %v8602, %v8860
      %v8925 = vsub.f32 %v8603, %v8861
      %v8926 = vsub.f32 %v8604, %v8862
      %v8927 = vsub.f32 %v8605, %v8863
      %v8928 = vsub.f32 %v8606, %v8864
      %v8929 = vsub.f32 %v8607, %v8865
      %v8930 = vsub.f32 %v8608, %v8866
      %v8931 = vsub.f32 %v8609, %v8867
      %v8932 = vsub.f32 %v8610, %v8868
      %v8933 = vsub.f32 %v8611, %v8869
      %v8934 = vsub.f32 %v8612, %v8870
      %v8935 = vsub.f32 %v8613, %v8871
      %v8936 = vsub.f32 %v8614, %v8872
      %v8937 = vsub.f32 %v8615, %v8873
      %v8938 = vsub.f32 %v8616, %v8874
      %v8939 = vsub.f32 %v8617, %v8875
      %v8940 = vsub.f32 %v8618, %v8876
      %v8941 = vsub.f32 %v8619, %v8877
      %v8942 = vsub.f32 %v8620, %v8878
      %v8943 = vsub.f32 %v8621, %v8879
      %v8944 = vsub.f32 %v8622, %v8880
      %v8945 = vsub.f32 %v8623, %v8881
      %v8946 = vsub.f32 %v8624, %v8882
      %v8947 = vsub.f32 %v8625, %v8883
      %v8948 = vsub.f32 %v8626, %v8884
      %v8949 = vsub.f32 %v8627, %v8885
      %v8950 = vsub.f32 %v8628, %v8886
      %v8951 = vsub.f32 %v8629, %v8887
      %v8952 = vsub.f32 %v8630, %v8888
      %v8953 = vsub.f32 %v8631, %v8889
      %v8954 = vsub.f32 %v8632, %v8890
      %v8955 = vsub.f32 %v8633, %v8891
      %v8956 = vsub.f32 %v8634, %v8892
      %v8957 = vsub.f32 %v8635, %v8893
      %v8958 = vsub.f32 %v8636, %v8894
      %v8959 = vmul.f32 %v8895, %v8895
      %v8960 = vmul.f32 %v8896, %v8896
      %v8961 = vmul.f32 %v8897, %v8897
      %v8962 = vmul.f32 %v8898, %v8898
      %v8963 = vmul.f32 %v8899, %v8899
      %v8964 = vmul.f32 %v8900, %v8900
      %v8965 = vmul.f32 %v8901, %v8901
      %v8966 = vmul.f32 %v8902, %v8902
      %v8967 = vmul.f32 %v8903, %v8903
      %v8968 = vmul.f32 %v8904, %v8904
      %v8969 = vmul.f32 %v8905, %v8905
      %v8970 = vmul.f32 %v8906, %v8906
      %v8971 = vmul.f32 %v8907, %v8907
      %v8972 = vmul.f32 %v8908, %v8908
      %v8973 = vmul.f32 %v8909, %v8909
      %v8974 = vmul.f32 %v8910, %v8910
      %v8975 = vmul.f32 %v8911, %v8911
      %v8976 = vmul.f32 %v8912, %v8912
      %v8977 = vmul.f32 %v8913, %v8913
      %v8978 = vmul.f32 %v8914, %v8914
      %v8979 = vmul.f32 %v8915, %v8915
      %v8980 = vmul.f32 %v8916, %v8916
      %v8981 = vmul.f32 %v8917, %v8917
      %v8982 = vmul.f32 %v8918, %v8918
      %v8983 = vmul.f32 %v8919, %v8919
      %v8984 = vmul.f32 %v8920, %v8920
      %v8985 = vmul.f32 %v8921, %v8921
      %v8986 = vmul.f32 %v8922, %v8922
      %v8987 = vmul.f32 %v8923, %v8923
      %v8988 = vmul.f32 %v8924, %v8924
      %v8989 = vmul.f32 %v8925, %v8925
      %v8990 = vmul.f32 %v8926, %v8926
      %v8991 = vmul.f32 %v8927, %v8927
      %v8992 = vmul.f32 %v8928, %v8928
      %v8993 = vmul.f32 %v8929, %v8929
      %v8994 = vmul.f32 %v8930, %v8930
      %v8995 = vmul.f32 %v8931, %v8931
      %v8996 = vmul.f32 %v8932, %v8932
      %v8997 = vmul.f32 %v8933, %v8933
      %v8998 = vmul.f32 %v8934, %v8934
      %v8999 = vmul.f32 %v8935, %v8935
      %v9000 = vmul.f32 %v8936, %v8936
      %v9001 = vmul.f32 %v8937, %v8937
      %v9002 = vmul.f32 %v8938, %v8938
      %v9003 = vmul.f32 %v8939, %v8939
      %v9004 = vmul.f32 %v8940, %v8940
      %v9005 = vmul.f32 %v8941, %v8941
      %v9006 = vmul.f32 %v8942, %v8942
      %v9007 = vmul.f32 %v8943, %v8943
      %v9008 = vmul.f32 %v8944, %v8944
      %v9009 = vmul.f32 %v8945, %v8945
      %v9010 = vmul.f32 %v8946, %v8946
      %v9011 = vmul.f32 %v8947, %v8947
      %v9012 = vmul.f32 %v8948, %v8948
      %v9013 = vmul.f32 %v8949, %v8949
      %v9014 = vmul.f32 %v8950, %v8950
      %v9015 = vmul.f32 %v8951, %v8951
      %v9016 = vmul.f32 %v8952, %v8952
      %v9017 = vmul.f32 %v8953, %v8953
      %v9018 = vmul.f32 %v8954, %v8954
      %v9019 = vmul.f32 %v8955, %v8955
      %v9020 = vmul.f32 %v8956, %v8956
      %v9021 = vmul.f32 %v8957, %v8957
      %v9022 = vmul.f32 %v8958, %v8958
      %v9023 = vsel %vm562, %v8959, 0.0
      %9024 = vadd.xlane.f32.xlu0 %v9023
      %v9025 = vpop.xlane.xlu0 %9024
      %v9026 = vsel %vm562, %v8960, 0.0
      %9027 = vadd.xlane.f32.xlu0 %v9026
      %v9028 = vpop.xlane.xlu0 %9027
      %v9029 = vsel %vm562, %v8961, 0.0
      %9030 = vadd.xlane.f32.xlu0 %v9029
      %v9031 = vpop.xlane.xlu0 %9030
      %v9032 = vsel %vm562, %v8962, 0.0
      %9033 = vadd.xlane.f32.xlu0 %v9032
      %v9034 = vpop.xlane.xlu0 %9033
      %v9035 = vsel %vm562, %v8963, 0.0
      %9036 = vadd.xlane.f32.xlu0 %v9035
      %v9037 = vpop.xlane.xlu0 %9036
      %v9038 = vsel %vm562, %v8964, 0.0
      %9039 = vadd.xlane.f32.xlu0 %v9038
      %v9040 = vpop.xlane.xlu0 %9039
      %v9041 = vsel %vm562, %v8965, 0.0
      %9042 = vadd.xlane.f32.xlu0 %v9041
      %v9043 = vpop.xlane.xlu0 %9042
      %v9044 = vsel %vm562, %v8966, 0.0
      %9045 = vadd.xlane.f32.xlu0 %v9044
      %v9046 = vpop.xlane.xlu0 %9045
      %v9047 = vsel %vm562, %v8967, 0.0
      %9048 = vadd.xlane.f32.xlu0 %v9047
      %v9049 = vpop.xlane.xlu0 %9048
      %v9050 = vsel %vm562, %v8968, 0.0
      %9051 = vadd.xlane.f32.xlu0 %v9050
      %v9052 = vpop.xlane.xlu0 %9051
      %v9053 = vsel %vm562, %v8969, 0.0
      %9054 = vadd.xlane.f32.xlu0 %v9053
      %v9055 = vpop.xlane.xlu0 %9054
      %v9056 = vsel %vm562, %v8970, 0.0
      %9057 = vadd.xlane.f32.xlu0 %v9056
      %v9058 = vpop.xlane.xlu0 %9057
      %v9059 = vsel %vm562, %v8971, 0.0
      %9060 = vadd.xlane.f32.xlu0 %v9059
      %v9061 = vpop.xlane.xlu0 %9060
      %v9062 = vsel %vm562, %v8972, 0.0
      %9063 = vadd.xlane.f32.xlu0 %v9062
      %v9064 = vpop.xlane.xlu0 %9063
      %v9065 = vsel %vm562, %v8973, 0.0
      %9066 = vadd.xlane.f32.xlu0 %v9065
      %v9067 = vpop.xlane.xlu0 %9066
      %v9068 = vsel %vm562, %v8974, 0.0
      %9069 = vadd.xlane.f32.xlu0 %v9068
      %v9070 = vpop.xlane.xlu0 %9069
      %v9071 = vsel %vm562, %v8975, 0.0
      %9072 = vadd.xlane.f32.xlu0 %v9071
      %v9073 = vpop.xlane.xlu0 %9072
      %v9074 = vsel %vm562, %v8976, 0.0
      %9075 = vadd.xlane.f32.xlu0 %v9074
      %v9076 = vpop.xlane.xlu0 %9075
      %v9077 = vsel %vm562, %v8977, 0.0
      %9078 = vadd.xlane.f32.xlu0 %v9077
      %v9079 = vpop.xlane.xlu0 %9078
      %v9080 = vsel %vm562, %v8978, 0.0
      %9081 = vadd.xlane.f32.xlu0 %v9080
      %v9082 = vpop.xlane.xlu0 %9081
      %v9083 = vsel %vm562, %v8979, 0.0
      %9084 = vadd.xlane.f32.xlu0 %v9083
      %v9085 = vpop.xlane.xlu0 %9084
      %v9086 = vsel %vm562, %v8980, 0.0
      %9087 = vadd.xlane.f32.xlu0 %v9086
      %v9088 = vpop.xlane.xlu0 %9087
      %v9089 = vsel %vm562, %v8981, 0.0
      %9090 = vadd.xlane.f32.xlu0 %v9089
      %v9091 = vpop.xlane.xlu0 %9090
      %v9092 = vsel %vm562, %v8982, 0.0
      %9093 = vadd.xlane.f32.xlu0 %v9092
      %v9094 = vpop.xlane.xlu0 %9093
      %v9095 = vsel %vm562, %v8983, 0.0
      %9096 = vadd.xlane.f32.xlu0 %v9095
      %v9097 = vpop.xlane.xlu0 %9096
      %v9098 = vsel %vm562, %v8984, 0.0
      %9099 = vadd.xlane.f32.xlu0 %v9098
      %v9100 = vpop.xlane.xlu0 %9099
      %v9101 = vsel %vm562, %v8985, 0.0
      %9102 = vadd.xlane.f32.xlu0 %v9101
      %v9103 = vpop.xlane.xlu0 %9102
      %v9104 = vsel %vm562, %v8986, 0.0
      %9105 = vadd.xlane.f32.xlu0 %v9104
      %v9106 = vpop.xlane.xlu0 %9105
      %v9107 = vsel %vm562, %v8987, 0.0
      %9108 = vadd.xlane.f32.xlu0 %v9107
      %v9109 = vpop.xlane.xlu0 %9108
      %v9110 = vsel %vm562, %v8988, 0.0
      %9111 = vadd.xlane.f32.xlu0 %v9110
      %v9112 = vpop.xlane.xlu0 %9111
      %v9113 = vsel %vm562, %v8989, 0.0
      %9114 = vadd.xlane.f32.xlu0 %v9113
      %v9115 = vpop.xlane.xlu0 %9114
      %v9116 = vsel %vm562, %v8990, 0.0
      %9117 = vadd.xlane.f32.xlu0 %v9116
      %v9118 = vpop.xlane.xlu0 %9117
      %v9119 = vsel %vm562, %v8991, 0.0
      %9120 = vadd.xlane.f32.xlu0 %v9119
      %v9121 = vpop.xlane.xlu0 %9120
      %v9122 = vsel %vm562, %v8992, 0.0
      %9123 = vadd.xlane.f32.xlu0 %v9122
      %v9124 = vpop.xlane.xlu0 %9123
      %v9125 = vsel %vm562, %v8993, 0.0
      %9126 = vadd.xlane.f32.xlu0 %v9125
      %v9127 = vpop.xlane.xlu0 %9126
      %v9128 = vsel %vm562, %v8994, 0.0
      %9129 = vadd.xlane.f32.xlu0 %v9128
      %v9130 = vpop.xlane.xlu0 %9129
      %v9131 = vsel %vm562, %v8995, 0.0
      %9132 = vadd.xlane.f32.xlu0 %v9131
      %v9133 = vpop.xlane.xlu0 %9132
      %v9134 = vsel %vm562, %v8996, 0.0
      %9135 = vadd.xlane.f32.xlu0 %v9134
      %v9136 = vpop.xlane.xlu0 %9135
      %v9137 = vsel %vm562, %v8997, 0.0
      %9138 = vadd.xlane.f32.xlu0 %v9137
      %v9139 = vpop.xlane.xlu0 %9138
      %v9140 = vsel %vm562, %v8998, 0.0
      %9141 = vadd.xlane.f32.xlu0 %v9140
      %v9142 = vpop.xlane.xlu0 %9141
      %v9143 = vsel %vm562, %v8999, 0.0
      %9144 = vadd.xlane.f32.xlu0 %v9143
      %v9145 = vpop.xlane.xlu0 %9144
      %v9146 = vsel %vm562, %v9000, 0.0
      %9147 = vadd.xlane.f32.xlu0 %v9146
      %v9148 = vpop.xlane.xlu0 %9147
      %v9149 = vsel %vm562, %v9001, 0.0
      %9150 = vadd.xlane.f32.xlu0 %v9149
      %v9151 = vpop.xlane.xlu0 %9150
      %v9152 = vsel %vm562, %v9002, 0.0
      %9153 = vadd.xlane.f32.xlu0 %v9152
      %v9154 = vpop.xlane.xlu0 %9153
      %v9155 = vsel %vm562, %v9003, 0.0
      %9156 = vadd.xlane.f32.xlu0 %v9155
      %v9157 = vpop.xlane.xlu0 %9156
      %v9158 = vsel %vm562, %v9004, 0.0
      %9159 = vadd.xlane.f32.xlu0 %v9158
      %v9160 = vpop.xlane.xlu0 %9159
      %v9161 = vsel %vm562, %v9005, 0.0
      %9162 = vadd.xlane.f32.xlu0 %v9161
      %v9163 = vpop.xlane.xlu0 %9162
      %v9164 = vsel %vm562, %v9006, 0.0
      %9165 = vadd.xlane.f32.xlu0 %v9164
      %v9166 = vpop.xlane.xlu0 %9165
      %v9167 = vsel %vm562, %v9007, 0.0
      %9168 = vadd.xlane.f32.xlu0 %v9167
      %v9169 = vpop.xlane.xlu0 %9168
      %v9170 = vsel %vm562, %v9008, 0.0
      %9171 = vadd.xlane.f32.xlu0 %v9170
      %v9172 = vpop.xlane.xlu0 %9171
      %v9173 = vsel %vm562, %v9009, 0.0
      %9174 = vadd.xlane.f32.xlu0 %v9173
      %v9175 = vpop.xlane.xlu0 %9174
      %v9176 = vsel %vm562, %v9010, 0.0
      %9177 = vadd.xlane.f32.xlu0 %v9176
      %v9178 = vpop.xlane.xlu0 %9177
      %v9179 = vsel %vm562, %v9011, 0.0
      %9180 = vadd.xlane.f32.xlu0 %v9179
      %v9181 = vpop.xlane.xlu0 %9180
      %v9182 = vsel %vm562, %v9012, 0.0
      %9183 = vadd.xlane.f32.xlu0 %v9182
      %v9184 = vpop.xlane.xlu0 %9183
      %v9185 = vsel %vm562, %v9013, 0.0
      %9186 = vadd.xlane.f32.xlu0 %v9185
      %v9187 = vpop.xlane.xlu0 %9186
      %v9188 = vsel %vm562, %v9014, 0.0
      %9189 = vadd.xlane.f32.xlu0 %v9188
      %v9190 = vpop.xlane.xlu0 %9189
      %v9191 = vsel %vm562, %v9015, 0.0
      %9192 = vadd.xlane.f32.xlu0 %v9191
      %v9193 = vpop.xlane.xlu0 %9192
      %v9194 = vsel %vm562, %v9016, 0.0
      %9195 = vadd.xlane.f32.xlu0 %v9194
      %v9196 = vpop.xlane.xlu0 %9195
      %v9197 = vsel %vm562, %v9017, 0.0
      %9198 = vadd.xlane.f32.xlu0 %v9197
      %v9199 = vpop.xlane.xlu0 %9198
      %v9200 = vsel %vm562, %v9018, 0.0
      %9201 = vadd.xlane.f32.xlu0 %v9200
      %v9202 = vpop.xlane.xlu0 %9201
      %v9203 = vsel %vm562, %v9019, 0.0
      %9204 = vadd.xlane.f32.xlu0 %v9203
      %v9205 = vpop.xlane.xlu0 %9204
      %v9206 = vsel %vm562, %v9020, 0.0
      %9207 = vadd.xlane.f32.xlu0 %v9206
      %v9208 = vpop.xlane.xlu0 %9207
      %v9209 = vsel %vm562, %v9021, 0.0
      %9210 = vadd.xlane.f32.xlu0 %v9209
      %v9211 = vpop.xlane.xlu0 %9210
      %v9212 = vsel %vm562, %v9022, 0.0
      %9213 = vadd.xlane.f32.xlu0 %v9212
      %v9214 = vpop.xlane.xlu0 %9213
      %v9215 = vmul.f32 %v9025, %v755
      %v9216 = vmul.f32 %v9028, %v755
      %v9217 = vmul.f32 %v9031, %v755
      %v9218 = vmul.f32 %v9034, %v755
      %v9219 = vmul.f32 %v9037, %v755
      %v9220 = vmul.f32 %v9040, %v755
      %v9221 = vmul.f32 %v9043, %v755
      %v9222 = vmul.f32 %v9046, %v755
      %v9223 = vmul.f32 %v9049, %v755
      %v9224 = vmul.f32 %v9052, %v755
      %v9225 = vmul.f32 %v9055, %v755
      %v9226 = vmul.f32 %v9058, %v755
      %v9227 = vmul.f32 %v9061, %v755
      %v9228 = vmul.f32 %v9064, %v755
      %v9229 = vmul.f32 %v9067, %v755
      %v9230 = vmul.f32 %v9070, %v755
      %v9231 = vmul.f32 %v9073, %v755
      %v9232 = vmul.f32 %v9076, %v755
      %v9233 = vmul.f32 %v9079, %v755
      %v9234 = vmul.f32 %v9082, %v755
      %v9235 = vmul.f32 %v9085, %v755
      %v9236 = vmul.f32 %v9088, %v755
      %v9237 = vmul.f32 %v9091, %v755
      %v9238 = vmul.f32 %v9094, %v755
      %v9239 = vmul.f32 %v9097, %v755
      %v9240 = vmul.f32 %v9100, %v755
      %v9241 = vmul.f32 %v9103, %v755
      %v9242 = vmul.f32 %v9106, %v755
      %v9243 = vmul.f32 %v9109, %v755
      %v9244 = vmul.f32 %v9112, %v755
      %v9245 = vmul.f32 %v9115, %v755
      %v9246 = vmul.f32 %v9118, %v755
      %v9247 = vmul.f32 %v9121, %v755
      %v9248 = vmul.f32 %v9124, %v755
      %v9249 = vmul.f32 %v9127, %v755
      %v9250 = vmul.f32 %v9130, %v755
      %v9251 = vmul.f32 %v9133, %v755
      %v9252 = vmul.f32 %v9136, %v755
      %v9253 = vmul.f32 %v9139, %v755
      %v9254 = vmul.f32 %v9142, %v755
      %v9255 = vmul.f32 %v9145, %v755
      %v9256 = vmul.f32 %v9148, %v755
      %v9257 = vmul.f32 %v9151, %v755
      %v9258 = vmul.f32 %v9154, %v755
      %v9259 = vmul.f32 %v9157, %v755
      %v9260 = vmul.f32 %v9160, %v755
      %v9261 = vmul.f32 %v9163, %v755
      %v9262 = vmul.f32 %v9166, %v755
      %v9263 = vmul.f32 %v9169, %v755
      %v9264 = vmul.f32 %v9172, %v755
      %v9265 = vmul.f32 %v9175, %v755
      %v9266 = vmul.f32 %v9178, %v755
      %v9267 = vmul.f32 %v9181, %v755
      %v9268 = vmul.f32 %v9184, %v755
      %v9269 = vmul.f32 %v9187, %v755
      %v9270 = vmul.f32 %v9190, %v755
      %v9271 = vmul.f32 %v9193, %v755
      %v9272 = vmul.f32 %v9196, %v755
      %v9273 = vmul.f32 %v9199, %v755
      %v9274 = vmul.f32 %v9202, %v755
      %v9275 = vmul.f32 %v9205, %v755
      %v9276 = vmul.f32 %v9208, %v755
      %v9277 = vmul.f32 %v9211, %v755
      %v9278 = vmul.f32 %v9214, %v755
      %v9279 = vadd.f32 %v9215, 1e-05
      %v9280 = vadd.f32 %v9216, 1e-05
      %v9281 = vadd.f32 %v9217, 1e-05
      %v9282 = vadd.f32 %v9218, 1e-05
      %v9283 = vadd.f32 %v9219, 1e-05
      %v9284 = vadd.f32 %v9220, 1e-05
      %v9285 = vadd.f32 %v9221, 1e-05
      %v9286 = vadd.f32 %v9222, 1e-05
      %v9287 = vadd.f32 %v9223, 1e-05
      %v9288 = vadd.f32 %v9224, 1e-05
      %v9289 = vadd.f32 %v9225, 1e-05
      %v9290 = vadd.f32 %v9226, 1e-05
      %v9291 = vadd.f32 %v9227, 1e-05
      %v9292 = vadd.f32 %v9228, 1e-05
      %v9293 = vadd.f32 %v9229, 1e-05
      %v9294 = vadd.f32 %v9230, 1e-05
      %v9295 = vadd.f32 %v9231, 1e-05
      %v9296 = vadd.f32 %v9232, 1e-05
      %v9297 = vadd.f32 %v9233, 1e-05
      %v9298 = vadd.f32 %v9234, 1e-05
      %v9299 = vadd.f32 %v9235, 1e-05
      %v9300 = vadd.f32 %v9236, 1e-05
      %v9301 = vadd.f32 %v9237, 1e-05
      %v9302 = vadd.f32 %v9238, 1e-05
      %v9303 = vadd.f32 %v9239, 1e-05
      %v9304 = vadd.f32 %v9240, 1e-05
      %v9305 = vadd.f32 %v9241, 1e-05
      %v9306 = vadd.f32 %v9242, 1e-05
      %v9307 = vadd.f32 %v9243, 1e-05
      %v9308 = vadd.f32 %v9244, 1e-05
      %v9309 = vadd.f32 %v9245, 1e-05
      %v9310 = vadd.f32 %v9246, 1e-05
      %v9311 = vadd.f32 %v9247, 1e-05
      %v9312 = vadd.f32 %v9248, 1e-05
      %v9313 = vadd.f32 %v9249, 1e-05
      %v9314 = vadd.f32 %v9250, 1e-05
      %v9315 = vadd.f32 %v9251, 1e-05
      %v9316 = vadd.f32 %v9252, 1e-05
      %v9317 = vadd.f32 %v9253, 1e-05
      %v9318 = vadd.f32 %v9254, 1e-05
      %v9319 = vadd.f32 %v9255, 1e-05
      %v9320 = vadd.f32 %v9256, 1e-05
      %v9321 = vadd.f32 %v9257, 1e-05
      %v9322 = vadd.f32 %v9258, 1e-05
      %v9323 = vadd.f32 %v9259, 1e-05
      %v9324 = vadd.f32 %v9260, 1e-05
      %v9325 = vadd.f32 %v9261, 1e-05
      %v9326 = vadd.f32 %v9262, 1e-05
      %v9327 = vadd.f32 %v9263, 1e-05
      %v9328 = vadd.f32 %v9264, 1e-05
      %v9329 = vadd.f32 %v9265, 1e-05
      %v9330 = vadd.f32 %v9266, 1e-05
      %v9331 = vadd.f32 %v9267, 1e-05
      %v9332 = vadd.f32 %v9268, 1e-05
      %v9333 = vadd.f32 %v9269, 1e-05
      %v9334 = vadd.f32 %v9270, 1e-05
      %v9335 = vadd.f32 %v9271, 1e-05
      %v9336 = vadd.f32 %v9272, 1e-05
      %v9337 = vadd.f32 %v9273, 1e-05
      %v9338 = vadd.f32 %v9274, 1e-05
      %v9339 = vadd.f32 %v9275, 1e-05
      %v9340 = vadd.f32 %v9276, 1e-05
      %v9341 = vadd.f32 %v9277, 1e-05
      %v9342 = vadd.f32 %v9278, 1e-05
      %v9343 = vrsqrt.pop %v9279
      %v9344 = vrsqrt.pop %v9280
      %v9345 = vrsqrt.pop %v9281
      %v9346 = vrsqrt.pop %v9282
      %v9347 = vrsqrt.pop %v9283
      %v9348 = vrsqrt.pop %v9284
      %v9349 = vrsqrt.pop %v9285
      %v9350 = vrsqrt.pop %v9286
      %v9351 = vrsqrt.pop %v9287
      %v9352 = vrsqrt.pop %v9288
      %v9353 = vrsqrt.pop %v9289
      %v9354 = vrsqrt.pop %v9290
      %v9355 = vrsqrt.pop %v9291
      %v9356 = vrsqrt.pop %v9292
      %v9357 = vrsqrt.pop %v9293
      %v9358 = vrsqrt.pop %v9294
      %v9359 = vrsqrt.pop %v9295
      %v9360 = vrsqrt.pop %v9296
      %v9361 = vrsqrt.pop %v9297
      %v9362 = vrsqrt.pop %v9298
      %v9363 = vrsqrt.pop %v9299
      %v9364 = vrsqrt.pop %v9300
      %v9365 = vrsqrt.pop %v9301
      %v9366 = vrsqrt.pop %v9302
      %v9367 = vrsqrt.pop %v9303
      %v9368 = vrsqrt.pop %v9304
      %v9369 = vrsqrt.pop %v9305
      %v9370 = vrsqrt.pop %v9306
      %v9371 = vrsqrt.pop %v9307
      %v9372 = vrsqrt.pop %v9308
      %v9373 = vrsqrt.pop %v9309
      %v9374 = vrsqrt.pop %v9310
      %v9375 = vrsqrt.pop %v9311
      %v9376 = vrsqrt.pop %v9312
      %v9377 = vrsqrt.pop %v9313
      %v9378 = vrsqrt.pop %v9314
      %v9379 = vrsqrt.pop %v9315
      %v9380 = vrsqrt.pop %v9316
      %v9381 = vrsqrt.pop %v9317
      %v9382 = vrsqrt.pop %v9318
      %v9383 = vrsqrt.pop %v9319
      %v9384 = vrsqrt.pop %v9320
      %v9385 = vrsqrt.pop %v9321
      %v9386 = vrsqrt.pop %v9322
      %v9387 = vrsqrt.pop %v9323
      %v9388 = vrsqrt.pop %v9324
      %v9389 = vrsqrt.pop %v9325
      %v9390 = vrsqrt.pop %v9326
      %v9391 = vrsqrt.pop %v9327
      %v9392 = vrsqrt.pop %v9328
      %v9393 = vrsqrt.pop %v9329
      %v9394 = vrsqrt.pop %v9330
      %v9395 = vrsqrt.pop %v9331
      %v9396 = vrsqrt.pop %v9332
      %v9397 = vrsqrt.pop %v9333
      %v9398 = vrsqrt.pop %v9334
      %v9399 = vrsqrt.pop %v9335
      %v9400 = vrsqrt.pop %v9336
      %v9401 = vrsqrt.pop %v9337
      %v9402 = vrsqrt.pop %v9338
      %v9403 = vrsqrt.pop %v9339
      %v9404 = vrsqrt.pop %v9340
      %v9405 = vrsqrt.pop %v9341
      %v9406 = vrsqrt.pop %v9342
      %v9407 = vmul.f32 %v8895, %v9343
      %v9408 = vmul.f32 %v8896, %v9344
      %v9409 = vmul.f32 %v8897, %v9345
      %v9410 = vmul.f32 %v8898, %v9346
      %v9411 = vmul.f32 %v8899, %v9347
      %v9412 = vmul.f32 %v8900, %v9348
      %v9413 = vmul.f32 %v8901, %v9349
      %v9414 = vmul.f32 %v8902, %v9350
      %v9415 = vmul.f32 %v8903, %v9351
      %v9416 = vmul.f32 %v8904, %v9352
      %v9417 = vmul.f32 %v8905, %v9353
      %v9418 = vmul.f32 %v8906, %v9354
      %v9419 = vmul.f32 %v8907, %v9355
      %v9420 = vmul.f32 %v8908, %v9356
      %v9421 = vmul.f32 %v8909, %v9357
      %v9422 = vmul.f32 %v8910, %v9358
      %v9423 = vmul.f32 %v8911, %v9359
      %v9424 = vmul.f32 %v8912, %v9360
      %v9425 = vmul.f32 %v8913, %v9361
      %v9426 = vmul.f32 %v8914, %v9362
      %v9427 = vmul.f32 %v8915, %v9363
      %v9428 = vmul.f32 %v8916, %v9364
      %v9429 = vmul.f32 %v8917, %v9365
      %v9430 = vmul.f32 %v8918, %v9366
      %v9431 = vmul.f32 %v8919, %v9367
      %v9432 = vmul.f32 %v8920, %v9368
      %v9433 = vmul.f32 %v8921, %v9369
      %v9434 = vmul.f32 %v8922, %v9370
      %v9435 = vmul.f32 %v8923, %v9371
      %v9436 = vmul.f32 %v8924, %v9372
      %v9437 = vmul.f32 %v8925, %v9373
      %v9438 = vmul.f32 %v8926, %v9374
      %v9439 = vmul.f32 %v8927, %v9375
      %v9440 = vmul.f32 %v8928, %v9376
      %v9441 = vmul.f32 %v8929, %v9377
      %v9442 = vmul.f32 %v8930, %v9378
      %v9443 = vmul.f32 %v8931, %v9379
      %v9444 = vmul.f32 %v8932, %v9380
      %v9445 = vmul.f32 %v8933, %v9381
      %v9446 = vmul.f32 %v8934, %v9382
      %v9447 = vmul.f32 %v8935, %v9383
      %v9448 = vmul.f32 %v8936, %v9384
      %v9449 = vmul.f32 %v8937, %v9385
      %v9450 = vmul.f32 %v8938, %v9386
      %v9451 = vmul.f32 %v8939, %v9387
      %v9452 = vmul.f32 %v8940, %v9388
      %v9453 = vmul.f32 %v8941, %v9389
      %v9454 = vmul.f32 %v8942, %v9390
      %v9455 = vmul.f32 %v8943, %v9391
      %v9456 = vmul.f32 %v8944, %v9392
      %v9457 = vmul.f32 %v8945, %v9393
      %v9458 = vmul.f32 %v8946, %v9394
      %v9459 = vmul.f32 %v8947, %v9395
      %v9460 = vmul.f32 %v8948, %v9396
      %v9461 = vmul.f32 %v8949, %v9397
      %v9462 = vmul.f32 %v8950, %v9398
      %v9463 = vmul.f32 %v8951, %v9399
      %v9464 = vmul.f32 %v8952, %v9400
      %v9465 = vmul.f32 %v8953, %v9401
      %v9466 = vmul.f32 %v8954, %v9402
      %v9467 = vmul.f32 %v8955, %v9403
      %v9468 = vmul.f32 %v8956, %v9404
      %v9469 = vmul.f32 %v8957, %v9405
      %v9470 = vmul.f32 %v8958, %v9406
      %v9472 = vlaneseq
      %v9473 = vshrl.u32 %v9472, 7
      %v9474 = vsub.s32 0, %v9473
      %v9475 = vrot.slane %v8637, %v9474
      %v9477 = vmul.f32 %v9407, %v9475
      %v9478 = vmul.f32 %v9408, %v9475
      %v9479 = vmul.f32 %v9409, %v9475
      %v9480 = vmul.f32 %v9410, %v9475
      %v9481 = vmul.f32 %v9411, %v9475
      %v9482 = vmul.f32 %v9412, %v9475
      %v9483 = vmul.f32 %v9413, %v9475
      %v9484 = vmul.f32 %v9414, %v9475
      %v9485 = vmul.f32 %v9415, %v9475
      %v9486 = vmul.f32 %v9416, %v9475
      %v9487 = vmul.f32 %v9417, %v9475
      %v9488 = vmul.f32 %v9418, %v9475
      %v9489 = vmul.f32 %v9419, %v9475
      %v9490 = vmul.f32 %v9420, %v9475
      %v9491 = vmul.f32 %v9421, %v9475
      %v9492 = vmul.f32 %v9422, %v9475
      %v9493 = vmul.f32 %v9423, %v9475
      %v9494 = vmul.f32 %v9424, %v9475
      %v9495 = vmul.f32 %v9425, %v9475
      %v9496 = vmul.f32 %v9426, %v9475
      %v9497 = vmul.f32 %v9427, %v9475
      %v9498 = vmul.f32 %v9428, %v9475
      %v9499 = vmul.f32 %v9429, %v9475
      %v9500 = vmul.f32 %v9430, %v9475
      %v9501 = vmul.f32 %v9431, %v9475
      %v9502 = vmul.f32 %v9432, %v9475
      %v9503 = vmul.f32 %v9433, %v9475
      %v9504 = vmul.f32 %v9434, %v9475
      %v9505 = vmul.f32 %v9435, %v9475
      %v9506 = vmul.f32 %v9436, %v9475
      %v9507 = vmul.f32 %v9437, %v9475
      %v9508 = vmul.f32 %v9438, %v9475
      %v9509 = vmul.f32 %v9439, %v9475
      %v9510 = vmul.f32 %v9440, %v9475
      %v9511 = vmul.f32 %v9441, %v9475
      %v9512 = vmul.f32 %v9442, %v9475
      %v9513 = vmul.f32 %v9443, %v9475
      %v9514 = vmul.f32 %v9444, %v9475
      %v9515 = vmul.f32 %v9445, %v9475
      %v9516 = vmul.f32 %v9446, %v9475
      %v9517 = vmul.f32 %v9447, %v9475
      %v9518 = vmul.f32 %v9448, %v9475
      %v9519 = vmul.f32 %v9449, %v9475
      %v9520 = vmul.f32 %v9450, %v9475
      %v9521 = vmul.f32 %v9451, %v9475
      %v9522 = vmul.f32 %v9452, %v9475
      %v9523 = vmul.f32 %v9453, %v9475
      %v9524 = vmul.f32 %v9454, %v9475
      %v9525 = vmul.f32 %v9455, %v9475
      %v9526 = vmul.f32 %v9456, %v9475
      %v9527 = vmul.f32 %v9457, %v9475
      %v9528 = vmul.f32 %v9458, %v9475
      %v9529 = vmul.f32 %v9459, %v9475
      %v9530 = vmul.f32 %v9460, %v9475
      %v9531 = vmul.f32 %v9461, %v9475
      %v9532 = vmul.f32 %v9462, %v9475
      %v9533 = vmul.f32 %v9463, %v9475
      %v9534 = vmul.f32 %v9464, %v9475
      %v9535 = vmul.f32 %v9465, %v9475
      %v9536 = vmul.f32 %v9466, %v9475
      %v9537 = vmul.f32 %v9467, %v9475
      %v9538 = vmul.f32 %v9468, %v9475
      %v9539 = vmul.f32 %v9469, %v9475
      %v9540 = vmul.f32 %v9470, %v9475
      %v9542 = vlaneseq
      %v9543 = vshrl.u32 %v9542, 7
      %v9544 = vsub.s32 0, %v9543
      %v9545 = vrot.slane %v8638, %v9544
      %v9547 = vadd.f32 %v9477, %v9545
      %v9548 = vadd.f32 %v9478, %v9545
      %v9549 = vadd.f32 %v9479, %v9545
      %v9550 = vadd.f32 %v9480, %v9545
      %v9551 = vadd.f32 %v9481, %v9545
      %v9552 = vadd.f32 %v9482, %v9545
      %v9553 = vadd.f32 %v9483, %v9545
      %v9554 = vadd.f32 %v9484, %v9545
      %v9555 = vadd.f32 %v9485, %v9545
      %v9556 = vadd.f32 %v9486, %v9545
      %v9557 = vadd.f32 %v9487, %v9545
      %v9558 = vadd.f32 %v9488, %v9545
      %v9559 = vadd.f32 %v9489, %v9545
      %v9560 = vadd.f32 %v9490, %v9545
      %v9561 = vadd.f32 %v9491, %v9545
      %v9562 = vadd.f32 %v9492, %v9545
      %v9563 = vadd.f32 %v9493, %v9545
      %v9564 = vadd.f32 %v9494, %v9545
      %v9565 = vadd.f32 %v9495, %v9545
      %v9566 = vadd.f32 %v9496, %v9545
      %v9567 = vadd.f32 %v9497, %v9545
      %v9568 = vadd.f32 %v9498, %v9545
      %v9569 = vadd.f32 %v9499, %v9545
      %v9570 = vadd.f32 %v9500, %v9545
      %v9571 = vadd.f32 %v9501, %v9545
      %v9572 = vadd.f32 %v9502, %v9545
      %v9573 = vadd.f32 %v9503, %v9545
      %v9574 = vadd.f32 %v9504, %v9545
      %v9575 = vadd.f32 %v9505, %v9545
      %v9576 = vadd.f32 %v9506, %v9545
      %v9577 = vadd.f32 %v9507, %v9545
      %v9578 = vadd.f32 %v9508, %v9545
      %v9579 = vadd.f32 %v9509, %v9545
      %v9580 = vadd.f32 %v9510, %v9545
      %v9581 = vadd.f32 %v9511, %v9545
      %v9582 = vadd.f32 %v9512, %v9545
      %v9583 = vadd.f32 %v9513, %v9545
      %v9584 = vadd.f32 %v9514, %v9545
      %v9585 = vadd.f32 %v9515, %v9545
      %v9586 = vadd.f32 %v9516, %v9545
      %v9587 = vadd.f32 %v9517, %v9545
      %v9588 = vadd.f32 %v9518, %v9545
      %v9589 = vadd.f32 %v9519, %v9545
      %v9590 = vadd.f32 %v9520, %v9545
      %v9591 = vadd.f32 %v9521, %v9545
      %v9592 = vadd.f32 %v9522, %v9545
      %v9593 = vadd.f32 %v9523, %v9545
      %v9594 = vadd.f32 %v9524, %v9545
      %v9595 = vadd.f32 %v9525, %v9545
      %v9596 = vadd.f32 %v9526, %v9545
      %v9597 = vadd.f32 %v9527, %v9545
      %v9598 = vadd.f32 %v9528, %v9545
      %v9599 = vadd.f32 %v9529, %v9545
      %v9600 = vadd.f32 %v9530, %v9545
      %v9601 = vadd.f32 %v9531, %v9545
      %v9602 = vadd.f32 %v9532, %v9545
      %v9603 = vadd.f32 %v9533, %v9545
      %v9604 = vadd.f32 %v9534, %v9545
      %v9605 = vadd.f32 %v9535, %v9545
      %v9606 = vadd.f32 %v9536, %v9545
      %v9607 = vadd.f32 %v9537, %v9545
      %v9608 = vadd.f32 %v9538, %v9545
      %v9609 = vadd.f32 %v9539, %v9545
      %v9610 = vadd.f32 %v9540, %v9545
      %v9611 = vpack.c.bf16 %v9548, %v9547
      %v9612 = vpack.c.bf16 %v9550, %v9549
      %v9613 = vpack.c.bf16 %v9552, %v9551
      %v9614 = vpack.c.bf16 %v9554, %v9553
      %v9615 = vpack.c.bf16 %v9556, %v9555
      %v9616 = vpack.c.bf16 %v9558, %v9557
      %v9617 = vpack.c.bf16 %v9560, %v9559
      %v9618 = vpack.c.bf16 %v9562, %v9561
      %v9619 = vpack.c.bf16 %v9564, %v9563
      %v9620 = vpack.c.bf16 %v9566, %v9565
      %v9621 = vpack.c.bf16 %v9568, %v9567
      %v9622 = vpack.c.bf16 %v9570, %v9569
      %v9623 = vpack.c.bf16 %v9572, %v9571
      %v9624 = vpack.c.bf16 %v9574, %v9573
      %v9625 = vpack.c.bf16 %v9576, %v9575
      %v9626 = vpack.c.bf16 %v9578, %v9577
      %v9627 = vpack.c.bf16 %v9580, %v9579
      %v9628 = vpack.c.bf16 %v9582, %v9581
      %v9629 = vpack.c.bf16 %v9584, %v9583
      %v9630 = vpack.c.bf16 %v9586, %v9585
      %v9631 = vpack.c.bf16 %v9588, %v9587
      %v9632 = vpack.c.bf16 %v9590, %v9589
      %v9633 = vpack.c.bf16 %v9592, %v9591
      %v9634 = vpack.c.bf16 %v9594, %v9593
      %v9635 = vpack.c.bf16 %v9596, %v9595
      %v9636 = vpack.c.bf16 %v9598, %v9597
      %v9637 = vpack.c.bf16 %v9600, %v9599
      %v9638 = vpack.c.bf16 %v9602, %v9601
      %v9639 = vpack.c.bf16 %v9604, %v9603
      %v9640 = vpack.c.bf16 %v9606, %v9605
      %v9641 = vpack.c.bf16 %v9608, %v9607
      %v9642 = vpack.c.bf16 %v9610, %v9609
      %v9643 = vld [vmem:[%s11] sm:$0xff]
      %v9644 = vld [vmem:[%s11 + $0x8] sm:$0xff]
      %v9645 = vld [vmem:[%s11 + $0x10] sm:$0xff]
      %v9646 = vld [vmem:[%s11 + $0x18] sm:$0xff]
      %v9647 = vpack.c.bf16 %v9644, %v9643
      %v9648 = vpack.c.bf16 %v9646, %v9645
      %v9649 = vld [vmem:[%s12] sm:$0x1]
      %v9651 = vlaneseq
      %v9652 = vshrl.u32 %v9651, 7
      %v9653 = vsub.s32 0, %v9652
      %v9654 = vrot.slane %v9649, %v9653
      %v9657 = vsel %vm562, %v9611, 0
      %v9660 = vsel %vm562, %v9612, 0
      %v9663 = vsel %vm562, %v9613, 0
      %v9666 = vsel %vm562, %v9614, 0
      %v9669 = vsel %vm562, %v9615, 0
      %v9672 = vsel %vm562, %v9616, 0
      %v9675 = vsel %vm562, %v9617, 0
      %v9678 = vsel %vm562, %v9618, 0
      %v9681 = vsel %vm562, %v9619, 0
      %v9684 = vsel %vm562, %v9620, 0
      %v9687 = vsel %vm562, %v9621, 0
      %v9690 = vsel %vm562, %v9622, 0
      %v9693 = vsel %vm562, %v9623, 0
      %v9696 = vsel %vm562, %v9624, 0
      %v9699 = vsel %vm562, %v9625, 0
      %v9702 = vsel %vm562, %v9626, 0
      %v9705 = vsel %vm562, %v9627, 0
      %v9708 = vsel %vm562, %v9628, 0
      %v9711 = vsel %vm562, %v9629, 0
      %v9714 = vsel %vm562, %v9630, 0
      %v9717 = vsel %vm562, %v9631, 0
      %v9720 = vsel %vm562, %v9632, 0
      %v9723 = vsel %vm562, %v9633, 0
      %v9726 = vsel %vm562, %v9634, 0
      %v9729 = vsel %vm562, %v9635, 0
      %v9732 = vsel %vm562, %v9636, 0
      %v9735 = vsel %vm562, %v9637, 0
      %v9738 = vsel %vm562, %v9638, 0
      %v9741 = vsel %vm562, %v9639, 0
      %v9744 = vsel %vm562, %v9640, 0
      %v9747 = vsel %vm562, %v9641, 0
      %v9750 = vsel %vm562, %v9642, 0
      %9752 = vmatprep.subr.bf16.mxu0 0
      %9753 = vmatpush1.bf16.msra.mxu0 0
      %9754 = vmatprep.subr.bf16.mxu0 0
      %9755 = vmatpush1.bf16.msra.mxu0 0
      %9756 = vmatprep.subr.bf16.mxu0 0
      %9757 = vmatpush1.bf16.msra.mxu0 0
      %9758 = vmatprep.subr.bf16.mxu0 0
      %9759 = vmatpush1.bf16.msra.mxu0 0
      %9760 = vmatprep.subr.bf16.mxu0 0
      %9761 = vmatpush1.bf16.msra.mxu0 0
      %9762 = vmatprep.subr.bf16.mxu0 0
      %9763 = vmatpush1.bf16.msra.mxu0 0
      %9764 = vmatprep.subr.bf16.mxu0 0
      %9765 = vmatpush1.bf16.msra.mxu0 %v9648
      %9766 = vmatprep.subr.bf16.mxu0 0
      %9767 = vmatpush1.bf16.msra.mxu0 %v9647
      %9768 = vmatprep.subr.bf16.mxu0 0
      %9769 = vmatpush2.bf16.msra.mxu0 0
      %9770 = vmatprep.subr.bf16.mxu0 0
      %9771 = vmatpush2.bf16.msra.mxu0 0
      %9772 = vmatprep.subr.bf16.mxu0 0
      %9773 = vmatpush2.bf16.msra.mxu0 0
      %9774 = vmatprep.subr.bf16.mxu0 0
      %9775 = vmatpush2.bf16.msra.mxu0 0
      %9776 = vmatprep.subr.bf16.mxu0 0
      %9777 = vmatpush2.bf16.msra.mxu0 0
      %9778 = vmatprep.subr.bf16.mxu0 0
      %9779 = vmatpush2.bf16.msra.mxu0 0
      %9780 = vmatprep.subr.bf16.mxu0 0
      %9781 = vmatpush2.bf16.msra.mxu0 0
      %9782 = vmatprep.subr.bf16.mxu0 0
      %9783 = vmatpush2.bf16.msra.mxu0 0
      %9784 = vmatprep.mubr.bf16.mxu0 0
      %9785 = vmatmul.mubr.bf16.gmra.mxu0 %v9657
      %v9786 = vpop.f32.mrf.mxu0
      %v9787 = vadd.f32 %v9654, %v9786
      %v9788 = vpop.f32.mrf.mxu0
      %v9789 = vpop.f32.mrf.mxu0
      %v9790 = vadd.f32 %v9654, %v9789
      %v9791 = vpop.f32.mrf.mxu0
      %9792 = vmatprep.mubr.bf16.mxu0 0
      %9793 = vmatmul.mubr.bf16.gmra.mxu0 %v9660
      %v9794 = vpop.f32.mrf.mxu0
      %v9795 = vadd.f32 %v9654, %v9794
      %v9796 = vpop.f32.mrf.mxu0
      %v9797 = vpop.f32.mrf.mxu0
      %v9798 = vadd.f32 %v9654, %v9797
      %v9799 = vpop.f32.mrf.mxu0
      %9800 = vmatprep.mubr.bf16.mxu0 0
      %9801 = vmatmul.mubr.bf16.gmra.mxu0 %v9663
      %v9802 = vpop.f32.mrf.mxu0
      %v9803 = vadd.f32 %v9654, %v9802
      %v9804 = vpop.f32.mrf.mxu0
      %v9805 = vpop.f32.mrf.mxu0
      %v9806 = vadd.f32 %v9654, %v9805
      %v9807 = vpop.f32.mrf.mxu0
      %9808 = vmatprep.mubr.bf16.mxu0 0
      %9809 = vmatmul.mubr.bf16.gmra.mxu0 %v9666
      %v9810 = vpop.f32.mrf.mxu0
      %v9811 = vadd.f32 %v9654, %v9810
      %v9812 = vpop.f32.mrf.mxu0
      %v9813 = vpop.f32.mrf.mxu0
      %v9814 = vadd.f32 %v9654, %v9813
      %v9815 = vpop.f32.mrf.mxu0
      %9816 = vmatprep.mubr.bf16.mxu0 0
      %9817 = vmatmul.mubr.bf16.gmra.mxu0 %v9669
      %v9818 = vpop.f32.mrf.mxu0
      %v9819 = vadd.f32 %v9654, %v9818
      %v9820 = vpop.f32.mrf.mxu0
      %v9821 = vpop.f32.mrf.mxu0
      %v9822 = vadd.f32 %v9654, %v9821
      %v9823 = vpop.f32.mrf.mxu0
      %9824 = vmatprep.mubr.bf16.mxu0 0
      %9825 = vmatmul.mubr.bf16.gmra.mxu0 %v9672
      %v9826 = vpop.f32.mrf.mxu0
      %v9827 = vadd.f32 %v9654, %v9826
      %v9828 = vpop.f32.mrf.mxu0
      %v9829 = vpop.f32.mrf.mxu0
      %v9830 = vadd.f32 %v9654, %v9829
      %v9831 = vpop.f32.mrf.mxu0
      %9832 = vmatprep.mubr.bf16.mxu0 0
      %9833 = vmatmul.mubr.bf16.gmra.mxu0 %v9675
      %v9834 = vpop.f32.mrf.mxu0
      %v9835 = vadd.f32 %v9654, %v9834
      %v9836 = vpop.f32.mrf.mxu0
      %v9837 = vpop.f32.mrf.mxu0
      %v9838 = vadd.f32 %v9654, %v9837
      %v9839 = vpop.f32.mrf.mxu0
      %9840 = vmatprep.mubr.bf16.mxu0 0
      %9841 = vmatmul.mubr.bf16.gmra.mxu0 %v9678
      %v9842 = vpop.f32.mrf.mxu0
      %v9843 = vadd.f32 %v9654, %v9842
      %v9844 = vpop.f32.mrf.mxu0
      %v9845 = vpop.f32.mrf.mxu0
      %v9846 = vadd.f32 %v9654, %v9845
      %v9847 = vpop.f32.mrf.mxu0
      %9848 = vmatprep.mubr.bf16.mxu0 0
      %9849 = vmatmul.mubr.bf16.gmra.mxu0 %v9681
      %v9850 = vpop.f32.mrf.mxu0
      %v9851 = vadd.f32 %v9654, %v9850
      %v9852 = vpop.f32.mrf.mxu0
      %v9853 = vpop.f32.mrf.mxu0
      %v9854 = vadd.f32 %v9654, %v9853
      %v9855 = vpop.f32.mrf.mxu0
      %9856 = vmatprep.mubr.bf16.mxu0 0
      %9857 = vmatmul.mubr.bf16.gmra.mxu0 %v9684
      %v9858 = vpop.f32.mrf.mxu0
      %v9859 = vadd.f32 %v9654, %v9858
      %v9860 = vpop.f32.mrf.mxu0
      %v9861 = vpop.f32.mrf.mxu0
      %v9862 = vadd.f32 %v9654, %v9861
      %v9863 = vpop.f32.mrf.mxu0
      %9864 = vmatprep.mubr.bf16.mxu0 0
      %9865 = vmatmul.mubr.bf16.gmra.mxu0 %v9687
      %v9866 = vpop.f32.mrf.mxu0
      %v9867 = vadd.f32 %v9654, %v9866
      %v9868 = vpop.f32.mrf.mxu0
      %v9869 = vpop.f32.mrf.mxu0
      %v9870 = vadd.f32 %v9654, %v9869
      %v9871 = vpop.f32.mrf.mxu0
      %9872 = vmatprep.mubr.bf16.mxu0 0
      %9873 = vmatmul.mubr.bf16.gmra.mxu0 %v9690
      %v9874 = vpop.f32.mrf.mxu0
      %v9875 = vadd.f32 %v9654, %v9874
      %v9876 = vpop.f32.mrf.mxu0
      %v9877 = vpop.f32.mrf.mxu0
      %v9878 = vadd.f32 %v9654, %v9877
      %v9879 = vpop.f32.mrf.mxu0
      %9880 = vmatprep.mubr.bf16.mxu0 0
      %9881 = vmatmul.mubr.bf16.gmra.mxu0 %v9693
      %v9882 = vpop.f32.mrf.mxu0
      %v9883 = vadd.f32 %v9654, %v9882
      %v9884 = vpop.f32.mrf.mxu0
      %v9885 = vpop.f32.mrf.mxu0
      %v9886 = vadd.f32 %v9654, %v9885
      %v9887 = vpop.f32.mrf.mxu0
      %9888 = vmatprep.mubr.bf16.mxu0 0
      %9889 = vmatmul.mubr.bf16.gmra.mxu0 %v9696
      %v9890 = vpop.f32.mrf.mxu0
      %v9891 = vadd.f32 %v9654, %v9890
      %v9892 = vpop.f32.mrf.mxu0
      %v9893 = vpop.f32.mrf.mxu0
      %v9894 = vadd.f32 %v9654, %v9893
      %v9895 = vpop.f32.mrf.mxu0
      %9896 = vmatprep.mubr.bf16.mxu0 0
      %9897 = vmatmul.mubr.bf16.gmra.mxu0 %v9699
      %v9898 = vpop.f32.mrf.mxu0
      %v9899 = vadd.f32 %v9654, %v9898
      %v9900 = vpop.f32.mrf.mxu0
      %v9901 = vpop.f32.mrf.mxu0
      %v9902 = vadd.f32 %v9654, %v9901
      %v9903 = vpop.f32.mrf.mxu0
      %9904 = vmatprep.mubr.bf16.mxu0 0
      %9905 = vmatmul.mubr.bf16.gmra.mxu0 %v9702
      %v9906 = vpop.f32.mrf.mxu0
      %v9907 = vadd.f32 %v9654, %v9906
      %v9908 = vpop.f32.mrf.mxu0
      %v9909 = vpop.f32.mrf.mxu0
      %v9910 = vadd.f32 %v9654, %v9909
      %v9911 = vpop.f32.mrf.mxu0
      %9912 = vmatprep.mubr.bf16.mxu0 0
      %9913 = vmatmul.mubr.bf16.gmra.mxu0 %v9705
      %v9914 = vpop.f32.mrf.mxu0
      %v9915 = vadd.f32 %v9654, %v9914
      %v9916 = vpop.f32.mrf.mxu0
      %v9917 = vpop.f32.mrf.mxu0
      %v9918 = vadd.f32 %v9654, %v9917
      %v9919 = vpop.f32.mrf.mxu0
      %9920 = vmatprep.mubr.bf16.mxu0 0
      %9921 = vmatmul.mubr.bf16.gmra.mxu0 %v9708
      %v9922 = vpop.f32.mrf.mxu0
      %v9923 = vadd.f32 %v9654, %v9922
      %v9924 = vpop.f32.mrf.mxu0
      %v9925 = vpop.f32.mrf.mxu0
      %v9926 = vadd.f32 %v9654, %v9925
      %v9927 = vpop.f32.mrf.mxu0
      %9928 = vmatprep.mubr.bf16.mxu0 0
      %9929 = vmatmul.mubr.bf16.gmra.mxu0 %v9711
      %v9930 = vpop.f32.mrf.mxu0
      %v9931 = vadd.f32 %v9654, %v9930
      %v9932 = vpop.f32.mrf.mxu0
      %v9933 = vpop.f32.mrf.mxu0
      %v9934 = vadd.f32 %v9654, %v9933
      %v9935 = vpop.f32.mrf.mxu0
      %9936 = vmatprep.mubr.bf16.mxu0 0
      %9937 = vmatmul.mubr.bf16.gmra.mxu0 %v9714
      %v9938 = vpop.f32.mrf.mxu0
      %v9939 = vadd.f32 %v9654, %v9938
      %v9940 = vpop.f32.mrf.mxu0
      %v9941 = vpop.f32.mrf.mxu0
      %v9942 = vadd.f32 %v9654, %v9941
      %v9943 = vpop.f32.mrf.mxu0
      %9944 = vmatprep.mubr.bf16.mxu0 0
      %9945 = vmatmul.mubr.bf16.gmra.mxu0 %v9717
      %v9946 = vpop.f32.mrf.mxu0
      %v9947 = vadd.f32 %v9654, %v9946
      %v9948 = vpop.f32.mrf.mxu0
      %v9949 = vpop.f32.mrf.mxu0
      %v9950 = vadd.f32 %v9654, %v9949
      %v9951 = vpop.f32.mrf.mxu0
      %9952 = vmatprep.mubr.bf16.mxu0 0
      %9953 = vmatmul.mubr.bf16.gmra.mxu0 %v9720
      %v9954 = vpop.f32.mrf.mxu0
      %v9955 = vadd.f32 %v9654, %v9954
      %v9956 = vpop.f32.mrf.mxu0
      %v9957 = vpop.f32.mrf.mxu0
      %v9958 = vadd.f32 %v9654, %v9957
      %v9959 = vpop.f32.mrf.mxu0
      %9960 = vmatprep.mubr.bf16.mxu0 0
      %9961 = vmatmul.mubr.bf16.gmra.mxu0 %v9723
      %v9962 = vpop.f32.mrf.mxu0
      %v9963 = vadd.f32 %v9654, %v9962
      %v9964 = vpop.f32.mrf.mxu0
      %v9965 = vpop.f32.mrf.mxu0
      %v9966 = vadd.f32 %v9654, %v9965
      %v9967 = vpop.f32.mrf.mxu0
      %9968 = vmatprep.mubr.bf16.mxu0 0
      %9969 = vmatmul.mubr.bf16.gmra.mxu0 %v9726
      %v9970 = vpop.f32.mrf.mxu0
      %v9971 = vadd.f32 %v9654, %v9970
      %v9972 = vpop.f32.mrf.mxu0
      %v9973 = vpop.f32.mrf.mxu0
      %v9974 = vadd.f32 %v9654, %v9973
      %v9975 = vpop.f32.mrf.mxu0
      %9976 = vmatprep.mubr.bf16.mxu0 0
      %9977 = vmatmul.mubr.bf16.gmra.mxu0 %v9729
      %v9978 = vpop.f32.mrf.mxu0
      %v9979 = vadd.f32 %v9654, %v9978
      %v9980 = vpop.f32.mrf.mxu0
      %v9981 = vpop.f32.mrf.mxu0
      %v9982 = vadd.f32 %v9654, %v9981
      %v9983 = vpop.f32.mrf.mxu0
      %9984 = vmatprep.mubr.bf16.mxu0 0
      %9985 = vmatmul.mubr.bf16.gmra.mxu0 %v9732
      %v9986 = vpop.f32.mrf.mxu0
      %v9987 = vadd.f32 %v9654, %v9986
      %v9988 = vpop.f32.mrf.mxu0
      %v9989 = vpop.f32.mrf.mxu0
      %v9990 = vadd.f32 %v9654, %v9989
      %v9991 = vpop.f32.mrf.mxu0
      %9992 = vmatprep.mubr.bf16.mxu0 0
      %9993 = vmatmul.mubr.bf16.gmra.mxu0 %v9735
      %v9994 = vpop.f32.mrf.mxu0
      %v9995 = vadd.f32 %v9654, %v9994
      %v9996 = vpop.f32.mrf.mxu0
      %v9997 = vpop.f32.mrf.mxu0
      %v9998 = vadd.f32 %v9654, %v9997
      %v9999 = vpop.f32.mrf.mxu0
      %10000 = vmatprep.mubr.bf16.mxu0 0
      %10001 = vmatmul.mubr.bf16.gmra.mxu0 %v9738
      %v10002 = vpop.f32.mrf.mxu0
      %v10003 = vadd.f32 %v9654, %v10002
      %v10004 = vpop.f32.mrf.mxu0
      %v10005 = vpop.f32.mrf.mxu0
      %v10006 = vadd.f32 %v9654, %v10005
      %v10007 = vpop.f32.mrf.mxu0
      %10008 = vmatprep.mubr.bf16.mxu0 0
      %10009 = vmatmul.mubr.bf16.gmra.mxu0 %v9741
      %v10010 = vpop.f32.mrf.mxu0
      %v10011 = vadd.f32 %v9654, %v10010
      %v10012 = vpop.f32.mrf.mxu0
      %v10013 = vpop.f32.mrf.mxu0
      %v10014 = vadd.f32 %v9654, %v10013
      %v10015 = vpop.f32.mrf.mxu0
      %10016 = vmatprep.mubr.bf16.mxu0 0
      %10017 = vmatmul.mubr.bf16.gmra.mxu0 %v9744
      %v10018 = vpop.f32.mrf.mxu0
      %v10019 = vadd.f32 %v9654, %v10018
      %v10020 = vpop.f32.mrf.mxu0
      %v10021 = vpop.f32.mrf.mxu0
      %v10022 = vadd.f32 %v9654, %v10021
      %v10023 = vpop.f32.mrf.mxu0
      %10024 = vmatprep.mubr.bf16.mxu0 0
      %10025 = vmatmul.mubr.bf16.gmra.mxu0 %v9747
      %v10026 = vpop.f32.mrf.mxu0
      %v10027 = vadd.f32 %v9654, %v10026
      %v10028 = vpop.f32.mrf.mxu0
      %v10029 = vpop.f32.mrf.mxu0
      %v10030 = vadd.f32 %v9654, %v10029
      %v10031 = vpop.f32.mrf.mxu0
      %10032 = vmatprep.mubr.bf16.mxu0 0
      %10033 = vmatmul.mubr.bf16.gmra.mxu0 %v9750
      %v10034 = vpop.f32.mrf.mxu0
      %v10035 = vadd.f32 %v9654, %v10034
      %v10036 = vpop.f32.mrf.mxu0
      %v10037 = vpop.f32.mrf.mxu0
      %v10038 = vadd.f32 %v9654, %v10037
      %v10039 = vpop.f32.mrf.mxu0
      %10040 = vdwg.mxu0
      %v10041 = vmul.f32 %v9787, 0.5
      %v10042 = vmul.f32 %v9790, 0.5
      %v10043 = vmul.f32 %v9795, 0.5
      %v10044 = vmul.f32 %v9798, 0.5
      %v10045 = vmul.f32 %v9803, 0.5
      %v10046 = vmul.f32 %v9806, 0.5
      %v10047 = vmul.f32 %v9811, 0.5
      %v10048 = vmul.f32 %v9814, 0.5
      %v10049 = vmul.f32 %v9819, 0.5
      %v10050 = vmul.f32 %v9822, 0.5
      %v10051 = vmul.f32 %v9827, 0.5
      %v10052 = vmul.f32 %v9830, 0.5
      %v10053 = vmul.f32 %v9835, 0.5
      %v10054 = vmul.f32 %v9838, 0.5
      %v10055 = vmul.f32 %v9843, 0.5
      %v10056 = vmul.f32 %v9846, 0.5
      %v10057 = vmul.f32 %v9851, 0.5
      %v10058 = vmul.f32 %v9854, 0.5
      %v10059 = vmul.f32 %v9859, 0.5
      %v10060 = vmul.f32 %v9862, 0.5
      %v10061 = vmul.f32 %v9867, 0.5
      %v10062 = vmul.f32 %v9870, 0.5
      %v10063 = vmul.f32 %v9875, 0.5
      %v10064 = vmul.f32 %v9878, 0.5
      %v10065 = vmul.f32 %v9883, 0.5
      %v10066 = vmul.f32 %v9886, 0.5
      %v10067 = vmul.f32 %v9891, 0.5
      %v10068 = vmul.f32 %v9894, 0.5
      %v10069 = vmul.f32 %v9899, 0.5
      %v10070 = vmul.f32 %v9902, 0.5
      %v10071 = vmul.f32 %v9907, 0.5
      %v10072 = vmul.f32 %v9910, 0.5
      %v10073 = vmul.f32 %v9915, 0.5
      %v10074 = vmul.f32 %v9918, 0.5
      %v10075 = vmul.f32 %v9923, 0.5
      %v10076 = vmul.f32 %v9926, 0.5
      %v10077 = vmul.f32 %v9931, 0.5
      %v10078 = vmul.f32 %v9934, 0.5
      %v10079 = vmul.f32 %v9939, 0.5
      %v10080 = vmul.f32 %v9942, 0.5
      %v10081 = vmul.f32 %v9947, 0.5
      %v10082 = vmul.f32 %v9950, 0.5
      %v10083 = vmul.f32 %v9955, 0.5
      %v10084 = vmul.f32 %v9958, 0.5
      %v10085 = vmul.f32 %v9963, 0.5
      %v10086 = vmul.f32 %v9966, 0.5
      %v10087 = vmul.f32 %v9971, 0.5
      %v10088 = vmul.f32 %v9974, 0.5
      %v10089 = vmul.f32 %v9979, 0.5
      %v10090 = vmul.f32 %v9982, 0.5
      %v10091 = vmul.f32 %v9987, 0.5
      %v10092 = vmul.f32 %v9990, 0.5
      %v10093 = vmul.f32 %v9995, 0.5
      %v10094 = vmul.f32 %v9998, 0.5
      %v10095 = vmul.f32 %v10003, 0.5
      %v10096 = vmul.f32 %v10006, 0.5
      %v10097 = vmul.f32 %v10011, 0.5
      %v10098 = vmul.f32 %v10014, 0.5
      %v10099 = vmul.f32 %v10019, 0.5
      %v10100 = vmul.f32 %v10022, 0.5
      %v10101 = vmul.f32 %v10027, 0.5
      %v10102 = vmul.f32 %v10030, 0.5
      %v10103 = vmul.f32 %v10035, 0.5
      %v10104 = vmul.f32 %v10038, 0.5
      %v10105 = vmul.f32 %v9787, 0.044715
      %v10106 = vmul.f32 %v9790, 0.044715
      %v10107 = vmul.f32 %v9795, 0.044715
      %v10108 = vmul.f32 %v9798, 0.044715
      %v10109 = vmul.f32 %v9803, 0.044715
      %v10110 = vmul.f32 %v9806, 0.044715
      %v10111 = vmul.f32 %v9811, 0.044715
      %v10112 = vmul.f32 %v9814, 0.044715
      %v10113 = vmul.f32 %v9819, 0.044715
      %v10114 = vmul.f32 %v9822, 0.044715
      %v10115 = vmul.f32 %v9827, 0.044715
      %v10116 = vmul.f32 %v9830, 0.044715
      %v10117 = vmul.f32 %v9835, 0.044715
      %v10118 = vmul.f32 %v9838, 0.044715
      %v10119 = vmul.f32 %v9843, 0.044715
      %v10120 = vmul.f32 %v9846, 0.044715
      %v10121 = vmul.f32 %v9851, 0.044715
      %v10122 = vmul.f32 %v9854, 0.044715
      %v10123 = vmul.f32 %v9859, 0.044715
      %v10124 = vmul.f32 %v9862, 0.044715
      %v10125 = vmul.f32 %v9867, 0.044715
      %v10126 = vmul.f32 %v9870, 0.044715
      %v10127 = vmul.f32 %v9875, 0.044715
      %v10128 = vmul.f32 %v9878, 0.044715
      %v10129 = vmul.f32 %v9883, 0.044715
      %v10130 = vmul.f32 %v9886, 0.044715
      %v10131 = vmul.f32 %v9891, 0.044715
      %v10132 = vmul.f32 %v9894, 0.044715
      %v10133 = vmul.f32 %v9899, 0.044715
      %v10134 = vmul.f32 %v9902, 0.044715
      %v10135 = vmul.f32 %v9907, 0.044715
      %v10136 = vmul.f32 %v9910, 0.044715
      %v10137 = vmul.f32 %v9915, 0.044715
      %v10138 = vmul.f32 %v9918, 0.044715
      %v10139 = vmul.f32 %v9923, 0.044715
      %v10140 = vmul.f32 %v9926, 0.044715
      %v10141 = vmul.f32 %v9931, 0.044715
      %v10142 = vmul.f32 %v9934, 0.044715
      %v10143 = vmul.f32 %v9939, 0.044715
      %v10144 = vmul.f32 %v9942, 0.044715
      %v10145 = vmul.f32 %v9947, 0.044715
      %v10146 = vmul.f32 %v9950, 0.044715
      %v10147 = vmul.f32 %v9955, 0.044715
      %v10148 = vmul.f32 %v9958, 0.044715
      %v10149 = vmul.f32 %v9963, 0.044715
      %v10150 = vmul.f32 %v9966, 0.044715
      %v10151 = vmul.f32 %v9971, 0.044715
      %v10152 = vmul.f32 %v9974, 0.044715
      %v10153 = vmul.f32 %v9979, 0.044715
      %v10154 = vmul.f32 %v9982, 0.044715
      %v10155 = vmul.f32 %v9987, 0.044715
      %v10156 = vmul.f32 %v9990, 0.044715
      %v10157 = vmul.f32 %v9995, 0.044715
      %v10158 = vmul.f32 %v9998, 0.044715
      %v10159 = vmul.f32 %v10003, 0.044715
      %v10160 = vmul.f32 %v10006, 0.044715
      %v10161 = vmul.f32 %v10011, 0.044715
      %v10162 = vmul.f32 %v10014, 0.044715
      %v10163 = vmul.f32 %v10019, 0.044715
      %v10164 = vmul.f32 %v10022, 0.044715
      %v10165 = vmul.f32 %v10027, 0.044715
      %v10166 = vmul.f32 %v10030, 0.044715
      %v10167 = vmul.f32 %v10035, 0.044715
      %v10168 = vmul.f32 %v10038, 0.044715
      %v10169 = vmul.f32 %v10105, %v9787
      %v10170 = vmul.f32 %v10106, %v9790
      %v10171 = vmul.f32 %v10107, %v9795
      %v10172 = vmul.f32 %v10108, %v9798
      %v10173 = vmul.f32 %v10109, %v9803
      %v10174 = vmul.f32 %v10110, %v9806
      %v10175 = vmul.f32 %v10111, %v9811
      %v10176 = vmul.f32 %v10112, %v9814
      %v10177 = vmul.f32 %v10113, %v9819
      %v10178 = vmul.f32 %v10114, %v9822
      %v10179 = vmul.f32 %v10115, %v9827
      %v10180 = vmul.f32 %v10116, %v9830
      %v10181 = vmul.f32 %v10117, %v9835
      %v10182 = vmul.f32 %v10118, %v9838
      %v10183 = vmul.f32 %v10119, %v9843
      %v10184 = vmul.f32 %v10120, %v9846
      %v10185 = vmul.f32 %v10121, %v9851
      %v10186 = vmul.f32 %v10122, %v9854
      %v10187 = vmul.f32 %v10123, %v9859
      %v10188 = vmul.f32 %v10124, %v9862
      %v10189 = vmul.f32 %v10125, %v9867
      %v10190 = vmul.f32 %v10126, %v9870
      %v10191 = vmul.f32 %v10127, %v9875
      %v10192 = vmul.f32 %v10128, %v9878
      %v10193 = vmul.f32 %v10129, %v9883
      %v10194 = vmul.f32 %v10130, %v9886
      %v10195 = vmul.f32 %v10131, %v9891
      %v10196 = vmul.f32 %v10132, %v9894
      %v10197 = vmul.f32 %v10133, %v9899
      %v10198 = vmul.f32 %v10134, %v9902
      %v10199 = vmul.f32 %v10135, %v9907
      %v10200 = vmul.f32 %v10136, %v9910
      %v10201 = vmul.f32 %v10137, %v9915
      %v10202 = vmul.f32 %v10138, %v9918
      %v10203 = vmul.f32 %v10139, %v9923
      %v10204 = vmul.f32 %v10140, %v9926
      %v10205 = vmul.f32 %v10141, %v9931
      %v10206 = vmul.f32 %v10142, %v9934
      %v10207 = vmul.f32 %v10143, %v9939
      %v10208 = vmul.f32 %v10144, %v9942
      %v10209 = vmul.f32 %v10145, %v9947
      %v10210 = vmul.f32 %v10146, %v9950
      %v10211 = vmul.f32 %v10147, %v9955
      %v10212 = vmul.f32 %v10148, %v9958
      %v10213 = vmul.f32 %v10149, %v9963
      %v10214 = vmul.f32 %v10150, %v9966
      %v10215 = vmul.f32 %v10151, %v9971
      %v10216 = vmul.f32 %v10152, %v9974
      %v10217 = vmul.f32 %v10153, %v9979
      %v10218 = vmul.f32 %v10154, %v9982
      %v10219 = vmul.f32 %v10155, %v9987
      %v10220 = vmul.f32 %v10156, %v9990
      %v10221 = vmul.f32 %v10157, %v9995
      %v10222 = vmul.f32 %v10158, %v9998
      %v10223 = vmul.f32 %v10159, %v10003
      %v10224 = vmul.f32 %v10160, %v10006
      %v10225 = vmul.f32 %v10161, %v10011
      %v10226 = vmul.f32 %v10162, %v10014
      %v10227 = vmul.f32 %v10163, %v10019
      %v10228 = vmul.f32 %v10164, %v10022
      %v10229 = vmul.f32 %v10165, %v10027
      %v10230 = vmul.f32 %v10166, %v10030
      %v10231 = vmul.f32 %v10167, %v10035
      %v10232 = vmul.f32 %v10168, %v10038
      %v10233 = vmul.f32 %v10169, %v9787
      %v10234 = vmul.f32 %v10170, %v9790
      %v10235 = vmul.f32 %v10171, %v9795
      %v10236 = vmul.f32 %v10172, %v9798
      %v10237 = vmul.f32 %v10173, %v9803
      %v10238 = vmul.f32 %v10174, %v9806
      %v10239 = vmul.f32 %v10175, %v9811
      %v10240 = vmul.f32 %v10176, %v9814
      %v10241 = vmul.f32 %v10177, %v9819
      %v10242 = vmul.f32 %v10178, %v9822
      %v10243 = vmul.f32 %v10179, %v9827
      %v10244 = vmul.f32 %v10180, %v9830
      %v10245 = vmul.f32 %v10181, %v9835
      %v10246 = vmul.f32 %v10182, %v9838
      %v10247 = vmul.f32 %v10183, %v9843
      %v10248 = vmul.f32 %v10184, %v9846
      %v10249 = vmul.f32 %v10185, %v9851
      %v10250 = vmul.f32 %v10186, %v9854
      %v10251 = vmul.f32 %v10187, %v9859
      %v10252 = vmul.f32 %v10188, %v9862
      %v10253 = vmul.f32 %v10189, %v9867
      %v10254 = vmul.f32 %v10190, %v9870
      %v10255 = vmul.f32 %v10191, %v9875
      %v10256 = vmul.f32 %v10192, %v9878
      %v10257 = vmul.f32 %v10193, %v9883
      %v10258 = vmul.f32 %v10194, %v9886
      %v10259 = vmul.f32 %v10195, %v9891
      %v10260 = vmul.f32 %v10196, %v9894
      %v10261 = vmul.f32 %v10197, %v9899
      %v10262 = vmul.f32 %v10198, %v9902
      %v10263 = vmul.f32 %v10199, %v9907
      %v10264 = vmul.f32 %v10200, %v9910
      %v10265 = vmul.f32 %v10201, %v9915
      %v10266 = vmul.f32 %v10202, %v9918
      %v10267 = vmul.f32 %v10203, %v9923
      %v10268 = vmul.f32 %v10204, %v9926
      %v10269 = vmul.f32 %v10205, %v9931
      %v10270 = vmul.f32 %v10206, %v9934
      %v10271 = vmul.f32 %v10207, %v9939
      %v10272 = vmul.f32 %v10208, %v9942
      %v10273 = vmul.f32 %v10209, %v9947
      %v10274 = vmul.f32 %v10210, %v9950
      %v10275 = vmul.f32 %v10211, %v9955
      %v10276 = vmul.f32 %v10212, %v9958
      %v10277 = vmul.f32 %v10213, %v9963
      %v10278 = vmul.f32 %v10214, %v9966
      %v10279 = vmul.f32 %v10215, %v9971
      %v10280 = vmul.f32 %v10216, %v9974
      %v10281 = vmul.f32 %v10217, %v9979
      %v10282 = vmul.f32 %v10218, %v9982
      %v10283 = vmul.f32 %v10219, %v9987
      %v10284 = vmul.f32 %v10220, %v9990
      %v10285 = vmul.f32 %v10221, %v9995
      %v10286 = vmul.f32 %v10222, %v9998
      %v10287 = vmul.f32 %v10223, %v10003
      %v10288 = vmul.f32 %v10224, %v10006
      %v10289 = vmul.f32 %v10225, %v10011
      %v10290 = vmul.f32 %v10226, %v10014
      %v10291 = vmul.f32 %v10227, %v10019
      %v10292 = vmul.f32 %v10228, %v10022
      %v10293 = vmul.f32 %v10229, %v10027
      %v10294 = vmul.f32 %v10230, %v10030
      %v10295 = vmul.f32 %v10231, %v10035
      %v10296 = vmul.f32 %v10232, %v10038
      %v10297 = vadd.f32 %v9787, %v10233
      %v10298 = vadd.f32 %v9790, %v10234
      %v10299 = vadd.f32 %v9795, %v10235
      %v10300 = vadd.f32 %v9798, %v10236
      %v10301 = vadd.f32 %v9803, %v10237
      %v10302 = vadd.f32 %v9806, %v10238
      %v10303 = vadd.f32 %v9811, %v10239
      %v10304 = vadd.f32 %v9814, %v10240
      %v10305 = vadd.f32 %v9819, %v10241
      %v10306 = vadd.f32 %v9822, %v10242
      %v10307 = vadd.f32 %v9827, %v10243
      %v10308 = vadd.f32 %v9830, %v10244
      %v10309 = vadd.f32 %v9835, %v10245
      %v10310 = vadd.f32 %v9838, %v10246
      %v10311 = vadd.f32 %v9843, %v10247
      %v10312 = vadd.f32 %v9846, %v10248
      %v10313 = vadd.f32 %v9851, %v10249
      %v10314 = vadd.f32 %v9854, %v10250
      %v10315 = vadd.f32 %v9859, %v10251
      %v10316 = vadd.f32 %v9862, %v10252
      %v10317 = vadd.f32 %v9867, %v10253
      %v10318 = vadd.f32 %v9870, %v10254
      %v10319 = vadd.f32 %v9875, %v10255
      %v10320 = vadd.f32 %v9878, %v10256
      %v10321 = vadd.f32 %v9883, %v10257
      %v10322 = vadd.f32 %v9886, %v10258
      %v10323 = vadd.f32 %v9891, %v10259
      %v10324 = vadd.f32 %v9894, %v10260
      %v10325 = vadd.f32 %v9899, %v10261
      %v10326 = vadd.f32 %v9902, %v10262
      %v10327 = vadd.f32 %v9907, %v10263
      %v10328 = vadd.f32 %v9910, %v10264
      %v10329 = vadd.f32 %v9915, %v10265
      %v10330 = vadd.f32 %v9918, %v10266
      %v10331 = vadd.f32 %v9923, %v10267
      %v10332 = vadd.f32 %v9926, %v10268
      %v10333 = vadd.f32 %v9931, %v10269
      %v10334 = vadd.f32 %v9934, %v10270
      %v10335 = vadd.f32 %v9939, %v10271
      %v10336 = vadd.f32 %v9942, %v10272
      %v10337 = vadd.f32 %v9947, %v10273
      %v10338 = vadd.f32 %v9950, %v10274
      %v10339 = vadd.f32 %v9955, %v10275
      %v10340 = vadd.f32 %v9958, %v10276
      %v10341 = vadd.f32 %v9963, %v10277
      %v10342 = vadd.f32 %v9966, %v10278
      %v10343 = vadd.f32 %v9971, %v10279
      %v10344 = vadd.f32 %v9974, %v10280
      %v10345 = vadd.f32 %v9979, %v10281
      %v10346 = vadd.f32 %v9982, %v10282
      %v10347 = vadd.f32 %v9987, %v10283
      %v10348 = vadd.f32 %v9990, %v10284
      %v10349 = vadd.f32 %v9995, %v10285
      %v10350 = vadd.f32 %v9998, %v10286
      %v10351 = vadd.f32 %v10003, %v10287
      %v10352 = vadd.f32 %v10006, %v10288
      %v10353 = vadd.f32 %v10011, %v10289
      %v10354 = vadd.f32 %v10014, %v10290
      %v10355 = vadd.f32 %v10019, %v10291
      %v10356 = vadd.f32 %v10022, %v10292
      %v10357 = vadd.f32 %v10027, %v10293
      %v10358 = vadd.f32 %v10030, %v10294
      %v10359 = vadd.f32 %v10035, %v10295
      %v10360 = vadd.f32 %v10038, %v10296
      %v10361 = vmul.f32 %v10297, 0.7978846
      %v10362 = vmul.f32 %v10298, 0.7978846
      %v10363 = vmul.f32 %v10299, 0.7978846
      %v10364 = vmul.f32 %v10300, 0.7978846
      %v10365 = vmul.f32 %v10301, 0.7978846
      %v10366 = vmul.f32 %v10302, 0.7978846
      %v10367 = vmul.f32 %v10303, 0.7978846
      %v10368 = vmul.f32 %v10304, 0.7978846
      %v10369 = vmul.f32 %v10305, 0.7978846
      %v10370 = vmul.f32 %v10306, 0.7978846
      %v10371 = vmul.f32 %v10307, 0.7978846
      %v10372 = vmul.f32 %v10308, 0.7978846
      %v10373 = vmul.f32 %v10309, 0.7978846
      %v10374 = vmul.f32 %v10310, 0.7978846
      %v10375 = vmul.f32 %v10311, 0.7978846
      %v10376 = vmul.f32 %v10312, 0.7978846
      %v10377 = vmul.f32 %v10313, 0.7978846
      %v10378 = vmul.f32 %v10314, 0.7978846
      %v10379 = vmul.f32 %v10315, 0.7978846
      %v10380 = vmul.f32 %v10316, 0.7978846
      %v10381 = vmul.f32 %v10317, 0.7978846
      %v10382 = vmul.f32 %v10318, 0.7978846
      %v10383 = vmul.f32 %v10319, 0.7978846
      %v10384 = vmul.f32 %v10320, 0.7978846
      %v10385 = vmul.f32 %v10321, 0.7978846
      %v10386 = vmul.f32 %v10322, 0.7978846
      %v10387 = vmul.f32 %v10323, 0.7978846
      %v10388 = vmul.f32 %v10324, 0.7978846
      %v10389 = vmul.f32 %v10325, 0.7978846
      %v10390 = vmul.f32 %v10326, 0.7978846
      %v10391 = vmul.f32 %v10327, 0.7978846
      %v10392 = vmul.f32 %v10328, 0.7978846
      %v10393 = vmul.f32 %v10329, 0.7978846
      %v10394 = vmul.f32 %v10330, 0.7978846
      %v10395 = vmul.f32 %v10331, 0.7978846
      %v10396 = vmul.f32 %v10332, 0.7978846
      %v10397 = vmul.f32 %v10333, 0.7978846
      %v10398 = vmul.f32 %v10334, 0.7978846
      %v10399 = vmul.f32 %v10335, 0.7978846
      %v10400 = vmul.f32 %v10336, 0.7978846
      %v10401 = vmul.f32 %v10337, 0.7978846
      %v10402 = vmul.f32 %v10338, 0.7978846
      %v10403 = vmul.f32 %v10339, 0.7978846
      %v10404 = vmul.f32 %v10340, 0.7978846
      %v10405 = vmul.f32 %v10341, 0.7978846
      %v10406 = vmul.f32 %v10342, 0.7978846
      %v10407 = vmul.f32 %v10343, 0.7978846
      %v10408 = vmul.f32 %v10344, 0.7978846
      %v10409 = vmul.f32 %v10345, 0.7978846
      %v10410 = vmul.f32 %v10346, 0.7978846
      %v10411 = vmul.f32 %v10347, 0.7978846
      %v10412 = vmul.f32 %v10348, 0.7978846
      %v10413 = vmul.f32 %v10349, 0.7978846
      %v10414 = vmul.f32 %v10350, 0.7978846
      %v10415 = vmul.f32 %v10351, 0.7978846
      %v10416 = vmul.f32 %v10352, 0.7978846
      %v10417 = vmul.f32 %v10353, 0.7978846
      %v10418 = vmul.f32 %v10354, 0.7978846
      %v10419 = vmul.f32 %v10355, 0.7978846
      %v10420 = vmul.f32 %v10356, 0.7978846
      %v10421 = vmul.f32 %v10357, 0.7978846
      %v10422 = vmul.f32 %v10358, 0.7978846
      %v10423 = vmul.f32 %v10359, 0.7978846
      %v10424 = vmul.f32 %v10360, 0.7978846
      %v10425 = vtanh.pop %v10361
      %v10426 = vtanh.pop %v10362
      %v10427 = vtanh.pop %v10363
      %v10428 = vtanh.pop %v10364
      %v10429 = vtanh.pop %v10365
      %v10430 = vtanh.pop %v10366
      %v10431 = vtanh.pop %v10367
      %v10432 = vtanh.pop %v10368
      %v10433 = vtanh.pop %v10369
      %v10434 = vtanh.pop %v10370
      %v10435 = vtanh.pop %v10371
      %v10436 = vtanh.pop %v10372
      %v10437 = vtanh.pop %v10373
      %v10438 = vtanh.pop %v10374
      %v10439 = vtanh.pop %v10375
      %v10440 = vtanh.pop %v10376
      %v10441 = vtanh.pop %v10377
      %v10442 = vtanh.pop %v10378
      %v10443 = vtanh.pop %v10379
      %v10444 = vtanh.pop %v10380
      %v10445 = vtanh.pop %v10381
      %v10446 = vtanh.pop %v10382
      %v10447 = vtanh.pop %v10383
      %v10448 = vtanh.pop %v10384
      %v10449 = vtanh.pop %v10385
      %v10450 = vtanh.pop %v10386
      %v10451 = vtanh.pop %v10387
      %v10452 = vtanh.pop %v10388
      %v10453 = vtanh.pop %v10389
      %v10454 = vtanh.pop %v10390
      %v10455 = vtanh.pop %v10391
      %v10456 = vtanh.pop %v10392
      %v10457 = vtanh.pop %v10393
      %v10458 = vtanh.pop %v10394
      %v10459 = vtanh.pop %v10395
      %v10460 = vtanh.pop %v10396
      %v10461 = vtanh.pop %v10397
      %v10462 = vtanh.pop %v10398
      %v10463 = vtanh.pop %v10399
      %v10464 = vtanh.pop %v10400
      %v10465 = vtanh.pop %v10401
      %v10466 = vtanh.pop %v10402
      %v10467 = vtanh.pop %v10403
      %v10468 = vtanh.pop %v10404
      %v10469 = vtanh.pop %v10405
      %v10470 = vtanh.pop %v10406
      %v10471 = vtanh.pop %v10407
      %v10472 = vtanh.pop %v10408
      %v10473 = vtanh.pop %v10409
      %v10474 = vtanh.pop %v10410
      %v10475 = vtanh.pop %v10411
      %v10476 = vtanh.pop %v10412
      %v10477 = vtanh.pop %v10413
      %v10478 = vtanh.pop %v10414
      %v10479 = vtanh.pop %v10415
      %v10480 = vtanh.pop %v10416
      %v10481 = vtanh.pop %v10417
      %v10482 = vtanh.pop %v10418
      %v10483 = vtanh.pop %v10419
      %v10484 = vtanh.pop %v10420
      %v10485 = vtanh.pop %v10421
      %v10486 = vtanh.pop %v10422
      %v10487 = vtanh.pop %v10423
      %v10488 = vtanh.pop %v10424
      %v10489 = vadd.f32 %v10425, 1.0
      %v10490 = vadd.f32 %v10426, 1.0
      %v10491 = vadd.f32 %v10427, 1.0
      %v10492 = vadd.f32 %v10428, 1.0
      %v10493 = vadd.f32 %v10429, 1.0
      %v10494 = vadd.f32 %v10430, 1.0
      %v10495 = vadd.f32 %v10431, 1.0
      %v10496 = vadd.f32 %v10432, 1.0
      %v10497 = vadd.f32 %v10433, 1.0
      %v10498 = vadd.f32 %v10434, 1.0
      %v10499 = vadd.f32 %v10435, 1.0
      %v10500 = vadd.f32 %v10436, 1.0
      %v10501 = vadd.f32 %v10437, 1.0
      %v10502 = vadd.f32 %v10438, 1.0
      %v10503 = vadd.f32 %v10439, 1.0
      %v10504 = vadd.f32 %v10440, 1.0
      %v10505 = vadd.f32 %v10441, 1.0
      %v10506 = vadd.f32 %v10442, 1.0
      %v10507 = vadd.f32 %v10443, 1.0
      %v10508 = vadd.f32 %v10444, 1.0
      %v10509 = vadd.f32 %v10445, 1.0
      %v10510 = vadd.f32 %v10446, 1.0
      %v10511 = vadd.f32 %v10447, 1.0
      %v10512 = vadd.f32 %v10448, 1.0
      %v10513 = vadd.f32 %v10449, 1.0
      %v10514 = vadd.f32 %v10450, 1.0
      %v10515 = vadd.f32 %v10451, 1.0
      %v10516 = vadd.f32 %v10452, 1.0
      %v10517 = vadd.f32 %v10453, 1.0
      %v10518 = vadd.f32 %v10454, 1.0
      %v10519 = vadd.f32 %v10455, 1.0
      %v10520 = vadd.f32 %v10456, 1.0
      %v10521 = vadd.f32 %v10457, 1.0
      %v10522 = vadd.f32 %v10458, 1.0
      %v10523 = vadd.f32 %v10459, 1.0
      %v10524 = vadd.f32 %v10460, 1.0
      %v10525 = vadd.f32 %v10461, 1.0
      %v10526 = vadd.f32 %v10462, 1.0
      %v10527 = vadd.f32 %v10463, 1.0
      %v10528 = vadd.f32 %v10464, 1.0
      %v10529 = vadd.f32 %v10465, 1.0
      %v10530 = vadd.f32 %v10466, 1.0
      %v10531 = vadd.f32 %v10467, 1.0
      %v10532 = vadd.f32 %v10468, 1.0
      %v10533 = vadd.f32 %v10469, 1.0
      %v10534 = vadd.f32 %v10470, 1.0
      %v10535 = vadd.f32 %v10471, 1.0
      %v10536 = vadd.f32 %v10472, 1.0
      %v10537 = vadd.f32 %v10473, 1.0
      %v10538 = vadd.f32 %v10474, 1.0
      %v10539 = vadd.f32 %v10475, 1.0
      %v10540 = vadd.f32 %v10476, 1.0
      %v10541 = vadd.f32 %v10477, 1.0
      %v10542 = vadd.f32 %v10478, 1.0
      %v10543 = vadd.f32 %v10479, 1.0
      %v10544 = vadd.f32 %v10480, 1.0
      %v10545 = vadd.f32 %v10481, 1.0
      %v10546 = vadd.f32 %v10482, 1.0
      %v10547 = vadd.f32 %v10483, 1.0
      %v10548 = vadd.f32 %v10484, 1.0
      %v10549 = vadd.f32 %v10485, 1.0
      %v10550 = vadd.f32 %v10486, 1.0
      %v10551 = vadd.f32 %v10487, 1.0
      %v10552 = vadd.f32 %v10488, 1.0
      %v10553 = vmul.f32 %v10041, %v10489
      %v10554 = vmul.f32 %v10042, %v10490
      %v10555 = vmul.f32 %v10043, %v10491
      %v10556 = vmul.f32 %v10044, %v10492
      %v10557 = vmul.f32 %v10045, %v10493
      %v10558 = vmul.f32 %v10046, %v10494
      %v10559 = vmul.f32 %v10047, %v10495
      %v10560 = vmul.f32 %v10048, %v10496
      %v10561 = vmul.f32 %v10049, %v10497
      %v10562 = vmul.f32 %v10050, %v10498
      %v10563 = vmul.f32 %v10051, %v10499
      %v10564 = vmul.f32 %v10052, %v10500
      %v10565 = vmul.f32 %v10053, %v10501
      %v10566 = vmul.f32 %v10054, %v10502
      %v10567 = vmul.f32 %v10055, %v10503
      %v10568 = vmul.f32 %v10056, %v10504
      %v10569 = vmul.f32 %v10057, %v10505
      %v10570 = vmul.f32 %v10058, %v10506
      %v10571 = vmul.f32 %v10059, %v10507
      %v10572 = vmul.f32 %v10060, %v10508
      %v10573 = vmul.f32 %v10061, %v10509
      %v10574 = vmul.f32 %v10062, %v10510
      %v10575 = vmul.f32 %v10063, %v10511
      %v10576 = vmul.f32 %v10064, %v10512
      %v10577 = vmul.f32 %v10065, %v10513
      %v10578 = vmul.f32 %v10066, %v10514
      %v10579 = vmul.f32 %v10067, %v10515
      %v10580 = vmul.f32 %v10068, %v10516
      %v10581 = vmul.f32 %v10069, %v10517
      %v10582 = vmul.f32 %v10070, %v10518
      %v10583 = vmul.f32 %v10071, %v10519
      %v10584 = vmul.f32 %v10072, %v10520
      %v10585 = vmul.f32 %v10073, %v10521
      %v10586 = vmul.f32 %v10074, %v10522
      %v10587 = vmul.f32 %v10075, %v10523
      %v10588 = vmul.f32 %v10076, %v10524
      %v10589 = vmul.f32 %v10077, %v10525
      %v10590 = vmul.f32 %v10078, %v10526
      %v10591 = vmul.f32 %v10079, %v10527
      %v10592 = vmul.f32 %v10080, %v10528
      %v10593 = vmul.f32 %v10081, %v10529
      %v10594 = vmul.f32 %v10082, %v10530
      %v10595 = vmul.f32 %v10083, %v10531
      %v10596 = vmul.f32 %v10084, %v10532
      %v10597 = vmul.f32 %v10085, %v10533
      %v10598 = vmul.f32 %v10086, %v10534
      %v10599 = vmul.f32 %v10087, %v10535
      %v10600 = vmul.f32 %v10088, %v10536
      %v10601 = vmul.f32 %v10089, %v10537
      %v10602 = vmul.f32 %v10090, %v10538
      %v10603 = vmul.f32 %v10091, %v10539
      %v10604 = vmul.f32 %v10092, %v10540
      %v10605 = vmul.f32 %v10093, %v10541
      %v10606 = vmul.f32 %v10094, %v10542
      %v10607 = vmul.f32 %v10095, %v10543
      %v10608 = vmul.f32 %v10096, %v10544
      %v10609 = vmul.f32 %v10097, %v10545
      %v10610 = vmul.f32 %v10098, %v10546
      %v10611 = vmul.f32 %v10099, %v10547
      %v10612 = vmul.f32 %v10100, %v10548
      %v10613 = vmul.f32 %v10101, %v10549
      %v10614 = vmul.f32 %v10102, %v10550
      %v10615 = vmul.f32 %v10103, %v10551
      %v10616 = vmul.f32 %v10104, %v10552
      %v10617 = vpack.c.bf16 %v10554, %v10553
      %v10618 = vpack.c.bf16 %v10556, %v10555
      %v10619 = vpack.c.bf16 %v10558, %v10557
      %v10620 = vpack.c.bf16 %v10560, %v10559
      %v10621 = vpack.c.bf16 %v10562, %v10561
      %v10622 = vpack.c.bf16 %v10564, %v10563
      %v10623 = vpack.c.bf16 %v10566, %v10565
      %v10624 = vpack.c.bf16 %v10568, %v10567
      %v10625 = vpack.c.bf16 %v10570, %v10569
      %v10626 = vpack.c.bf16 %v10572, %v10571
      %v10627 = vpack.c.bf16 %v10574, %v10573
      %v10628 = vpack.c.bf16 %v10576, %v10575
      %v10629 = vpack.c.bf16 %v10578, %v10577
      %v10630 = vpack.c.bf16 %v10580, %v10579
      %v10631 = vpack.c.bf16 %v10582, %v10581
      %v10632 = vpack.c.bf16 %v10584, %v10583
      %v10633 = vpack.c.bf16 %v10586, %v10585
      %v10634 = vpack.c.bf16 %v10588, %v10587
      %v10635 = vpack.c.bf16 %v10590, %v10589
      %v10636 = vpack.c.bf16 %v10592, %v10591
      %v10637 = vpack.c.bf16 %v10594, %v10593
      %v10638 = vpack.c.bf16 %v10596, %v10595
      %v10639 = vpack.c.bf16 %v10598, %v10597
      %v10640 = vpack.c.bf16 %v10600, %v10599
      %v10641 = vpack.c.bf16 %v10602, %v10601
      %v10642 = vpack.c.bf16 %v10604, %v10603
      %v10643 = vpack.c.bf16 %v10606, %v10605
      %v10644 = vpack.c.bf16 %v10608, %v10607
      %v10645 = vpack.c.bf16 %v10610, %v10609
      %v10646 = vpack.c.bf16 %v10612, %v10611
      %v10647 = vpack.c.bf16 %v10614, %v10613
      %v10648 = vpack.c.bf16 %v10616, %v10615
      %v10649 = vld [vmem:[%s13] sm:$0xff]
      %v10650 = vld [vmem:[%s13 + $0x8] sm:$0xff]
      %v10651 = vld [vmem:[%s13 + $0x10] sm:$0xff]
      %v10652 = vld [vmem:[%s13 + $0x18] sm:$0xff]
      %v10653 = vld [vmem:[%s13 + $0x20] sm:$0xff]
      %v10654 = vld [vmem:[%s13 + $0x28] sm:$0xff]
      %v10655 = vld [vmem:[%s13 + $0x30] sm:$0xff]
      %v10656 = vld [vmem:[%s13 + $0x38] sm:$0xff]
      %v10657 = vpack.c.bf16 %v10650, %v10649
      %v10658 = vpack.c.bf16 %v10652, %v10651
      %v10659 = vpack.c.bf16 %v10654, %v10653
      %v10660 = vpack.c.bf16 %v10656, %v10655
      %v10661 = vld [vmem:[%s14] sm:$0x1]
      %v10663 = vlaneseq
      %v10664 = vshrl.u32 %v10663, 7
      %v10665 = vsub.s32 0, %v10664
      %v10666 = vrot.slane %v10661, %v10665
      %v10669 = vsel %vm3422, %v10617, 0
      %v10672 = vsel %vm3422, %v10618, 0
      %v10675 = vsel %vm3422, %v10619, 0
      %v10678 = vsel %vm3422, %v10620, 0
      %v10681 = vsel %vm3422, %v10621, 0
      %v10684 = vsel %vm3422, %v10622, 0
      %v10687 = vsel %vm3422, %v10623, 0
      %v10690 = vsel %vm3422, %v10624, 0
      %v10693 = vsel %vm3422, %v10625, 0
      %v10696 = vsel %vm3422, %v10626, 0
      %v10699 = vsel %vm3422, %v10627, 0
      %v10702 = vsel %vm3422, %v10628, 0
      %v10705 = vsel %vm3422, %v10629, 0
      %v10708 = vsel %vm3422, %v10630, 0
      %v10711 = vsel %vm3422, %v10631, 0
      %v10714 = vsel %vm3422, %v10632, 0
      %v10717 = vsel %vm3422, %v10633, 0
      %v10720 = vsel %vm3422, %v10634, 0
      %v10723 = vsel %vm3422, %v10635, 0
      %v10726 = vsel %vm3422, %v10636, 0
      %v10729 = vsel %vm3422, %v10637, 0
      %v10732 = vsel %vm3422, %v10638, 0
      %v10735 = vsel %vm3422, %v10639, 0
      %v10738 = vsel %vm3422, %v10640, 0
      %v10741 = vsel %vm3422, %v10641, 0
      %v10744 = vsel %vm3422, %v10642, 0
      %v10747 = vsel %vm3422, %v10643, 0
      %v10750 = vsel %vm3422, %v10644, 0
      %v10753 = vsel %vm3422, %v10645, 0
      %v10756 = vsel %vm3422, %v10646, 0
      %v10759 = vsel %vm3422, %v10647, 0
      %v10762 = vsel %vm3422, %v10648, 0
      %10764 = vmatprep.subr.bf16.mxu0 0
      %10765 = vmatpush1.bf16.msra.mxu0 0
      %10766 = vmatprep.subr.bf16.mxu0 0
      %10767 = vmatpush1.bf16.msra.mxu0 0
      %10768 = vmatprep.subr.bf16.mxu0 0
      %10769 = vmatpush1.bf16.msra.mxu0 0
      %10770 = vmatprep.subr.bf16.mxu0 0
      %10771 = vmatpush1.bf16.msra.mxu0 0
      %10772 = vmatprep.subr.bf16.mxu0 0
      %10773 = vmatpush1.bf16.msra.mxu0 %v10660
      %10774 = vmatprep.subr.bf16.mxu0 0
      %10775 = vmatpush1.bf16.msra.mxu0 %v10659
      %10776 = vmatprep.subr.bf16.mxu0 0
      %10777 = vmatpush1.bf16.msra.mxu0 %v10658
      %10778 = vmatprep.subr.bf16.mxu0 0
      %10779 = vmatpush1.bf16.msra.mxu0 %v10657
      %10780 = vmatprep.subr.bf16.mxu0 0
      %10781 = vmatpush2.bf16.msra.mxu0 0
      %10782 = vmatprep.subr.bf16.mxu0 0
      %10783 = vmatpush2.bf16.msra.mxu0 0
      %10784 = vmatprep.subr.bf16.mxu0 0
      %10785 = vmatpush2.bf16.msra.mxu0 0
      %10786 = vmatprep.subr.bf16.mxu0 0
      %10787 = vmatpush2.bf16.msra.mxu0 0
      %10788 = vmatprep.subr.bf16.mxu0 0
      %10789 = vmatpush2.bf16.msra.mxu0 0
      %10790 = vmatprep.subr.bf16.mxu0 0
      %10791 = vmatpush2.bf16.msra.mxu0 0
      %10792 = vmatprep.subr.bf16.mxu0 0
      %10793 = vmatpush2.bf16.msra.mxu0 0
      %10794 = vmatprep.subr.bf16.mxu0 0
      %10795 = vmatpush2.bf16.msra.mxu0 0
      %10796 = vmatprep.mubr.bf16.mxu0 0
      %10797 = vmatmul.mubr.bf16.gmra.mxu0 %v10669
      %v10798 = vpop.f32.mrf.mxu0
      %v10799 = vadd.f32 %v10666, %v10798
      %v10800 = vpop.f32.mrf.mxu0
      %v10801 = vpop.f32.mrf.mxu0
      %v10802 = vadd.f32 %v10666, %v10801
      %v10803 = vpop.f32.mrf.mxu0
      %10804 = vmatprep.mubr.bf16.mxu0 0
      %10805 = vmatmul.mubr.bf16.gmra.mxu0 %v10672
      %v10806 = vpop.f32.mrf.mxu0
      %v10807 = vadd.f32 %v10666, %v10806
      %v10808 = vpop.f32.mrf.mxu0
      %v10809 = vpop.f32.mrf.mxu0
      %v10810 = vadd.f32 %v10666, %v10809
      %v10811 = vpop.f32.mrf.mxu0
      %10812 = vmatprep.mubr.bf16.mxu0 0
      %10813 = vmatmul.mubr.bf16.gmra.mxu0 %v10675
      %v10814 = vpop.f32.mrf.mxu0
      %v10815 = vadd.f32 %v10666, %v10814
      %v10816 = vpop.f32.mrf.mxu0
      %v10817 = vpop.f32.mrf.mxu0
      %v10818 = vadd.f32 %v10666, %v10817
      %v10819 = vpop.f32.mrf.mxu0
      %10820 = vmatprep.mubr.bf16.mxu0 0
      %10821 = vmatmul.mubr.bf16.gmra.mxu0 %v10678
      %v10822 = vpop.f32.mrf.mxu0
      %v10823 = vadd.f32 %v10666, %v10822
      %v10824 = vpop.f32.mrf.mxu0
      %v10825 = vpop.f32.mrf.mxu0
      %v10826 = vadd.f32 %v10666, %v10825
      %v10827 = vpop.f32.mrf.mxu0
      %10828 = vmatprep.mubr.bf16.mxu0 0
      %10829 = vmatmul.mubr.bf16.gmra.mxu0 %v10681
      %v10830 = vpop.f32.mrf.mxu0
      %v10831 = vadd.f32 %v10666, %v10830
      %v10832 = vpop.f32.mrf.mxu0
      %v10833 = vpop.f32.mrf.mxu0
      %v10834 = vadd.f32 %v10666, %v10833
      %v10835 = vpop.f32.mrf.mxu0
      %10836 = vmatprep.mubr.bf16.mxu0 0
      %10837 = vmatmul.mubr.bf16.gmra.mxu0 %v10684
      %v10838 = vpop.f32.mrf.mxu0
      %v10839 = vadd.f32 %v10666, %v10838
      %v10840 = vpop.f32.mrf.mxu0
      %v10841 = vpop.f32.mrf.mxu0
      %v10842 = vadd.f32 %v10666, %v10841
      %v10843 = vpop.f32.mrf.mxu0
      %10844 = vmatprep.mubr.bf16.mxu0 0
      %10845 = vmatmul.mubr.bf16.gmra.mxu0 %v10687
      %v10846 = vpop.f32.mrf.mxu0
      %v10847 = vadd.f32 %v10666, %v10846
      %v10848 = vpop.f32.mrf.mxu0
      %v10849 = vpop.f32.mrf.mxu0
      %v10850 = vadd.f32 %v10666, %v10849
      %v10851 = vpop.f32.mrf.mxu0
      %10852 = vmatprep.mubr.bf16.mxu0 0
      %10853 = vmatmul.mubr.bf16.gmra.mxu0 %v10690
      %v10854 = vpop.f32.mrf.mxu0
      %v10855 = vadd.f32 %v10666, %v10854
      %v10856 = vpop.f32.mrf.mxu0
      %v10857 = vpop.f32.mrf.mxu0
      %v10858 = vadd.f32 %v10666, %v10857
      %v10859 = vpop.f32.mrf.mxu0
      %10860 = vmatprep.mubr.bf16.mxu0 0
      %10861 = vmatmul.mubr.bf16.gmra.mxu0 %v10693
      %v10862 = vpop.f32.mrf.mxu0
      %v10863 = vadd.f32 %v10666, %v10862
      %v10864 = vpop.f32.mrf.mxu0
      %v10865 = vpop.f32.mrf.mxu0
      %v10866 = vadd.f32 %v10666, %v10865
      %v10867 = vpop.f32.mrf.mxu0
      %10868 = vmatprep.mubr.bf16.mxu0 0
      %10869 = vmatmul.mubr.bf16.gmra.mxu0 %v10696
      %v10870 = vpop.f32.mrf.mxu0
      %v10871 = vadd.f32 %v10666, %v10870
      %v10872 = vpop.f32.mrf.mxu0
      %v10873 = vpop.f32.mrf.mxu0
      %v10874 = vadd.f32 %v10666, %v10873
      %v10875 = vpop.f32.mrf.mxu0
      %10876 = vmatprep.mubr.bf16.mxu0 0
      %10877 = vmatmul.mubr.bf16.gmra.mxu0 %v10699
      %v10878 = vpop.f32.mrf.mxu0
      %v10879 = vadd.f32 %v10666, %v10878
      %v10880 = vpop.f32.mrf.mxu0
      %v10881 = vpop.f32.mrf.mxu0
      %v10882 = vadd.f32 %v10666, %v10881
      %v10883 = vpop.f32.mrf.mxu0
      %10884 = vmatprep.mubr.bf16.mxu0 0
      %10885 = vmatmul.mubr.bf16.gmra.mxu0 %v10702
      %v10886 = vpop.f32.mrf.mxu0
      %v10887 = vadd.f32 %v10666, %v10886
      %v10888 = vpop.f32.mrf.mxu0
      %v10889 = vpop.f32.mrf.mxu0
      %v10890 = vadd.f32 %v10666, %v10889
      %v10891 = vpop.f32.mrf.mxu0
      %10892 = vmatprep.mubr.bf16.mxu0 0
      %10893 = vmatmul.mubr.bf16.gmra.mxu0 %v10705
      %v10894 = vpop.f32.mrf.mxu0
      %v10895 = vadd.f32 %v10666, %v10894
      %v10896 = vpop.f32.mrf.mxu0
      %v10897 = vpop.f32.mrf.mxu0
      %v10898 = vadd.f32 %v10666, %v10897
      %v10899 = vpop.f32.mrf.mxu0
      %10900 = vmatprep.mubr.bf16.mxu0 0
      %10901 = vmatmul.mubr.bf16.gmra.mxu0 %v10708
      %v10902 = vpop.f32.mrf.mxu0
      %v10903 = vadd.f32 %v10666, %v10902
      %v10904 = vpop.f32.mrf.mxu0
      %v10905 = vpop.f32.mrf.mxu0
      %v10906 = vadd.f32 %v10666, %v10905
      %v10907 = vpop.f32.mrf.mxu0
      %10908 = vmatprep.mubr.bf16.mxu0 0
      %10909 = vmatmul.mubr.bf16.gmra.mxu0 %v10711
      %v10910 = vpop.f32.mrf.mxu0
      %v10911 = vadd.f32 %v10666, %v10910
      %v10912 = vpop.f32.mrf.mxu0
      %v10913 = vpop.f32.mrf.mxu0
      %v10914 = vadd.f32 %v10666, %v10913
      %v10915 = vpop.f32.mrf.mxu0
      %10916 = vmatprep.mubr.bf16.mxu0 0
      %10917 = vmatmul.mubr.bf16.gmra.mxu0 %v10714
      %v10918 = vpop.f32.mrf.mxu0
      %v10919 = vadd.f32 %v10666, %v10918
      %v10920 = vpop.f32.mrf.mxu0
      %v10921 = vpop.f32.mrf.mxu0
      %v10922 = vadd.f32 %v10666, %v10921
      %v10923 = vpop.f32.mrf.mxu0
      %10924 = vmatprep.mubr.bf16.mxu0 0
      %10925 = vmatmul.mubr.bf16.gmra.mxu0 %v10717
      %v10926 = vpop.f32.mrf.mxu0
      %v10927 = vadd.f32 %v10666, %v10926
      %v10928 = vpop.f32.mrf.mxu0
      %v10929 = vpop.f32.mrf.mxu0
      %v10930 = vadd.f32 %v10666, %v10929
      %v10931 = vpop.f32.mrf.mxu0
      %10932 = vmatprep.mubr.bf16.mxu0 0
      %10933 = vmatmul.mubr.bf16.gmra.mxu0 %v10720
      %v10934 = vpop.f32.mrf.mxu0
      %v10935 = vadd.f32 %v10666, %v10934
      %v10936 = vpop.f32.mrf.mxu0
      %v10937 = vpop.f32.mrf.mxu0
      %v10938 = vadd.f32 %v10666, %v10937
      %v10939 = vpop.f32.mrf.mxu0
      %10940 = vmatprep.mubr.bf16.mxu0 0
      %10941 = vmatmul.mubr.bf16.gmra.mxu0 %v10723
      %v10942 = vpop.f32.mrf.mxu0
      %v10943 = vadd.f32 %v10666, %v10942
      %v10944 = vpop.f32.mrf.mxu0
      %v10945 = vpop.f32.mrf.mxu0
      %v10946 = vadd.f32 %v10666, %v10945
      %v10947 = vpop.f32.mrf.mxu0
      %10948 = vmatprep.mubr.bf16.mxu0 0
      %10949 = vmatmul.mubr.bf16.gmra.mxu0 %v10726
      %v10950 = vpop.f32.mrf.mxu0
      %v10951 = vadd.f32 %v10666, %v10950
      %v10952 = vpop.f32.mrf.mxu0
      %v10953 = vpop.f32.mrf.mxu0
      %v10954 = vadd.f32 %v10666, %v10953
      %v10955 = vpop.f32.mrf.mxu0
      %10956 = vmatprep.mubr.bf16.mxu0 0
      %10957 = vmatmul.mubr.bf16.gmra.mxu0 %v10729
      %v10958 = vpop.f32.mrf.mxu0
      %v10959 = vadd.f32 %v10666, %v10958
      %v10960 = vpop.f32.mrf.mxu0
      %v10961 = vpop.f32.mrf.mxu0
      %v10962 = vadd.f32 %v10666, %v10961
      %v10963 = vpop.f32.mrf.mxu0
      %10964 = vmatprep.mubr.bf16.mxu0 0
      %10965 = vmatmul.mubr.bf16.gmra.mxu0 %v10732
      %v10966 = vpop.f32.mrf.mxu0
      %v10967 = vadd.f32 %v10666, %v10966
      %v10968 = vpop.f32.mrf.mxu0
      %v10969 = vpop.f32.mrf.mxu0
      %v10970 = vadd.f32 %v10666, %v10969
      %v10971 = vpop.f32.mrf.mxu0
      %10972 = vmatprep.mubr.bf16.mxu0 0
      %10973 = vmatmul.mubr.bf16.gmra.mxu0 %v10735
      %v10974 = vpop.f32.mrf.mxu0
      %v10975 = vadd.f32 %v10666, %v10974
      %v10976 = vpop.f32.mrf.mxu0
      %v10977 = vpop.f32.mrf.mxu0
      %v10978 = vadd.f32 %v10666, %v10977
      %v10979 = vpop.f32.mrf.mxu0
      %10980 = vmatprep.mubr.bf16.mxu0 0
      %10981 = vmatmul.mubr.bf16.gmra.mxu0 %v10738
      %v10982 = vpop.f32.mrf.mxu0
      %v10983 = vadd.f32 %v10666, %v10982
      %v10984 = vpop.f32.mrf.mxu0
      %v10985 = vpop.f32.mrf.mxu0
      %v10986 = vadd.f32 %v10666, %v10985
      %v10987 = vpop.f32.mrf.mxu0
      %10988 = vmatprep.mubr.bf16.mxu0 0
      %10989 = vmatmul.mubr.bf16.gmra.mxu0 %v10741
      %v10990 = vpop.f32.mrf.mxu0
      %v10991 = vadd.f32 %v10666, %v10990
      %v10992 = vpop.f32.mrf.mxu0
      %v10993 = vpop.f32.mrf.mxu0
      %v10994 = vadd.f32 %v10666, %v10993
      %v10995 = vpop.f32.mrf.mxu0
      %10996 = vmatprep.mubr.bf16.mxu0 0
      %10997 = vmatmul.mubr.bf16.gmra.mxu0 %v10744
      %v10998 = vpop.f32.mrf.mxu0
      %v10999 = vadd.f32 %v10666, %v10998
      %v11000 = vpop.f32.mrf.mxu0
      %v11001 = vpop.f32.mrf.mxu0
      %v11002 = vadd.f32 %v10666, %v11001
      %v11003 = vpop.f32.mrf.mxu0
      %11004 = vmatprep.mubr.bf16.mxu0 0
      %11005 = vmatmul.mubr.bf16.gmra.mxu0 %v10747
      %v11006 = vpop.f32.mrf.mxu0
      %v11007 = vadd.f32 %v10666, %v11006
      %v11008 = vpop.f32.mrf.mxu0
      %v11009 = vpop.f32.mrf.mxu0
      %v11010 = vadd.f32 %v10666, %v11009
      %v11011 = vpop.f32.mrf.mxu0
      %11012 = vmatprep.mubr.bf16.mxu0 0
      %11013 = vmatmul.mubr.bf16.gmra.mxu0 %v10750
      %v11014 = vpop.f32.mrf.mxu0
      %v11015 = vadd.f32 %v10666, %v11014
      %v11016 = vpop.f32.mrf.mxu0
      %v11017 = vpop.f32.mrf.mxu0
      %v11018 = vadd.f32 %v10666, %v11017
      %v11019 = vpop.f32.mrf.mxu0
      %11020 = vmatprep.mubr.bf16.mxu0 0
      %11021 = vmatmul.mubr.bf16.gmra.mxu0 %v10753
      %v11022 = vpop.f32.mrf.mxu0
      %v11023 = vadd.f32 %v10666, %v11022
      %v11024 = vpop.f32.mrf.mxu0
      %v11025 = vpop.f32.mrf.mxu0
      %v11026 = vadd.f32 %v10666, %v11025
      %v11027 = vpop.f32.mrf.mxu0
      %11028 = vmatprep.mubr.bf16.mxu0 0
      %11029 = vmatmul.mubr.bf16.gmra.mxu0 %v10756
      %v11030 = vpop.f32.mrf.mxu0
      %v11031 = vadd.f32 %v10666, %v11030
      %v11032 = vpop.f32.mrf.mxu0
      %v11033 = vpop.f32.mrf.mxu0
      %v11034 = vadd.f32 %v10666, %v11033
      %v11035 = vpop.f32.mrf.mxu0
      %11036 = vmatprep.mubr.bf16.mxu0 0
      %11037 = vmatmul.mubr.bf16.gmra.mxu0 %v10759
      %v11038 = vpop.f32.mrf.mxu0
      %v11039 = vadd.f32 %v10666, %v11038
      %v11040 = vpop.f32.mrf.mxu0
      %v11041 = vpop.f32.mrf.mxu0
      %v11042 = vadd.f32 %v10666, %v11041
      %v11043 = vpop.f32.mrf.mxu0
      %11044 = vmatprep.mubr.bf16.mxu0 0
      %11045 = vmatmul.mubr.bf16.gmra.mxu0 %v10762
      %v11046 = vpop.f32.mrf.mxu0
      %v11047 = vadd.f32 %v10666, %v11046
      %v11048 = vpop.f32.mrf.mxu0
      %v11049 = vpop.f32.mrf.mxu0
      %v11050 = vadd.f32 %v10666, %v11049
      %v11051 = vpop.f32.mrf.mxu0
      %11052 = vdwg.mxu0
      %v11053 = vadd.f32 %v8573, %v10799
      %v11054 = vadd.f32 %v8574, %v10802
      %v11055 = vadd.f32 %v8575, %v10807
      %v11056 = vadd.f32 %v8576, %v10810
      %v11057 = vadd.f32 %v8577, %v10815
      %v11058 = vadd.f32 %v8578, %v10818
      %v11059 = vadd.f32 %v8579, %v10823
      %v11060 = vadd.f32 %v8580, %v10826
      %v11061 = vadd.f32 %v8581, %v10831
      %v11062 = vadd.f32 %v8582, %v10834
      %v11063 = vadd.f32 %v8583, %v10839
      %v11064 = vadd.f32 %v8584, %v10842
      %v11065 = vadd.f32 %v8585, %v10847
      %v11066 = vadd.f32 %v8586, %v10850
      %v11067 = vadd.f32 %v8587, %v10855
      %v11068 = vadd.f32 %v8588, %v10858
      %v11069 = vadd.f32 %v8589, %v10863
      %v11070 = vadd.f32 %v8590, %v10866
      %v11071 = vadd.f32 %v8591, %v10871
      %v11072 = vadd.f32 %v8592, %v10874
      %v11073 = vadd.f32 %v8593, %v10879
      %v11074 = vadd.f32 %v8594, %v10882
      %v11075 = vadd.f32 %v8595, %v10887
      %v11076 = vadd.f32 %v8596, %v10890
      %v11077 = vadd.f32 %v8597, %v10895
      %v11078 = vadd.f32 %v8598, %v10898
      %v11079 = vadd.f32 %v8599, %v10903
      %v11080 = vadd.f32 %v8600, %v10906
      %v11081 = vadd.f32 %v8601, %v10911
      %v11082 = vadd.f32 %v8602, %v10914
      %v11083 = vadd.f32 %v8603, %v10919
      %v11084 = vadd.f32 %v8604, %v10922
      %v11085 = vadd.f32 %v8605, %v10927
      %v11086 = vadd.f32 %v8606, %v10930
      %v11087 = vadd.f32 %v8607, %v10935
      %v11088 = vadd.f32 %v8608, %v10938
      %v11089 = vadd.f32 %v8609, %v10943
      %v11090 = vadd.f32 %v8610, %v10946
      %v11091 = vadd.f32 %v8611, %v10951
      %v11092 = vadd.f32 %v8612, %v10954
      %v11093 = vadd.f32 %v8613, %v10959
      %v11094 = vadd.f32 %v8614, %v10962
      %v11095 = vadd.f32 %v8615, %v10967
      %v11096 = vadd.f32 %v8616, %v10970
      %v11097 = vadd.f32 %v8617, %v10975
      %v11098 = vadd.f32 %v8618, %v10978
      %v11099 = vadd.f32 %v8619, %v10983
      %v11100 = vadd.f32 %v8620, %v10986
      %v11101 = vadd.f32 %v8621, %v10991
      %v11102 = vadd.f32 %v8622, %v10994
      %v11103 = vadd.f32 %v8623, %v10999
      %v11104 = vadd.f32 %v8624, %v11002
      %v11105 = vadd.f32 %v8625, %v11007
      %v11106 = vadd.f32 %v8626, %v11010
      %v11107 = vadd.f32 %v8627, %v11015
      %v11108 = vadd.f32 %v8628, %v11018
      %v11109 = vadd.f32 %v8629, %v11023
      %v11110 = vadd.f32 %v8630, %v11026
      %v11111 = vadd.f32 %v8631, %v11031
      %v11112 = vadd.f32 %v8632, %v11034
      %v11113 = vadd.f32 %v8633, %v11039
      %v11114 = vadd.f32 %v8634, %v11042
      %v11115 = vadd.f32 %v8635, %v11047
      %v11116 = vadd.f32 %v8636, %v11050
      %11117 = vst.msk [vmem:[%s494] sm:$0xff] %vm562, %v11053
      %11118 = vst.msk [vmem:[%s494 + $0x8] sm:$0xff] %vm562, %v11054
      %11119 = vst.msk [vmem:[%s494 + $0x10] sm:$0xff] %vm562, %v11055
      %11120 = vst.msk [vmem:[%s494 + $0x18] sm:$0xff] %vm562, %v11056
      %11121 = vst.msk [vmem:[%s494 + $0x20] sm:$0xff] %vm562, %v11057
      %11122 = vst.msk [vmem:[%s494 + $0x28] sm:$0xff] %vm562, %v11058
      %11123 = vst.msk [vmem:[%s494 + $0x30] sm:$0xff] %vm562, %v11059
      %11124 = vst.msk [vmem:[%s494 + $0x38] sm:$0xff] %vm562, %v11060
      %11125 = vst.msk [vmem:[%s494 + $0x40] sm:$0xff] %vm562, %v11061
      %11126 = vst.msk [vmem:[%s494 + $0x48] sm:$0xff] %vm562, %v11062
      %11127 = vst.msk [vmem:[%s494 + $0x50] sm:$0xff] %vm562, %v11063
      %11128 = vst.msk [vmem:[%s494 + $0x58] sm:$0xff] %vm562, %v11064
      %11129 = vst.msk [vmem:[%s494 + $0x60] sm:$0xff] %vm562, %v11065
      %11130 = vst.msk [vmem:[%s494 + $0x68] sm:$0xff] %vm562, %v11066
      %11131 = vst.msk [vmem:[%s494 + $0x70] sm:$0xff] %vm562, %v11067
      %11132 = vst.msk [vmem:[%s494 + $0x78] sm:$0xff] %vm562, %v11068
      %11133 = vst.msk [vmem:[%s494 + $0x80] sm:$0xff] %vm562, %v11069
      %11134 = vst.msk [vmem:[%s494 + $0x88] sm:$0xff] %vm562, %v11070
      %11135 = vst.msk [vmem:[%s494 + $0x90] sm:$0xff] %vm562, %v11071
      %11136 = vst.msk [vmem:[%s494 + $0x98] sm:$0xff] %vm562, %v11072
      %11137 = vst.msk [vmem:[%s494 + $0xa0] sm:$0xff] %vm562, %v11073
      %11138 = vst.msk [vmem:[%s494 + $0xa8] sm:$0xff] %vm562, %v11074
      %11139 = vst.msk [vmem:[%s494 + $0xb0] sm:$0xff] %vm562, %v11075
      %11140 = vst.msk [vmem:[%s494 + $0xb8] sm:$0xff] %vm562, %v11076
      %11141 = vst.msk [vmem:[%s494 + $0xc0] sm:$0xff] %vm562, %v11077
      %11142 = vst.msk [vmem:[%s494 + $0xc8] sm:$0xff] %vm562, %v11078
      %11143 = vst.msk [vmem:[%s494 + $0xd0] sm:$0xff] %vm562, %v11079
      %11144 = vst.msk [vmem:[%s494 + $0xd8] sm:$0xff] %vm562, %v11080
      %11145 = vst.msk [vmem:[%s494 + $0xe0] sm:$0xff] %vm562, %v11081
      %11146 = vst.msk [vmem:[%s494 + $0xe8] sm:$0xff] %vm562, %v11082
      %11147 = vst.msk [vmem:[%s494 + $0xf0] sm:$0xff] %vm562, %v11083
      %11148 = vst.msk [vmem:[%s494 + $0xf8] sm:$0xff] %vm562, %v11084
      %11149 = vst.msk [vmem:[%s494 + $0x100] sm:$0xff] %vm562, %v11085
      %11150 = vst.msk [vmem:[%s494 + $0x108] sm:$0xff] %vm562, %v11086
      %11151 = vst.msk [vmem:[%s494 + $0x110] sm:$0xff] %vm562, %v11087
      %11152 = vst.msk [vmem:[%s494 + $0x118] sm:$0xff] %vm562, %v11088
      %11153 = vst.msk [vmem:[%s494 + $0x120] sm:$0xff] %vm562, %v11089
      %11154 = vst.msk [vmem:[%s494 + $0x128] sm:$0xff] %vm562, %v11090
      %11155 = vst.msk [vmem:[%s494 + $0x130] sm:$0xff] %vm562, %v11091
      %11156 = vst.msk [vmem:[%s494 + $0x138] sm:$0xff] %vm562, %v11092
      %11157 = vst.msk [vmem:[%s494 + $0x140] sm:$0xff] %vm562, %v11093
      %11158 = vst.msk [vmem:[%s494 + $0x148] sm:$0xff] %vm562, %v11094
      %11159 = vst.msk [vmem:[%s494 + $0x150] sm:$0xff] %vm562, %v11095
      %11160 = vst.msk [vmem:[%s494 + $0x158] sm:$0xff] %vm562, %v11096
      %11161 = vst.msk [vmem:[%s494 + $0x160] sm:$0xff] %vm562, %v11097
      %11162 = vst.msk [vmem:[%s494 + $0x168] sm:$0xff] %vm562, %v11098
      %11163 = vst.msk [vmem:[%s494 + $0x170] sm:$0xff] %vm562, %v11099
      %11164 = vst.msk [vmem:[%s494 + $0x178] sm:$0xff] %vm562, %v11100
      %11165 = vst.msk [vmem:[%s494 + $0x180] sm:$0xff] %vm562, %v11101
      %11166 = vst.msk [vmem:[%s494 + $0x188] sm:$0xff] %vm562, %v11102
      %11167 = vst.msk [vmem:[%s494 + $0x190] sm:$0xff] %vm562, %v11103
      %11168 = vst.msk [vmem:[%s494 + $0x198] sm:$0xff] %vm562, %v11104
      %11169 = vst.msk [vmem:[%s494 + $0x1a0] sm:$0xff] %vm562, %v11105
      %11170 = vst.msk [vmem:[%s494 + $0x1a8] sm:$0xff] %vm562, %v11106
      %11171 = vst.msk [vmem:[%s494 + $0x1b0] sm:$0xff] %vm562, %v11107
      %11172 = vst.msk [vmem:[%s494 + $0x1b8] sm:$0xff] %vm562, %v11108
      %11173 = vst.msk [vmem:[%s494 + $0x1c0] sm:$0xff] %vm562, %v11109
      %11174 = vst.msk [vmem:[%s494 + $0x1c8] sm:$0xff] %vm562, %v11110
      %11175 = vst.msk [vmem:[%s494 + $0x1d0] sm:$0xff] %vm562, %v11111
      %11176 = vst.msk [vmem:[%s494 + $0x1d8] sm:$0xff] %vm562, %v11112
      %11177 = vst.msk [vmem:[%s494 + $0x1e0] sm:$0xff] %vm562, %v11113
      %11178 = vst.msk [vmem:[%s494 + $0x1e8] sm:$0xff] %vm562, %v11114
      %11179 = vst.msk [vmem:[%s494 + $0x1f0] sm:$0xff] %vm562, %v11115
      %11180 = vst.msk [vmem:[%s494 + $0x1f8] sm:$0xff] %vm562, %v11116
      %p11181 = scmp.lt.s32.totalorder %s26, 1
      %s11182 = scalar_select %p11181, %s26, 1
      %s11183 = smul.addr %s11182, 64
      %s11184 = smul.addr %s11183, 8
      %s11185 = scalar_lea.vmem %s15, %s11184
      // Predicated region
      $region81: #{_lambda_.1} parent=79 // pred_check
        %p11186 = pneg %p364
      $region82: #{_lambda_.1} parent=79 // pred_check_branch
        %11188 = sbr.rel (%p11186) target = $region84
      $region83: #{_lambda_.1} parent=79 // pred_region
        _
      $region84: #{_lambda_.1} parent=79 // pred_fallthru
        _
    $region80: #{_lambda_.1} parent=5 // pred_fallthru
      _
    %p11189 = scmp.le.s32.totalorder 2, %s21
    // Predicated region
    $region85: #{_lambda_.1} parent=5 // pred_check
      %p11190 = pneg %p11189
    $region86: #{_lambda_.1} parent=5 // pred_check_branch
      %11192 = sbr.rel (%p11190) target = $region88
    $region87: #{_lambda_.1} parent=5 // pred_region
      %s11193 = ssub.s32 %s21, 2
      // Predicated region
      $region89: #{_lambda_.1} parent=87 // pred_check
        %p11194 = pneg %p370
      $region90: #{_lambda_.1} parent=87 // pred_check_branch
        %11196 = sbr.rel (%p11194) target = $region92
      $region91: #{_lambda_.1} parent=87 // pred_region
        %p11197 = scmp.lt.s32.totalorder %s27, 1
        %s11198 = scalar_select %p11197, %s27, 1
        %s11199 = smul.addr %s11198, 64
        %s11200 = smul.addr %s11199, 8
        %s11201 = scalar_lea.vmem %s15, %s11200
      $region92: #{_lambda_.1} parent=87 // pred_fallthru
        _
    $region88: #{_lambda_.1} parent=5 // pred_fallthru
      _
  $region6: #{_lambda_.1} parent=0 // loop_footer
    %s25 = sadd.s32 1, %s21
  $region7: #{_lambda_.1} parent=0 // loop_footer_branch
    %20 = sbr.rel target = $region3
  $region8: #{_lambda_.1} parent=0 // loop_exit
    _

</llo_original>
